<compile_context>
chip_gen: v7x
topology: tpu7x:2x2x1
jax: 0.10.0
libtpu: 0.0.40
codegen_flags: <defaults>
</compile_context>

<pallas_src>
import jax
import jax.numpy as jnp
from jax.experimental import pallas as pl
from jax.experimental.pallas import tpu as pltpu

C1, C2, C3, NCLS = 16, 32, 64, 15


# ---------------------------------------------------------------------------
# Host-side (prepare-time) constant builders
# ---------------------------------------------------------------------------
def _banded_conv_matrices(w, w_in):
    """w: (kH, kW, Cin, Cout) -> (kH, w_in*Cin, w_in*Cout) banded matrices.

    Row index = w_in_pos*Cin + ci, col index = w_out_pos*Cout + co.  Width
    zero-padding (padding=1) is encoded by the band validity.
    """
    kH, kW, cin, cout = w.shape
    pad = (kW - 1) // 2
    row = jnp.arange(w_in)[:, None]
    col = jnp.arange(w_in)[None, :]
    blocks = []
    for kh in range(kH):
        m = jnp.zeros((w_in * cin, w_in * cout), jnp.float32)
        for kw in range(kW):
            s = (row == col + (kw - pad)).astype(jnp.float32)
            m = m + jnp.kron(s, w[kh, kw].astype(jnp.float32))
        blocks.append(m)
    return jnp.stack(blocks)


def _row_pool_selectors(h_out, h_in):
    """(2, h_out, h_in) 0/1 matrices selecting even / odd rows."""
    i = jnp.arange(h_out)[:, None]
    j = jnp.arange(h_in)[None, :]
    return jnp.stack([(j == 2 * i).astype(jnp.float32),
                      (j == 2 * i + 1).astype(jnp.float32)])


def _lane_pool_selectors(w_in, w_out, c):
    """(2, w_in*c, w_out*c) 0/1 matrices selecting even / odd w-blocks of size c."""
    r = jnp.arange(w_in * c)[:, None]
    k = jnp.arange(w_out * c)[None, :]

    def sel(off):
        return ((r // c == 2 * (k // c) + off) & (r % c == k % c)).astype(jnp.float32)

    return jnp.stack([sel(0), sel(1)])


def init_params(key, input_hw):
    H, W = input_hw
    keys = iter(jax.random.split(key, 8))

    def conv_p(cin, cout):
        bound = 1.0 / (3 * 3 * cin) ** 0.5
        w = jax.random.uniform(next(keys), (3, 3, cin, cout), jnp.float32, -bound, bound)
        b = jax.random.uniform(next(keys), (cout,), jnp.float32, -bound, bound)
        return w, b

    p = {}
    p["conv1_w"], p["conv1_b"] = conv_p(1, C1)
    p["conv2_w"], p["conv2_b"] = conv_p(C1, C2)
    p["conv3_w"], p["conv3_b"] = conv_p(C2, C3)
    fc_in = C3 * (H // 4) * (W // 4)
    bound = 1.0 / fc_in ** 0.5
    # fc1_w rows are in (h, w, c) flatten order (NHWC); equivalent to the PyTorch
    # NCHW flatten up to a fixed permutation of rows (weights are ours to init).
    p["fc1_w"] = jax.random.uniform(next(keys), (fc_in, NCLS), jnp.float32, -bound, bound)
    p["fc1_b"] = jax.random.uniform(next(keys), (NCLS,), jnp.float32, -bound, bound)
    return p


def prepare_params(params, input_hw):
    """One-time transform into the kernel-ready (banded / tiled / bf16) form."""
    H, W = input_hw
    H1, W1, H2, W2 = H // 2, W // 2, H // 4, W // 4
    wdt = jnp.bfloat16
    return {
        "m1": _banded_conv_matrices(params["conv1_w"], W).astype(wdt),
        "b1t": jnp.tile(params["conv1_b"], W)[None, :].astype(jnp.float32),
        "rs1": _row_pool_selectors(H1, H).astype(wdt),
        "cs1": _lane_pool_selectors(W, W1, C1).astype(wdt),
        "m2": _banded_conv_matrices(params["conv2_w"], W1).astype(wdt),
        "b2t": jnp.tile(params["conv2_b"], W1)[None, :].astype(jnp.float32),
        "rs2": _row_pool_selectors(H2, H1).astype(wdt),
        "cs2": _lane_pool_selectors(W1, W2, C2).astype(wdt),
        "m3": _banded_conv_matrices(params["conv3_w"], W2).astype(wdt),
        "b3t": jnp.tile(params["conv3_b"], W2)[None, :].astype(jnp.float32),
        "wf": params["fc1_w"].reshape(H2, W2 * C3, NCLS).astype(wdt),
        "bfc": params["fc1_b"][None, :].astype(jnp.float32),
    }


# ---------------------------------------------------------------------------
# Pallas kernel (whole forward, one batch element per grid step)
# ---------------------------------------------------------------------------
def _conv3x3_relu(src, s_ref, m_ref, b_ref):
    """src: (H, W*Cin) f32 -> relu(conv3x3_same(src) + b) as (H, W*Cout) f32."""
    h = s_ref.shape[0] - 2
    s_ref[...] = jnp.zeros_like(s_ref)          # zero rows 0 and h+1 = H padding
    s_ref[1:h + 1, :] = src
    acc = b_ref[...].astype(jnp.float32)        # (1, W*Cout), broadcasts over rows
    for kh in range(3):
        acc = acc + jnp.dot(s_ref[kh:kh + h, :].astype(m_ref.dtype), m_ref[kh],
                            preferred_element_type=jnp.float32)
    return jnp.maximum(acc, 0.0)


def _maxpool2x2(a, rs_ref, cs_ref):
    """a: (H, W*C) f32 -> (H//2, (W//2)*C) f32 via selection matmuls + max."""
    wdt = rs_ref.dtype
    ab = a.astype(wdt)
    t = jnp.maximum(jnp.dot(rs_ref[0], ab, preferred_element_type=jnp.float32),
                    jnp.dot(rs_ref[1], ab, preferred_element_type=jnp.float32))
    tb = t.astype(wdt)
    return jnp.maximum(jnp.dot(tb, cs_ref[0], preferred_element_type=jnp.float32),
                       jnp.dot(tb, cs_ref[1], preferred_element_type=jnp.float32))


def _loccnn1_kernel(x_ref, m1_ref, b1_ref, rs1_ref, cs1_ref,
                    m2_ref, b2_ref, rs2_ref, cs2_ref,
                    m3_ref, b3_ref, wf_ref, bfc_ref,
                    out_ref, s1_ref, s2_ref, s3_ref):
    a1 = _conv3x3_relu(x_ref[...], s1_ref, m1_ref, b1_ref)   # (H,  W *16)
    p1 = _maxpool2x2(a1, rs1_ref, cs1_ref)                   # (H1, W1*16)
    a2 = _conv3x3_relu(p1, s2_ref, m2_ref, b2_ref)           # (H1, W1*32)
    p2 = _maxpool2x2(a2, rs2_ref, cs2_ref)                   # (H2, W2*32)
    a3 = _conv3x3_relu(p2, s3_ref, m3_ref, b3_ref)           # (H2, W2*64)

    # fc1: flatten in (h, w, c) order == per-row dots against wf (H2, W2*64, 15)
    acc = bfc_ref[...].astype(jnp.float32)                   # (1, 15)
    for h in range(wf_ref.shape[0]):
        acc = acc + jnp.dot(a3[h:h + 1, :].astype(wf_ref.dtype), wf_ref[h],
                            preferred_element_type=jnp.float32)
    out_ref[...] = acc


def loc_cnn1_forward(prep, x_nchw):
    B, cin, H, W = x_nchw.shape
    assert cin == 1 and H % 4 == 0 and W % 4 == 0
    H1, W1, H2, W2 = H // 2, W // 2, H // 4, W // 4
    x = x_nchw[:, 0, :, :].astype(jnp.float32)               # (B, H, W)

    def full(a):
        n = a.ndim
        return pl.BlockSpec(a.shape, lambda b, n=n: (0,) * n)

    args = (x, prep["m1"], prep["b1t"], prep["rs1"], prep["cs1"],
            prep["m2"], prep["b2t"], prep["rs2"], prep["cs2"],
            prep["m3"], prep["b3t"], prep["wf"], prep["bfc"])
    in_specs = [pl.BlockSpec((None, H, W), lambda b: (b, 0, 0))]
    in_specs += [full(a) for a in args[1:]]

    out = pl.pallas_call(
        _loccnn1_kernel,
        out_shape=jax.ShapeDtypeStruct((B, 1, NCLS), jnp.float32),
        grid=(B,),
        in_specs=in_specs,
        out_specs=pl.BlockSpec((None, 1, NCLS), lambda b: (b, 0, 0)),
        scratch_shapes=[
            pltpu.VMEM((H + 2, W), jnp.float32),        # conv1 row-padded input
            pltpu.VMEM((H1 + 2, W1 * C1), jnp.float32),  # conv2 row-padded input
            pltpu.VMEM((H2 + 2, W2 * C2), jnp.float32),  # conv3 row-padded input
        ],
        compiler_params=pltpu.CompilerParams(
            dimension_semantics=("parallel",),
            vmem_limit_bytes=32 * 1024 * 1024),
    )(*args)
    return out[:, 0, :]


# ---------------------------------------------------------------------------
# Pure-JAX reference (f32) for a correctness check
# ---------------------------------------------------------------------------
def _reference_forward(params, x_nchw):
    x = jnp.transpose(x_nchw, (0, 2, 3, 1)).astype(jnp.float32)  # NHWC

    def conv(x, w, b):
        y = jax.lax.conv_general_dilated(
            x, w.astype(jnp.float32), window_strides=(1, 1), padding="SAME",
            dimension_numbers=("NHWC", "HWIO", "NHWC"))
        return jax.nn.relu(y + b)

    def pool(x):
        return jax.lax.reduce_window(x, -jnp.inf, jax.lax.max,
                                     (1, 2, 2, 1), (1, 2, 2, 1), "VALID")

    y = pool(conv(x, params["conv1_w"], params["conv1_b"]))
    y = pool(conv(y, params["conv2_w"], params["conv2_b"]))
    y = conv(y, params["conv3_w"], params["conv3_b"])
    flat = y.reshape(y.shape[0], -1)                 # (h, w, c) flatten order
    return flat @ params["fc1_w"] + params["fc1_b"]


if __name__ == "__main__":
    key = jax.random.PRNGKey(0)
    pkey, xkey = jax.random.split(key)

    B, H, W = 2, 32, 32
    params = init_params(pkey, (H, W))
    prep = prepare_params(params, (H, W))
    x = jax.random.normal(xkey, (B, 1, H, W), jnp.float32)

    fwd = jax.jit(loc_cnn1_forward)
    out = jax.block_until_ready(fwd(prep, x))

    assert out.shape == (B, NCLS), out.shape
    assert bool(jnp.all(jnp.isfinite(out)))

    ref = _reference_forward(params, x)
    err = float(jnp.max(jnp.abs(out - ref)))
    scale = float(jnp.max(jnp.abs(ref))) + 1e-6
    assert err / scale < 0.05, (err, scale)   # bf16-weight tolerance

    print("KERNEL_OK")
</pallas_src>

<mosaic_0001>
module attributes {stable_mosaic.version = 11 : i64} {
  func.func @_loccnn1_kernel(%arg0: i32, %arg1: memref<1x32x32xf32, #tpu.memory_space<vmem>>, %arg2: memref<3x32x512xbf16, #tpu.memory_space<vmem>>, %arg3: memref<1x512xf32, #tpu.memory_space<vmem>>, %arg4: memref<2x16x32xbf16, #tpu.memory_space<vmem>>, %arg5: memref<2x512x256xbf16, #tpu.memory_space<vmem>>, %arg6: memref<3x256x512xbf16, #tpu.memory_space<vmem>>, %arg7: memref<1x512xf32, #tpu.memory_space<vmem>>, %arg8: memref<2x8x16xbf16, #tpu.memory_space<vmem>>, %arg9: memref<2x512x256xbf16, #tpu.memory_space<vmem>>, %arg10: memref<3x256x512xbf16, #tpu.memory_space<vmem>>, %arg11: memref<1x512xf32, #tpu.memory_space<vmem>>, %arg12: memref<8x512x15xbf16, #tpu.memory_space<vmem>>, %arg13: memref<1x15xf32, #tpu.memory_space<vmem>>, %arg14: memref<1x1x15xf32, #tpu.memory_space<vmem>>, %arg15: memref<34x32xf32, #tpu.memory_space<vmem>>, %arg16: memref<18x256xf32, #tpu.memory_space<vmem>>, %arg17: memref<10x256xf32, #tpu.memory_space<vmem>>) attributes {dimension_semantics = [#tpu.dimension_semantics<parallel>], iteration_bounds = array<i64: 2>, scalar_prefetch = 0 : i64, scratch_operands = 3 : i64, tpu.core_type = #tpu.core_type<tc>, window_params = [{transform_indices = @transform_0, window_bounds = array<i64: 1, 32, 32>}, {pipeline_mode = #tpu.pipeline_mode<synchronous>, transform_indices = @transform_1, window_bounds = array<i64: 3, 32, 512>}, {pipeline_mode = #tpu.pipeline_mode<synchronous>, transform_indices = @transform_2, window_bounds = array<i64: 1, 512>}, {pipeline_mode = #tpu.pipeline_mode<synchronous>, transform_indices = @transform_3, window_bounds = array<i64: 2, 16, 32>}, {pipeline_mode = #tpu.pipeline_mode<synchronous>, transform_indices = @transform_4, window_bounds = array<i64: 2, 512, 256>}, {pipeline_mode = #tpu.pipeline_mode<synchronous>, transform_indices = @transform_5, window_bounds = array<i64: 3, 256, 512>}, {pipeline_mode = #tpu.pipeline_mode<synchronous>, transform_indices = @transform_6, window_bounds = array<i64: 1, 512>}, {pipeline_mode = #tpu.pipeline_mode<synchronous>, transform_indices = @transform_7, window_bounds = array<i64: 2, 8, 16>}, {pipeline_mode = #tpu.pipeline_mode<synchronous>, transform_indices = @transform_8, window_bounds = array<i64: 2, 512, 256>}, {pipeline_mode = #tpu.pipeline_mode<synchronous>, transform_indices = @transform_9, window_bounds = array<i64: 3, 256, 512>}, {pipeline_mode = #tpu.pipeline_mode<synchronous>, transform_indices = @transform_10, window_bounds = array<i64: 1, 512>}, {pipeline_mode = #tpu.pipeline_mode<synchronous>, transform_indices = @transform_11, window_bounds = array<i64: 8, 512, 15>}, {pipeline_mode = #tpu.pipeline_mode<synchronous>, transform_indices = @transform_12, window_bounds = array<i64: 1, 15>}, {transform_indices = @transform_13, window_bounds = array<i64: 1, 1, 15>}]} {
    %c0 = arith.constant 0 : index
    %c0_0 = arith.constant 0 : index
    %c0_1 = arith.constant 0 : index
    %0 = vector.load %arg1[%c0, %c0_0, %c0_1] : memref<1x32x32xf32, #tpu.memory_space<vmem>>, vector<1x32x32xf32>
    %1 = vector.shape_cast %0 : vector<1x32x32xf32> to vector<32x32xf32>
    %cst = arith.constant 0.000000e+00 : f32
    %2 = vector.broadcast %cst : f32 to vector<34x32xf32>
    %c0_2 = arith.constant 0 : index
    %c0_3 = arith.constant 0 : index
    %3 = vector.load %arg15[%c0_2, %c0_3] : memref<34x32xf32, #tpu.memory_space<vmem>>, vector<34x32xf32>
    tpu.vector_store %arg15[%c0_2, %c0_3], %2 {strides = array<i32>} : memref<34x32xf32, #tpu.memory_space<vmem>>, vector<34x32xf32>,
    %c1 = arith.constant 1 : index
    %c0_4 = arith.constant 0 : index
    %4 = vector.load %arg15[%c1, %c0_4] : memref<34x32xf32, #tpu.memory_space<vmem>>, vector<32x32xf32>
    tpu.vector_store %arg15[%c1, %c0_4], %1 {strides = array<i32>} : memref<34x32xf32, #tpu.memory_space<vmem>>, vector<32x32xf32>,
    %c0_5 = arith.constant 0 : index
    %c0_6 = arith.constant 0 : index
    %5 = vector.load %arg3[%c0_5, %c0_6] : memref<1x512xf32, #tpu.memory_space<vmem>>, vector<1x512xf32>
    %c0_7 = arith.constant 0 : index
    %c0_8 = arith.constant 0 : index
    %6 = vector.load %arg15[%c0_7, %c0_8] : memref<34x32xf32, #tpu.memory_space<vmem>>, vector<32x32xf32>
    %7 = arith.truncf %6 : vector<32x32xf32> to vector<32x32xbf16>
    %c0_9 = arith.constant 0 : index
    %c0_10 = arith.constant 0 : index
    %c0_11 = arith.constant 0 : index
    %8 = vector.load %arg2[%c0_9, %c0_10, %c0_11] : memref<3x32x512xbf16, #tpu.memory_space<vmem>>, vector<1x32x512xbf16>
    %9 = vector.shape_cast %8 : vector<1x32x512xbf16> to vector<32x512xbf16>
    %cst_12 = arith.constant dense<0.000000e+00> : vector<32x512xf32>
    %10 = tpu.matmul %7, %9, %cst_12 {dimension_numbers = #tpu.dot_dimension_numbers<[1], [0], [0], [1], [0, 0, 1, 1], [], []>} : vector<32x32xbf16>, vector<32x512xbf16>, vector<32x512xf32> -> vector<32x512xf32>
    %11 = vector.broadcast %5 : vector<1x512xf32> to vector<32x512xf32>
    %12 = arith.addf %11, %10 : vector<32x512xf32>
    %c1_13 = arith.constant 1 : index
    %c0_14 = arith.constant 0 : index
    %13 = vector.load %arg15[%c1_13, %c0_14] : memref<34x32xf32, #tpu.memory_space<vmem>>, vector<32x32xf32>
    %14 = arith.truncf %13 : vector<32x32xf32> to vector<32x32xbf16>
    %c1_15 = arith.constant 1 : index
    %c0_16 = arith.constant 0 : index
    %c0_17 = arith.constant 0 : index
    %15 = vector.load %arg2[%c1_15, %c0_16, %c0_17] : memref<3x32x512xbf16, #tpu.memory_space<vmem>>, vector<1x32x512xbf16>
    %16 = vector.shape_cast %15 : vector<1x32x512xbf16> to vector<32x512xbf16>
    %cst_18 = arith.constant dense<0.000000e+00> : vector<32x512xf32>
    %17 = tpu.matmul %14, %16, %cst_18 {dimension_numbers = #tpu.dot_dimension_numbers<[1], [0], [0], [1], [0, 0, 1, 1], [], []>} : vector<32x32xbf16>, vector<32x512xbf16>, vector<32x512xf32> -> vector<32x512xf32>
    %18 = arith.addf %12, %17 : vector<32x512xf32>
    %c2 = arith.constant 2 : index
    %c0_19 = arith.constant 0 : index
    %19 = vector.load %arg15[%c2, %c0_19] : memref<34x32xf32, #tpu.memory_space<vmem>>, vector<32x32xf32>
    %20 = arith.truncf %19 : vector<32x32xf32> to vector<32x32xbf16>
    %c2_20 = arith.constant 2 : index
    %c0_21 = arith.constant 0 : index
    %c0_22 = arith.constant 0 : index
    %21 = vector.load %arg2[%c2_20, %c0_21, %c0_22] : memref<3x32x512xbf16, #tpu.memory_space<vmem>>, vector<1x32x512xbf16>
    %22 = vector.shape_cast %21 : vector<1x32x512xbf16> to vector<32x512xbf16>
    %cst_23 = arith.constant dense<0.000000e+00> : vector<32x512xf32>
    %23 = tpu.matmul %20, %22, %cst_23 {dimension_numbers = #tpu.dot_dimension_numbers<[1], [0], [0], [1], [0, 0, 1, 1], [], []>} : vector<32x32xbf16>, vector<32x512xbf16>, vector<32x512xf32> -> vector<32x512xf32>
    %24 = arith.addf %18, %23 : vector<32x512xf32>
    %cst_24 = arith.constant 0.000000e+00 : f32
    %25 = vector.broadcast %cst_24 : f32 to vector<32x512xf32>
    %26 = arith.maximumf %24, %25 : vector<32x512xf32>
    %27 = arith.truncf %26 : vector<32x512xf32> to vector<32x512xbf16>
    %c0_25 = arith.constant 0 : index
    %c0_26 = arith.constant 0 : index
    %c0_27 = arith.constant 0 : index
    %28 = vector.load %arg4[%c0_25, %c0_26, %c0_27] : memref<2x16x32xbf16, #tpu.memory_space<vmem>>, vector<1x16x32xbf16>
    %29 = vector.shape_cast %28 : vector<1x16x32xbf16> to vector<16x32xbf16>
    %cst_28 = arith.constant dense<0.000000e+00> : vector<16x512xf32>
    %30 = tpu.matmul %29, %27, %cst_28 {dimension_numbers = #tpu.dot_dimension_numbers<[1], [0], [0], [1], [0, 0, 1, 1], [], []>} : vector<16x32xbf16>, vector<32x512xbf16>, vector<16x512xf32> -> vector<16x512xf32>
    %c1_29 = arith.constant 1 : index
    %c0_30 = arith.constant 0 : index
    %c0_31 = arith.constant 0 : index
    %31 = vector.load %arg4[%c1_29, %c0_30, %c0_31] : memref<2x16x32xbf16, #tpu.memory_space<vmem>>, vector<1x16x32xbf16>
    %32 = vector.shape_cast %31 : vector<1x16x32xbf16> to vector<16x32xbf16>
    %cst_32 = arith.constant dense<0.000000e+00> : vector<16x512xf32>
    %33 = tpu.matmul %32, %27, %cst_32 {dimension_numbers = #tpu.dot_dimension_numbers<[1], [0], [0], [1], [0, 0, 1, 1], [], []>} : vector<16x32xbf16>, vector<32x512xbf16>, vector<16x512xf32> -> vector<16x512xf32>
    %34 = arith.maximumf %30, %33 : vector<16x512xf32>
    %35 = arith.truncf %34 : vector<16x512xf32> to vector<16x512xbf16>
    %c0_33 = arith.constant 0 : index
    %c0_34 = arith.constant 0 : index
    %c0_35 = arith.constant 0 : index
    %36 = vector.load %arg5[%c0_33, %c0_34, %c0_35] : memref<2x512x256xbf16, #tpu.memory_space<vmem>>, vector<1x512x256xbf16>
    %37 = vector.shape_cast %36 : vector<1x512x256xbf16> to vector<512x256xbf16>
    %cst_36 = arith.constant dense<0.000000e+00> : vector<16x256xf32>
    %38 = tpu.matmul %35, %37, %cst_36 {dimension_numbers = #tpu.dot_dimension_numbers<[1], [0], [0], [1], [0, 0, 1, 1], [], []>} : vector<16x512xbf16>, vector<512x256xbf16>, vector<16x256xf32> -> vector<16x256xf32>
    %c1_37 = arith.constant 1 : index
    %c0_38 = arith.constant 0 : index
    %c0_39 = arith.constant 0 : index
    %39 = vector.load %arg5[%c1_37, %c0_38, %c0_39] : memref<2x512x256xbf16, #tpu.memory_space<vmem>>, vector<1x512x256xbf16>
    %40 = vector.shape_cast %39 : vector<1x512x256xbf16> to vector<512x256xbf16>
    %cst_40 = arith.constant dense<0.000000e+00> : vector<16x256xf32>
    %41 = tpu.matmul %35, %40, %cst_40 {dimension_numbers = #tpu.dot_dimension_numbers<[1], [0], [0], [1], [0, 0, 1, 1], [], []>} : vector<16x512xbf16>, vector<512x256xbf16>, vector<16x256xf32> -> vector<16x256xf32>
    %42 = arith.maximumf %38, %41 : vector<16x256xf32>
    %cst_41 = arith.constant 0.000000e+00 : f32
    %43 = vector.broadcast %cst_41 : f32 to vector<18x256xf32>
    %c0_42 = arith.constant 0 : index
    %c0_43 = arith.constant 0 : index
    %44 = vector.load %arg16[%c0_42, %c0_43] : memref<18x256xf32, #tpu.memory_space<vmem>>, vector<18x256xf32>
    tpu.vector_store %arg16[%c0_42, %c0_43], %43 {strides = array<i32>} : memref<18x256xf32, #tpu.memory_space<vmem>>, vector<18x256xf32>,
    %c1_44 = arith.constant 1 : index
    %c0_45 = arith.constant 0 : index
    %45 = vector.load %arg16[%c1_44, %c0_45] : memref<18x256xf32, #tpu.memory_space<vmem>>, vector<16x256xf32>
    tpu.vector_store %arg16[%c1_44, %c0_45], %42 {strides = array<i32>} : memref<18x256xf32, #tpu.memory_space<vmem>>, vector<16x256xf32>,
    %c0_46 = arith.constant 0 : index
    %c0_47 = arith.constant 0 : index
    %46 = vector.load %arg7[%c0_46, %c0_47] : memref<1x512xf32, #tpu.memory_space<vmem>>, vector<1x512xf32>
    %c0_48 = arith.constant 0 : index
    %c0_49 = arith.constant 0 : index
    %47 = vector.load %arg16[%c0_48, %c0_49] : memref<18x256xf32, #tpu.memory_space<vmem>>, vector<16x256xf32>
    %48 = arith.truncf %47 : vector<16x256xf32> to vector<16x256xbf16>
    %c0_50 = arith.constant 0 : index
    %c0_51 = arith.constant 0 : index
    %c0_52 = arith.constant 0 : index
    %49 = vector.load %arg6[%c0_50, %c0_51, %c0_52] : memref<3x256x512xbf16, #tpu.memory_space<vmem>>, vector<1x256x512xbf16>
    %50 = vector.shape_cast %49 : vector<1x256x512xbf16> to vector<256x512xbf16>
    %cst_53 = arith.constant dense<0.000000e+00> : vector<16x512xf32>
    %51 = tpu.matmul %48, %50, %cst_53 {dimension_numbers = #tpu.dot_dimension_numbers<[1], [0], [0], [1], [0, 0, 1, 1], [], []>} : vector<16x256xbf16>, vector<256x512xbf16>, vector<16x512xf32> -> vector<16x512xf32>
    %52 = vector.broadcast %46 : vector<1x512xf32> to vector<16x512xf32>
    %53 = arith.addf %52, %51 : vector<16x512xf32>
    %c1_54 = arith.constant 1 : index
    %c0_55 = arith.constant 0 : index
    %54 = vector.load %arg16[%c1_54, %c0_55] : memref<18x256xf32, #tpu.memory_space<vmem>>, vector<16x256xf32>
    %55 = arith.truncf %54 : vector<16x256xf32> to vector<16x256xbf16>
    %c1_56 = arith.constant 1 : index
    %c0_57 = arith.constant 0 : index
    %c0_58 = arith.constant 0 : index
    %56 = vector.load %arg6[%c1_56, %c0_57, %c0_58] : memref<3x256x512xbf16, #tpu.memory_space<vmem>>, vector<1x256x512xbf16>
    %57 = vector.shape_cast %56 : vector<1x256x512xbf16> to vector<256x512xbf16>
    %cst_59 = arith.constant dense<0.000000e+00> : vector<16x512xf32>
    %58 = tpu.matmul %55, %57, %cst_59 {dimension_numbers = #tpu.dot_dimension_numbers<[1], [0], [0], [1], [0, 0, 1, 1], [], []>} : vector<16x256xbf16>, vector<256x512xbf16>, vector<16x512xf32> -> vector<16x512xf32>
    %59 = arith.addf %53, %58 : vector<16x512xf32>
    %c2_60 = arith.constant 2 : index
    %c0_61 = arith.constant 0 : index
    %60 = vector.load %arg16[%c2_60, %c0_61] : memref<18x256xf32, #tpu.memory_space<vmem>>, vector<16x256xf32>
    %61 = arith.truncf %60 : vector<16x256xf32> to vector<16x256xbf16>
    %c2_62 = arith.constant 2 : index
    %c0_63 = arith.constant 0 : index
    %c0_64 = arith.constant 0 : index
    %62 = vector.load %arg6[%c2_62, %c0_63, %c0_64] : memref<3x256x512xbf16, #tpu.memory_space<vmem>>, vector<1x256x512xbf16>
    %63 = vector.shape_cast %62 : vector<1x256x512xbf16> to vector<256x512xbf16>
    %cst_65 = arith.constant dense<0.000000e+00> : vector<16x512xf32>
    %64 = tpu.matmul %61, %63, %cst_65 {dimension_numbers = #tpu.dot_dimension_numbers<[1], [0], [0], [1], [0, 0, 1, 1], [], []>} : vector<16x256xbf16>, vector<256x512xbf16>, vector<16x512xf32> -> vector<16x512xf32>
    %65 = arith.addf %59, %64 : vector<16x512xf32>
    %cst_66 = arith.constant 0.000000e+00 : f32
    %66 = vector.broadcast %cst_66 : f32 to vector<16x512xf32>
    %67 = arith.maximumf %65, %66 : vector<16x512xf32>
    %68 = arith.truncf %67 : vector<16x512xf32> to vector<16x512xbf16>
    %c0_67 = arith.constant 0 : index
    %c0_68 = arith.constant 0 : index
    %c0_69 = arith.constant 0 : index
    %69 = vector.load %arg8[%c0_67, %c0_68, %c0_69] : memref<2x8x16xbf16, #tpu.memory_space<vmem>>, vector<1x8x16xbf16>
    %70 = vector.shape_cast %69 : vector<1x8x16xbf16> to vector<8x16xbf16>
    %cst_70 = arith.constant dense<0.000000e+00> : vector<8x512xf32>
    %71 = tpu.matmul %70, %68, %cst_70 {dimension_numbers = #tpu.dot_dimension_numbers<[1], [0], [0], [1], [0, 0, 1, 1], [], []>} : vector<8x16xbf16>, vector<16x512xbf16>, vector<8x512xf32> -> vector<8x512xf32>
    %c1_71 = arith.constant 1 : index
    %c0_72 = arith.constant 0 : index
    %c0_73 = arith.constant 0 : index
    %72 = vector.load %arg8[%c1_71, %c0_72, %c0_73] : memref<2x8x16xbf16, #tpu.memory_space<vmem>>, vector<1x8x16xbf16>
    %73 = vector.shape_cast %72 : vector<1x8x16xbf16> to vector<8x16xbf16>
    %cst_74 = arith.constant dense<0.000000e+00> : vector<8x512xf32>
    %74 = tpu.matmul %73, %68, %cst_74 {dimension_numbers = #tpu.dot_dimension_numbers<[1], [0], [0], [1], [0, 0, 1, 1], [], []>} : vector<8x16xbf16>, vector<16x512xbf16>, vector<8x512xf32> -> vector<8x512xf32>
    %75 = arith.maximumf %71, %74 : vector<8x512xf32>
    %76 = arith.truncf %75 : vector<8x512xf32> to vector<8x512xbf16>
    %c0_75 = arith.constant 0 : index
    %c0_76 = arith.constant 0 : index
    %c0_77 = arith.constant 0 : index
    %77 = vector.load %arg9[%c0_75, %c0_76, %c0_77] : memref<2x512x256xbf16, #tpu.memory_space<vmem>>, vector<1x512x256xbf16>
    %78 = vector.shape_cast %77 : vector<1x512x256xbf16> to vector<512x256xbf16>
    %cst_78 = arith.constant dense<0.000000e+00> : vector<8x256xf32>
    %79 = tpu.matmul %76, %78, %cst_78 {dimension_numbers = #tpu.dot_dimension_numbers<[1], [0], [0], [1], [0, 0, 1, 1], [], []>} : vector<8x512xbf16>, vector<512x256xbf16>, vector<8x256xf32> -> vector<8x256xf32>
    %c1_79 = arith.constant 1 : index
    %c0_80 = arith.constant 0 : index
    %c0_81 = arith.constant 0 : index
    %80 = vector.load %arg9[%c1_79, %c0_80, %c0_81] : memref<2x512x256xbf16, #tpu.memory_space<vmem>>, vector<1x512x256xbf16>
    %81 = vector.shape_cast %80 : vector<1x512x256xbf16> to vector<512x256xbf16>
    %cst_82 = arith.constant dense<0.000000e+00> : vector<8x256xf32>
    %82 = tpu.matmul %76, %81, %cst_82 {dimension_numbers = #tpu.dot_dimension_numbers<[1], [0], [0], [1], [0, 0, 1, 1], [], []>} : vector<8x512xbf16>, vector<512x256xbf16>, vector<8x256xf32> -> vector<8x256xf32>
    %83 = arith.maximumf %79, %82 : vector<8x256xf32>
    %cst_83 = arith.constant 0.000000e+00 : f32
    %84 = vector.broadcast %cst_83 : f32 to vector<10x256xf32>
    %c0_84 = arith.constant 0 : index
    %c0_85 = arith.constant 0 : index
    %85 = vector.load %arg17[%c0_84, %c0_85] : memref<10x256xf32, #tpu.memory_space<vmem>>, vector<10x256xf32>
    tpu.vector_store %arg17[%c0_84, %c0_85], %84 {strides = array<i32>} : memref<10x256xf32, #tpu.memory_space<vmem>>, vector<10x256xf32>,
    %c1_86 = arith.constant 1 : index
    %c0_87 = arith.constant 0 : index
    %86 = vector.load %arg17[%c1_86, %c0_87] : memref<10x256xf32, #tpu.memory_space<vmem>>, vector<8x256xf32>
    tpu.vector_store %arg17[%c1_86, %c0_87], %83 {strides = array<i32>} : memref<10x256xf32, #tpu.memory_space<vmem>>, vector<8x256xf32>,
    %c0_88 = arith.constant 0 : index
    %c0_89 = arith.constant 0 : index
    %87 = vector.load %arg11[%c0_88, %c0_89] : memref<1x512xf32, #tpu.memory_space<vmem>>, vector<1x512xf32>
    %c0_90 = arith.constant 0 : index
    %c0_91 = arith.constant 0 : index
    %88 = vector.load %arg17[%c0_90, %c0_91] : memref<10x256xf32, #tpu.memory_space<vmem>>, vector<8x256xf32>
    %89 = arith.truncf %88 : vector<8x256xf32> to vector<8x256xbf16>
    %c0_92 = arith.constant 0 : index
    %c0_93 = arith.constant 0 : index
    %c0_94 = arith.constant 0 : index
    %90 = vector.load %arg10[%c0_92, %c0_93, %c0_94] : memref<3x256x512xbf16, #tpu.memory_space<vmem>>, vector<1x256x512xbf16>
    %91 = vector.shape_cast %90 : vector<1x256x512xbf16> to vector<256x512xbf16>
    %cst_95 = arith.constant dense<0.000000e+00> : vector<8x512xf32>
    %92 = tpu.matmul %89, %91, %cst_95 {dimension_numbers = #tpu.dot_dimension_numbers<[1], [0], [0], [1], [0, 0, 1, 1], [], []>} : vector<8x256xbf16>, vector<256x512xbf16>, vector<8x512xf32> -> vector<8x512xf32>
    %93 = vector.broadcast %87 : vector<1x512xf32> to vector<8x512xf32>
    %94 = arith.addf %93, %92 : vector<8x512xf32>
    %c1_96 = arith.constant 1 : index
    %c0_97 = arith.constant 0 : index
    %95 = vector.load %arg17[%c1_96, %c0_97] : memref<10x256xf32, #tpu.memory_space<vmem>>, vector<8x256xf32>
    %96 = arith.truncf %95 : vector<8x256xf32> to vector<8x256xbf16>
    %c1_98 = arith.constant 1 : index
    %c0_99 = arith.constant 0 : index
    %c0_100 = arith.constant 0 : index
    %97 = vector.load %arg10[%c1_98, %c0_99, %c0_100] : memref<3x256x512xbf16, #tpu.memory_space<vmem>>, vector<1x256x512xbf16>
    %98 = vector.shape_cast %97 : vector<1x256x512xbf16> to vector<256x512xbf16>
    %cst_101 = arith.constant dense<0.000000e+00> : vector<8x512xf32>
    %99 = tpu.matmul %96, %98, %cst_101 {dimension_numbers = #tpu.dot_dimension_numbers<[1], [0], [0], [1], [0, 0, 1, 1], [], []>} : vector<8x256xbf16>, vector<256x512xbf16>, vector<8x512xf32> -> vector<8x512xf32>
    %100 = arith.addf %94, %99 : vector<8x512xf32>
    %c2_102 = arith.constant 2 : index
    %c0_103 = arith.constant 0 : index
    %101 = vector.load %arg17[%c2_102, %c0_103] : memref<10x256xf32, #tpu.memory_space<vmem>>, vector<8x256xf32>
    %102 = arith.truncf %101 : vector<8x256xf32> to vector<8x256xbf16>
    %c2_104 = arith.constant 2 : index
    %c0_105 = arith.constant 0 : index
    %c0_106 = arith.constant 0 : index
    %103 = vector.load %arg10[%c2_104, %c0_105, %c0_106] : memref<3x256x512xbf16, #tpu.memory_space<vmem>>, vector<1x256x512xbf16>
    %104 = vector.shape_cast %103 : vector<1x256x512xbf16> to vector<256x512xbf16>
    %cst_107 = arith.constant dense<0.000000e+00> : vector<8x512xf32>
    %105 = tpu.matmul %102, %104, %cst_107 {dimension_numbers = #tpu.dot_dimension_numbers<[1], [0], [0], [1], [0, 0, 1, 1], [], []>} : vector<8x256xbf16>, vector<256x512xbf16>, vector<8x512xf32> -> vector<8x512xf32>
    %106 = arith.addf %100, %105 : vector<8x512xf32>
    %cst_108 = arith.constant 0.000000e+00 : f32
    %107 = vector.broadcast %cst_108 : f32 to vector<8x512xf32>
    %108 = arith.maximumf %106, %107 : vector<8x512xf32>
    %c0_109 = arith.constant 0 : index
    %c0_110 = arith.constant 0 : index
    %109 = vector.load %arg13[%c0_109, %c0_110] : memref<1x15xf32, #tpu.memory_space<vmem>>, vector<1x15xf32>
    %110 = vector.extract_strided_slice %108 {offsets = [0, 0], sizes = [1, 512], strides = [1, 1]} : vector<8x512xf32> to vector<1x512xf32>
    %111 = arith.truncf %110 : vector<1x512xf32> to vector<1x512xbf16>
    %c0_111 = arith.constant 0 : index
    %c0_112 = arith.constant 0 : index
    %c0_113 = arith.constant 0 : index
    %112 = vector.load %arg12[%c0_111, %c0_112, %c0_113] : memref<8x512x15xbf16, #tpu.memory_space<vmem>>, vector<1x512x15xbf16>
    %113 = vector.shape_cast %112 : vector<1x512x15xbf16> to vector<512x15xbf16>
    %cst_114 = arith.constant dense<0.000000e+00> : vector<1x15xf32>
    %114 = tpu.matmul %111, %113, %cst_114 {dimension_numbers = #tpu.dot_dimension_numbers<[1], [0], [0], [1], [0, 0, 1, 1], [], []>} : vector<1x512xbf16>, vector<512x15xbf16>, vector<1x15xf32> -> vector<1x15xf32>
    %115 = arith.addf %109, %114 : vector<1x15xf32>
    %116 = vector.extract_strided_slice %108 {offsets = [1, 0], sizes = [1, 512], strides = [1, 1]} : vector<8x512xf32> to vector<1x512xf32>
    %117 = arith.truncf %116 : vector<1x512xf32> to vector<1x512xbf16>
    %c1_115 = arith.constant 1 : index
    %c0_116 = arith.constant 0 : index
    %c0_117 = arith.constant 0 : index
    %118 = vector.load %arg12[%c1_115, %c0_116, %c0_117] : memref<8x512x15xbf16, #tpu.memory_space<vmem>>, vector<1x512x15xbf16>
    %119 = vector.shape_cast %118 : vector<1x512x15xbf16> to vector<512x15xbf16>
    %cst_118 = arith.constant dense<0.000000e+00> : vector<1x15xf32>
    %120 = tpu.matmul %117, %119, %cst_118 {dimension_numbers = #tpu.dot_dimension_numbers<[1], [0], [0], [1], [0, 0, 1, 1], [], []>} : vector<1x512xbf16>, vector<512x15xbf16>, vector<1x15xf32> -> vector<1x15xf32>
    %121 = arith.addf %115, %120 : vector<1x15xf32>
    %122 = vector.extract_strided_slice %108 {offsets = [2, 0], sizes = [1, 512], strides = [1, 1]} : vector<8x512xf32> to vector<1x512xf32>
    %123 = arith.truncf %122 : vector<1x512xf32> to vector<1x512xbf16>
    %c2_119 = arith.constant 2 : index
    %c0_120 = arith.constant 0 : index
    %c0_121 = arith.constant 0 : index
    %124 = vector.load %arg12[%c2_119, %c0_120, %c0_121] : memref<8x512x15xbf16, #tpu.memory_space<vmem>>, vector<1x512x15xbf16>
    %125 = vector.shape_cast %124 : vector<1x512x15xbf16> to vector<512x15xbf16>
    %cst_122 = arith.constant dense<0.000000e+00> : vector<1x15xf32>
    %126 = tpu.matmul %123, %125, %cst_122 {dimension_numbers = #tpu.dot_dimension_numbers<[1], [0], [0], [1], [0, 0, 1, 1], [], []>} : vector<1x512xbf16>, vector<512x15xbf16>, vector<1x15xf32> -> vector<1x15xf32>
    %127 = arith.addf %121, %126 : vector<1x15xf32>
    %128 = vector.extract_strided_slice %108 {offsets = [3, 0], sizes = [1, 512], strides = [1, 1]} : vector<8x512xf32> to vector<1x512xf32>
    %129 = arith.truncf %128 : vector<1x512xf32> to vector<1x512xbf16>
    %c3 = arith.constant 3 : index
    %c0_123 = arith.constant 0 : index
    %c0_124 = arith.constant 0 : index
    %130 = vector.load %arg12[%c3, %c0_123, %c0_124] : memref<8x512x15xbf16, #tpu.memory_space<vmem>>, vector<1x512x15xbf16>
    %131 = vector.shape_cast %130 : vector<1x512x15xbf16> to vector<512x15xbf16>
    %cst_125 = arith.constant dense<0.000000e+00> : vector<1x15xf32>
    %132 = tpu.matmul %129, %131, %cst_125 {dimension_numbers = #tpu.dot_dimension_numbers<[1], [0], [0], [1], [0, 0, 1, 1], [], []>} : vector<1x512xbf16>, vector<512x15xbf16>, vector<1x15xf32> -> vector<1x15xf32>
    %133 = arith.addf %127, %132 : vector<1x15xf32>
    %134 = vector.extract_strided_slice %108 {offsets = [4, 0], sizes = [1, 512], strides = [1, 1]} : vector<8x512xf32> to vector<1x512xf32>
    %135 = arith.truncf %134 : vector<1x512xf32> to vector<1x512xbf16>
    %c4 = arith.constant 4 : index
    %c0_126 = arith.constant 0 : index
    %c0_127 = arith.constant 0 : index
    %136 = vector.load %arg12[%c4, %c0_126, %c0_127] : memref<8x512x15xbf16, #tpu.memory_space<vmem>>, vector<1x512x15xbf16>
    %137 = vector.shape_cast %136 : vector<1x512x15xbf16> to vector<512x15xbf16>
    %cst_128 = arith.constant dense<0.000000e+00> : vector<1x15xf32>
    %138 = tpu.matmul %135, %137, %cst_128 {dimension_numbers = #tpu.dot_dimension_numbers<[1], [0], [0], [1], [0, 0, 1, 1], [], []>} : vector<1x512xbf16>, vector<512x15xbf16>, vector<1x15xf32> -> vector<1x15xf32>
    %139 = arith.addf %133, %138 : vector<1x15xf32>
    %140 = vector.extract_strided_slice %108 {offsets = [5, 0], sizes = [1, 512], strides = [1, 1]} : vector<8x512xf32> to vector<1x512xf32>
    %141 = arith.truncf %140 : vector<1x512xf32> to vector<1x512xbf16>
    %c5 = arith.constant 5 : index
    %c0_129 = arith.constant 0 : index
    %c0_130 = arith.constant 0 : index
    %142 = vector.load %arg12[%c5, %c0_129, %c0_130] : memref<8x512x15xbf16, #tpu.memory_space<vmem>>, vector<1x512x15xbf16>
    %143 = vector.shape_cast %142 : vector<1x512x15xbf16> to vector<512x15xbf16>
    %cst_131 = arith.constant dense<0.000000e+00> : vector<1x15xf32>
    %144 = tpu.matmul %141, %143, %cst_131 {dimension_numbers = #tpu.dot_dimension_numbers<[1], [0], [0], [1], [0, 0, 1, 1], [], []>} : vector<1x512xbf16>, vector<512x15xbf16>, vector<1x15xf32> -> vector<1x15xf32>
    %145 = arith.addf %139, %144 : vector<1x15xf32>
    %146 = vector.extract_strided_slice %108 {offsets = [6, 0], sizes = [1, 512], strides = [1, 1]} : vector<8x512xf32> to vector<1x512xf32>
    %147 = arith.truncf %146 : vector<1x512xf32> to vector<1x512xbf16>
    %c6 = arith.constant 6 : index
    %c0_132 = arith.constant 0 : index
    %c0_133 = arith.constant 0 : index
    %148 = vector.load %arg12[%c6, %c0_132, %c0_133] : memref<8x512x15xbf16, #tpu.memory_space<vmem>>, vector<1x512x15xbf16>
    %149 = vector.shape_cast %148 : vector<1x512x15xbf16> to vector<512x15xbf16>
    %cst_134 = arith.constant dense<0.000000e+00> : vector<1x15xf32>
    %150 = tpu.matmul %147, %149, %cst_134 {dimension_numbers = #tpu.dot_dimension_numbers<[1], [0], [0], [1], [0, 0, 1, 1], [], []>} : vector<1x512xbf16>, vector<512x15xbf16>, vector<1x15xf32> -> vector<1x15xf32>
    %151 = arith.addf %145, %150 : vector<1x15xf32>
    %152 = vector.extract_strided_slice %108 {offsets = [7, 0], sizes = [1, 512], strides = [1, 1]} : vector<8x512xf32> to vector<1x512xf32>
    %153 = arith.truncf %152 : vector<1x512xf32> to vector<1x512xbf16>
    %c7 = arith.constant 7 : index
    %c0_135 = arith.constant 0 : index
    %c0_136 = arith.constant 0 : index
    %154 = vector.load %arg12[%c7, %c0_135, %c0_136] : memref<8x512x15xbf16, #tpu.memory_space<vmem>>, vector<1x512x15xbf16>
    %155 = vector.shape_cast %154 : vector<1x512x15xbf16> to vector<512x15xbf16>
    %cst_137 = arith.constant dense<0.000000e+00> : vector<1x15xf32>
    %156 = tpu.matmul %153, %155, %cst_137 {dimension_numbers = #tpu.dot_dimension_numbers<[1], [0], [0], [1], [0, 0, 1, 1], [], []>} : vector<1x512xbf16>, vector<512x15xbf16>, vector<1x15xf32> -> vector<1x15xf32>
    %157 = arith.addf %151, %156 : vector<1x15xf32>
    %c0_138 = arith.constant 0 : index
    %c0_139 = arith.constant 0 : index
    %c0_140 = arith.constant 0 : index
    %158 = vector.load %arg14[%c0_138, %c0_139, %c0_140] : memref<1x1x15xf32, #tpu.memory_space<vmem>>, vector<1x1x15xf32>
    %159 = vector.shape_cast %158 : vector<1x1x15xf32> to vector<1x15xf32>
    %160 = vector.shape_cast %157 : vector<1x15xf32> to vector<1x1x15xf32>
    tpu.vector_store %arg14[%c0_138, %c0_139, %c0_140], %160 {strides = array<i32>} : memref<1x1x15xf32, #tpu.memory_space<vmem>>, vector<1x1x15xf32>,
    return
  }
  func.func @transform_0(%arg0: i32) -> (i32, i32, i32) {
    %c0_i32 = arith.constant 0 : i32
    %c0_i32_0 = arith.constant 0 : i32
    %c0_i32_1 = arith.constant 0 : i32
    return %arg0, %c0_i32, %c0_i32_0 : i32, i32, i32
  }
  func.func @transform_1(%arg0: i32) -> (i32, i32, i32) {
    %c0_i32 = arith.constant 0 : i32
    %c0_i32_0 = arith.constant 0 : i32
    %c0_i32_1 = arith.constant 0 : i32
    %c0_i32_2 = arith.constant 0 : i32
    return %c0_i32, %c0_i32_0, %c0_i32_1 : i32, i32, i32
  }
  func.func @transform_2(%arg0: i32) -> (i32, i32) {
    %c0_i32 = arith.constant 0 : i32
    %c0_i32_0 = arith.constant 0 : i32
    %c0_i32_1 = arith.constant 0 : i32
    return %c0_i32, %c0_i32_0 : i32, i32
  }
  func.func @transform_3(%arg0: i32) -> (i32, i32, i32) {
    %c0_i32 = arith.constant 0 : i32
    %c0_i32_0 = arith.constant 0 : i32
    %c0_i32_1 = arith.constant 0 : i32
    %c0_i32_2 = arith.constant 0 : i32
    return %c0_i32, %c0_i32_0, %c0_i32_1 : i32, i32, i32
  }
  func.func @transform_4(%arg0: i32) -> (i32, i32, i32) {
    %c0_i32 = arith.constant 0 : i32
    %c0_i32_0 = arith.constant 0 : i32
    %c0_i32_1 = arith.constant 0 : i32
    %c0_i32_2 = arith.constant 0 : i32
    return %c0_i32, %c0_i32_0, %c0_i32_1 : i32, i32, i32
  }
  func.func @transform_5(%arg0: i32) -> (i32, i32, i32) {
    %c0_i32 = arith.constant 0 : i32
    %c0_i32_0 = arith.constant 0 : i32
    %c0_i32_1 = arith.constant 0 : i32
    %c0_i32_2 = arith.constant 0 : i32
    return %c0_i32, %c0_i32_0, %c0_i32_1 : i32, i32, i32
  }
  func.func @transform_6(%arg0: i32) -> (i32, i32) {
    %c0_i32 = arith.constant 0 : i32
    %c0_i32_0 = arith.constant 0 : i32
    %c0_i32_1 = arith.constant 0 : i32
    return %c0_i32, %c0_i32_0 : i32, i32
  }
  func.func @transform_7(%arg0: i32) -> (i32, i32, i32) {
    %c0_i32 = arith.constant 0 : i32
    %c0_i32_0 = arith.constant 0 : i32
    %c0_i32_1 = arith.constant 0 : i32
    %c0_i32_2 = arith.constant 0 : i32
    return %c0_i32, %c0_i32_0, %c0_i32_1 : i32, i32, i32
  }
  func.func @transform_8(%arg0: i32) -> (i32, i32, i32) {
    %c0_i32 = arith.constant 0 : i32
    %c0_i32_0 = arith.constant 0 : i32
    %c0_i32_1 = arith.constant 0 : i32
    %c0_i32_2 = arith.constant 0 : i32
    return %c0_i32, %c0_i32_0, %c0_i32_1 : i32, i32, i32
  }
  func.func @transform_9(%arg0: i32) -> (i32, i32, i32) {
    %c0_i32 = arith.constant 0 : i32
    %c0_i32_0 = arith.constant 0 : i32
    %c0_i32_1 = arith.constant 0 : i32
    %c0_i32_2 = arith.constant 0 : i32
    return %c0_i32, %c0_i32_0, %c0_i32_1 : i32, i32, i32
  }
  func.func @transform_10(%arg0: i32) -> (i32, i32) {
    %c0_i32 = arith.constant 0 : i32
    %c0_i32_0 = arith.constant 0 : i32
    %c0_i32_1 = arith.constant 0 : i32
    return %c0_i32, %c0_i32_0 : i32, i32
  }
  func.func @transform_11(%arg0: i32) -> (i32, i32, i32) {
    %c0_i32 = arith.constant 0 : i32
    %c0_i32_0 = arith.constant 0 : i32
    %c0_i32_1 = arith.constant 0 : i32
    %c0_i32_2 = arith.constant 0 : i32
    return %c0_i32, %c0_i32_0, %c0_i32_1 : i32, i32, i32
  }
  func.func @transform_12(%arg0: i32) -> (i32, i32) {
    %c0_i32 = arith.constant 0 : i32
    %c0_i32_0 = arith.constant 0 : i32
    %c0_i32_1 = arith.constant 0 : i32
    return %c0_i32, %c0_i32_0 : i32, i32
  }
  func.func @transform_13(%arg0: i32) -> (i32, i32, i32) {
    %c0_i32 = arith.constant 0 : i32
    %c0_i32_0 = arith.constant 0 : i32
    %c0_i32_1 = arith.constant 0 : i32
    return %arg0, %c0_i32, %c0_i32_0 : i32, i32, i32
  }
}

</mosaic_0001>

<llo_original>
// kernel: loc_cnn1_forward.1
$region0: #{loc_cnn1_forward.1}
  #allocation0 [shape = 'u32[]', space=smem, size = 0x4, offset = 0x4, fixed_abs, tag = 'smem constant byte address 0x4 - core index']
  #allocation1 [shape = 'u32[144,128]{1,0:T(1,128)}', space=vmem, size = 0x12000, scoped, tag = 'internal scratch']
  #allocation2 [shape = 'f32[34,32]{1,0:T(8,128)}', space=vmem, size = 0x5000, scoped, tag = 'scratch operand']
  #allocation3 [shape = 'f32[18,256]{1,0:T(8,128)}', space=vmem, size = 0x6000, scoped, tag = 'scratch operand']
  #allocation4 [shape = 'f32[10,256]{1,0:T(8,128)}', space=vmem, size = 0x4000, scoped, tag = 'scratch operand']
  %s0 = inlined_call_operand.vmem [shape: f32[2,32,32], index: 0, kind: input, shape index: {}]
  %s1 = inlined_call_operand.vmem [shape: bf16[3,32,512], index: 1, kind: input, shape index: {}]
  %s2 = inlined_call_operand.vmem [shape: f32[1,512], index: 2, kind: input, shape index: {}]
  %s3 = inlined_call_operand.vmem [shape: bf16[2,16,32], index: 3, kind: input, shape index: {}]
  %s4 = inlined_call_operand.hbm [shape: bf16[2,512,256], index: 4, kind: input, shape index: {}]
  %s5 = inlined_call_operand.vmem [shape: bf16[3,256,512], index: 5, kind: input, shape index: {}]
  %s6 = inlined_call_operand.vmem [shape: f32[1,512], index: 6, kind: input, shape index: {}]
  %s7 = inlined_call_operand.vmem [shape: bf16[2,8,16], index: 7, kind: input, shape index: {}]
  %s8 = inlined_call_operand.hbm [shape: bf16[2,512,256], index: 8, kind: input, shape index: {}]
  %s9 = inlined_call_operand.hbm [shape: bf16[3,256,512], index: 9, kind: input, shape index: {}]
  %s10 = inlined_call_operand.vmem [shape: f32[1,512], index: 10, kind: input, shape index: {}]
  %s11 = inlined_call_operand.vmem [shape: bf16[8,512,15], index: 11, kind: input, shape index: {}]
  %s12 = inlined_call_operand.vmem [shape: f32[1,15], index: 12, kind: input, shape index: {}]
  %s13 = inlined_call_operand.hbm [shape: f32[2,1,15], index: 13, kind: output, shape index: {}]
  %s14 = sld [smem:[#allocation0]]
  $region97: #{loc_cnn1_forward.1} parent=0
    _
  %s16 = ssub.s32 1, %s14
  %s17 = scalar_select 0, %s16, %s14
  $region1: #{loc_cnn1_forward.1} parent=0
    #allocation5 [shape = 'u8[524288]{0}', space=vmem, size = 0x80000, scoped, tag = 'input window, operand 4, single buffered']
    #allocation6 [shape = 's32[2]{0}', space=sflag, size = 0x8, scoped, tag = 'scoped memory for loc_cnn1_forward.1']
    #allocation7 [shape = 's32[2]{0}', space=sflag, size = 0x8, scoped, tag = 'scoped memory for loc_cnn1_forward.1']
    #allocation8 [shape = 'u8[524288]{0}', space=vmem, size = 0x80000, scoped, tag = 'input window, operand 8, single buffered']
    #allocation9 [shape = 's32[1]{0}', space=sflag, size = 0x4, scoped, tag = 'scoped memory for loc_cnn1_forward.1']
    #allocation10 [shape = 'u8[786432]{0}', space=vmem, size = 0xc0000, scoped, tag = 'input window, operand 9, single buffered']
    #allocation11 [shape = 'u8[1024]{0}', space=vmem, size = 0x400, scoped, tag = 'output window, operand 0']
    %18 = vsyncpa [#allocation6], 0
    %19 = vsyncpa [#allocation9], 0
    %20 = vsyncpa [#allocation7], 0
    %s21 = scalar_lea.sflag [#allocation7], 1
    %22 = vsyncpa %s21, 0
    loop: start=0, step=1, limit=4
    $region2: #{loc_cnn1_forward.1} parent=1 // loop_pre_header
      _
    $region3: #{loc_cnn1_forward.1} parent=1 // loop_header
      %s24 = sphi 0, %s28
      %p25 = scmp.ge.s32.totalorder %s24, 4
      %s34 = sphi 0, %s36
      %s37 = sphi 0, %s34
      %s38 = sphi 0, %s37
      %s54 = sphi 0, %s38
      %s58 = sphi 0, %s58
      %s60 = sphi 0, %s58
      %s61 = sphi 0, %s60
      %s75 = sphi 0, %s61
      %s79 = sphi 0, %s79
      %s81 = sphi 0, %s79
      %s82 = sphi 0, %s81
      %s96 = sphi 0, %s82
      %s100 = sphi 0, %s100
      %s102 = sphi 0, %s100
      %s103 = sphi 0, %s102
      %s117 = sphi 0, %s103
      %s121 = sphi 0, %s121
      %s123 = sphi 0, %s121
      %s124 = sphi 0, %s123
      %s138 = sphi 0, %s124
      %s142 = sphi 0, %s142
      %s144 = sphi 0, %s142
      %s145 = sphi 0, %s144
      %s159 = sphi 0, %s145
      %s163 = sphi 0, %s163
      %s165 = sphi 0, %s163
      %s166 = sphi 0, %s165
      %s180 = sphi 0, %s166
      %s184 = sphi 0, %s184
      %s186 = sphi 0, %s184
      %s187 = sphi 0, %s186
      %s201 = sphi 0, %s187
      %s205 = sphi 0, %s205
      %s207 = sphi 0, %s205
      %s208 = sphi 0, %s207
      %s222 = sphi 0, %s208
      %s226 = sphi 0, %s226
      %s228 = sphi 0, %s226
      %s229 = sphi 0, %s228
      %s243 = sphi 0, %s229
      %s247 = sphi 0, %s247
      %s249 = sphi 0, %s247
      %s250 = sphi 0, %s249
      %s264 = sphi 0, %s250
      %s268 = sphi 0, %s268
      %s270 = sphi 0, %s268
      %s271 = sphi 0, %s270
      %s285 = sphi 0, %s271
      %s289 = sphi 0, %s289
      %s291 = sphi 0, %s289
      %s292 = sphi 0, %s291
      %s306 = sphi 0, %s292
      %s312 = sphi 0, %s314
      %s315 = sphi 0, %s312
      %s316 = sphi 0, %s315
      %s332 = sphi 0, %s316
    $region4: #{loc_cnn1_forward.1} parent=1 // loop_header_branch
      %27 = sbr.rel (%p25) target = $region8
    $region5: #{loc_cnn1_forward.1} parent=1 // loop_body
      %s29 = ssub.s32 %s24, 1
      %s30 = ssub.s32 %s24, 2
      %s31 = sadd.s32 %s24, 1
      %s32 = ssub.s32 %s24, %s31
      %p33 = scmp.eq.s32.totalorder %s32, 0
      %s35 = sadd.s32 %s34, 1
      %s36 = scalar_select %p33, %s34, %s35
      %p39 = pneg %p33
      %p40 = scmp.eq.s32.totalorder %s24, 1
      %p41 = por %p39, %p40
      %p42 = scmp.ne.s32.totalorder %s34, %s37
      %p43 = scmp.eq.s32.totalorder %s24, 0
      %p44 = por %p42, %p43
      %p45 = scmp.ne.s32.totalorder %s34, %s37
      %p46 = scmp.eq.s32.totalorder %s29, 1
      %p47 = por %p45, %p46
      %p48 = scmp.ne.s32.totalorder %s37, %s38
      %p49 = scmp.eq.s32.totalorder %s29, 0
      %p50 = por %p48, %p49
      %p51 = scmp.ne.s32.totalorder %s37, %s38
      %p52 = scmp.eq.s32.totalorder %s30, 1
      %p53 = por %p51, %p52
      %p55 = scmp.ne.s32.totalorder %s38, %s54
      %p56 = scmp.eq.s32.totalorder %s30, 0
      %p57 = por %p55, %p56
      %s59 = sadd.s32 %s58, 1
      %p62 = scmp.eq.s32.totalorder %s24, 1
      %p63 = scmp.ne.s32.totalorder %s58, %s60
      %p64 = scmp.eq.s32.totalorder %s24, 0
      %p65 = por %p63, %p64
      %p66 = scmp.ne.s32.totalorder %s58, %s60
      %p67 = scmp.eq.s32.totalorder %s29, 1
      %p68 = por %p66, %p67
      %p69 = scmp.ne.s32.totalorder %s60, %s61
      %p70 = scmp.eq.s32.totalorder %s29, 0
      %p71 = por %p69, %p70
      %p72 = scmp.ne.s32.totalorder %s60, %s61
      %p73 = scmp.eq.s32.totalorder %s30, 1
      %p74 = por %p72, %p73
      %p76 = scmp.ne.s32.totalorder %s61, %s75
      %p77 = scmp.eq.s32.totalorder %s30, 0
      %p78 = por %p76, %p77
      %s80 = sadd.s32 %s79, 1
      %p83 = scmp.eq.s32.totalorder %s24, 1
      %p84 = scmp.ne.s32.totalorder %s79, %s81
      %p85 = scmp.eq.s32.totalorder %s24, 0
      %p86 = por %p84, %p85
      %p87 = scmp.ne.s32.totalorder %s79, %s81
      %p88 = scmp.eq.s32.totalorder %s29, 1
      %p89 = por %p87, %p88
      %p90 = scmp.ne.s32.totalorder %s81, %s82
      %p91 = scmp.eq.s32.totalorder %s29, 0
      %p92 = por %p90, %p91
      %p93 = scmp.ne.s32.totalorder %s81, %s82
      %p94 = scmp.eq.s32.totalorder %s30, 1
      %p95 = por %p93, %p94
      %p97 = scmp.ne.s32.totalorder %s82, %s96
      %p98 = scmp.eq.s32.totalorder %s30, 0
      %p99 = por %p97, %p98
      %s101 = sadd.s32 %s100, 1
      %p104 = scmp.eq.s32.totalorder %s24, 1
      %p105 = scmp.ne.s32.totalorder %s100, %s102
      %p106 = scmp.eq.s32.totalorder %s24, 0
      %p107 = por %p105, %p106
      %p108 = scmp.ne.s32.totalorder %s100, %s102
      %p109 = scmp.eq.s32.totalorder %s29, 1
      %p110 = por %p108, %p109
      %p111 = scmp.ne.s32.totalorder %s102, %s103
      %p112 = scmp.eq.s32.totalorder %s29, 0
      %p113 = por %p111, %p112
      %p114 = scmp.ne.s32.totalorder %s102, %s103
      %p115 = scmp.eq.s32.totalorder %s30, 1
      %p116 = por %p114, %p115
      %p118 = scmp.ne.s32.totalorder %s103, %s117
      %p119 = scmp.eq.s32.totalorder %s30, 0
      %p120 = por %p118, %p119
      %s122 = sadd.s32 %s121, 1
      %p125 = scmp.eq.s32.totalorder %s24, 1
      %p126 = scmp.ne.s32.totalorder %s121, %s123
      %p127 = scmp.eq.s32.totalorder %s24, 0
      %p128 = por %p126, %p127
      %p129 = scmp.ne.s32.totalorder %s121, %s123
      %p130 = scmp.eq.s32.totalorder %s29, 1
      %p131 = por %p129, %p130
      %p132 = scmp.ne.s32.totalorder %s123, %s124
      %p133 = scmp.eq.s32.totalorder %s29, 0
      %p134 = por %p132, %p133
      %p135 = scmp.ne.s32.totalorder %s123, %s124
      %p136 = scmp.eq.s32.totalorder %s30, 1
      %p137 = por %p135, %p136
      %p139 = scmp.ne.s32.totalorder %s124, %s138
      %p140 = scmp.eq.s32.totalorder %s30, 0
      %p141 = por %p139, %p140
      %s143 = sadd.s32 %s142, 1
      %p146 = scmp.eq.s32.totalorder %s24, 1
      %p147 = scmp.ne.s32.totalorder %s142, %s144
      %p148 = scmp.eq.s32.totalorder %s24, 0
      %p149 = por %p147, %p148
      %p150 = scmp.ne.s32.totalorder %s142, %s144
      %p151 = scmp.eq.s32.totalorder %s29, 1
      %p152 = por %p150, %p151
      %p153 = scmp.ne.s32.totalorder %s144, %s145
      %p154 = scmp.eq.s32.totalorder %s29, 0
      %p155 = por %p153, %p154
      %p156 = scmp.ne.s32.totalorder %s144, %s145
      %p157 = scmp.eq.s32.totalorder %s30, 1
      %p158 = por %p156, %p157
      %p160 = scmp.ne.s32.totalorder %s145, %s159
      %p161 = scmp.eq.s32.totalorder %s30, 0
      %p162 = por %p160, %p161
      %s164 = sadd.s32 %s163, 1
      %p167 = scmp.eq.s32.totalorder %s24, 1
      %p168 = scmp.ne.s32.totalorder %s163, %s165
      %p169 = scmp.eq.s32.totalorder %s24, 0
      %p170 = por %p168, %p169
      %p171 = scmp.ne.s32.totalorder %s163, %s165
      %p172 = scmp.eq.s32.totalorder %s29, 1
      %p173 = por %p171, %p172
      %p174 = scmp.ne.s32.totalorder %s165, %s166
      %p175 = scmp.eq.s32.totalorder %s29, 0
      %p176 = por %p174, %p175
      %p177 = scmp.ne.s32.totalorder %s165, %s166
      %p178 = scmp.eq.s32.totalorder %s30, 1
      %p179 = por %p177, %p178
      %p181 = scmp.ne.s32.totalorder %s166, %s180
      %p182 = scmp.eq.s32.totalorder %s30, 0
      %p183 = por %p181, %p182
      %s185 = sadd.s32 %s184, 1
      %p188 = scmp.eq.s32.totalorder %s24, 1
      %p189 = scmp.ne.s32.totalorder %s184, %s186
      %p190 = scmp.eq.s32.totalorder %s24, 0
      %p191 = por %p189, %p190
      %p192 = scmp.ne.s32.totalorder %s184, %s186
      %p193 = scmp.eq.s32.totalorder %s29, 1
      %p194 = por %p192, %p193
      %p195 = scmp.ne.s32.totalorder %s186, %s187
      %p196 = scmp.eq.s32.totalorder %s29, 0
      %p197 = por %p195, %p196
      %p198 = scmp.ne.s32.totalorder %s186, %s187
      %p199 = scmp.eq.s32.totalorder %s30, 1
      %p200 = por %p198, %p199
      %p202 = scmp.ne.s32.totalorder %s187, %s201
      %p203 = scmp.eq.s32.totalorder %s30, 0
      %p204 = por %p202, %p203
      %s206 = sadd.s32 %s205, 1
      %p209 = scmp.eq.s32.totalorder %s24, 1
      %p210 = scmp.ne.s32.totalorder %s205, %s207
      %p211 = scmp.eq.s32.totalorder %s24, 0
      %p212 = por %p210, %p211
      %p213 = scmp.ne.s32.totalorder %s205, %s207
      %p214 = scmp.eq.s32.totalorder %s29, 1
      %p215 = por %p213, %p214
      %p216 = scmp.ne.s32.totalorder %s207, %s208
      %p217 = scmp.eq.s32.totalorder %s29, 0
      %p218 = por %p216, %p217
      %p219 = scmp.ne.s32.totalorder %s207, %s208
      %p220 = scmp.eq.s32.totalorder %s30, 1
      %p221 = por %p219, %p220
      %p223 = scmp.ne.s32.totalorder %s208, %s222
      %p224 = scmp.eq.s32.totalorder %s30, 0
      %p225 = por %p223, %p224
      %s227 = sadd.s32 %s226, 1
      %p230 = scmp.eq.s32.totalorder %s24, 1
      %p231 = scmp.ne.s32.totalorder %s226, %s228
      %p232 = scmp.eq.s32.totalorder %s24, 0
      %p233 = por %p231, %p232
      %p234 = scmp.ne.s32.totalorder %s226, %s228
      %p235 = scmp.eq.s32.totalorder %s29, 1
      %p236 = por %p234, %p235
      %p237 = scmp.ne.s32.totalorder %s228, %s229
      %p238 = scmp.eq.s32.totalorder %s29, 0
      %p239 = por %p237, %p238
      %p240 = scmp.ne.s32.totalorder %s228, %s229
      %p241 = scmp.eq.s32.totalorder %s30, 1
      %p242 = por %p240, %p241
      %p244 = scmp.ne.s32.totalorder %s229, %s243
      %p245 = scmp.eq.s32.totalorder %s30, 0
      %p246 = por %p244, %p245
      %s248 = sadd.s32 %s247, 1
      %p251 = scmp.eq.s32.totalorder %s24, 1
      %p252 = scmp.ne.s32.totalorder %s247, %s249
      %p253 = scmp.eq.s32.totalorder %s24, 0
      %p254 = por %p252, %p253
      %p255 = scmp.ne.s32.totalorder %s247, %s249
      %p256 = scmp.eq.s32.totalorder %s29, 1
      %p257 = por %p255, %p256
      %p258 = scmp.ne.s32.totalorder %s249, %s250
      %p259 = scmp.eq.s32.totalorder %s29, 0
      %p260 = por %p258, %p259
      %p261 = scmp.ne.s32.totalorder %s249, %s250
      %p262 = scmp.eq.s32.totalorder %s30, 1
      %p263 = por %p261, %p262
      %p265 = scmp.ne.s32.totalorder %s250, %s264
      %p266 = scmp.eq.s32.totalorder %s30, 0
      %p267 = por %p265, %p266
      %s269 = sadd.s32 %s268, 1
      %p272 = scmp.eq.s32.totalorder %s24, 1
      %p273 = scmp.ne.s32.totalorder %s268, %s270
      %p274 = scmp.eq.s32.totalorder %s24, 0
      %p275 = por %p273, %p274
      %p276 = scmp.ne.s32.totalorder %s268, %s270
      %p277 = scmp.eq.s32.totalorder %s29, 1
      %p278 = por %p276, %p277
      %p279 = scmp.ne.s32.totalorder %s270, %s271
      %p280 = scmp.eq.s32.totalorder %s29, 0
      %p281 = por %p279, %p280
      %p282 = scmp.ne.s32.totalorder %s270, %s271
      %p283 = scmp.eq.s32.totalorder %s30, 1
      %p284 = por %p282, %p283
      %p286 = scmp.ne.s32.totalorder %s271, %s285
      %p287 = scmp.eq.s32.totalorder %s30, 0
      %p288 = por %p286, %p287
      %s290 = sadd.s32 %s289, 1
      %p293 = scmp.eq.s32.totalorder %s24, 1
      %p294 = scmp.ne.s32.totalorder %s289, %s291
      %p295 = scmp.eq.s32.totalorder %s24, 0
      %p296 = por %p294, %p295
      %p297 = scmp.ne.s32.totalorder %s289, %s291
      %p298 = scmp.eq.s32.totalorder %s29, 1
      %p299 = por %p297, %p298
      %p300 = scmp.ne.s32.totalorder %s291, %s292
      %p301 = scmp.eq.s32.totalorder %s29, 0
      %p302 = por %p300, %p301
      %p303 = scmp.ne.s32.totalorder %s291, %s292
      %p304 = scmp.eq.s32.totalorder %s30, 1
      %p305 = por %p303, %p304
      %p307 = scmp.ne.s32.totalorder %s292, %s306
      %p308 = scmp.eq.s32.totalorder %s30, 0
      %p309 = por %p307, %p308
      %s310 = ssub.s32 %s24, %s31
      %p311 = scmp.eq.s32.totalorder %s310, 0
      %s313 = sadd.s32 %s312, 1
      %s314 = scalar_select %p311, %s312, %s313
      %p317 = pneg %p311
      %p318 = scmp.eq.s32.totalorder %s24, 1
      %p319 = por %p317, %p318
      %p320 = scmp.ne.s32.totalorder %s312, %s315
      %p321 = scmp.eq.s32.totalorder %s24, 0
      %p322 = por %p320, %p321
      %p323 = scmp.ne.s32.totalorder %s312, %s315
      %p324 = scmp.eq.s32.totalorder %s29, 1
      %p325 = por %p323, %p324
      %p326 = scmp.ne.s32.totalorder %s315, %s316
      %p327 = scmp.eq.s32.totalorder %s29, 0
      %p328 = por %p326, %p327
      %p329 = scmp.ne.s32.totalorder %s315, %s316
      %p330 = scmp.eq.s32.totalorder %s30, 1
      %p331 = por %p329, %p330
      %p333 = scmp.ne.s32.totalorder %s316, %s332
      %p334 = scmp.eq.s32.totalorder %s30, 0
      %p335 = por %p333, %p334
      %p336 = scmp.le.s32.totalorder 1, %s24
      %p337 = scmp.lt.s32.totalorder %s24, 3
      %p338 = pnand %p336, %p337
      %p339 = pneg %p338
      // Predicated region
      $region9: #{loc_cnn1_forward.1} parent=5 // pred_check
        _
      $region10: #{loc_cnn1_forward.1} parent=5 // pred_check_branch
        %341 = sbr.rel (%p338) target = $region12
      $region11: #{loc_cnn1_forward.1} parent=5 // pred_region
        %s342 = ssub.s32 %s24, 1
        // Predicated region
        $region13: #{loc_cnn1_forward.1} parent=11 // pred_check
          %p343 = pneg %p71
        $region14: #{loc_cnn1_forward.1} parent=11 // pred_check_branch
          %345 = sbr.rel (%p343) target = $region16
        $region15: #{loc_cnn1_forward.1} parent=11 // pred_region
          _
        $region16: #{loc_cnn1_forward.1} parent=11 // pred_fallthru
          _
        // Predicated region
        $region17: #{loc_cnn1_forward.1} parent=11 // pred_check
          %p346 = pneg %p92
        $region18: #{loc_cnn1_forward.1} parent=11 // pred_check_branch
          %348 = sbr.rel (%p346) target = $region20
        $region19: #{loc_cnn1_forward.1} parent=11 // pred_region
          _
        $region20: #{loc_cnn1_forward.1} parent=11 // pred_fallthru
          _
        // Predicated region
        $region21: #{loc_cnn1_forward.1} parent=11 // pred_check
          %p349 = pneg %p113
        $region22: #{loc_cnn1_forward.1} parent=11 // pred_check_branch
          %351 = sbr.rel (%p349) target = $region24
        $region23: #{loc_cnn1_forward.1} parent=11 // pred_region
          _
        $region24: #{loc_cnn1_forward.1} parent=11 // pred_fallthru
          _
        // Predicated region
        $region25: #{loc_cnn1_forward.1} parent=11 // pred_check
          %p352 = pneg %p134
        $region26: #{loc_cnn1_forward.1} parent=11 // pred_check_branch
          %354 = sbr.rel (%p352) target = $region28
        $region27: #{loc_cnn1_forward.1} parent=11 // pred_region
          %s356 = ssub.s32 16384, 16384
          %357 = vsyncadd [#allocation6], %s356
          %s358 = sshll.u32 [#allocation5], 4
          %s359 = int_to_ptr.vmem [resolvable:$true] %s358
          %364 = dma.hbm_to_vmem [thread:$0]  %s4, 16384, %s359, [#allocation6], 128, 128, 8
        $region28: #{loc_cnn1_forward.1} parent=11 // pred_fallthru
          _
        // Predicated region
        $region29: #{loc_cnn1_forward.1} parent=11 // pred_check
          %p365 = pneg %p155
        $region30: #{loc_cnn1_forward.1} parent=11 // pred_check_branch
          %367 = sbr.rel (%p365) target = $region32
        $region31: #{loc_cnn1_forward.1} parent=11 // pred_region
          _
        $region32: #{loc_cnn1_forward.1} parent=11 // pred_fallthru
          _
        // Predicated region
        $region33: #{loc_cnn1_forward.1} parent=11 // pred_check
          %p368 = pneg %p176
        $region34: #{loc_cnn1_forward.1} parent=11 // pred_check_branch
          %370 = sbr.rel (%p368) target = $region36
        $region35: #{loc_cnn1_forward.1} parent=11 // pred_region
          _
        $region36: #{loc_cnn1_forward.1} parent=11 // pred_fallthru
          _
        // Predicated region
        $region37: #{loc_cnn1_forward.1} parent=11 // pred_check
          %p371 = pneg %p197
        $region38: #{loc_cnn1_forward.1} parent=11 // pred_check_branch
          %373 = sbr.rel (%p371) target = $region40
        $region39: #{loc_cnn1_forward.1} parent=11 // pred_region
          _
        $region40: #{loc_cnn1_forward.1} parent=11 // pred_fallthru
          _
        // Predicated region
        $region41: #{loc_cnn1_forward.1} parent=11 // pred_check
          %p374 = pneg %p218
        $region42: #{loc_cnn1_forward.1} parent=11 // pred_check_branch
          %376 = sbr.rel (%p374) target = $region44
        $region43: #{loc_cnn1_forward.1} parent=11 // pred_region
          %s378 = ssub.s32 16384, 16384
          %379 = vsyncadd [#allocation9], %s378
          %s380 = sshll.u32 [#allocation8], 4
          %s381 = int_to_ptr.vmem [resolvable:$true] %s380
          %386 = dma.hbm_to_vmem [thread:$0]  %s8, 16384, %s381, [#allocation9], 128, 128, 8
        $region44: #{loc_cnn1_forward.1} parent=11 // pred_fallthru
          _
        // Predicated region
        $region45: #{loc_cnn1_forward.1} parent=11 // pred_check
          %p387 = pneg %p239
        $region46: #{loc_cnn1_forward.1} parent=11 // pred_check_branch
          %389 = sbr.rel (%p387) target = $region48
        $region47: #{loc_cnn1_forward.1} parent=11 // pred_region
          %s391 = ssub.s32 24576, 24576
          %392 = vsyncadd [#allocation9], %s391
          %s393 = sshll.u32 [#allocation10], 4
          %s394 = int_to_ptr.vmem [resolvable:$true] %s393
          %399 = dma.hbm_to_vmem [thread:$0]  %s9, 24576, %s394, [#allocation9], 256, 256, 16
        $region48: #{loc_cnn1_forward.1} parent=11 // pred_fallthru
          _
        // Predicated region
        $region49: #{loc_cnn1_forward.1} parent=11 // pred_check
          %p400 = pneg %p260
        $region50: #{loc_cnn1_forward.1} parent=11 // pred_check_branch
          %402 = sbr.rel (%p400) target = $region52
        $region51: #{loc_cnn1_forward.1} parent=11 // pred_region
          _
        $region52: #{loc_cnn1_forward.1} parent=11 // pred_fallthru
          _
        // Predicated region
        $region53: #{loc_cnn1_forward.1} parent=11 // pred_check
          %p403 = pneg %p281
        $region54: #{loc_cnn1_forward.1} parent=11 // pred_check_branch
          %405 = sbr.rel (%p403) target = $region56
        $region55: #{loc_cnn1_forward.1} parent=11 // pred_region
          _
        $region56: #{loc_cnn1_forward.1} parent=11 // pred_fallthru
          _
        // Predicated region
        $region57: #{loc_cnn1_forward.1} parent=11 // pred_check
          %p406 = pneg %p302
        $region58: #{loc_cnn1_forward.1} parent=11 // pred_check_branch
          %408 = sbr.rel (%p406) target = $region60
        $region59: #{loc_cnn1_forward.1} parent=11 // pred_region
          _
        $region60: #{loc_cnn1_forward.1} parent=11 // pred_fallthru
          _
      $region12: #{loc_cnn1_forward.1} parent=5 // pred_fallthru
        _
      %p409 = scmp.lt.s32.totalorder %s24, 2
      // Predicated region
      $region61: #{loc_cnn1_forward.1} parent=5 // pred_check
        %p410 = pneg %p409
      $region62: #{loc_cnn1_forward.1} parent=5 // pred_check_branch
        %412 = sbr.rel (%p410) target = $region64
      $region63: #{loc_cnn1_forward.1} parent=5 // pred_region
        // Predicated region
        $region65: #{loc_cnn1_forward.1} parent=63 // pred_check
          %p413 = pneg %p44
        $region66: #{loc_cnn1_forward.1} parent=63 // pred_check_branch
          %415 = sbr.rel (%p413) target = $region68
        $region67: #{loc_cnn1_forward.1} parent=63 // pred_region
          %p416 = scmp.lt.s32.totalorder %s24, 1
          %s417 = scalar_select %p416, %s24, 1
          %s418 = smul.addr %s417, 4
          %s419 = smul.addr %s418, 8
          %s420 = scalar_lea.vmem %s0, %s419
        $region68: #{loc_cnn1_forward.1} parent=63 // pred_fallthru
          _
      $region64: #{loc_cnn1_forward.1} parent=5 // pred_fallthru
        _
      %p421 = scmp.le.s32.totalorder 1, %s24
      %p422 = scmp.lt.s32.totalorder %s24, 3
      %p423 = pnand %p421, %p422
      %p424 = pneg %p423
      // Predicated region
      $region69: #{loc_cnn1_forward.1} parent=5 // pred_check
        _
      $region70: #{loc_cnn1_forward.1} parent=5 // pred_check_branch
        %426 = sbr.rel (%p423) target = $region72
      $region71: #{loc_cnn1_forward.1} parent=5 // pred_region
        %s427 = ssub.s32 %s24, 1
        // Predicated region
        $region73: #{loc_cnn1_forward.1} parent=71 // pred_check
          %p428 = pneg %p134
        $region74: #{loc_cnn1_forward.1} parent=71 // pred_check_branch
          %430 = sbr.rel (%p428) target = $region76
        $region75: #{loc_cnn1_forward.1} parent=71 // pred_region
          %431 = dma.done [#allocation6], 16384
        $region76: #{loc_cnn1_forward.1} parent=71 // pred_fallthru
          _
        // Predicated region
        $region77: #{loc_cnn1_forward.1} parent=71 // pred_check
          %p432 = pneg %p218
        $region78: #{loc_cnn1_forward.1} parent=71 // pred_check_branch
          %434 = sbr.rel (%p432) target = $region80
        $region79: #{loc_cnn1_forward.1} parent=71 // pred_region
          %435 = dma.done [#allocation9], 16384
        $region80: #{loc_cnn1_forward.1} parent=71 // pred_fallthru
          _
        // Predicated region
        $region81: #{loc_cnn1_forward.1} parent=71 // pred_check
          %p436 = pneg %p239
        $region82: #{loc_cnn1_forward.1} parent=71 // pred_check_branch
          %438 = sbr.rel (%p436) target = $region84
        $region83: #{loc_cnn1_forward.1} parent=71 // pred_region
          %439 = dma.done [#allocation9], 24576
        $region84: #{loc_cnn1_forward.1} parent=71 // pred_fallthru
          _
        %p440 = scmp.lt.s32.totalorder %s29, 1
        %s441 = scalar_select %p440, %s29, 1
        %s442 = smul.addr %s441, 4
        %s443 = smul.addr %s442, 8
        %s444 = scalar_lea.vmem %s0, %s443
        %p445 = pneg %p50
        %p446 = pneg %p47
        %p447 = pneg %p71
        %p448 = pneg %p68
        %p449 = pneg %p92
        %p450 = pneg %p89
        %p451 = pneg %p113
        %p452 = pneg %p110
        %p453 = pneg %p134
        %p454 = pneg %p131
        %p455 = pneg %p155
        %p456 = pneg %p152
        %p457 = pneg %p176
        %p458 = pneg %p173
        %p459 = pneg %p197
        %p460 = pneg %p194
        %p461 = pneg %p218
        %p462 = pneg %p215
        %p463 = pneg %p239
        %p464 = pneg %p236
        %p465 = pneg %p260
        %p466 = pneg %p257
        %p467 = pneg %p281
        %p468 = pneg %p278
        %p469 = pneg %p302
        %p470 = pneg %p299
        %p471 = pneg %p328
        %p472 = pneg %p325
        %s473 = sand.u32 %s315, 1
        %s474 = scalar_lea.sflag [#allocation7], %s473
        %s475 = sand.u32 %s315, 1
        %s476 = scalar_lea.vmem [#allocation11], %s475
        %p477 = scmp.lt.s32.totalorder %s29, 1
        %s478 = scalar_select %p477, %s29, 1
        %s479 = smul.addr %s478, 4
        %s480 = smul.addr %s479, 8
        %s481 = scalar_lea.vmem %s0, %s480
        %v483 = vld [vmem:[%s481] sm:$0xff]
        %v484 = vld [vmem:[%s481 + $0x8] sm:$0xff]
        %v485 = vld [vmem:[%s481 + $0x10] sm:$0xff]
        %v486 = vld [vmem:[%s481 + $0x18] sm:$0xff]
        %vm487 = vcmask 261120
        %488 = vst.msk [vmem:[#allocation2] sm:$0xff] %vm487, 0.0
        %489 = vst.msk [vmem:[#allocation2 + $0x8] sm:$0xff] %vm487, 0.0
        %490 = vst.msk [vmem:[#allocation2 + $0x10] sm:$0xff] %vm487, 0.0
        %491 = vst.msk [vmem:[#allocation2 + $0x18] sm:$0xff] %vm487, 0.0
        %vm492 = vcmask 254976
        %493 = vst.msk [vmem:[#allocation2 + $0x20] sm:$0x3] %vm492, 0.0
        %494 = vst.msk [vmem:[#allocation2 + $0x1] sm:$0xff] %vm487, %v483
        %495 = vst.msk [vmem:[#allocation2 + $0x9] sm:$0xff] %vm487, %v484
        %496 = vst.msk [vmem:[#allocation2 + $0x11] sm:$0xff] %vm487, %v485
        %497 = vst.msk [vmem:[#allocation2 + $0x19] sm:$0xff] %vm487, %v486
        %v498 = vld [vmem:[%s2] sm:$0xf]
        %v499 = vld [vmem:[#allocation2] sm:$0xff]
        %v500 = vld [vmem:[#allocation2 + $0x8] sm:$0xff]
        %v501 = vld [vmem:[#allocation2 + $0x10] sm:$0xff]
        %v502 = vld [vmem:[#allocation2 + $0x18] sm:$0xff]
        %v503 = vpack.c.bf16 %v500, %v499
        %v504 = vpack.c.bf16 %v502, %v501
        %v505 = vld [vmem:[%s1] sm:$0xff]
        %v506 = vld [vmem:[%s1 + $0x8] sm:$0xff]
        %v507 = vld [vmem:[%s1 + $0x10] sm:$0xff]
        %v508 = vld [vmem:[%s1 + $0x18] sm:$0xff]
        %v509 = vld [vmem:[%s1 + $0x20] sm:$0xff]
        %v510 = vld [vmem:[%s1 + $0x28] sm:$0xff]
        %v511 = vld [vmem:[%s1 + $0x30] sm:$0xff]
        %v512 = vld [vmem:[%s1 + $0x38] sm:$0xff]
        %v521 = vunpack.c.l.b16 %v505
        %v522 = vunpack.c.h.b16 %v505
        %v523 = vunpack.c.l.b16 %v506
        %v524 = vunpack.c.h.b16 %v506
        %v525 = vunpack.c.l.b16 %v507
        %v526 = vunpack.c.h.b16 %v507
        %v527 = vunpack.c.l.b16 %v508
        %v528 = vunpack.c.h.b16 %v508
        %v529 = vunpack.c.l.b16 %v509
        %v530 = vunpack.c.h.b16 %v509
        %v531 = vunpack.c.l.b16 %v510
        %v532 = vunpack.c.h.b16 %v510
        %v533 = vunpack.c.l.b16 %v511
        %v534 = vunpack.c.h.b16 %v511
        %v535 = vunpack.c.l.b16 %v512
        %v536 = vunpack.c.h.b16 %v512
        %v537 = vpack.c.b16 %v525, %v521
        %v538 = vpack.c.b16 %v526, %v522
        %v539 = vpack.c.b16 %v527, %v523
        %v540 = vpack.c.b16 %v528, %v524
        %v541 = vpack.c.b16 %v533, %v529
        %v542 = vpack.c.b16 %v534, %v530
        %v543 = vpack.c.b16 %v535, %v531
        %v544 = vpack.c.b16 %v536, %v532
        %v554 = vsel %vm487, %v503, 0
        %v557 = vsel %vm487, %v504, 0
        %559 = vmatprep.subr.bf16.mxu0 %v538
        %560 = vmatpush1.bf16.msra.mxu0 %v537
        %561 = vmatprep.subr.bf16.mxu0 %v542
        %562 = vmatpush1.bf16.msra.mxu0 %v541
        %563 = vmatprep.subr.bf16.mxu0 0
        %564 = vmatpush1.bf16.msra.mxu0 0
        %565 = vmatprep.subr.bf16.mxu0 0
        %566 = vmatpush1.bf16.msra.mxu0 0
        %567 = vmatprep.subr.bf16.mxu0 0
        %568 = vmatpush1.bf16.msra.mxu0 0
        %569 = vmatprep.subr.bf16.mxu0 0
        %570 = vmatpush1.bf16.msra.mxu0 0
        %571 = vmatprep.subr.bf16.mxu0 0
        %572 = vmatpush1.bf16.msra.mxu0 0
        %573 = vmatprep.subr.bf16.mxu0 0
        %574 = vmatpush1.bf16.msra.mxu0 0
        %575 = vmatprep.subr.bf16.mxu0 0
        %576 = vmatpush1.bf16.msra.mxu0 0
        %577 = vmatprep.subr.bf16.mxu0 0
        %578 = vmatpush1.bf16.msra.mxu0 0
        %579 = vmatprep.subr.bf16.mxu0 0
        %580 = vmatpush1.bf16.msra.mxu0 0
        %581 = vmatprep.subr.bf16.mxu0 0
        %582 = vmatpush1.bf16.msra.mxu0 0
        %583 = vmatprep.subr.bf16.mxu0 0
        %584 = vmatpush1.bf16.msra.mxu0 0
        %585 = vmatprep.subr.bf16.mxu0 0
        %586 = vmatpush1.bf16.msra.mxu0 0
        %587 = vmatprep.subr.bf16.mxu0 0
        %588 = vmatpush1.bf16.msra.mxu0 0
        %589 = vmatprep.subr.bf16.mxu0 0
        %590 = vmatpush1.bf16.msra.mxu0 0
        %591 = vmatprep.mubr.bf16.mxu0 0
        %592 = vmatmul.mubr.bf16.gmra.mrb[0].mxu0 %v554
        %v593 = vpop.f32.mrb[0].mxu0
        %v594 = vadd.f32 0.0, %v593
        %v595 = vpop.f32.mrb[0].mxu0
        %v596 = vadd.f32 0.0, %v595
        %v597 = vpop.f32.mrb[0].mxu0
        %v598 = vadd.f32 0.0, %v597
        %v599 = vpop.f32.mrb[0].mxu0
        %v600 = vadd.f32 0.0, %v599
        %601 = vmatprep.mubr.bf16.mxu0 0
        %602 = vmatmul.mubr.bf16.gmra.mrb[0].mxu0 %v557
        %v603 = vpop.f32.mrb[0].mxu0
        %v604 = vadd.f32 0.0, %v603
        %v605 = vpop.f32.mrb[0].mxu0
        %v606 = vadd.f32 0.0, %v605
        %v607 = vpop.f32.mrb[0].mxu0
        %v608 = vadd.f32 0.0, %v607
        %v609 = vpop.f32.mrb[0].mxu0
        %v610 = vadd.f32 0.0, %v609
        %611 = vdwg.mxu0
        %612 = vmatprep.subr.bf16.mxu0 %v540
        %613 = vmatpush1.bf16.msra.mxu0 %v539
        %614 = vmatprep.subr.bf16.mxu0 %v544
        %615 = vmatpush1.bf16.msra.mxu0 %v543
        %616 = vmatprep.subr.bf16.mxu0 0
        %617 = vmatpush1.bf16.msra.mxu0 0
        %618 = vmatprep.subr.bf16.mxu0 0
        %619 = vmatpush1.bf16.msra.mxu0 0
        %620 = vmatprep.subr.bf16.mxu0 0
        %621 = vmatpush1.bf16.msra.mxu0 0
        %622 = vmatprep.subr.bf16.mxu0 0
        %623 = vmatpush1.bf16.msra.mxu0 0
        %624 = vmatprep.subr.bf16.mxu0 0
        %625 = vmatpush1.bf16.msra.mxu0 0
        %626 = vmatprep.subr.bf16.mxu0 0
        %627 = vmatpush1.bf16.msra.mxu0 0
        %628 = vmatprep.subr.bf16.mxu0 0
        %629 = vmatpush1.bf16.msra.mxu0 0
        %630 = vmatprep.subr.bf16.mxu0 0
        %631 = vmatpush1.bf16.msra.mxu0 0
        %632 = vmatprep.subr.bf16.mxu0 0
        %633 = vmatpush1.bf16.msra.mxu0 0
        %634 = vmatprep.subr.bf16.mxu0 0
        %635 = vmatpush1.bf16.msra.mxu0 0
        %636 = vmatprep.subr.bf16.mxu0 0
        %637 = vmatpush1.bf16.msra.mxu0 0
        %638 = vmatprep.subr.bf16.mxu0 0
        %639 = vmatpush1.bf16.msra.mxu0 0
        %640 = vmatprep.subr.bf16.mxu0 0
        %641 = vmatpush1.bf16.msra.mxu0 0
        %642 = vmatprep.subr.bf16.mxu0 0
        %643 = vmatpush1.bf16.msra.mxu0 0
        %644 = vmatprep.mubr.bf16.mxu0 0
        %645 = vmatmul.mubr.bf16.gmra.mrb[0].mxu0 %v554
        %v646 = vpop.f32.mrb[0].mxu0
        %v647 = vadd.f32 0.0, %v646
        %v648 = vpop.f32.mrb[0].mxu0
        %v649 = vadd.f32 0.0, %v648
        %v650 = vpop.f32.mrb[0].mxu0
        %v651 = vadd.f32 0.0, %v650
        %v652 = vpop.f32.mrb[0].mxu0
        %v653 = vadd.f32 0.0, %v652
        %654 = vmatprep.mubr.bf16.mxu0 0
        %655 = vmatmul.mubr.bf16.gmra.mrb[0].mxu0 %v557
        %v656 = vpop.f32.mrb[0].mxu0
        %v657 = vadd.f32 0.0, %v656
        %v658 = vpop.f32.mrb[0].mxu0
        %v659 = vadd.f32 0.0, %v658
        %v660 = vpop.f32.mrb[0].mxu0
        %v661 = vadd.f32 0.0, %v660
        %v662 = vpop.f32.mrb[0].mxu0
        %v663 = vadd.f32 0.0, %v662
        %664 = vdwg.mxu0
        %v666 = vlaneseq
        %v667 = vshrl.u32 %v666, 7
        %v668 = vsub.s32 0, %v667
        %v669 = vrot.slane %v498, %v668
        %v670 = vlaneseq
        %v671 = vshrl.u32 %v670, 7
        %v672 = vsub.s32 1, %v671
        %v673 = vrot.slane %v498, %v672
        %v674 = vlaneseq
        %v675 = vshrl.u32 %v674, 7
        %v676 = vsub.s32 2, %v675
        %v677 = vrot.slane %v498, %v676
        %v678 = vlaneseq
        %v679 = vshrl.u32 %v678, 7
        %v680 = vsub.s32 3, %v679
        %v681 = vrot.slane %v498, %v680
        %v686 = vadd.f32 %v669, %v594
        %v687 = vadd.f32 %v673, %v596
        %v688 = vadd.f32 %v677, %v647
        %v689 = vadd.f32 %v681, %v649
        %v690 = vadd.f32 %v669, %v598
        %v691 = vadd.f32 %v673, %v600
        %v692 = vadd.f32 %v677, %v651
        %v693 = vadd.f32 %v681, %v653
        %v694 = vadd.f32 %v669, %v604
        %v695 = vadd.f32 %v673, %v606
        %v696 = vadd.f32 %v677, %v657
        %v697 = vadd.f32 %v681, %v659
        %v698 = vadd.f32 %v669, %v608
        %v699 = vadd.f32 %v673, %v610
        %v700 = vadd.f32 %v677, %v661
        %v701 = vadd.f32 %v681, %v663
        %v702 = vld [vmem:[#allocation2 + $0x1] sm:$0xff]
        %v703 = vld [vmem:[#allocation2 + $0x9] sm:$0xff]
        %v704 = vld [vmem:[#allocation2 + $0x11] sm:$0xff]
        %v705 = vld [vmem:[#allocation2 + $0x19] sm:$0xff]
        %v706 = vpack.c.bf16 %v703, %v702
        %v707 = vpack.c.bf16 %v705, %v704
        %s708 = scalar_lea.vmem %s1, 64
        %v709 = vld [vmem:[%s708] sm:$0xff]
        %v710 = vld [vmem:[%s708 + $0x8] sm:$0xff]
        %v711 = vld [vmem:[%s708 + $0x10] sm:$0xff]
        %v712 = vld [vmem:[%s708 + $0x18] sm:$0xff]
        %v713 = vld [vmem:[%s708 + $0x20] sm:$0xff]
        %v714 = vld [vmem:[%s708 + $0x28] sm:$0xff]
        %v715 = vld [vmem:[%s708 + $0x30] sm:$0xff]
        %v716 = vld [vmem:[%s708 + $0x38] sm:$0xff]
        %v725 = vunpack.c.l.b16 %v709
        %v726 = vunpack.c.h.b16 %v709
        %v727 = vunpack.c.l.b16 %v710
        %v728 = vunpack.c.h.b16 %v710
        %v729 = vunpack.c.l.b16 %v711
        %v730 = vunpack.c.h.b16 %v711
        %v731 = vunpack.c.l.b16 %v712
        %v732 = vunpack.c.h.b16 %v712
        %v733 = vunpack.c.l.b16 %v713
        %v734 = vunpack.c.h.b16 %v713
        %v735 = vunpack.c.l.b16 %v714
        %v736 = vunpack.c.h.b16 %v714
        %v737 = vunpack.c.l.b16 %v715
        %v738 = vunpack.c.h.b16 %v715
        %v739 = vunpack.c.l.b16 %v716
        %v740 = vunpack.c.h.b16 %v716
        %v741 = vpack.c.b16 %v729, %v725
        %v742 = vpack.c.b16 %v730, %v726
        %v743 = vpack.c.b16 %v731, %v727
        %v744 = vpack.c.b16 %v732, %v728
        %v745 = vpack.c.b16 %v737, %v733
        %v746 = vpack.c.b16 %v738, %v734
        %v747 = vpack.c.b16 %v739, %v735
        %v748 = vpack.c.b16 %v740, %v736
        %v758 = vsel %vm487, %v706, 0
        %v761 = vsel %vm487, %v707, 0
        %763 = vmatprep.subr.bf16.mxu0 %v742
        %764 = vmatpush1.bf16.msra.mxu0 %v741
        %765 = vmatprep.subr.bf16.mxu0 %v746
        %766 = vmatpush1.bf16.msra.mxu0 %v745
        %767 = vmatprep.subr.bf16.mxu0 0
        %768 = vmatpush1.bf16.msra.mxu0 0
        %769 = vmatprep.subr.bf16.mxu0 0
        %770 = vmatpush1.bf16.msra.mxu0 0
        %771 = vmatprep.subr.bf16.mxu0 0
        %772 = vmatpush1.bf16.msra.mxu0 0
        %773 = vmatprep.subr.bf16.mxu0 0
        %774 = vmatpush1.bf16.msra.mxu0 0
        %775 = vmatprep.subr.bf16.mxu0 0
        %776 = vmatpush1.bf16.msra.mxu0 0
        %777 = vmatprep.subr.bf16.mxu0 0
        %778 = vmatpush1.bf16.msra.mxu0 0
        %779 = vmatprep.subr.bf16.mxu0 0
        %780 = vmatpush1.bf16.msra.mxu0 0
        %781 = vmatprep.subr.bf16.mxu0 0
        %782 = vmatpush1.bf16.msra.mxu0 0
        %783 = vmatprep.subr.bf16.mxu0 0
        %784 = vmatpush1.bf16.msra.mxu0 0
        %785 = vmatprep.subr.bf16.mxu0 0
        %786 = vmatpush1.bf16.msra.mxu0 0
        %787 = vmatprep.subr.bf16.mxu0 0
        %788 = vmatpush1.bf16.msra.mxu0 0
        %789 = vmatprep.subr.bf16.mxu0 0
        %790 = vmatpush1.bf16.msra.mxu0 0
        %791 = vmatprep.subr.bf16.mxu0 0
        %792 = vmatpush1.bf16.msra.mxu0 0
        %793 = vmatprep.subr.bf16.mxu0 0
        %794 = vmatpush1.bf16.msra.mxu0 0
        %795 = vmatprep.mubr.bf16.mxu0 0
        %796 = vmatmul.mubr.bf16.gmra.mrb[0].mxu0 %v758
        %v797 = vpop.f32.mrb[0].mxu0
        %v798 = vadd.f32 0.0, %v797
        %v799 = vpop.f32.mrb[0].mxu0
        %v800 = vadd.f32 0.0, %v799
        %v801 = vpop.f32.mrb[0].mxu0
        %v802 = vadd.f32 0.0, %v801
        %v803 = vpop.f32.mrb[0].mxu0
        %v804 = vadd.f32 0.0, %v803
        %805 = vmatprep.mubr.bf16.mxu0 0
        %806 = vmatmul.mubr.bf16.gmra.mrb[0].mxu0 %v761
        %v807 = vpop.f32.mrb[0].mxu0
        %v808 = vadd.f32 0.0, %v807
        %v809 = vpop.f32.mrb[0].mxu0
        %v810 = vadd.f32 0.0, %v809
        %v811 = vpop.f32.mrb[0].mxu0
        %v812 = vadd.f32 0.0, %v811
        %v813 = vpop.f32.mrb[0].mxu0
        %v814 = vadd.f32 0.0, %v813
        %815 = vdwg.mxu0
        %816 = vmatprep.subr.bf16.mxu0 %v744
        %817 = vmatpush1.bf16.msra.mxu0 %v743
        %818 = vmatprep.subr.bf16.mxu0 %v748
        %819 = vmatpush1.bf16.msra.mxu0 %v747
        %820 = vmatprep.subr.bf16.mxu0 0
        %821 = vmatpush1.bf16.msra.mxu0 0
        %822 = vmatprep.subr.bf16.mxu0 0
        %823 = vmatpush1.bf16.msra.mxu0 0
        %824 = vmatprep.subr.bf16.mxu0 0
        %825 = vmatpush1.bf16.msra.mxu0 0
        %826 = vmatprep.subr.bf16.mxu0 0
        %827 = vmatpush1.bf16.msra.mxu0 0
        %828 = vmatprep.subr.bf16.mxu0 0
        %829 = vmatpush1.bf16.msra.mxu0 0
        %830 = vmatprep.subr.bf16.mxu0 0
        %831 = vmatpush1.bf16.msra.mxu0 0
        %832 = vmatprep.subr.bf16.mxu0 0
        %833 = vmatpush1.bf16.msra.mxu0 0
        %834 = vmatprep.subr.bf16.mxu0 0
        %835 = vmatpush1.bf16.msra.mxu0 0
        %836 = vmatprep.subr.bf16.mxu0 0
        %837 = vmatpush1.bf16.msra.mxu0 0
        %838 = vmatprep.subr.bf16.mxu0 0
        %839 = vmatpush1.bf16.msra.mxu0 0
        %840 = vmatprep.subr.bf16.mxu0 0
        %841 = vmatpush1.bf16.msra.mxu0 0
        %842 = vmatprep.subr.bf16.mxu0 0
        %843 = vmatpush1.bf16.msra.mxu0 0
        %844 = vmatprep.subr.bf16.mxu0 0
        %845 = vmatpush1.bf16.msra.mxu0 0
        %846 = vmatprep.subr.bf16.mxu0 0
        %847 = vmatpush1.bf16.msra.mxu0 0
        %848 = vmatprep.mubr.bf16.mxu0 0
        %849 = vmatmul.mubr.bf16.gmra.mrb[0].mxu0 %v758
        %v850 = vpop.f32.mrb[0].mxu0
        %v851 = vadd.f32 0.0, %v850
        %v852 = vpop.f32.mrb[0].mxu0
        %v853 = vadd.f32 0.0, %v852
        %v854 = vpop.f32.mrb[0].mxu0
        %v855 = vadd.f32 0.0, %v854
        %v856 = vpop.f32.mrb[0].mxu0
        %v857 = vadd.f32 0.0, %v856
        %858 = vmatprep.mubr.bf16.mxu0 0
        %859 = vmatmul.mubr.bf16.gmra.mrb[0].mxu0 %v761
        %v860 = vpop.f32.mrb[0].mxu0
        %v861 = vadd.f32 0.0, %v860
        %v862 = vpop.f32.mrb[0].mxu0
        %v863 = vadd.f32 0.0, %v862
        %v864 = vpop.f32.mrb[0].mxu0
        %v865 = vadd.f32 0.0, %v864
        %v866 = vpop.f32.mrb[0].mxu0
        %v867 = vadd.f32 0.0, %v866
        %868 = vdwg.mxu0
        %v869 = vadd.f32 %v686, %v798
        %v870 = vadd.f32 %v687, %v800
        %v871 = vadd.f32 %v688, %v851
        %v872 = vadd.f32 %v689, %v853
        %v873 = vadd.f32 %v690, %v802
        %v874 = vadd.f32 %v691, %v804
        %v875 = vadd.f32 %v692, %v855
        %v876 = vadd.f32 %v693, %v857
        %v877 = vadd.f32 %v694, %v808
        %v878 = vadd.f32 %v695, %v810
        %v879 = vadd.f32 %v696, %v861
        %v880 = vadd.f32 %v697, %v863
        %v881 = vadd.f32 %v698, %v812
        %v882 = vadd.f32 %v699, %v814
        %v883 = vadd.f32 %v700, %v865
        %v884 = vadd.f32 %v701, %v867
        %v885 = vld [vmem:[#allocation2 + $0x2] sm:$0xff]
        %v886 = vld [vmem:[#allocation2 + $0xa] sm:$0xff]
        %v887 = vld [vmem:[#allocation2 + $0x12] sm:$0xff]
        %v888 = vld [vmem:[#allocation2 + $0x1a] sm:$0xff]
        %v889 = vpack.c.bf16 %v886, %v885
        %v890 = vpack.c.bf16 %v888, %v887
        %s891 = scalar_lea.vmem %s1, 128
        %v892 = vld [vmem:[%s891] sm:$0xff]
        %v893 = vld [vmem:[%s891 + $0x8] sm:$0xff]
        %v894 = vld [vmem:[%s891 + $0x10] sm:$0xff]
        %v895 = vld [vmem:[%s891 + $0x18] sm:$0xff]
        %v896 = vld [vmem:[%s891 + $0x20] sm:$0xff]
        %v897 = vld [vmem:[%s891 + $0x28] sm:$0xff]
        %v898 = vld [vmem:[%s891 + $0x30] sm:$0xff]
        %v899 = vld [vmem:[%s891 + $0x38] sm:$0xff]
        %v908 = vunpack.c.l.b16 %v892
        %v909 = vunpack.c.h.b16 %v892
        %v910 = vunpack.c.l.b16 %v893
        %v911 = vunpack.c.h.b16 %v893
        %v912 = vunpack.c.l.b16 %v894
        %v913 = vunpack.c.h.b16 %v894
        %v914 = vunpack.c.l.b16 %v895
        %v915 = vunpack.c.h.b16 %v895
        %v916 = vunpack.c.l.b16 %v896
        %v917 = vunpack.c.h.b16 %v896
        %v918 = vunpack.c.l.b16 %v897
        %v919 = vunpack.c.h.b16 %v897
        %v920 = vunpack.c.l.b16 %v898
        %v921 = vunpack.c.h.b16 %v898
        %v922 = vunpack.c.l.b16 %v899
        %v923 = vunpack.c.h.b16 %v899
        %v924 = vpack.c.b16 %v912, %v908
        %v925 = vpack.c.b16 %v913, %v909
        %v926 = vpack.c.b16 %v914, %v910
        %v927 = vpack.c.b16 %v915, %v911
        %v928 = vpack.c.b16 %v920, %v916
        %v929 = vpack.c.b16 %v921, %v917
        %v930 = vpack.c.b16 %v922, %v918
        %v931 = vpack.c.b16 %v923, %v919
        %v941 = vsel %vm487, %v889, 0
        %v944 = vsel %vm487, %v890, 0
        %946 = vmatprep.subr.bf16.mxu0 %v925
        %947 = vmatpush1.bf16.msra.mxu0 %v924
        %948 = vmatprep.subr.bf16.mxu0 %v929
        %949 = vmatpush1.bf16.msra.mxu0 %v928
        %950 = vmatprep.subr.bf16.mxu0 0
        %951 = vmatpush1.bf16.msra.mxu0 0
        %952 = vmatprep.subr.bf16.mxu0 0
        %953 = vmatpush1.bf16.msra.mxu0 0
        %954 = vmatprep.subr.bf16.mxu0 0
        %955 = vmatpush1.bf16.msra.mxu0 0
        %956 = vmatprep.subr.bf16.mxu0 0
        %957 = vmatpush1.bf16.msra.mxu0 0
        %958 = vmatprep.subr.bf16.mxu0 0
        %959 = vmatpush1.bf16.msra.mxu0 0
        %960 = vmatprep.subr.bf16.mxu0 0
        %961 = vmatpush1.bf16.msra.mxu0 0
        %962 = vmatprep.subr.bf16.mxu0 0
        %963 = vmatpush1.bf16.msra.mxu0 0
        %964 = vmatprep.subr.bf16.mxu0 0
        %965 = vmatpush1.bf16.msra.mxu0 0
        %966 = vmatprep.subr.bf16.mxu0 0
        %967 = vmatpush1.bf16.msra.mxu0 0
        %968 = vmatprep.subr.bf16.mxu0 0
        %969 = vmatpush1.bf16.msra.mxu0 0
        %970 = vmatprep.subr.bf16.mxu0 0
        %971 = vmatpush1.bf16.msra.mxu0 0
        %972 = vmatprep.subr.bf16.mxu0 0
        %973 = vmatpush1.bf16.msra.mxu0 0
        %974 = vmatprep.subr.bf16.mxu0 0
        %975 = vmatpush1.bf16.msra.mxu0 0
        %976 = vmatprep.subr.bf16.mxu0 0
        %977 = vmatpush1.bf16.msra.mxu0 0
        %978 = vmatprep.mubr.bf16.mxu0 0
        %979 = vmatmul.mubr.bf16.gmra.mrb[0].mxu0 %v941
        %v980 = vpop.f32.mrb[0].mxu0
        %v981 = vadd.f32 0.0, %v980
        %v982 = vpop.f32.mrb[0].mxu0
        %v983 = vadd.f32 0.0, %v982
        %v984 = vpop.f32.mrb[0].mxu0
        %v985 = vadd.f32 0.0, %v984
        %v986 = vpop.f32.mrb[0].mxu0
        %v987 = vadd.f32 0.0, %v986
        %988 = vmatprep.mubr.bf16.mxu0 0
        %989 = vmatmul.mubr.bf16.gmra.mrb[0].mxu0 %v944
        %v990 = vpop.f32.mrb[0].mxu0
        %v991 = vadd.f32 0.0, %v990
        %v992 = vpop.f32.mrb[0].mxu0
        %v993 = vadd.f32 0.0, %v992
        %v994 = vpop.f32.mrb[0].mxu0
        %v995 = vadd.f32 0.0, %v994
        %v996 = vpop.f32.mrb[0].mxu0
        %v997 = vadd.f32 0.0, %v996
        %998 = vdwg.mxu0
        %999 = vmatprep.subr.bf16.mxu0 %v927
        %1000 = vmatpush1.bf16.msra.mxu0 %v926
        %1001 = vmatprep.subr.bf16.mxu0 %v931
        %1002 = vmatpush1.bf16.msra.mxu0 %v930
        %1003 = vmatprep.subr.bf16.mxu0 0
        %1004 = vmatpush1.bf16.msra.mxu0 0
        %1005 = vmatprep.subr.bf16.mxu0 0
        %1006 = vmatpush1.bf16.msra.mxu0 0
        %1007 = vmatprep.subr.bf16.mxu0 0
        %1008 = vmatpush1.bf16.msra.mxu0 0
        %1009 = vmatprep.subr.bf16.mxu0 0
        %1010 = vmatpush1.bf16.msra.mxu0 0
        %1011 = vmatprep.subr.bf16.mxu0 0
        %1012 = vmatpush1.bf16.msra.mxu0 0
        %1013 = vmatprep.subr.bf16.mxu0 0
        %1014 = vmatpush1.bf16.msra.mxu0 0
        %1015 = vmatprep.subr.bf16.mxu0 0
        %1016 = vmatpush1.bf16.msra.mxu0 0
        %1017 = vmatprep.subr.bf16.mxu0 0
        %1018 = vmatpush1.bf16.msra.mxu0 0
        %1019 = vmatprep.subr.bf16.mxu0 0
        %1020 = vmatpush1.bf16.msra.mxu0 0
        %1021 = vmatprep.subr.bf16.mxu0 0
        %1022 = vmatpush1.bf16.msra.mxu0 0
        %1023 = vmatprep.subr.bf16.mxu0 0
        %1024 = vmatpush1.bf16.msra.mxu0 0
        %1025 = vmatprep.subr.bf16.mxu0 0
        %1026 = vmatpush1.bf16.msra.mxu0 0
        %1027 = vmatprep.subr.bf16.mxu0 0
        %1028 = vmatpush1.bf16.msra.mxu0 0
        %1029 = vmatprep.subr.bf16.mxu0 0
        %1030 = vmatpush1.bf16.msra.mxu0 0
        %1031 = vmatprep.mubr.bf16.mxu0 0
        %1032 = vmatmul.mubr.bf16.gmra.mrb[0].mxu0 %v941
        %v1033 = vpop.f32.mrb[0].mxu0
        %v1034 = vadd.f32 0.0, %v1033
        %v1035 = vpop.f32.mrb[0].mxu0
        %v1036 = vadd.f32 0.0, %v1035
        %v1037 = vpop.f32.mrb[0].mxu0
        %v1038 = vadd.f32 0.0, %v1037
        %v1039 = vpop.f32.mrb[0].mxu0
        %v1040 = vadd.f32 0.0, %v1039
        %1041 = vmatprep.mubr.bf16.mxu0 0
        %1042 = vmatmul.mubr.bf16.gmra.mrb[0].mxu0 %v944
        %v1043 = vpop.f32.mrb[0].mxu0
        %v1044 = vadd.f32 0.0, %v1043
        %v1045 = vpop.f32.mrb[0].mxu0
        %v1046 = vadd.f32 0.0, %v1045
        %v1047 = vpop.f32.mrb[0].mxu0
        %v1048 = vadd.f32 0.0, %v1047
        %v1049 = vpop.f32.mrb[0].mxu0
        %v1050 = vadd.f32 0.0, %v1049
        %1051 = vdwg.mxu0
        %v1052 = vadd.f32 %v869, %v981
        %v1053 = vadd.f32 %v870, %v983
        %v1054 = vadd.f32 %v871, %v1034
        %v1055 = vadd.f32 %v872, %v1036
        %v1056 = vadd.f32 %v873, %v985
        %v1057 = vadd.f32 %v874, %v987
        %v1058 = vadd.f32 %v875, %v1038
        %v1059 = vadd.f32 %v876, %v1040
        %v1060 = vadd.f32 %v877, %v991
        %v1061 = vadd.f32 %v878, %v993
        %v1062 = vadd.f32 %v879, %v1044
        %v1063 = vadd.f32 %v880, %v1046
        %v1064 = vadd.f32 %v881, %v995
        %v1065 = vadd.f32 %v882, %v997
        %v1066 = vadd.f32 %v883, %v1048
        %v1067 = vadd.f32 %v884, %v1050
        %v1068 = vmax.f32 %v1052, 0.0
        %v1069 = vmax.f32 %v1053, 0.0
        %v1070 = vmax.f32 %v1054, 0.0
        %v1071 = vmax.f32 %v1055, 0.0
        %v1072 = vmax.f32 %v1056, 0.0
        %v1073 = vmax.f32 %v1057, 0.0
        %v1074 = vmax.f32 %v1058, 0.0
        %v1075 = vmax.f32 %v1059, 0.0
        %v1076 = vmax.f32 %v1060, 0.0
        %v1077 = vmax.f32 %v1061, 0.0
        %v1078 = vmax.f32 %v1062, 0.0
        %v1079 = vmax.f32 %v1063, 0.0
        %v1080 = vmax.f32 %v1064, 0.0
        %v1081 = vmax.f32 %v1065, 0.0
        %v1082 = vmax.f32 %v1066, 0.0
        %v1083 = vmax.f32 %v1067, 0.0
        %v1084 = vpack.c.bf16 %v1072, %v1068
        %v1085 = vpack.c.bf16 %v1073, %v1069
        %v1086 = vpack.c.bf16 %v1074, %v1070
        %v1087 = vpack.c.bf16 %v1075, %v1071
        %v1088 = vpack.c.bf16 %v1080, %v1076
        %v1089 = vpack.c.bf16 %v1081, %v1077
        %v1090 = vpack.c.bf16 %v1082, %v1078
        %v1091 = vpack.c.bf16 %v1083, %v1079
        %v1092 = vld [vmem:[%s3] sm:$0xf]
        %v1093 = vld [vmem:[%s3 + $0x4] sm:$0xf]
        %v1096 = vunpack.c.l.b16 %v1092
        %v1097 = vunpack.c.l.b16 %v1093
        %v1098 = vpack.c.b16 %v1097, %v1096
        %v1100 = vsel %vm487, %v1098, 0
        %1102 = vmatprep.subr.bf16.mxu0 %v1085
        %1103 = vmatpush1.bf16.msra.mxu0 %v1084
        %1104 = vmatprep.subr.bf16.mxu0 %v1089
        %1105 = vmatpush1.bf16.msra.mxu0 %v1088
        %1106 = vmatprep.subr.bf16.mxu0 0
        %1107 = vmatpush1.bf16.msra.mxu0 0
        %1108 = vmatprep.subr.bf16.mxu0 0
        %1109 = vmatpush1.bf16.msra.mxu0 0
        %1110 = vmatprep.subr.bf16.mxu0 0
        %1111 = vmatpush1.bf16.msra.mxu0 0
        %1112 = vmatprep.subr.bf16.mxu0 0
        %1113 = vmatpush1.bf16.msra.mxu0 0
        %1114 = vmatprep.subr.bf16.mxu0 0
        %1115 = vmatpush1.bf16.msra.mxu0 0
        %1116 = vmatprep.subr.bf16.mxu0 0
        %1117 = vmatpush1.bf16.msra.mxu0 0
        %1118 = vmatprep.subr.bf16.mxu0 0
        %1119 = vmatpush1.bf16.msra.mxu0 0
        %1120 = vmatprep.subr.bf16.mxu0 0
        %1121 = vmatpush1.bf16.msra.mxu0 0
        %1122 = vmatprep.subr.bf16.mxu0 0
        %1123 = vmatpush1.bf16.msra.mxu0 0
        %1124 = vmatprep.subr.bf16.mxu0 0
        %1125 = vmatpush1.bf16.msra.mxu0 0
        %1126 = vmatprep.subr.bf16.mxu0 0
        %1127 = vmatpush1.bf16.msra.mxu0 0
        %1128 = vmatprep.subr.bf16.mxu0 0
        %1129 = vmatpush1.bf16.msra.mxu0 0
        %1130 = vmatprep.subr.bf16.mxu0 0
        %1131 = vmatpush1.bf16.msra.mxu0 0
        %1132 = vmatprep.subr.bf16.mxu0 0
        %1133 = vmatpush1.bf16.msra.mxu0 0
        %1134 = vmatprep.mubr.bf16.mxu0 0
        %1135 = vmatmul.mubr.bf16.gmra.mrb[0].mxu0 %v1100
        %v1136 = vpop.f32.mrb[0].mxu0
        %v1137 = vadd.f32 0.0, %v1136
        %v1138 = vpop.f32.mrb[0].mxu0
        %v1139 = vadd.f32 0.0, %v1138
        %v1140 = vpop.f32.mrb[0].mxu0
        %v1141 = vadd.f32 0.0, %v1140
        %v1142 = vpop.f32.mrb[0].mxu0
        %v1143 = vadd.f32 0.0, %v1142
        %1144 = vdwg.mxu0
        %1145 = vmatprep.subr.bf16.mxu0 %v1087
        %1146 = vmatpush1.bf16.msra.mxu0 %v1086
        %1147 = vmatprep.subr.bf16.mxu0 %v1091
        %1148 = vmatpush1.bf16.msra.mxu0 %v1090
        %1149 = vmatprep.subr.bf16.mxu0 0
        %1150 = vmatpush1.bf16.msra.mxu0 0
        %1151 = vmatprep.subr.bf16.mxu0 0
        %1152 = vmatpush1.bf16.msra.mxu0 0
        %1153 = vmatprep.subr.bf16.mxu0 0
        %1154 = vmatpush1.bf16.msra.mxu0 0
        %1155 = vmatprep.subr.bf16.mxu0 0
        %1156 = vmatpush1.bf16.msra.mxu0 0
        %1157 = vmatprep.subr.bf16.mxu0 0
        %1158 = vmatpush1.bf16.msra.mxu0 0
        %1159 = vmatprep.subr.bf16.mxu0 0
        %1160 = vmatpush1.bf16.msra.mxu0 0
        %1161 = vmatprep.subr.bf16.mxu0 0
        %1162 = vmatpush1.bf16.msra.mxu0 0
        %1163 = vmatprep.subr.bf16.mxu0 0
        %1164 = vmatpush1.bf16.msra.mxu0 0
        %1165 = vmatprep.subr.bf16.mxu0 0
        %1166 = vmatpush1.bf16.msra.mxu0 0
        %1167 = vmatprep.subr.bf16.mxu0 0
        %1168 = vmatpush1.bf16.msra.mxu0 0
        %1169 = vmatprep.subr.bf16.mxu0 0
        %1170 = vmatpush1.bf16.msra.mxu0 0
        %1171 = vmatprep.subr.bf16.mxu0 0
        %1172 = vmatpush1.bf16.msra.mxu0 0
        %1173 = vmatprep.subr.bf16.mxu0 0
        %1174 = vmatpush1.bf16.msra.mxu0 0
        %1175 = vmatprep.subr.bf16.mxu0 0
        %1176 = vmatpush1.bf16.msra.mxu0 0
        %1177 = vmatprep.mubr.bf16.mxu0 0
        %1178 = vmatmul.mubr.bf16.gmra.mrb[0].mxu0 %v1100
        %v1179 = vpop.f32.mrb[0].mxu0
        %v1180 = vadd.f32 0.0, %v1179
        %v1181 = vpop.f32.mrb[0].mxu0
        %v1182 = vadd.f32 0.0, %v1181
        %v1183 = vpop.f32.mrb[0].mxu0
        %v1184 = vadd.f32 0.0, %v1183
        %v1185 = vpop.f32.mrb[0].mxu0
        %v1186 = vadd.f32 0.0, %v1185
        %1187 = vdwg.mxu0
        %s1188 = scalar_lea.vmem %s3, 8
        %v1189 = vld [vmem:[%s1188] sm:$0xf]
        %v1190 = vld [vmem:[%s1188 + $0x4] sm:$0xf]
        %v1193 = vunpack.c.l.b16 %v1189
        %v1194 = vunpack.c.l.b16 %v1190
        %v1195 = vpack.c.b16 %v1194, %v1193
        %v1197 = vsel %vm487, %v1195, 0
        %1199 = vmatprep.subr.bf16.mxu0 %v1085
        %1200 = vmatpush1.bf16.msra.mxu0 %v1084
        %1201 = vmatprep.subr.bf16.mxu0 %v1089
        %1202 = vmatpush1.bf16.msra.mxu0 %v1088
        %1203 = vmatprep.subr.bf16.mxu0 0
        %1204 = vmatpush1.bf16.msra.mxu0 0
        %1205 = vmatprep.subr.bf16.mxu0 0
        %1206 = vmatpush1.bf16.msra.mxu0 0
        %1207 = vmatprep.subr.bf16.mxu0 0
        %1208 = vmatpush1.bf16.msra.mxu0 0
        %1209 = vmatprep.subr.bf16.mxu0 0
        %1210 = vmatpush1.bf16.msra.mxu0 0
        %1211 = vmatprep.subr.bf16.mxu0 0
        %1212 = vmatpush1.bf16.msra.mxu0 0
        %1213 = vmatprep.subr.bf16.mxu0 0
        %1214 = vmatpush1.bf16.msra.mxu0 0
        %1215 = vmatprep.subr.bf16.mxu0 0
        %1216 = vmatpush1.bf16.msra.mxu0 0
        %1217 = vmatprep.subr.bf16.mxu0 0
        %1218 = vmatpush1.bf16.msra.mxu0 0
        %1219 = vmatprep.subr.bf16.mxu0 0
        %1220 = vmatpush1.bf16.msra.mxu0 0
        %1221 = vmatprep.subr.bf16.mxu0 0
        %1222 = vmatpush1.bf16.msra.mxu0 0
        %1223 = vmatprep.subr.bf16.mxu0 0
        %1224 = vmatpush1.bf16.msra.mxu0 0
        %1225 = vmatprep.subr.bf16.mxu0 0
        %1226 = vmatpush1.bf16.msra.mxu0 0
        %1227 = vmatprep.subr.bf16.mxu0 0
        %1228 = vmatpush1.bf16.msra.mxu0 0
        %1229 = vmatprep.subr.bf16.mxu0 0
        %1230 = vmatpush1.bf16.msra.mxu0 0
        %1231 = vmatprep.mubr.bf16.mxu0 0
        %1232 = vmatmul.mubr.bf16.gmra.mrb[0].mxu0 %v1197
        %v1233 = vpop.f32.mrb[0].mxu0
        %v1234 = vadd.f32 0.0, %v1233
        %v1235 = vpop.f32.mrb[0].mxu0
        %v1236 = vadd.f32 0.0, %v1235
        %v1237 = vpop.f32.mrb[0].mxu0
        %v1238 = vadd.f32 0.0, %v1237
        %v1239 = vpop.f32.mrb[0].mxu0
        %v1240 = vadd.f32 0.0, %v1239
        %1241 = vdwg.mxu0
        %1242 = vmatprep.subr.bf16.mxu0 %v1087
        %1243 = vmatpush1.bf16.msra.mxu0 %v1086
        %1244 = vmatprep.subr.bf16.mxu0 %v1091
        %1245 = vmatpush1.bf16.msra.mxu0 %v1090
        %1246 = vmatprep.subr.bf16.mxu0 0
        %1247 = vmatpush1.bf16.msra.mxu0 0
        %1248 = vmatprep.subr.bf16.mxu0 0
        %1249 = vmatpush1.bf16.msra.mxu0 0
        %1250 = vmatprep.subr.bf16.mxu0 0
        %1251 = vmatpush1.bf16.msra.mxu0 0
        %1252 = vmatprep.subr.bf16.mxu0 0
        %1253 = vmatpush1.bf16.msra.mxu0 0
        %1254 = vmatprep.subr.bf16.mxu0 0
        %1255 = vmatpush1.bf16.msra.mxu0 0
        %1256 = vmatprep.subr.bf16.mxu0 0
        %1257 = vmatpush1.bf16.msra.mxu0 0
        %1258 = vmatprep.subr.bf16.mxu0 0
        %1259 = vmatpush1.bf16.msra.mxu0 0
        %1260 = vmatprep.subr.bf16.mxu0 0
        %1261 = vmatpush1.bf16.msra.mxu0 0
        %1262 = vmatprep.subr.bf16.mxu0 0
        %1263 = vmatpush1.bf16.msra.mxu0 0
        %1264 = vmatprep.subr.bf16.mxu0 0
        %1265 = vmatpush1.bf16.msra.mxu0 0
        %1266 = vmatprep.subr.bf16.mxu0 0
        %1267 = vmatpush1.bf16.msra.mxu0 0
        %1268 = vmatprep.subr.bf16.mxu0 0
        %1269 = vmatpush1.bf16.msra.mxu0 0
        %1270 = vmatprep.subr.bf16.mxu0 0
        %1271 = vmatpush1.bf16.msra.mxu0 0
        %1272 = vmatprep.subr.bf16.mxu0 0
        %1273 = vmatpush1.bf16.msra.mxu0 0
        %1274 = vmatprep.mubr.bf16.mxu0 0
        %1275 = vmatmul.mubr.bf16.gmra.mrb[0].mxu0 %v1197
        %v1276 = vpop.f32.mrb[0].mxu0
        %v1277 = vadd.f32 0.0, %v1276
        %v1278 = vpop.f32.mrb[0].mxu0
        %v1279 = vadd.f32 0.0, %v1278
        %v1280 = vpop.f32.mrb[0].mxu0
        %v1281 = vadd.f32 0.0, %v1280
        %v1282 = vpop.f32.mrb[0].mxu0
        %v1283 = vadd.f32 0.0, %v1282
        %1284 = vdwg.mxu0
        %v1285 = vmax.f32 %v1137, %v1234
        %v1286 = vmax.f32 %v1139, %v1236
        %v1287 = vmax.f32 %v1180, %v1277
        %v1288 = vmax.f32 %v1182, %v1279
        %v1289 = vmax.f32 %v1141, %v1238
        %v1290 = vmax.f32 %v1143, %v1240
        %v1291 = vmax.f32 %v1184, %v1281
        %v1292 = vmax.f32 %v1186, %v1283
        %v1293 = vpack.c.bf16 %v1289, %v1285
        %v1294 = vpack.c.bf16 %v1290, %v1286
        %v1295 = vpack.c.bf16 %v1291, %v1287
        %v1296 = vpack.c.bf16 %v1292, %v1288
        %v1297 = vld [vmem:[#allocation5] sm:$0xff]
        %v1298 = vld [vmem:[#allocation5 + $0x8] sm:$0xff]
        %v1299 = vld [vmem:[#allocation5 + $0x10] sm:$0xff]
        %v1300 = vld [vmem:[#allocation5 + $0x18] sm:$0xff]
        %v1301 = vld [vmem:[#allocation5 + $0x20] sm:$0xff]
        %v1302 = vld [vmem:[#allocation5 + $0x28] sm:$0xff]
        %v1303 = vld [vmem:[#allocation5 + $0x30] sm:$0xff]
        %v1304 = vld [vmem:[#allocation5 + $0x38] sm:$0xff]
        %v1305 = vld [vmem:[#allocation5 + $0x40] sm:$0xff]
        %v1306 = vld [vmem:[#allocation5 + $0x48] sm:$0xff]
        %v1307 = vld [vmem:[#allocation5 + $0x50] sm:$0xff]
        %v1308 = vld [vmem:[#allocation5 + $0x58] sm:$0xff]
        %v1309 = vld [vmem:[#allocation5 + $0x60] sm:$0xff]
        %v1310 = vld [vmem:[#allocation5 + $0x68] sm:$0xff]
        %v1311 = vld [vmem:[#allocation5 + $0x70] sm:$0xff]
        %v1312 = vld [vmem:[#allocation5 + $0x78] sm:$0xff]
        %v1313 = vld [vmem:[#allocation5 + $0x80] sm:$0xff]
        %v1314 = vld [vmem:[#allocation5 + $0x88] sm:$0xff]
        %v1315 = vld [vmem:[#allocation5 + $0x90] sm:$0xff]
        %v1316 = vld [vmem:[#allocation5 + $0x98] sm:$0xff]
        %v1317 = vld [vmem:[#allocation5 + $0xa0] sm:$0xff]
        %v1318 = vld [vmem:[#allocation5 + $0xa8] sm:$0xff]
        %v1319 = vld [vmem:[#allocation5 + $0xb0] sm:$0xff]
        %v1320 = vld [vmem:[#allocation5 + $0xb8] sm:$0xff]
        %v1321 = vld [vmem:[#allocation5 + $0xc0] sm:$0xff]
        %v1322 = vld [vmem:[#allocation5 + $0xc8] sm:$0xff]
        %v1323 = vld [vmem:[#allocation5 + $0xd0] sm:$0xff]
        %v1324 = vld [vmem:[#allocation5 + $0xd8] sm:$0xff]
        %v1325 = vld [vmem:[#allocation5 + $0xe0] sm:$0xff]
        %v1326 = vld [vmem:[#allocation5 + $0xe8] sm:$0xff]
        %v1327 = vld [vmem:[#allocation5 + $0xf0] sm:$0xff]
        %v1328 = vld [vmem:[#allocation5 + $0xf8] sm:$0xff]
        %v1329 = vld [vmem:[#allocation5 + $0x100] sm:$0xff]
        %v1330 = vld [vmem:[#allocation5 + $0x108] sm:$0xff]
        %v1331 = vld [vmem:[#allocation5 + $0x110] sm:$0xff]
        %v1332 = vld [vmem:[#allocation5 + $0x118] sm:$0xff]
        %v1333 = vld [vmem:[#allocation5 + $0x120] sm:$0xff]
        %v1334 = vld [vmem:[#allocation5 + $0x128] sm:$0xff]
        %v1335 = vld [vmem:[#allocation5 + $0x130] sm:$0xff]
        %v1336 = vld [vmem:[#allocation5 + $0x138] sm:$0xff]
        %v1337 = vld [vmem:[#allocation5 + $0x140] sm:$0xff]
        %v1338 = vld [vmem:[#allocation5 + $0x148] sm:$0xff]
        %v1339 = vld [vmem:[#allocation5 + $0x150] sm:$0xff]
        %v1340 = vld [vmem:[#allocation5 + $0x158] sm:$0xff]
        %v1341 = vld [vmem:[#allocation5 + $0x160] sm:$0xff]
        %v1342 = vld [vmem:[#allocation5 + $0x168] sm:$0xff]
        %v1343 = vld [vmem:[#allocation5 + $0x170] sm:$0xff]
        %v1344 = vld [vmem:[#allocation5 + $0x178] sm:$0xff]
        %v1345 = vld [vmem:[#allocation5 + $0x180] sm:$0xff]
        %v1346 = vld [vmem:[#allocation5 + $0x188] sm:$0xff]
        %v1347 = vld [vmem:[#allocation5 + $0x190] sm:$0xff]
        %v1348 = vld [vmem:[#allocation5 + $0x198] sm:$0xff]
        %v1349 = vld [vmem:[#allocation5 + $0x1a0] sm:$0xff]
        %v1350 = vld [vmem:[#allocation5 + $0x1a8] sm:$0xff]
        %v1351 = vld [vmem:[#allocation5 + $0x1b0] sm:$0xff]
        %v1352 = vld [vmem:[#allocation5 + $0x1b8] sm:$0xff]
        %v1353 = vld [vmem:[#allocation5 + $0x1c0] sm:$0xff]
        %v1354 = vld [vmem:[#allocation5 + $0x1c8] sm:$0xff]
        %v1355 = vld [vmem:[#allocation5 + $0x1d0] sm:$0xff]
        %v1356 = vld [vmem:[#allocation5 + $0x1d8] sm:$0xff]
        %v1357 = vld [vmem:[#allocation5 + $0x1e0] sm:$0xff]
        %v1358 = vld [vmem:[#allocation5 + $0x1e8] sm:$0xff]
        %v1359 = vld [vmem:[#allocation5 + $0x1f0] sm:$0xff]
        %v1360 = vld [vmem:[#allocation5 + $0x1f8] sm:$0xff]
        %v1425 = vunpack.c.l.b16 %v1297
        %v1426 = vunpack.c.h.b16 %v1297
        %v1427 = vunpack.c.l.b16 %v1298
        %v1428 = vunpack.c.h.b16 %v1298
        %v1429 = vunpack.c.l.b16 %v1299
        %v1430 = vunpack.c.h.b16 %v1299
        %v1431 = vunpack.c.l.b16 %v1300
        %v1432 = vunpack.c.h.b16 %v1300
        %v1433 = vunpack.c.l.b16 %v1301
        %v1434 = vunpack.c.h.b16 %v1301
        %v1435 = vunpack.c.l.b16 %v1302
        %v1436 = vunpack.c.h.b16 %v1302
        %v1437 = vunpack.c.l.b16 %v1303
        %v1438 = vunpack.c.h.b16 %v1303
        %v1439 = vunpack.c.l.b16 %v1304
        %v1440 = vunpack.c.h.b16 %v1304
        %v1441 = vunpack.c.l.b16 %v1305
        %v1442 = vunpack.c.h.b16 %v1305
        %v1443 = vunpack.c.l.b16 %v1306
        %v1444 = vunpack.c.h.b16 %v1306
        %v1445 = vunpack.c.l.b16 %v1307
        %v1446 = vunpack.c.h.b16 %v1307
        %v1447 = vunpack.c.l.b16 %v1308
        %v1448 = vunpack.c.h.b16 %v1308
        %v1449 = vunpack.c.l.b16 %v1309
        %v1450 = vunpack.c.h.b16 %v1309
        %v1451 = vunpack.c.l.b16 %v1310
        %v1452 = vunpack.c.h.b16 %v1310
        %v1453 = vunpack.c.l.b16 %v1311
        %v1454 = vunpack.c.h.b16 %v1311
        %v1455 = vunpack.c.l.b16 %v1312
        %v1456 = vunpack.c.h.b16 %v1312
        %v1457 = vunpack.c.l.b16 %v1313
        %v1458 = vunpack.c.h.b16 %v1313
        %v1459 = vunpack.c.l.b16 %v1314
        %v1460 = vunpack.c.h.b16 %v1314
        %v1461 = vunpack.c.l.b16 %v1315
        %v1462 = vunpack.c.h.b16 %v1315
        %v1463 = vunpack.c.l.b16 %v1316
        %v1464 = vunpack.c.h.b16 %v1316
        %v1465 = vunpack.c.l.b16 %v1317
        %v1466 = vunpack.c.h.b16 %v1317
        %v1467 = vunpack.c.l.b16 %v1318
        %v1468 = vunpack.c.h.b16 %v1318
        %v1469 = vunpack.c.l.b16 %v1319
        %v1470 = vunpack.c.h.b16 %v1319
        %v1471 = vunpack.c.l.b16 %v1320
        %v1472 = vunpack.c.h.b16 %v1320
        %v1473 = vunpack.c.l.b16 %v1321
        %v1474 = vunpack.c.h.b16 %v1321
        %v1475 = vunpack.c.l.b16 %v1322
        %v1476 = vunpack.c.h.b16 %v1322
        %v1477 = vunpack.c.l.b16 %v1323
        %v1478 = vunpack.c.h.b16 %v1323
        %v1479 = vunpack.c.l.b16 %v1324
        %v1480 = vunpack.c.h.b16 %v1324
        %v1481 = vunpack.c.l.b16 %v1325
        %v1482 = vunpack.c.h.b16 %v1325
        %v1483 = vunpack.c.l.b16 %v1326
        %v1484 = vunpack.c.h.b16 %v1326
        %v1485 = vunpack.c.l.b16 %v1327
        %v1486 = vunpack.c.h.b16 %v1327
        %v1487 = vunpack.c.l.b16 %v1328
        %v1488 = vunpack.c.h.b16 %v1328
        %v1489 = vunpack.c.l.b16 %v1329
        %v1490 = vunpack.c.h.b16 %v1329
        %v1491 = vunpack.c.l.b16 %v1330
        %v1492 = vunpack.c.h.b16 %v1330
        %v1493 = vunpack.c.l.b16 %v1331
        %v1494 = vunpack.c.h.b16 %v1331
        %v1495 = vunpack.c.l.b16 %v1332
        %v1496 = vunpack.c.h.b16 %v1332
        %v1497 = vunpack.c.l.b16 %v1333
        %v1498 = vunpack.c.h.b16 %v1333
        %v1499 = vunpack.c.l.b16 %v1334
        %v1500 = vunpack.c.h.b16 %v1334
        %v1501 = vunpack.c.l.b16 %v1335
        %v1502 = vunpack.c.h.b16 %v1335
        %v1503 = vunpack.c.l.b16 %v1336
        %v1504 = vunpack.c.h.b16 %v1336
        %v1505 = vunpack.c.l.b16 %v1337
        %v1506 = vunpack.c.h.b16 %v1337
        %v1507 = vunpack.c.l.b16 %v1338
        %v1508 = vunpack.c.h.b16 %v1338
        %v1509 = vunpack.c.l.b16 %v1339
        %v1510 = vunpack.c.h.b16 %v1339
        %v1511 = vunpack.c.l.b16 %v1340
        %v1512 = vunpack.c.h.b16 %v1340
        %v1513 = vunpack.c.l.b16 %v1341
        %v1514 = vunpack.c.h.b16 %v1341
        %v1515 = vunpack.c.l.b16 %v1342
        %v1516 = vunpack.c.h.b16 %v1342
        %v1517 = vunpack.c.l.b16 %v1343
        %v1518 = vunpack.c.h.b16 %v1343
        %v1519 = vunpack.c.l.b16 %v1344
        %v1520 = vunpack.c.h.b16 %v1344
        %v1521 = vunpack.c.l.b16 %v1345
        %v1522 = vunpack.c.h.b16 %v1345
        %v1523 = vunpack.c.l.b16 %v1346
        %v1524 = vunpack.c.h.b16 %v1346
        %v1525 = vunpack.c.l.b16 %v1347
        %v1526 = vunpack.c.h.b16 %v1347
        %v1527 = vunpack.c.l.b16 %v1348
        %v1528 = vunpack.c.h.b16 %v1348
        %v1529 = vunpack.c.l.b16 %v1349
        %v1530 = vunpack.c.h.b16 %v1349
        %v1531 = vunpack.c.l.b16 %v1350
        %v1532 = vunpack.c.h.b16 %v1350
        %v1533 = vunpack.c.l.b16 %v1351
        %v1534 = vunpack.c.h.b16 %v1351
        %v1535 = vunpack.c.l.b16 %v1352
        %v1536 = vunpack.c.h.b16 %v1352
        %v1537 = vunpack.c.l.b16 %v1353
        %v1538 = vunpack.c.h.b16 %v1353
        %v1539 = vunpack.c.l.b16 %v1354
        %v1540 = vunpack.c.h.b16 %v1354
        %v1541 = vunpack.c.l.b16 %v1355
        %v1542 = vunpack.c.h.b16 %v1355
        %v1543 = vunpack.c.l.b16 %v1356
        %v1544 = vunpack.c.h.b16 %v1356
        %v1545 = vunpack.c.l.b16 %v1357
        %v1546 = vunpack.c.h.b16 %v1357
        %v1547 = vunpack.c.l.b16 %v1358
        %v1548 = vunpack.c.h.b16 %v1358
        %v1549 = vunpack.c.l.b16 %v1359
        %v1550 = vunpack.c.h.b16 %v1359
        %v1551 = vunpack.c.l.b16 %v1360
        %v1552 = vunpack.c.h.b16 %v1360
        %v1553 = vpack.c.b16 %v1427, %v1425
        %v1554 = vpack.c.b16 %v1428, %v1426
        %v1555 = vpack.c.b16 %v1431, %v1429
        %v1556 = vpack.c.b16 %v1432, %v1430
        %v1557 = vpack.c.b16 %v1435, %v1433
        %v1558 = vpack.c.b16 %v1436, %v1434
        %v1559 = vpack.c.b16 %v1439, %v1437
        %v1560 = vpack.c.b16 %v1440, %v1438
        %v1561 = vpack.c.b16 %v1443, %v1441
        %v1562 = vpack.c.b16 %v1444, %v1442
        %v1563 = vpack.c.b16 %v1447, %v1445
        %v1564 = vpack.c.b16 %v1448, %v1446
        %v1565 = vpack.c.b16 %v1451, %v1449
        %v1566 = vpack.c.b16 %v1452, %v1450
        %v1567 = vpack.c.b16 %v1455, %v1453
        %v1568 = vpack.c.b16 %v1456, %v1454
        %v1569 = vpack.c.b16 %v1459, %v1457
        %v1570 = vpack.c.b16 %v1460, %v1458
        %v1571 = vpack.c.b16 %v1463, %v1461
        %v1572 = vpack.c.b16 %v1464, %v1462
        %v1573 = vpack.c.b16 %v1467, %v1465
        %v1574 = vpack.c.b16 %v1468, %v1466
        %v1575 = vpack.c.b16 %v1471, %v1469
        %v1576 = vpack.c.b16 %v1472, %v1470
        %v1577 = vpack.c.b16 %v1475, %v1473
        %v1578 = vpack.c.b16 %v1476, %v1474
        %v1579 = vpack.c.b16 %v1479, %v1477
        %v1580 = vpack.c.b16 %v1480, %v1478
        %v1581 = vpack.c.b16 %v1483, %v1481
        %v1582 = vpack.c.b16 %v1484, %v1482
        %v1583 = vpack.c.b16 %v1487, %v1485
        %v1584 = vpack.c.b16 %v1488, %v1486
        %v1585 = vpack.c.b16 %v1491, %v1489
        %v1586 = vpack.c.b16 %v1492, %v1490
        %v1587 = vpack.c.b16 %v1495, %v1493
        %v1588 = vpack.c.b16 %v1496, %v1494
        %v1589 = vpack.c.b16 %v1499, %v1497
        %v1590 = vpack.c.b16 %v1500, %v1498
        %v1591 = vpack.c.b16 %v1503, %v1501
        %v1592 = vpack.c.b16 %v1504, %v1502
        %v1593 = vpack.c.b16 %v1507, %v1505
        %v1594 = vpack.c.b16 %v1508, %v1506
        %v1595 = vpack.c.b16 %v1511, %v1509
        %v1596 = vpack.c.b16 %v1512, %v1510
        %v1597 = vpack.c.b16 %v1515, %v1513
        %v1598 = vpack.c.b16 %v1516, %v1514
        %v1599 = vpack.c.b16 %v1519, %v1517
        %v1600 = vpack.c.b16 %v1520, %v1518
        %v1601 = vpack.c.b16 %v1523, %v1521
        %v1602 = vpack.c.b16 %v1524, %v1522
        %v1603 = vpack.c.b16 %v1527, %v1525
        %v1604 = vpack.c.b16 %v1528, %v1526
        %v1605 = vpack.c.b16 %v1531, %v1529
        %v1606 = vpack.c.b16 %v1532, %v1530
        %v1607 = vpack.c.b16 %v1535, %v1533
        %v1608 = vpack.c.b16 %v1536, %v1534
        %v1609 = vpack.c.b16 %v1539, %v1537
        %v1610 = vpack.c.b16 %v1540, %v1538
        %v1611 = vpack.c.b16 %v1543, %v1541
        %v1612 = vpack.c.b16 %v1544, %v1542
        %v1613 = vpack.c.b16 %v1547, %v1545
        %v1614 = vpack.c.b16 %v1548, %v1546
        %v1615 = vpack.c.b16 %v1551, %v1549
        %v1616 = vpack.c.b16 %v1552, %v1550
        %1681 = vmatprep.subr.bf16.mxu0 %v1554
        %1682 = vmatpush1.bf16.msra.mxu0 %v1553
        %1683 = vmatprep.subr.bf16.mxu0 %v1556
        %1684 = vmatpush1.bf16.msra.mxu0 %v1555
        %1685 = vmatprep.subr.bf16.mxu0 %v1558
        %1686 = vmatpush1.bf16.msra.mxu0 %v1557
        %1687 = vmatprep.subr.bf16.mxu0 %v1560
        %1688 = vmatpush1.bf16.msra.mxu0 %v1559
        %1689 = vmatprep.subr.bf16.mxu0 %v1562
        %1690 = vmatpush1.bf16.msra.mxu0 %v1561
        %1691 = vmatprep.subr.bf16.mxu0 %v1564
        %1692 = vmatpush1.bf16.msra.mxu0 %v1563
        %1693 = vmatprep.subr.bf16.mxu0 %v1566
        %1694 = vmatpush1.bf16.msra.mxu0 %v1565
        %1695 = vmatprep.subr.bf16.mxu0 %v1568
        %1696 = vmatpush1.bf16.msra.mxu0 %v1567
        %1697 = vmatprep.subr.bf16.mxu0 %v1570
        %1698 = vmatpush1.bf16.msra.mxu0 %v1569
        %1699 = vmatprep.subr.bf16.mxu0 %v1572
        %1700 = vmatpush1.bf16.msra.mxu0 %v1571
        %1701 = vmatprep.subr.bf16.mxu0 %v1574
        %1702 = vmatpush1.bf16.msra.mxu0 %v1573
        %1703 = vmatprep.subr.bf16.mxu0 %v1576
        %1704 = vmatpush1.bf16.msra.mxu0 %v1575
        %1705 = vmatprep.subr.bf16.mxu0 %v1578
        %1706 = vmatpush1.bf16.msra.mxu0 %v1577
        %1707 = vmatprep.subr.bf16.mxu0 %v1580
        %1708 = vmatpush1.bf16.msra.mxu0 %v1579
        %1709 = vmatprep.subr.bf16.mxu0 %v1582
        %1710 = vmatpush1.bf16.msra.mxu0 %v1581
        %1711 = vmatprep.subr.bf16.mxu0 %v1584
        %1712 = vmatpush1.bf16.msra.mxu0 %v1583
        %1713 = vmatprep.mubr.bf16.mxu0 %v1294
        %1714 = vmatmul.mubr.bf16.gmra.mrb[0].mxu0 %v1293
        %v1715 = vpop.f32.mrb[0].mxu0
        %v1716 = vadd.f32 0.0, %v1715
        %v1717 = vpop.f32.mrb[0].mxu0
        %v1718 = vadd.f32 0.0, %v1717
        %v1719 = vpop.f32.mrb[0].mxu0
        %v1720 = vadd.f32 0.0, %v1719
        %v1721 = vpop.f32.mrb[0].mxu0
        %v1722 = vadd.f32 0.0, %v1721
        %1723 = vdwg.mxu0
        %1724 = vmatprep.subr.bf16.mxu0 %v1586
        %1725 = vmatpush1.bf16.msra.mxu0 %v1585
        %1726 = vmatprep.subr.bf16.mxu0 %v1588
        %1727 = vmatpush1.bf16.msra.mxu0 %v1587
        %1728 = vmatprep.subr.bf16.mxu0 %v1590
        %1729 = vmatpush1.bf16.msra.mxu0 %v1589
        %1730 = vmatprep.subr.bf16.mxu0 %v1592
        %1731 = vmatpush1.bf16.msra.mxu0 %v1591
        %1732 = vmatprep.subr.bf16.mxu0 %v1594
        %1733 = vmatpush1.bf16.msra.mxu0 %v1593
        %1734 = vmatprep.subr.bf16.mxu0 %v1596
        %1735 = vmatpush1.bf16.msra.mxu0 %v1595
        %1736 = vmatprep.subr.bf16.mxu0 %v1598
        %1737 = vmatpush1.bf16.msra.mxu0 %v1597
        %1738 = vmatprep.subr.bf16.mxu0 %v1600
        %1739 = vmatpush1.bf16.msra.mxu0 %v1599
        %1740 = vmatprep.subr.bf16.mxu0 %v1602
        %1741 = vmatpush1.bf16.msra.mxu0 %v1601
        %1742 = vmatprep.subr.bf16.mxu0 %v1604
        %1743 = vmatpush1.bf16.msra.mxu0 %v1603
        %1744 = vmatprep.subr.bf16.mxu0 %v1606
        %1745 = vmatpush1.bf16.msra.mxu0 %v1605
        %1746 = vmatprep.subr.bf16.mxu0 %v1608
        %1747 = vmatpush1.bf16.msra.mxu0 %v1607
        %1748 = vmatprep.subr.bf16.mxu0 %v1610
        %1749 = vmatpush1.bf16.msra.mxu0 %v1609
        %1750 = vmatprep.subr.bf16.mxu0 %v1612
        %1751 = vmatpush1.bf16.msra.mxu0 %v1611
        %1752 = vmatprep.subr.bf16.mxu0 %v1614
        %1753 = vmatpush1.bf16.msra.mxu0 %v1613
        %1754 = vmatprep.subr.bf16.mxu0 %v1616
        %1755 = vmatpush1.bf16.msra.mxu0 %v1615
        %1756 = vmatprep.mubr.bf16.mxu0 %v1296
        %1757 = vmatmul.mubr.bf16.gmra.mrb[0].mxu0 %v1295
        %v1758 = vpop.f32.mrb[0].mxu0
        %v1759 = vadd.f32 %v1716, %v1758
        %v1760 = vpop.f32.mrb[0].mxu0
        %v1761 = vadd.f32 %v1718, %v1760
        %v1762 = vpop.f32.mrb[0].mxu0
        %v1763 = vadd.f32 %v1720, %v1762
        %v1764 = vpop.f32.mrb[0].mxu0
        %v1765 = vadd.f32 %v1722, %v1764
        %1766 = vdwg.mxu0
        %s1767 = scalar_lea.vmem [#allocation5], 512
        %v1768 = vld [vmem:[%s1767] sm:$0xff]
        %v1769 = vld [vmem:[%s1767 + $0x8] sm:$0xff]
        %v1770 = vld [vmem:[%s1767 + $0x10] sm:$0xff]
        %v1771 = vld [vmem:[%s1767 + $0x18] sm:$0xff]
        %v1772 = vld [vmem:[%s1767 + $0x20] sm:$0xff]
        %v1773 = vld [vmem:[%s1767 + $0x28] sm:$0xff]
        %v1774 = vld [vmem:[%s1767 + $0x30] sm:$0xff]
        %v1775 = vld [vmem:[%s1767 + $0x38] sm:$0xff]
        %v1776 = vld [vmem:[%s1767 + $0x40] sm:$0xff]
        %v1777 = vld [vmem:[%s1767 + $0x48] sm:$0xff]
        %v1778 = vld [vmem:[%s1767 + $0x50] sm:$0xff]
        %v1779 = vld [vmem:[%s1767 + $0x58] sm:$0xff]
        %v1780 = vld [vmem:[%s1767 + $0x60] sm:$0xff]
        %v1781 = vld [vmem:[%s1767 + $0x68] sm:$0xff]
        %v1782 = vld [vmem:[%s1767 + $0x70] sm:$0xff]
        %v1783 = vld [vmem:[%s1767 + $0x78] sm:$0xff]
        %v1784 = vld [vmem:[%s1767 + $0x80] sm:$0xff]
        %v1785 = vld [vmem:[%s1767 + $0x88] sm:$0xff]
        %v1786 = vld [vmem:[%s1767 + $0x90] sm:$0xff]
        %v1787 = vld [vmem:[%s1767 + $0x98] sm:$0xff]
        %v1788 = vld [vmem:[%s1767 + $0xa0] sm:$0xff]
        %v1789 = vld [vmem:[%s1767 + $0xa8] sm:$0xff]
        %v1790 = vld [vmem:[%s1767 + $0xb0] sm:$0xff]
        %v1791 = vld [vmem:[%s1767 + $0xb8] sm:$0xff]
        %v1792 = vld [vmem:[%s1767 + $0xc0] sm:$0xff]
        %v1793 = vld [vmem:[%s1767 + $0xc8] sm:$0xff]
        %v1794 = vld [vmem:[%s1767 + $0xd0] sm:$0xff]
        %v1795 = vld [vmem:[%s1767 + $0xd8] sm:$0xff]
        %v1796 = vld [vmem:[%s1767 + $0xe0] sm:$0xff]
        %v1797 = vld [vmem:[%s1767 + $0xe8] sm:$0xff]
        %v1798 = vld [vmem:[%s1767 + $0xf0] sm:$0xff]
        %v1799 = vld [vmem:[%s1767 + $0xf8] sm:$0xff]
        %v1800 = vld [vmem:[%s1767 + $0x100] sm:$0xff]
        %v1801 = vld [vmem:[%s1767 + $0x108] sm:$0xff]
        %v1802 = vld [vmem:[%s1767 + $0x110] sm:$0xff]
        %v1803 = vld [vmem:[%s1767 + $0x118] sm:$0xff]
        %v1804 = vld [vmem:[%s1767 + $0x120] sm:$0xff]
        %v1805 = vld [vmem:[%s1767 + $0x128] sm:$0xff]
        %v1806 = vld [vmem:[%s1767 + $0x130] sm:$0xff]
        %v1807 = vld [vmem:[%s1767 + $0x138] sm:$0xff]
        %v1808 = vld [vmem:[%s1767 + $0x140] sm:$0xff]
        %v1809 = vld [vmem:[%s1767 + $0x148] sm:$0xff]
        %v1810 = vld [vmem:[%s1767 + $0x150] sm:$0xff]
        %v1811 = vld [vmem:[%s1767 + $0x158] sm:$0xff]
        %v1812 = vld [vmem:[%s1767 + $0x160] sm:$0xff]
        %v1813 = vld [vmem:[%s1767 + $0x168] sm:$0xff]
        %v1814 = vld [vmem:[%s1767 + $0x170] sm:$0xff]
        %v1815 = vld [vmem:[%s1767 + $0x178] sm:$0xff]
        %v1816 = vld [vmem:[%s1767 + $0x180] sm:$0xff]
        %v1817 = vld [vmem:[%s1767 + $0x188] sm:$0xff]
        %v1818 = vld [vmem:[%s1767 + $0x190] sm:$0xff]
        %v1819 = vld [vmem:[%s1767 + $0x198] sm:$0xff]
        %v1820 = vld [vmem:[%s1767 + $0x1a0] sm:$0xff]
        %v1821 = vld [vmem:[%s1767 + $0x1a8] sm:$0xff]
        %v1822 = vld [vmem:[%s1767 + $0x1b0] sm:$0xff]
        %v1823 = vld [vmem:[%s1767 + $0x1b8] sm:$0xff]
        %v1824 = vld [vmem:[%s1767 + $0x1c0] sm:$0xff]
        %v1825 = vld [vmem:[%s1767 + $0x1c8] sm:$0xff]
        %v1826 = vld [vmem:[%s1767 + $0x1d0] sm:$0xff]
        %v1827 = vld [vmem:[%s1767 + $0x1d8] sm:$0xff]
        %v1828 = vld [vmem:[%s1767 + $0x1e0] sm:$0xff]
        %v1829 = vld [vmem:[%s1767 + $0x1e8] sm:$0xff]
        %v1830 = vld [vmem:[%s1767 + $0x1f0] sm:$0xff]
        %v1831 = vld [vmem:[%s1767 + $0x1f8] sm:$0xff]
        %v1896 = vunpack.c.l.b16 %v1768
        %v1897 = vunpack.c.h.b16 %v1768
        %v1898 = vunpack.c.l.b16 %v1769
        %v1899 = vunpack.c.h.b16 %v1769
        %v1900 = vunpack.c.l.b16 %v1770
        %v1901 = vunpack.c.h.b16 %v1770
        %v1902 = vunpack.c.l.b16 %v1771
        %v1903 = vunpack.c.h.b16 %v1771
        %v1904 = vunpack.c.l.b16 %v1772
        %v1905 = vunpack.c.h.b16 %v1772
        %v1906 = vunpack.c.l.b16 %v1773
        %v1907 = vunpack.c.h.b16 %v1773
        %v1908 = vunpack.c.l.b16 %v1774
        %v1909 = vunpack.c.h.b16 %v1774
        %v1910 = vunpack.c.l.b16 %v1775
        %v1911 = vunpack.c.h.b16 %v1775
        %v1912 = vunpack.c.l.b16 %v1776
        %v1913 = vunpack.c.h.b16 %v1776
        %v1914 = vunpack.c.l.b16 %v1777
        %v1915 = vunpack.c.h.b16 %v1777
        %v1916 = vunpack.c.l.b16 %v1778
        %v1917 = vunpack.c.h.b16 %v1778
        %v1918 = vunpack.c.l.b16 %v1779
        %v1919 = vunpack.c.h.b16 %v1779
        %v1920 = vunpack.c.l.b16 %v1780
        %v1921 = vunpack.c.h.b16 %v1780
        %v1922 = vunpack.c.l.b16 %v1781
        %v1923 = vunpack.c.h.b16 %v1781
        %v1924 = vunpack.c.l.b16 %v1782
        %v1925 = vunpack.c.h.b16 %v1782
        %v1926 = vunpack.c.l.b16 %v1783
        %v1927 = vunpack.c.h.b16 %v1783
        %v1928 = vunpack.c.l.b16 %v1784
        %v1929 = vunpack.c.h.b16 %v1784
        %v1930 = vunpack.c.l.b16 %v1785
        %v1931 = vunpack.c.h.b16 %v1785
        %v1932 = vunpack.c.l.b16 %v1786
        %v1933 = vunpack.c.h.b16 %v1786
        %v1934 = vunpack.c.l.b16 %v1787
        %v1935 = vunpack.c.h.b16 %v1787
        %v1936 = vunpack.c.l.b16 %v1788
        %v1937 = vunpack.c.h.b16 %v1788
        %v1938 = vunpack.c.l.b16 %v1789
        %v1939 = vunpack.c.h.b16 %v1789
        %v1940 = vunpack.c.l.b16 %v1790
        %v1941 = vunpack.c.h.b16 %v1790
        %v1942 = vunpack.c.l.b16 %v1791
        %v1943 = vunpack.c.h.b16 %v1791
        %v1944 = vunpack.c.l.b16 %v1792
        %v1945 = vunpack.c.h.b16 %v1792
        %v1946 = vunpack.c.l.b16 %v1793
        %v1947 = vunpack.c.h.b16 %v1793
        %v1948 = vunpack.c.l.b16 %v1794
        %v1949 = vunpack.c.h.b16 %v1794
        %v1950 = vunpack.c.l.b16 %v1795
        %v1951 = vunpack.c.h.b16 %v1795
        %v1952 = vunpack.c.l.b16 %v1796
        %v1953 = vunpack.c.h.b16 %v1796
        %v1954 = vunpack.c.l.b16 %v1797
        %v1955 = vunpack.c.h.b16 %v1797
        %v1956 = vunpack.c.l.b16 %v1798
        %v1957 = vunpack.c.h.b16 %v1798
        %v1958 = vunpack.c.l.b16 %v1799
        %v1959 = vunpack.c.h.b16 %v1799
        %v1960 = vunpack.c.l.b16 %v1800
        %v1961 = vunpack.c.h.b16 %v1800
        %v1962 = vunpack.c.l.b16 %v1801
        %v1963 = vunpack.c.h.b16 %v1801
        %v1964 = vunpack.c.l.b16 %v1802
        %v1965 = vunpack.c.h.b16 %v1802
        %v1966 = vunpack.c.l.b16 %v1803
        %v1967 = vunpack.c.h.b16 %v1803
        %v1968 = vunpack.c.l.b16 %v1804
        %v1969 = vunpack.c.h.b16 %v1804
        %v1970 = vunpack.c.l.b16 %v1805
        %v1971 = vunpack.c.h.b16 %v1805
        %v1972 = vunpack.c.l.b16 %v1806
        %v1973 = vunpack.c.h.b16 %v1806
        %v1974 = vunpack.c.l.b16 %v1807
        %v1975 = vunpack.c.h.b16 %v1807
        %v1976 = vunpack.c.l.b16 %v1808
        %v1977 = vunpack.c.h.b16 %v1808
        %v1978 = vunpack.c.l.b16 %v1809
        %v1979 = vunpack.c.h.b16 %v1809
        %v1980 = vunpack.c.l.b16 %v1810
        %v1981 = vunpack.c.h.b16 %v1810
        %v1982 = vunpack.c.l.b16 %v1811
        %v1983 = vunpack.c.h.b16 %v1811
        %v1984 = vunpack.c.l.b16 %v1812
        %v1985 = vunpack.c.h.b16 %v1812
        %v1986 = vunpack.c.l.b16 %v1813
        %v1987 = vunpack.c.h.b16 %v1813
        %v1988 = vunpack.c.l.b16 %v1814
        %v1989 = vunpack.c.h.b16 %v1814
        %v1990 = vunpack.c.l.b16 %v1815
        %v1991 = vunpack.c.h.b16 %v1815
        %v1992 = vunpack.c.l.b16 %v1816
        %v1993 = vunpack.c.h.b16 %v1816
        %v1994 = vunpack.c.l.b16 %v1817
        %v1995 = vunpack.c.h.b16 %v1817
        %v1996 = vunpack.c.l.b16 %v1818
        %v1997 = vunpack.c.h.b16 %v1818
        %v1998 = vunpack.c.l.b16 %v1819
        %v1999 = vunpack.c.h.b16 %v1819
        %v2000 = vunpack.c.l.b16 %v1820
        %v2001 = vunpack.c.h.b16 %v1820
        %v2002 = vunpack.c.l.b16 %v1821
        %v2003 = vunpack.c.h.b16 %v1821
        %v2004 = vunpack.c.l.b16 %v1822
        %v2005 = vunpack.c.h.b16 %v1822
        %v2006 = vunpack.c.l.b16 %v1823
        %v2007 = vunpack.c.h.b16 %v1823
        %v2008 = vunpack.c.l.b16 %v1824
        %v2009 = vunpack.c.h.b16 %v1824
        %v2010 = vunpack.c.l.b16 %v1825
        %v2011 = vunpack.c.h.b16 %v1825
        %v2012 = vunpack.c.l.b16 %v1826
        %v2013 = vunpack.c.h.b16 %v1826
        %v2014 = vunpack.c.l.b16 %v1827
        %v2015 = vunpack.c.h.b16 %v1827
        %v2016 = vunpack.c.l.b16 %v1828
        %v2017 = vunpack.c.h.b16 %v1828
        %v2018 = vunpack.c.l.b16 %v1829
        %v2019 = vunpack.c.h.b16 %v1829
        %v2020 = vunpack.c.l.b16 %v1830
        %v2021 = vunpack.c.h.b16 %v1830
        %v2022 = vunpack.c.l.b16 %v1831
        %v2023 = vunpack.c.h.b16 %v1831
        %v2024 = vpack.c.b16 %v1898, %v1896
        %v2025 = vpack.c.b16 %v1899, %v1897
        %v2026 = vpack.c.b16 %v1902, %v1900
        %v2027 = vpack.c.b16 %v1903, %v1901
        %v2028 = vpack.c.b16 %v1906, %v1904
        %v2029 = vpack.c.b16 %v1907, %v1905
        %v2030 = vpack.c.b16 %v1910, %v1908
        %v2031 = vpack.c.b16 %v1911, %v1909
        %v2032 = vpack.c.b16 %v1914, %v1912
        %v2033 = vpack.c.b16 %v1915, %v1913
        %v2034 = vpack.c.b16 %v1918, %v1916
        %v2035 = vpack.c.b16 %v1919, %v1917
        %v2036 = vpack.c.b16 %v1922, %v1920
        %v2037 = vpack.c.b16 %v1923, %v1921
        %v2038 = vpack.c.b16 %v1926, %v1924
        %v2039 = vpack.c.b16 %v1927, %v1925
        %v2040 = vpack.c.b16 %v1930, %v1928
        %v2041 = vpack.c.b16 %v1931, %v1929
        %v2042 = vpack.c.b16 %v1934, %v1932
        %v2043 = vpack.c.b16 %v1935, %v1933
        %v2044 = vpack.c.b16 %v1938, %v1936
        %v2045 = vpack.c.b16 %v1939, %v1937
        %v2046 = vpack.c.b16 %v1942, %v1940
        %v2047 = vpack.c.b16 %v1943, %v1941
        %v2048 = vpack.c.b16 %v1946, %v1944
        %v2049 = vpack.c.b16 %v1947, %v1945
        %v2050 = vpack.c.b16 %v1950, %v1948
        %v2051 = vpack.c.b16 %v1951, %v1949
        %v2052 = vpack.c.b16 %v1954, %v1952
        %v2053 = vpack.c.b16 %v1955, %v1953
        %v2054 = vpack.c.b16 %v1958, %v1956
        %v2055 = vpack.c.b16 %v1959, %v1957
        %v2056 = vpack.c.b16 %v1962, %v1960
        %v2057 = vpack.c.b16 %v1963, %v1961
        %v2058 = vpack.c.b16 %v1966, %v1964
        %v2059 = vpack.c.b16 %v1967, %v1965
        %v2060 = vpack.c.b16 %v1970, %v1968
        %v2061 = vpack.c.b16 %v1971, %v1969
        %v2062 = vpack.c.b16 %v1974, %v1972
        %v2063 = vpack.c.b16 %v1975, %v1973
        %v2064 = vpack.c.b16 %v1978, %v1976
        %v2065 = vpack.c.b16 %v1979, %v1977
        %v2066 = vpack.c.b16 %v1982, %v1980
        %v2067 = vpack.c.b16 %v1983, %v1981
        %v2068 = vpack.c.b16 %v1986, %v1984
        %v2069 = vpack.c.b16 %v1987, %v1985
        %v2070 = vpack.c.b16 %v1990, %v1988
        %v2071 = vpack.c.b16 %v1991, %v1989
        %v2072 = vpack.c.b16 %v1994, %v1992
        %v2073 = vpack.c.b16 %v1995, %v1993
        %v2074 = vpack.c.b16 %v1998, %v1996
        %v2075 = vpack.c.b16 %v1999, %v1997
        %v2076 = vpack.c.b16 %v2002, %v2000
        %v2077 = vpack.c.b16 %v2003, %v2001
        %v2078 = vpack.c.b16 %v2006, %v2004
        %v2079 = vpack.c.b16 %v2007, %v2005
        %v2080 = vpack.c.b16 %v2010, %v2008
        %v2081 = vpack.c.b16 %v2011, %v2009
        %v2082 = vpack.c.b16 %v2014, %v2012
        %v2083 = vpack.c.b16 %v2015, %v2013
        %v2084 = vpack.c.b16 %v2018, %v2016
        %v2085 = vpack.c.b16 %v2019, %v2017
        %v2086 = vpack.c.b16 %v2022, %v2020
        %v2087 = vpack.c.b16 %v2023, %v2021
        %2152 = vmatprep.subr.bf16.mxu0 %v2025
        %2153 = vmatpush1.bf16.msra.mxu0 %v2024
        %2154 = vmatprep.subr.bf16.mxu0 %v2027
        %2155 = vmatpush1.bf16.msra.mxu0 %v2026
        %2156 = vmatprep.subr.bf16.mxu0 %v2029
        %2157 = vmatpush1.bf16.msra.mxu0 %v2028
        %2158 = vmatprep.subr.bf16.mxu0 %v2031
        %2159 = vmatpush1.bf16.msra.mxu0 %v2030
        %2160 = vmatprep.subr.bf16.mxu0 %v2033
        %2161 = vmatpush1.bf16.msra.mxu0 %v2032
        %2162 = vmatprep.subr.bf16.mxu0 %v2035
        %2163 = vmatpush1.bf16.msra.mxu0 %v2034
        %2164 = vmatprep.subr.bf16.mxu0 %v2037
        %2165 = vmatpush1.bf16.msra.mxu0 %v2036
        %2166 = vmatprep.subr.bf16.mxu0 %v2039
        %2167 = vmatpush1.bf16.msra.mxu0 %v2038
        %2168 = vmatprep.subr.bf16.mxu0 %v2041
        %2169 = vmatpush1.bf16.msra.mxu0 %v2040
        %2170 = vmatprep.subr.bf16.mxu0 %v2043
        %2171 = vmatpush1.bf16.msra.mxu0 %v2042
        %2172 = vmatprep.subr.bf16.mxu0 %v2045
        %2173 = vmatpush1.bf16.msra.mxu0 %v2044
        %2174 = vmatprep.subr.bf16.mxu0 %v2047
        %2175 = vmatpush1.bf16.msra.mxu0 %v2046
        %2176 = vmatprep.subr.bf16.mxu0 %v2049
        %2177 = vmatpush1.bf16.msra.mxu0 %v2048
        %2178 = vmatprep.subr.bf16.mxu0 %v2051
        %2179 = vmatpush1.bf16.msra.mxu0 %v2050
        %2180 = vmatprep.subr.bf16.mxu0 %v2053
        %2181 = vmatpush1.bf16.msra.mxu0 %v2052
        %2182 = vmatprep.subr.bf16.mxu0 %v2055
        %2183 = vmatpush1.bf16.msra.mxu0 %v2054
        %2184 = vmatprep.mubr.bf16.mxu0 %v1294
        %2185 = vmatmul.mubr.bf16.gmra.mrb[0].mxu0 %v1293
        %v2186 = vpop.f32.mrb[0].mxu0
        %v2187 = vadd.f32 0.0, %v2186
        %v2188 = vpop.f32.mrb[0].mxu0
        %v2189 = vadd.f32 0.0, %v2188
        %v2190 = vpop.f32.mrb[0].mxu0
        %v2191 = vadd.f32 0.0, %v2190
        %v2192 = vpop.f32.mrb[0].mxu0
        %v2193 = vadd.f32 0.0, %v2192
        %2194 = vdwg.mxu0
        %2195 = vmatprep.subr.bf16.mxu0 %v2057
        %2196 = vmatpush1.bf16.msra.mxu0 %v2056
        %2197 = vmatprep.subr.bf16.mxu0 %v2059
        %2198 = vmatpush1.bf16.msra.mxu0 %v2058
        %2199 = vmatprep.subr.bf16.mxu0 %v2061
        %2200 = vmatpush1.bf16.msra.mxu0 %v2060
        %2201 = vmatprep.subr.bf16.mxu0 %v2063
        %2202 = vmatpush1.bf16.msra.mxu0 %v2062
        %2203 = vmatprep.subr.bf16.mxu0 %v2065
        %2204 = vmatpush1.bf16.msra.mxu0 %v2064
        %2205 = vmatprep.subr.bf16.mxu0 %v2067
        %2206 = vmatpush1.bf16.msra.mxu0 %v2066
        %2207 = vmatprep.subr.bf16.mxu0 %v2069
        %2208 = vmatpush1.bf16.msra.mxu0 %v2068
        %2209 = vmatprep.subr.bf16.mxu0 %v2071
        %2210 = vmatpush1.bf16.msra.mxu0 %v2070
        %2211 = vmatprep.subr.bf16.mxu0 %v2073
        %2212 = vmatpush1.bf16.msra.mxu0 %v2072
        %2213 = vmatprep.subr.bf16.mxu0 %v2075
        %2214 = vmatpush1.bf16.msra.mxu0 %v2074
        %2215 = vmatprep.subr.bf16.mxu0 %v2077
        %2216 = vmatpush1.bf16.msra.mxu0 %v2076
        %2217 = vmatprep.subr.bf16.mxu0 %v2079
        %2218 = vmatpush1.bf16.msra.mxu0 %v2078
        %2219 = vmatprep.subr.bf16.mxu0 %v2081
        %2220 = vmatpush1.bf16.msra.mxu0 %v2080
        %2221 = vmatprep.subr.bf16.mxu0 %v2083
        %2222 = vmatpush1.bf16.msra.mxu0 %v2082
        %2223 = vmatprep.subr.bf16.mxu0 %v2085
        %2224 = vmatpush1.bf16.msra.mxu0 %v2084
        %2225 = vmatprep.subr.bf16.mxu0 %v2087
        %2226 = vmatpush1.bf16.msra.mxu0 %v2086
        %2227 = vmatprep.mubr.bf16.mxu0 %v1296
        %2228 = vmatmul.mubr.bf16.gmra.mrb[0].mxu0 %v1295
        %v2229 = vpop.f32.mrb[0].mxu0
        %v2230 = vadd.f32 %v2187, %v2229
        %v2231 = vpop.f32.mrb[0].mxu0
        %v2232 = vadd.f32 %v2189, %v2231
        %v2233 = vpop.f32.mrb[0].mxu0
        %v2234 = vadd.f32 %v2191, %v2233
        %v2235 = vpop.f32.mrb[0].mxu0
        %v2236 = vadd.f32 %v2193, %v2235
        %2237 = vdwg.mxu0
        %v2238 = vmax.f32 %v1759, %v2230
        %v2239 = vmax.f32 %v1761, %v2232
        %v2240 = vmax.f32 %v1763, %v2234
        %v2241 = vmax.f32 %v1765, %v2236
        %2242 = vst [vmem:[#allocation3] sm:$0xff] 0.0
        %2243 = vst [vmem:[#allocation3 + $0x8] sm:$0xff] 0.0
        %2244 = vst [vmem:[#allocation3 + $0x10] sm:$0xff] 0.0
        %2245 = vst [vmem:[#allocation3 + $0x18] sm:$0xff] 0.0
        %2246 = vst [vmem:[#allocation3 + $0x20] sm:$0x3] 0.0
        %2247 = vst [vmem:[#allocation3 + $0x28] sm:$0x3] 0.0
        %vm2252 = vcmask 1040384
        %v2253 = vrot.slane %v2238, 7
        %v2254 = vrot.slane %v2239, 7
        %v2255 = vrot.slane %v2240, 7
        %v2256 = vsel %vm2252, %v2253, %v2255
        %v2257 = vrot.slane %v2241, 7
        %v2258 = vsel %vm2252, %v2254, %v2257
        %2265 = vst [vmem:[#allocation3] sm:$0xfe] %v2253
        %2266 = vst [vmem:[#allocation3 + $0x8] sm:$0xfe] %v2254
        %2267 = vst [vmem:[#allocation3 + $0x10] sm:$0xff] %v2256
        %2268 = vst [vmem:[#allocation3 + $0x18] sm:$0xff] %v2258
        %2269 = vst [vmem:[#allocation3 + $0x20] sm:$0x1] %v2255
        %2270 = vst [vmem:[#allocation3 + $0x28] sm:$0x1] %v2257
        %v2271 = vld [vmem:[%s6] sm:$0xf]
        %v2272 = vld [vmem:[#allocation3] sm:$0xff]
        %v2273 = vld [vmem:[#allocation3 + $0x8] sm:$0xff]
        %v2274 = vld [vmem:[#allocation3 + $0x10] sm:$0xff]
        %v2275 = vld [vmem:[#allocation3 + $0x18] sm:$0xff]
        %v2276 = vpack.c.bf16 %v2274, %v2272
        %v2277 = vpack.c.bf16 %v2275, %v2273
        %v2278 = vld [vmem:[%s5] sm:$0xff]
        %v2279 = vld [vmem:[%s5 + $0x8] sm:$0xff]
        %v2280 = vld [vmem:[%s5 + $0x10] sm:$0xff]
        %v2281 = vld [vmem:[%s5 + $0x18] sm:$0xff]
        %v2282 = vld [vmem:[%s5 + $0x20] sm:$0xff]
        %v2283 = vld [vmem:[%s5 + $0x28] sm:$0xff]
        %v2284 = vld [vmem:[%s5 + $0x30] sm:$0xff]
        %v2285 = vld [vmem:[%s5 + $0x38] sm:$0xff]
        %v2286 = vld [vmem:[%s5 + $0x40] sm:$0xff]
        %v2287 = vld [vmem:[%s5 + $0x48] sm:$0xff]
        %v2288 = vld [vmem:[%s5 + $0x50] sm:$0xff]
        %v2289 = vld [vmem:[%s5 + $0x58] sm:$0xff]
        %v2290 = vld [vmem:[%s5 + $0x60] sm:$0xff]
        %v2291 = vld [vmem:[%s5 + $0x68] sm:$0xff]
        %v2292 = vld [vmem:[%s5 + $0x70] sm:$0xff]
        %v2293 = vld [vmem:[%s5 + $0x78] sm:$0xff]
        %v2294 = vld [vmem:[%s5 + $0x80] sm:$0xff]
        %v2295 = vld [vmem:[%s5 + $0x88] sm:$0xff]
        %v2296 = vld [vmem:[%s5 + $0x90] sm:$0xff]
        %v2297 = vld [vmem:[%s5 + $0x98] sm:$0xff]
        %v2298 = vld [vmem:[%s5 + $0xa0] sm:$0xff]
        %v2299 = vld [vmem:[%s5 + $0xa8] sm:$0xff]
        %v2300 = vld [vmem:[%s5 + $0xb0] sm:$0xff]
        %v2301 = vld [vmem:[%s5 + $0xb8] sm:$0xff]
        %v2302 = vld [vmem:[%s5 + $0xc0] sm:$0xff]
        %v2303 = vld [vmem:[%s5 + $0xc8] sm:$0xff]
        %v2304 = vld [vmem:[%s5 + $0xd0] sm:$0xff]
        %v2305 = vld [vmem:[%s5 + $0xd8] sm:$0xff]
        %v2306 = vld [vmem:[%s5 + $0xe0] sm:$0xff]
        %v2307 = vld [vmem:[%s5 + $0xe8] sm:$0xff]
        %v2308 = vld [vmem:[%s5 + $0xf0] sm:$0xff]
        %v2309 = vld [vmem:[%s5 + $0xf8] sm:$0xff]
        %v2310 = vld [vmem:[%s5 + $0x100] sm:$0xff]
        %v2311 = vld [vmem:[%s5 + $0x108] sm:$0xff]
        %v2312 = vld [vmem:[%s5 + $0x110] sm:$0xff]
        %v2313 = vld [vmem:[%s5 + $0x118] sm:$0xff]
        %v2314 = vld [vmem:[%s5 + $0x120] sm:$0xff]
        %v2315 = vld [vmem:[%s5 + $0x128] sm:$0xff]
        %v2316 = vld [vmem:[%s5 + $0x130] sm:$0xff]
        %v2317 = vld [vmem:[%s5 + $0x138] sm:$0xff]
        %v2318 = vld [vmem:[%s5 + $0x140] sm:$0xff]
        %v2319 = vld [vmem:[%s5 + $0x148] sm:$0xff]
        %v2320 = vld [vmem:[%s5 + $0x150] sm:$0xff]
        %v2321 = vld [vmem:[%s5 + $0x158] sm:$0xff]
        %v2322 = vld [vmem:[%s5 + $0x160] sm:$0xff]
        %v2323 = vld [vmem:[%s5 + $0x168] sm:$0xff]
        %v2324 = vld [vmem:[%s5 + $0x170] sm:$0xff]
        %v2325 = vld [vmem:[%s5 + $0x178] sm:$0xff]
        %v2326 = vld [vmem:[%s5 + $0x180] sm:$0xff]
        %v2327 = vld [vmem:[%s5 + $0x188] sm:$0xff]
        %v2328 = vld [vmem:[%s5 + $0x190] sm:$0xff]
        %v2329 = vld [vmem:[%s5 + $0x198] sm:$0xff]
        %v2330 = vld [vmem:[%s5 + $0x1a0] sm:$0xff]
        %v2331 = vld [vmem:[%s5 + $0x1a8] sm:$0xff]
        %v2332 = vld [vmem:[%s5 + $0x1b0] sm:$0xff]
        %v2333 = vld [vmem:[%s5 + $0x1b8] sm:$0xff]
        %v2334 = vld [vmem:[%s5 + $0x1c0] sm:$0xff]
        %v2335 = vld [vmem:[%s5 + $0x1c8] sm:$0xff]
        %v2336 = vld [vmem:[%s5 + $0x1d0] sm:$0xff]
        %v2337 = vld [vmem:[%s5 + $0x1d8] sm:$0xff]
        %v2338 = vld [vmem:[%s5 + $0x1e0] sm:$0xff]
        %v2339 = vld [vmem:[%s5 + $0x1e8] sm:$0xff]
        %v2340 = vld [vmem:[%s5 + $0x1f0] sm:$0xff]
        %v2341 = vld [vmem:[%s5 + $0x1f8] sm:$0xff]
        %v2406 = vunpack.c.l.b16 %v2278
        %v2407 = vunpack.c.h.b16 %v2278
        %v2408 = vunpack.c.l.b16 %v2279
        %v2409 = vunpack.c.h.b16 %v2279
        %v2410 = vunpack.c.l.b16 %v2280
        %v2411 = vunpack.c.h.b16 %v2280
        %v2412 = vunpack.c.l.b16 %v2281
        %v2413 = vunpack.c.h.b16 %v2281
        %v2414 = vunpack.c.l.b16 %v2282
        %v2415 = vunpack.c.h.b16 %v2282
        %v2416 = vunpack.c.l.b16 %v2283
        %v2417 = vunpack.c.h.b16 %v2283
        %v2418 = vunpack.c.l.b16 %v2284
        %v2419 = vunpack.c.h.b16 %v2284
        %v2420 = vunpack.c.l.b16 %v2285
        %v2421 = vunpack.c.h.b16 %v2285
        %v2422 = vunpack.c.l.b16 %v2286
        %v2423 = vunpack.c.h.b16 %v2286
        %v2424 = vunpack.c.l.b16 %v2287
        %v2425 = vunpack.c.h.b16 %v2287
        %v2426 = vunpack.c.l.b16 %v2288
        %v2427 = vunpack.c.h.b16 %v2288
        %v2428 = vunpack.c.l.b16 %v2289
        %v2429 = vunpack.c.h.b16 %v2289
        %v2430 = vunpack.c.l.b16 %v2290
        %v2431 = vunpack.c.h.b16 %v2290
        %v2432 = vunpack.c.l.b16 %v2291
        %v2433 = vunpack.c.h.b16 %v2291
        %v2434 = vunpack.c.l.b16 %v2292
        %v2435 = vunpack.c.h.b16 %v2292
        %v2436 = vunpack.c.l.b16 %v2293
        %v2437 = vunpack.c.h.b16 %v2293
        %v2438 = vunpack.c.l.b16 %v2294
        %v2439 = vunpack.c.h.b16 %v2294
        %v2440 = vunpack.c.l.b16 %v2295
        %v2441 = vunpack.c.h.b16 %v2295
        %v2442 = vunpack.c.l.b16 %v2296
        %v2443 = vunpack.c.h.b16 %v2296
        %v2444 = vunpack.c.l.b16 %v2297
        %v2445 = vunpack.c.h.b16 %v2297
        %v2446 = vunpack.c.l.b16 %v2298
        %v2447 = vunpack.c.h.b16 %v2298
        %v2448 = vunpack.c.l.b16 %v2299
        %v2449 = vunpack.c.h.b16 %v2299
        %v2450 = vunpack.c.l.b16 %v2300
        %v2451 = vunpack.c.h.b16 %v2300
        %v2452 = vunpack.c.l.b16 %v2301
        %v2453 = vunpack.c.h.b16 %v2301
        %v2454 = vunpack.c.l.b16 %v2302
        %v2455 = vunpack.c.h.b16 %v2302
        %v2456 = vunpack.c.l.b16 %v2303
        %v2457 = vunpack.c.h.b16 %v2303
        %v2458 = vunpack.c.l.b16 %v2304
        %v2459 = vunpack.c.h.b16 %v2304
        %v2460 = vunpack.c.l.b16 %v2305
        %v2461 = vunpack.c.h.b16 %v2305
        %v2462 = vunpack.c.l.b16 %v2306
        %v2463 = vunpack.c.h.b16 %v2306
        %v2464 = vunpack.c.l.b16 %v2307
        %v2465 = vunpack.c.h.b16 %v2307
        %v2466 = vunpack.c.l.b16 %v2308
        %v2467 = vunpack.c.h.b16 %v2308
        %v2468 = vunpack.c.l.b16 %v2309
        %v2469 = vunpack.c.h.b16 %v2309
        %v2470 = vunpack.c.l.b16 %v2310
        %v2471 = vunpack.c.h.b16 %v2310
        %v2472 = vunpack.c.l.b16 %v2311
        %v2473 = vunpack.c.h.b16 %v2311
        %v2474 = vunpack.c.l.b16 %v2312
        %v2475 = vunpack.c.h.b16 %v2312
        %v2476 = vunpack.c.l.b16 %v2313
        %v2477 = vunpack.c.h.b16 %v2313
        %v2478 = vunpack.c.l.b16 %v2314
        %v2479 = vunpack.c.h.b16 %v2314
        %v2480 = vunpack.c.l.b16 %v2315
        %v2481 = vunpack.c.h.b16 %v2315
        %v2482 = vunpack.c.l.b16 %v2316
        %v2483 = vunpack.c.h.b16 %v2316
        %v2484 = vunpack.c.l.b16 %v2317
        %v2485 = vunpack.c.h.b16 %v2317
        %v2486 = vunpack.c.l.b16 %v2318
        %v2487 = vunpack.c.h.b16 %v2318
        %v2488 = vunpack.c.l.b16 %v2319
        %v2489 = vunpack.c.h.b16 %v2319
        %v2490 = vunpack.c.l.b16 %v2320
        %v2491 = vunpack.c.h.b16 %v2320
        %v2492 = vunpack.c.l.b16 %v2321
        %v2493 = vunpack.c.h.b16 %v2321
        %v2494 = vunpack.c.l.b16 %v2322
        %v2495 = vunpack.c.h.b16 %v2322
        %v2496 = vunpack.c.l.b16 %v2323
        %v2497 = vunpack.c.h.b16 %v2323
        %v2498 = vunpack.c.l.b16 %v2324
        %v2499 = vunpack.c.h.b16 %v2324
        %v2500 = vunpack.c.l.b16 %v2325
        %v2501 = vunpack.c.h.b16 %v2325
        %v2502 = vunpack.c.l.b16 %v2326
        %v2503 = vunpack.c.h.b16 %v2326
        %v2504 = vunpack.c.l.b16 %v2327
        %v2505 = vunpack.c.h.b16 %v2327
        %v2506 = vunpack.c.l.b16 %v2328
        %v2507 = vunpack.c.h.b16 %v2328
        %v2508 = vunpack.c.l.b16 %v2329
        %v2509 = vunpack.c.h.b16 %v2329
        %v2510 = vunpack.c.l.b16 %v2330
        %v2511 = vunpack.c.h.b16 %v2330
        %v2512 = vunpack.c.l.b16 %v2331
        %v2513 = vunpack.c.h.b16 %v2331
        %v2514 = vunpack.c.l.b16 %v2332
        %v2515 = vunpack.c.h.b16 %v2332
        %v2516 = vunpack.c.l.b16 %v2333
        %v2517 = vunpack.c.h.b16 %v2333
        %v2518 = vunpack.c.l.b16 %v2334
        %v2519 = vunpack.c.h.b16 %v2334
        %v2520 = vunpack.c.l.b16 %v2335
        %v2521 = vunpack.c.h.b16 %v2335
        %v2522 = vunpack.c.l.b16 %v2336
        %v2523 = vunpack.c.h.b16 %v2336
        %v2524 = vunpack.c.l.b16 %v2337
        %v2525 = vunpack.c.h.b16 %v2337
        %v2526 = vunpack.c.l.b16 %v2338
        %v2527 = vunpack.c.h.b16 %v2338
        %v2528 = vunpack.c.l.b16 %v2339
        %v2529 = vunpack.c.h.b16 %v2339
        %v2530 = vunpack.c.l.b16 %v2340
        %v2531 = vunpack.c.h.b16 %v2340
        %v2532 = vunpack.c.l.b16 %v2341
        %v2533 = vunpack.c.h.b16 %v2341
        %v2534 = vpack.c.b16 %v2410, %v2406
        %v2535 = vpack.c.b16 %v2411, %v2407
        %v2536 = vpack.c.b16 %v2412, %v2408
        %v2537 = vpack.c.b16 %v2413, %v2409
        %v2538 = vpack.c.b16 %v2418, %v2414
        %v2539 = vpack.c.b16 %v2419, %v2415
        %v2540 = vpack.c.b16 %v2420, %v2416
        %v2541 = vpack.c.b16 %v2421, %v2417
        %v2542 = vpack.c.b16 %v2426, %v2422
        %v2543 = vpack.c.b16 %v2427, %v2423
        %v2544 = vpack.c.b16 %v2428, %v2424
        %v2545 = vpack.c.b16 %v2429, %v2425
        %v2546 = vpack.c.b16 %v2434, %v2430
        %v2547 = vpack.c.b16 %v2435, %v2431
        %v2548 = vpack.c.b16 %v2436, %v2432
        %v2549 = vpack.c.b16 %v2437, %v2433
        %v2550 = vpack.c.b16 %v2442, %v2438
        %v2551 = vpack.c.b16 %v2443, %v2439
        %v2552 = vpack.c.b16 %v2444, %v2440
        %v2553 = vpack.c.b16 %v2445, %v2441
        %v2554 = vpack.c.b16 %v2450, %v2446
        %v2555 = vpack.c.b16 %v2451, %v2447
        %v2556 = vpack.c.b16 %v2452, %v2448
        %v2557 = vpack.c.b16 %v2453, %v2449
        %v2558 = vpack.c.b16 %v2458, %v2454
        %v2559 = vpack.c.b16 %v2459, %v2455
        %v2560 = vpack.c.b16 %v2460, %v2456
        %v2561 = vpack.c.b16 %v2461, %v2457
        %v2562 = vpack.c.b16 %v2466, %v2462
        %v2563 = vpack.c.b16 %v2467, %v2463
        %v2564 = vpack.c.b16 %v2468, %v2464
        %v2565 = vpack.c.b16 %v2469, %v2465
        %v2566 = vpack.c.b16 %v2474, %v2470
        %v2567 = vpack.c.b16 %v2475, %v2471
        %v2568 = vpack.c.b16 %v2476, %v2472
        %v2569 = vpack.c.b16 %v2477, %v2473
        %v2570 = vpack.c.b16 %v2482, %v2478
        %v2571 = vpack.c.b16 %v2483, %v2479
        %v2572 = vpack.c.b16 %v2484, %v2480
        %v2573 = vpack.c.b16 %v2485, %v2481
        %v2574 = vpack.c.b16 %v2490, %v2486
        %v2575 = vpack.c.b16 %v2491, %v2487
        %v2576 = vpack.c.b16 %v2492, %v2488
        %v2577 = vpack.c.b16 %v2493, %v2489
        %v2578 = vpack.c.b16 %v2498, %v2494
        %v2579 = vpack.c.b16 %v2499, %v2495
        %v2580 = vpack.c.b16 %v2500, %v2496
        %v2581 = vpack.c.b16 %v2501, %v2497
        %v2582 = vpack.c.b16 %v2506, %v2502
        %v2583 = vpack.c.b16 %v2507, %v2503
        %v2584 = vpack.c.b16 %v2508, %v2504
        %v2585 = vpack.c.b16 %v2509, %v2505
        %v2586 = vpack.c.b16 %v2514, %v2510
        %v2587 = vpack.c.b16 %v2515, %v2511
        %v2588 = vpack.c.b16 %v2516, %v2512
        %v2589 = vpack.c.b16 %v2517, %v2513
        %v2590 = vpack.c.b16 %v2522, %v2518
        %v2591 = vpack.c.b16 %v2523, %v2519
        %v2592 = vpack.c.b16 %v2524, %v2520
        %v2593 = vpack.c.b16 %v2525, %v2521
        %v2594 = vpack.c.b16 %v2530, %v2526
        %v2595 = vpack.c.b16 %v2531, %v2527
        %v2596 = vpack.c.b16 %v2532, %v2528
        %v2597 = vpack.c.b16 %v2533, %v2529
        %2662 = vmatprep.subr.bf16.mxu0 %v2535
        %2663 = vmatpush1.bf16.msra.mxu0 %v2534
        %2664 = vmatprep.subr.bf16.mxu0 %v2539
        %2665 = vmatpush1.bf16.msra.mxu0 %v2538
        %2666 = vmatprep.subr.bf16.mxu0 %v2543
        %2667 = vmatpush1.bf16.msra.mxu0 %v2542
        %2668 = vmatprep.subr.bf16.mxu0 %v2547
        %2669 = vmatpush1.bf16.msra.mxu0 %v2546
        %2670 = vmatprep.subr.bf16.mxu0 %v2551
        %2671 = vmatpush1.bf16.msra.mxu0 %v2550
        %2672 = vmatprep.subr.bf16.mxu0 %v2555
        %2673 = vmatpush1.bf16.msra.mxu0 %v2554
        %2674 = vmatprep.subr.bf16.mxu0 %v2559
        %2675 = vmatpush1.bf16.msra.mxu0 %v2558
        %2676 = vmatprep.subr.bf16.mxu0 %v2563
        %2677 = vmatpush1.bf16.msra.mxu0 %v2562
        %2678 = vmatprep.subr.bf16.mxu0 %v2567
        %2679 = vmatpush1.bf16.msra.mxu0 %v2566
        %2680 = vmatprep.subr.bf16.mxu0 %v2571
        %2681 = vmatpush1.bf16.msra.mxu0 %v2570
        %2682 = vmatprep.subr.bf16.mxu0 %v2575
        %2683 = vmatpush1.bf16.msra.mxu0 %v2574
        %2684 = vmatprep.subr.bf16.mxu0 %v2579
        %2685 = vmatpush1.bf16.msra.mxu0 %v2578
        %2686 = vmatprep.subr.bf16.mxu0 %v2583
        %2687 = vmatpush1.bf16.msra.mxu0 %v2582
        %2688 = vmatprep.subr.bf16.mxu0 %v2587
        %2689 = vmatpush1.bf16.msra.mxu0 %v2586
        %2690 = vmatprep.subr.bf16.mxu0 %v2591
        %2691 = vmatpush1.bf16.msra.mxu0 %v2590
        %2692 = vmatprep.subr.bf16.mxu0 %v2595
        %2693 = vmatpush1.bf16.msra.mxu0 %v2594
        %2694 = vmatprep.mubr.bf16.mxu0 %v2277
        %2695 = vmatmul.mubr.bf16.gmra.mrb[0].mxu0 %v2276
        %v2696 = vpop.f32.mrb[0].mxu0
        %v2697 = vadd.f32 0.0, %v2696
        %v2698 = vpop.f32.mrb[0].mxu0
        %v2699 = vadd.f32 0.0, %v2698
        %v2700 = vpop.f32.mrb[0].mxu0
        %v2701 = vadd.f32 0.0, %v2700
        %v2702 = vpop.f32.mrb[0].mxu0
        %v2703 = vadd.f32 0.0, %v2702
        %2704 = vdwg.mxu0
        %2705 = vmatprep.subr.bf16.mxu0 %v2537
        %2706 = vmatpush1.bf16.msra.mxu0 %v2536
        %2707 = vmatprep.subr.bf16.mxu0 %v2541
        %2708 = vmatpush1.bf16.msra.mxu0 %v2540
        %2709 = vmatprep.subr.bf16.mxu0 %v2545
        %2710 = vmatpush1.bf16.msra.mxu0 %v2544
        %2711 = vmatprep.subr.bf16.mxu0 %v2549
        %2712 = vmatpush1.bf16.msra.mxu0 %v2548
        %2713 = vmatprep.subr.bf16.mxu0 %v2553
        %2714 = vmatpush1.bf16.msra.mxu0 %v2552
        %2715 = vmatprep.subr.bf16.mxu0 %v2557
        %2716 = vmatpush1.bf16.msra.mxu0 %v2556
        %2717 = vmatprep.subr.bf16.mxu0 %v2561
        %2718 = vmatpush1.bf16.msra.mxu0 %v2560
        %2719 = vmatprep.subr.bf16.mxu0 %v2565
        %2720 = vmatpush1.bf16.msra.mxu0 %v2564
        %2721 = vmatprep.subr.bf16.mxu0 %v2569
        %2722 = vmatpush1.bf16.msra.mxu0 %v2568
        %2723 = vmatprep.subr.bf16.mxu0 %v2573
        %2724 = vmatpush1.bf16.msra.mxu0 %v2572
        %2725 = vmatprep.subr.bf16.mxu0 %v2577
        %2726 = vmatpush1.bf16.msra.mxu0 %v2576
        %2727 = vmatprep.subr.bf16.mxu0 %v2581
        %2728 = vmatpush1.bf16.msra.mxu0 %v2580
        %2729 = vmatprep.subr.bf16.mxu0 %v2585
        %2730 = vmatpush1.bf16.msra.mxu0 %v2584
        %2731 = vmatprep.subr.bf16.mxu0 %v2589
        %2732 = vmatpush1.bf16.msra.mxu0 %v2588
        %2733 = vmatprep.subr.bf16.mxu0 %v2593
        %2734 = vmatpush1.bf16.msra.mxu0 %v2592
        %2735 = vmatprep.subr.bf16.mxu0 %v2597
        %2736 = vmatpush1.bf16.msra.mxu0 %v2596
        %2737 = vmatprep.mubr.bf16.mxu0 %v2277
        %2738 = vmatmul.mubr.bf16.gmra.mrb[0].mxu0 %v2276
        %v2739 = vpop.f32.mrb[0].mxu0
        %v2740 = vadd.f32 0.0, %v2739
        %v2741 = vpop.f32.mrb[0].mxu0
        %v2742 = vadd.f32 0.0, %v2741
        %v2743 = vpop.f32.mrb[0].mxu0
        %v2744 = vadd.f32 0.0, %v2743
        %v2745 = vpop.f32.mrb[0].mxu0
        %v2746 = vadd.f32 0.0, %v2745
        %2747 = vdwg.mxu0
        %v2749 = vlaneseq
        %v2750 = vshrl.u32 %v2749, 7
        %v2751 = vsub.s32 0, %v2750
        %v2752 = vrot.slane %v2271, %v2751
        %v2753 = vlaneseq
        %v2754 = vshrl.u32 %v2753, 7
        %v2755 = vsub.s32 1, %v2754
        %v2756 = vrot.slane %v2271, %v2755
        %v2757 = vlaneseq
        %v2758 = vshrl.u32 %v2757, 7
        %v2759 = vsub.s32 2, %v2758
        %v2760 = vrot.slane %v2271, %v2759
        %v2761 = vlaneseq
        %v2762 = vshrl.u32 %v2761, 7
        %v2763 = vsub.s32 3, %v2762
        %v2764 = vrot.slane %v2271, %v2763
        %v2769 = vadd.f32 %v2752, %v2697
        %v2770 = vadd.f32 %v2756, %v2699
        %v2771 = vadd.f32 %v2760, %v2740
        %v2772 = vadd.f32 %v2764, %v2742
        %v2773 = vadd.f32 %v2752, %v2701
        %v2774 = vadd.f32 %v2756, %v2703
        %v2775 = vadd.f32 %v2760, %v2744
        %v2776 = vadd.f32 %v2764, %v2746
        %v2777 = vld [vmem:[#allocation3] sm:$0xfe]
        %v2778 = vld [vmem:[#allocation3 + $0x8] sm:$0xfe]
        %v2779 = vld [vmem:[#allocation3 + $0x10] sm:$0xff]
        %v2780 = vld [vmem:[#allocation3 + $0x18] sm:$0xff]
        %v2781 = vld [vmem:[#allocation3 + $0x20] sm:$0x1]
        %v2782 = vld [vmem:[#allocation3 + $0x28] sm:$0x1]
        %v2783 = vpack.c.bf16 %v2779, %v2777
        %v2784 = vpack.c.bf16 %v2780, %v2778
        %v2785 = vpack.c.bf16 %v2781, %v2781
        %v2786 = vpack.c.bf16 %v2782, %v2782
        %s2787 = scalar_lea.vmem %s5, 512
        %v2788 = vld [vmem:[%s2787] sm:$0xff]
        %v2789 = vld [vmem:[%s2787 + $0x8] sm:$0xff]
        %v2790 = vld [vmem:[%s2787 + $0x10] sm:$0xff]
        %v2791 = vld [vmem:[%s2787 + $0x18] sm:$0xff]
        %v2792 = vld [vmem:[%s2787 + $0x20] sm:$0xff]
        %v2793 = vld [vmem:[%s2787 + $0x28] sm:$0xff]
        %v2794 = vld [vmem:[%s2787 + $0x30] sm:$0xff]
        %v2795 = vld [vmem:[%s2787 + $0x38] sm:$0xff]
        %v2796 = vld [vmem:[%s2787 + $0x40] sm:$0xff]
        %v2797 = vld [vmem:[%s2787 + $0x48] sm:$0xff]
        %v2798 = vld [vmem:[%s2787 + $0x50] sm:$0xff]
        %v2799 = vld [vmem:[%s2787 + $0x58] sm:$0xff]
        %v2800 = vld [vmem:[%s2787 + $0x60] sm:$0xff]
        %v2801 = vld [vmem:[%s2787 + $0x68] sm:$0xff]
        %v2802 = vld [vmem:[%s2787 + $0x70] sm:$0xff]
        %v2803 = vld [vmem:[%s2787 + $0x78] sm:$0xff]
        %v2804 = vld [vmem:[%s2787 + $0x80] sm:$0xff]
        %v2805 = vld [vmem:[%s2787 + $0x88] sm:$0xff]
        %v2806 = vld [vmem:[%s2787 + $0x90] sm:$0xff]
        %v2807 = vld [vmem:[%s2787 + $0x98] sm:$0xff]
        %v2808 = vld [vmem:[%s2787 + $0xa0] sm:$0xff]
        %v2809 = vld [vmem:[%s2787 + $0xa8] sm:$0xff]
        %v2810 = vld [vmem:[%s2787 + $0xb0] sm:$0xff]
        %v2811 = vld [vmem:[%s2787 + $0xb8] sm:$0xff]
        %v2812 = vld [vmem:[%s2787 + $0xc0] sm:$0xff]
        %v2813 = vld [vmem:[%s2787 + $0xc8] sm:$0xff]
        %v2814 = vld [vmem:[%s2787 + $0xd0] sm:$0xff]
        %v2815 = vld [vmem:[%s2787 + $0xd8] sm:$0xff]
        %v2816 = vld [vmem:[%s2787 + $0xe0] sm:$0xff]
        %v2817 = vld [vmem:[%s2787 + $0xe8] sm:$0xff]
        %v2818 = vld [vmem:[%s2787 + $0xf0] sm:$0xff]
        %v2819 = vld [vmem:[%s2787 + $0xf8] sm:$0xff]
        %v2820 = vld [vmem:[%s2787 + $0x100] sm:$0xff]
        %v2821 = vld [vmem:[%s2787 + $0x108] sm:$0xff]
        %v2822 = vld [vmem:[%s2787 + $0x110] sm:$0xff]
        %v2823 = vld [vmem:[%s2787 + $0x118] sm:$0xff]
        %v2824 = vld [vmem:[%s2787 + $0x120] sm:$0xff]
        %v2825 = vld [vmem:[%s2787 + $0x128] sm:$0xff]
        %v2826 = vld [vmem:[%s2787 + $0x130] sm:$0xff]
        %v2827 = vld [vmem:[%s2787 + $0x138] sm:$0xff]
        %v2828 = vld [vmem:[%s2787 + $0x140] sm:$0xff]
        %v2829 = vld [vmem:[%s2787 + $0x148] sm:$0xff]
        %v2830 = vld [vmem:[%s2787 + $0x150] sm:$0xff]
        %v2831 = vld [vmem:[%s2787 + $0x158] sm:$0xff]
        %v2832 = vld [vmem:[%s2787 + $0x160] sm:$0xff]
        %v2833 = vld [vmem:[%s2787 + $0x168] sm:$0xff]
        %v2834 = vld [vmem:[%s2787 + $0x170] sm:$0xff]
        %v2835 = vld [vmem:[%s2787 + $0x178] sm:$0xff]
        %v2836 = vld [vmem:[%s2787 + $0x180] sm:$0xff]
        %v2837 = vld [vmem:[%s2787 + $0x188] sm:$0xff]
        %v2838 = vld [vmem:[%s2787 + $0x190] sm:$0xff]
        %v2839 = vld [vmem:[%s2787 + $0x198] sm:$0xff]
        %v2840 = vld [vmem:[%s2787 + $0x1a0] sm:$0xff]
        %v2841 = vld [vmem:[%s2787 + $0x1a8] sm:$0xff]
        %v2842 = vld [vmem:[%s2787 + $0x1b0] sm:$0xff]
        %v2843 = vld [vmem:[%s2787 + $0x1b8] sm:$0xff]
        %v2844 = vld [vmem:[%s2787 + $0x1c0] sm:$0xff]
        %v2845 = vld [vmem:[%s2787 + $0x1c8] sm:$0xff]
        %v2846 = vld [vmem:[%s2787 + $0x1d0] sm:$0xff]
        %v2847 = vld [vmem:[%s2787 + $0x1d8] sm:$0xff]
        %v2848 = vld [vmem:[%s2787 + $0x1e0] sm:$0xff]
        %v2849 = vld [vmem:[%s2787 + $0x1e8] sm:$0xff]
        %v2850 = vld [vmem:[%s2787 + $0x1f0] sm:$0xff]
        %v2851 = vld [vmem:[%s2787 + $0x1f8] sm:$0xff]
        %vm2852 = vsmask.f32 7424
        %v2854 = vshrl.u32 %v2783, 16
        %v2856 = vshll.u32 %v2783, 16
        %v2858 = vrot.slane %v2856, 1
        %v2859 = vor.u32 %v2854, %v2858
        %v2861 = vshll.u32 %v2785, 16
        %v2863 = vrot.slane %v2861, 1
        %v2864 = vsel %vm2852, %v2859, %v2863
        %v2866 = vshrl.u32 %v2784, 16
        %v2868 = vshll.u32 %v2784, 16
        %v2870 = vrot.slane %v2868, 1
        %v2871 = vor.u32 %v2866, %v2870
        %v2873 = vshll.u32 %v2786, 16
        %v2875 = vrot.slane %v2873, 1
        %v2876 = vsel %vm2852, %v2871, %v2875
        %v2943 = vunpack.c.l.b16 %v2788
        %v2944 = vunpack.c.h.b16 %v2788
        %v2945 = vunpack.c.l.b16 %v2789
        %v2946 = vunpack.c.h.b16 %v2789
        %v2947 = vunpack.c.l.b16 %v2790
        %v2948 = vunpack.c.h.b16 %v2790
        %v2949 = vunpack.c.l.b16 %v2791
        %v2950 = vunpack.c.h.b16 %v2791
        %v2951 = vunpack.c.l.b16 %v2792
        %v2952 = vunpack.c.h.b16 %v2792
        %v2953 = vunpack.c.l.b16 %v2793
        %v2954 = vunpack.c.h.b16 %v2793
        %v2955 = vunpack.c.l.b16 %v2794
        %v2956 = vunpack.c.h.b16 %v2794
        %v2957 = vunpack.c.l.b16 %v2795
        %v2958 = vunpack.c.h.b16 %v2795
        %v2959 = vunpack.c.l.b16 %v2796
        %v2960 = vunpack.c.h.b16 %v2796
        %v2961 = vunpack.c.l.b16 %v2797
        %v2962 = vunpack.c.h.b16 %v2797
        %v2963 = vunpack.c.l.b16 %v2798
        %v2964 = vunpack.c.h.b16 %v2798
        %v2965 = vunpack.c.l.b16 %v2799
        %v2966 = vunpack.c.h.b16 %v2799
        %v2967 = vunpack.c.l.b16 %v2800
        %v2968 = vunpack.c.h.b16 %v2800
        %v2969 = vunpack.c.l.b16 %v2801
        %v2970 = vunpack.c.h.b16 %v2801
        %v2971 = vunpack.c.l.b16 %v2802
        %v2972 = vunpack.c.h.b16 %v2802
        %v2973 = vunpack.c.l.b16 %v2803
        %v2974 = vunpack.c.h.b16 %v2803
        %v2975 = vunpack.c.l.b16 %v2804
        %v2976 = vunpack.c.h.b16 %v2804
        %v2977 = vunpack.c.l.b16 %v2805
        %v2978 = vunpack.c.h.b16 %v2805
        %v2979 = vunpack.c.l.b16 %v2806
        %v2980 = vunpack.c.h.b16 %v2806
        %v2981 = vunpack.c.l.b16 %v2807
        %v2982 = vunpack.c.h.b16 %v2807
        %v2983 = vunpack.c.l.b16 %v2808
        %v2984 = vunpack.c.h.b16 %v2808
        %v2985 = vunpack.c.l.b16 %v2809
        %v2986 = vunpack.c.h.b16 %v2809
        %v2987 = vunpack.c.l.b16 %v2810
        %v2988 = vunpack.c.h.b16 %v2810
        %v2989 = vunpack.c.l.b16 %v2811
        %v2990 = vunpack.c.h.b16 %v2811
        %v2991 = vunpack.c.l.b16 %v2812
        %v2992 = vunpack.c.h.b16 %v2812
        %v2993 = vunpack.c.l.b16 %v2813
        %v2994 = vunpack.c.h.b16 %v2813
        %v2995 = vunpack.c.l.b16 %v2814
        %v2996 = vunpack.c.h.b16 %v2814
        %v2997 = vunpack.c.l.b16 %v2815
        %v2998 = vunpack.c.h.b16 %v2815
        %v2999 = vunpack.c.l.b16 %v2816
        %v3000 = vunpack.c.h.b16 %v2816
        %v3001 = vunpack.c.l.b16 %v2817
        %v3002 = vunpack.c.h.b16 %v2817
        %v3003 = vunpack.c.l.b16 %v2818
        %v3004 = vunpack.c.h.b16 %v2818
        %v3005 = vunpack.c.l.b16 %v2819
        %v3006 = vunpack.c.h.b16 %v2819
        %v3007 = vunpack.c.l.b16 %v2820
        %v3008 = vunpack.c.h.b16 %v2820
        %v3009 = vunpack.c.l.b16 %v2821
        %v3010 = vunpack.c.h.b16 %v2821
        %v3011 = vunpack.c.l.b16 %v2822
        %v3012 = vunpack.c.h.b16 %v2822
        %v3013 = vunpack.c.l.b16 %v2823
        %v3014 = vunpack.c.h.b16 %v2823
        %v3015 = vunpack.c.l.b16 %v2824
        %v3016 = vunpack.c.h.b16 %v2824
        %v3017 = vunpack.c.l.b16 %v2825
        %v3018 = vunpack.c.h.b16 %v2825
        %v3019 = vunpack.c.l.b16 %v2826
        %v3020 = vunpack.c.h.b16 %v2826
        %v3021 = vunpack.c.l.b16 %v2827
        %v3022 = vunpack.c.h.b16 %v2827
        %v3023 = vunpack.c.l.b16 %v2828
        %v3024 = vunpack.c.h.b16 %v2828
        %v3025 = vunpack.c.l.b16 %v2829
        %v3026 = vunpack.c.h.b16 %v2829
        %v3027 = vunpack.c.l.b16 %v2830
        %v3028 = vunpack.c.h.b16 %v2830
        %v3029 = vunpack.c.l.b16 %v2831
        %v3030 = vunpack.c.h.b16 %v2831
        %v3031 = vunpack.c.l.b16 %v2832
        %v3032 = vunpack.c.h.b16 %v2832
        %v3033 = vunpack.c.l.b16 %v2833
        %v3034 = vunpack.c.h.b16 %v2833
        %v3035 = vunpack.c.l.b16 %v2834
        %v3036 = vunpack.c.h.b16 %v2834
        %v3037 = vunpack.c.l.b16 %v2835
        %v3038 = vunpack.c.h.b16 %v2835
        %v3039 = vunpack.c.l.b16 %v2836
        %v3040 = vunpack.c.h.b16 %v2836
        %v3041 = vunpack.c.l.b16 %v2837
        %v3042 = vunpack.c.h.b16 %v2837
        %v3043 = vunpack.c.l.b16 %v2838
        %v3044 = vunpack.c.h.b16 %v2838
        %v3045 = vunpack.c.l.b16 %v2839
        %v3046 = vunpack.c.h.b16 %v2839
        %v3047 = vunpack.c.l.b16 %v2840
        %v3048 = vunpack.c.h.b16 %v2840
        %v3049 = vunpack.c.l.b16 %v2841
        %v3050 = vunpack.c.h.b16 %v2841
        %v3051 = vunpack.c.l.b16 %v2842
        %v3052 = vunpack.c.h.b16 %v2842
        %v3053 = vunpack.c.l.b16 %v2843
        %v3054 = vunpack.c.h.b16 %v2843
        %v3055 = vunpack.c.l.b16 %v2844
        %v3056 = vunpack.c.h.b16 %v2844
        %v3057 = vunpack.c.l.b16 %v2845
        %v3058 = vunpack.c.h.b16 %v2845
        %v3059 = vunpack.c.l.b16 %v2846
        %v3060 = vunpack.c.h.b16 %v2846
        %v3061 = vunpack.c.l.b16 %v2847
        %v3062 = vunpack.c.h.b16 %v2847
        %v3063 = vunpack.c.l.b16 %v2848
        %v3064 = vunpack.c.h.b16 %v2848
        %v3065 = vunpack.c.l.b16 %v2849
        %v3066 = vunpack.c.h.b16 %v2849
        %v3067 = vunpack.c.l.b16 %v2850
        %v3068 = vunpack.c.h.b16 %v2850
        %v3069 = vunpack.c.l.b16 %v2851
        %v3070 = vunpack.c.h.b16 %v2851
        %v3071 = vpack.c.b16 %v2947, %v2943
        %v3072 = vpack.c.b16 %v2948, %v2944
        %v3073 = vpack.c.b16 %v2949, %v2945
        %v3074 = vpack.c.b16 %v2950, %v2946
        %v3075 = vpack.c.b16 %v2955, %v2951
        %v3076 = vpack.c.b16 %v2956, %v2952
        %v3077 = vpack.c.b16 %v2957, %v2953
        %v3078 = vpack.c.b16 %v2958, %v2954
        %v3079 = vpack.c.b16 %v2963, %v2959
        %v3080 = vpack.c.b16 %v2964, %v2960
        %v3081 = vpack.c.b16 %v2965, %v2961
        %v3082 = vpack.c.b16 %v2966, %v2962
        %v3083 = vpack.c.b16 %v2971, %v2967
        %v3084 = vpack.c.b16 %v2972, %v2968
        %v3085 = vpack.c.b16 %v2973, %v2969
        %v3086 = vpack.c.b16 %v2974, %v2970
        %v3087 = vpack.c.b16 %v2979, %v2975
        %v3088 = vpack.c.b16 %v2980, %v2976
        %v3089 = vpack.c.b16 %v2981, %v2977
        %v3090 = vpack.c.b16 %v2982, %v2978
        %v3091 = vpack.c.b16 %v2987, %v2983
        %v3092 = vpack.c.b16 %v2988, %v2984
        %v3093 = vpack.c.b16 %v2989, %v2985
        %v3094 = vpack.c.b16 %v2990, %v2986
        %v3095 = vpack.c.b16 %v2995, %v2991
        %v3096 = vpack.c.b16 %v2996, %v2992
        %v3097 = vpack.c.b16 %v2997, %v2993
        %v3098 = vpack.c.b16 %v2998, %v2994
        %v3099 = vpack.c.b16 %v3003, %v2999
        %v3100 = vpack.c.b16 %v3004, %v3000
        %v3101 = vpack.c.b16 %v3005, %v3001
        %v3102 = vpack.c.b16 %v3006, %v3002
        %v3103 = vpack.c.b16 %v3011, %v3007
        %v3104 = vpack.c.b16 %v3012, %v3008
        %v3105 = vpack.c.b16 %v3013, %v3009
        %v3106 = vpack.c.b16 %v3014, %v3010
        %v3107 = vpack.c.b16 %v3019, %v3015
        %v3108 = vpack.c.b16 %v3020, %v3016
        %v3109 = vpack.c.b16 %v3021, %v3017
        %v3110 = vpack.c.b16 %v3022, %v3018
        %v3111 = vpack.c.b16 %v3027, %v3023
        %v3112 = vpack.c.b16 %v3028, %v3024
        %v3113 = vpack.c.b16 %v3029, %v3025
        %v3114 = vpack.c.b16 %v3030, %v3026
        %v3115 = vpack.c.b16 %v3035, %v3031
        %v3116 = vpack.c.b16 %v3036, %v3032
        %v3117 = vpack.c.b16 %v3037, %v3033
        %v3118 = vpack.c.b16 %v3038, %v3034
        %v3119 = vpack.c.b16 %v3043, %v3039
        %v3120 = vpack.c.b16 %v3044, %v3040
        %v3121 = vpack.c.b16 %v3045, %v3041
        %v3122 = vpack.c.b16 %v3046, %v3042
        %v3123 = vpack.c.b16 %v3051, %v3047
        %v3124 = vpack.c.b16 %v3052, %v3048
        %v3125 = vpack.c.b16 %v3053, %v3049
        %v3126 = vpack.c.b16 %v3054, %v3050
        %v3127 = vpack.c.b16 %v3059, %v3055
        %v3128 = vpack.c.b16 %v3060, %v3056
        %v3129 = vpack.c.b16 %v3061, %v3057
        %v3130 = vpack.c.b16 %v3062, %v3058
        %v3131 = vpack.c.b16 %v3067, %v3063
        %v3132 = vpack.c.b16 %v3068, %v3064
        %v3133 = vpack.c.b16 %v3069, %v3065
        %v3134 = vpack.c.b16 %v3070, %v3066
        %3199 = vmatprep.subr.bf16.mxu0 %v3072
        %3200 = vmatpush1.bf16.msra.mxu0 %v3071
        %3201 = vmatprep.subr.bf16.mxu0 %v3076
        %3202 = vmatpush1.bf16.msra.mxu0 %v3075
        %3203 = vmatprep.subr.bf16.mxu0 %v3080
        %3204 = vmatpush1.bf16.msra.mxu0 %v3079
        %3205 = vmatprep.subr.bf16.mxu0 %v3084
        %3206 = vmatpush1.bf16.msra.mxu0 %v3083
        %3207 = vmatprep.subr.bf16.mxu0 %v3088
        %3208 = vmatpush1.bf16.msra.mxu0 %v3087
        %3209 = vmatprep.subr.bf16.mxu0 %v3092
        %3210 = vmatpush1.bf16.msra.mxu0 %v3091
        %3211 = vmatprep.subr.bf16.mxu0 %v3096
        %3212 = vmatpush1.bf16.msra.mxu0 %v3095
        %3213 = vmatprep.subr.bf16.mxu0 %v3100
        %3214 = vmatpush1.bf16.msra.mxu0 %v3099
        %3215 = vmatprep.subr.bf16.mxu0 %v3104
        %3216 = vmatpush1.bf16.msra.mxu0 %v3103
        %3217 = vmatprep.subr.bf16.mxu0 %v3108
        %3218 = vmatpush1.bf16.msra.mxu0 %v3107
        %3219 = vmatprep.subr.bf16.mxu0 %v3112
        %3220 = vmatpush1.bf16.msra.mxu0 %v3111
        %3221 = vmatprep.subr.bf16.mxu0 %v3116
        %3222 = vmatpush1.bf16.msra.mxu0 %v3115
        %3223 = vmatprep.subr.bf16.mxu0 %v3120
        %3224 = vmatpush1.bf16.msra.mxu0 %v3119
        %3225 = vmatprep.subr.bf16.mxu0 %v3124
        %3226 = vmatpush1.bf16.msra.mxu0 %v3123
        %3227 = vmatprep.subr.bf16.mxu0 %v3128
        %3228 = vmatpush1.bf16.msra.mxu0 %v3127
        %3229 = vmatprep.subr.bf16.mxu0 %v3132
        %3230 = vmatpush1.bf16.msra.mxu0 %v3131
        %3231 = vmatprep.mubr.bf16.mxu0 %v2876
        %3232 = vmatmul.mubr.bf16.gmra.mrb[0].mxu0 %v2864
        %v3233 = vpop.f32.mrb[0].mxu0
        %v3234 = vadd.f32 0.0, %v3233
        %v3235 = vpop.f32.mrb[0].mxu0
        %v3236 = vadd.f32 0.0, %v3235
        %v3237 = vpop.f32.mrb[0].mxu0
        %v3238 = vadd.f32 0.0, %v3237
        %v3239 = vpop.f32.mrb[0].mxu0
        %v3240 = vadd.f32 0.0, %v3239
        %3241 = vdwg.mxu0
        %3242 = vmatprep.subr.bf16.mxu0 %v3074
        %3243 = vmatpush1.bf16.msra.mxu0 %v3073
        %3244 = vmatprep.subr.bf16.mxu0 %v3078
        %3245 = vmatpush1.bf16.msra.mxu0 %v3077
        %3246 = vmatprep.subr.bf16.mxu0 %v3082
        %3247 = vmatpush1.bf16.msra.mxu0 %v3081
        %3248 = vmatprep.subr.bf16.mxu0 %v3086
        %3249 = vmatpush1.bf16.msra.mxu0 %v3085
        %3250 = vmatprep.subr.bf16.mxu0 %v3090
        %3251 = vmatpush1.bf16.msra.mxu0 %v3089
        %3252 = vmatprep.subr.bf16.mxu0 %v3094
        %3253 = vmatpush1.bf16.msra.mxu0 %v3093
        %3254 = vmatprep.subr.bf16.mxu0 %v3098
        %3255 = vmatpush1.bf16.msra.mxu0 %v3097
        %3256 = vmatprep.subr.bf16.mxu0 %v3102
        %3257 = vmatpush1.bf16.msra.mxu0 %v3101
        %3258 = vmatprep.subr.bf16.mxu0 %v3106
        %3259 = vmatpush1.bf16.msra.mxu0 %v3105
        %3260 = vmatprep.subr.bf16.mxu0 %v3110
        %3261 = vmatpush1.bf16.msra.mxu0 %v3109
        %3262 = vmatprep.subr.bf16.mxu0 %v3114
        %3263 = vmatpush1.bf16.msra.mxu0 %v3113
        %3264 = vmatprep.subr.bf16.mxu0 %v3118
        %3265 = vmatpush1.bf16.msra.mxu0 %v3117
        %3266 = vmatprep.subr.bf16.mxu0 %v3122
        %3267 = vmatpush1.bf16.msra.mxu0 %v3121
        %3268 = vmatprep.subr.bf16.mxu0 %v3126
        %3269 = vmatpush1.bf16.msra.mxu0 %v3125
        %3270 = vmatprep.subr.bf16.mxu0 %v3130
        %3271 = vmatpush1.bf16.msra.mxu0 %v3129
        %3272 = vmatprep.subr.bf16.mxu0 %v3134
        %3273 = vmatpush1.bf16.msra.mxu0 %v3133
        %3274 = vmatprep.mubr.bf16.mxu0 %v2876
        %3275 = vmatmul.mubr.bf16.gmra.mrb[0].mxu0 %v2864
        %v3276 = vpop.f32.mrb[0].mxu0
        %v3277 = vadd.f32 0.0, %v3276
        %v3278 = vpop.f32.mrb[0].mxu0
        %v3279 = vadd.f32 0.0, %v3278
        %v3280 = vpop.f32.mrb[0].mxu0
        %v3281 = vadd.f32 0.0, %v3280
        %v3282 = vpop.f32.mrb[0].mxu0
        %v3283 = vadd.f32 0.0, %v3282
        %3284 = vdwg.mxu0
        %v3285 = vadd.f32 %v2769, %v3234
        %v3286 = vadd.f32 %v2770, %v3236
        %v3287 = vadd.f32 %v2771, %v3277
        %v3288 = vadd.f32 %v2772, %v3279
        %v3289 = vadd.f32 %v2773, %v3238
        %v3290 = vadd.f32 %v2774, %v3240
        %v3291 = vadd.f32 %v2775, %v3281
        %v3292 = vadd.f32 %v2776, %v3283
        %v3293 = vld [vmem:[#allocation3] sm:$0xfc]
        %v3294 = vld [vmem:[#allocation3 + $0x8] sm:$0xfc]
        %v3295 = vld [vmem:[#allocation3 + $0x20] sm:$0x3]
        %v3296 = vld [vmem:[#allocation3 + $0x28] sm:$0x3]
        %v3297 = vpack.c.bf16 %v2779, %v3293
        %v3298 = vpack.c.bf16 %v2780, %v3294
        %v3299 = vpack.c.bf16 %v3295, %v3295
        %v3300 = vpack.c.bf16 %v3296, %v3296
        %s3301 = scalar_lea.vmem %s5, 1024
        %v3302 = vld [vmem:[%s3301] sm:$0xff]
        %v3303 = vld [vmem:[%s3301 + $0x8] sm:$0xff]
        %v3304 = vld [vmem:[%s3301 + $0x10] sm:$0xff]
        %v3305 = vld [vmem:[%s3301 + $0x18] sm:$0xff]
        %v3306 = vld [vmem:[%s3301 + $0x20] sm:$0xff]
        %v3307 = vld [vmem:[%s3301 + $0x28] sm:$0xff]
        %v3308 = vld [vmem:[%s3301 + $0x30] sm:$0xff]
        %v3309 = vld [vmem:[%s3301 + $0x38] sm:$0xff]
        %v3310 = vld [vmem:[%s3301 + $0x40] sm:$0xff]
        %v3311 = vld [vmem:[%s3301 + $0x48] sm:$0xff]
        %v3312 = vld [vmem:[%s3301 + $0x50] sm:$0xff]
        %v3313 = vld [vmem:[%s3301 + $0x58] sm:$0xff]
        %v3314 = vld [vmem:[%s3301 + $0x60] sm:$0xff]
        %v3315 = vld [vmem:[%s3301 + $0x68] sm:$0xff]
        %v3316 = vld [vmem:[%s3301 + $0x70] sm:$0xff]
        %v3317 = vld [vmem:[%s3301 + $0x78] sm:$0xff]
        %v3318 = vld [vmem:[%s3301 + $0x80] sm:$0xff]
        %v3319 = vld [vmem:[%s3301 + $0x88] sm:$0xff]
        %v3320 = vld [vmem:[%s3301 + $0x90] sm:$0xff]
        %v3321 = vld [vmem:[%s3301 + $0x98] sm:$0xff]
        %v3322 = vld [vmem:[%s3301 + $0xa0] sm:$0xff]
        %v3323 = vld [vmem:[%s3301 + $0xa8] sm:$0xff]
        %v3324 = vld [vmem:[%s3301 + $0xb0] sm:$0xff]
        %v3325 = vld [vmem:[%s3301 + $0xb8] sm:$0xff]
        %v3326 = vld [vmem:[%s3301 + $0xc0] sm:$0xff]
        %v3327 = vld [vmem:[%s3301 + $0xc8] sm:$0xff]
        %v3328 = vld [vmem:[%s3301 + $0xd0] sm:$0xff]
        %v3329 = vld [vmem:[%s3301 + $0xd8] sm:$0xff]
        %v3330 = vld [vmem:[%s3301 + $0xe0] sm:$0xff]
        %v3331 = vld [vmem:[%s3301 + $0xe8] sm:$0xff]
        %v3332 = vld [vmem:[%s3301 + $0xf0] sm:$0xff]
        %v3333 = vld [vmem:[%s3301 + $0xf8] sm:$0xff]
        %v3334 = vld [vmem:[%s3301 + $0x100] sm:$0xff]
        %v3335 = vld [vmem:[%s3301 + $0x108] sm:$0xff]
        %v3336 = vld [vmem:[%s3301 + $0x110] sm:$0xff]
        %v3337 = vld [vmem:[%s3301 + $0x118] sm:$0xff]
        %v3338 = vld [vmem:[%s3301 + $0x120] sm:$0xff]
        %v3339 = vld [vmem:[%s3301 + $0x128] sm:$0xff]
        %v3340 = vld [vmem:[%s3301 + $0x130] sm:$0xff]
        %v3341 = vld [vmem:[%s3301 + $0x138] sm:$0xff]
        %v3342 = vld [vmem:[%s3301 + $0x140] sm:$0xff]
        %v3343 = vld [vmem:[%s3301 + $0x148] sm:$0xff]
        %v3344 = vld [vmem:[%s3301 + $0x150] sm:$0xff]
        %v3345 = vld [vmem:[%s3301 + $0x158] sm:$0xff]
        %v3346 = vld [vmem:[%s3301 + $0x160] sm:$0xff]
        %v3347 = vld [vmem:[%s3301 + $0x168] sm:$0xff]
        %v3348 = vld [vmem:[%s3301 + $0x170] sm:$0xff]
        %v3349 = vld [vmem:[%s3301 + $0x178] sm:$0xff]
        %v3350 = vld [vmem:[%s3301 + $0x180] sm:$0xff]
        %v3351 = vld [vmem:[%s3301 + $0x188] sm:$0xff]
        %v3352 = vld [vmem:[%s3301 + $0x190] sm:$0xff]
        %v3353 = vld [vmem:[%s3301 + $0x198] sm:$0xff]
        %v3354 = vld [vmem:[%s3301 + $0x1a0] sm:$0xff]
        %v3355 = vld [vmem:[%s3301 + $0x1a8] sm:$0xff]
        %v3356 = vld [vmem:[%s3301 + $0x1b0] sm:$0xff]
        %v3357 = vld [vmem:[%s3301 + $0x1b8] sm:$0xff]
        %v3358 = vld [vmem:[%s3301 + $0x1c0] sm:$0xff]
        %v3359 = vld [vmem:[%s3301 + $0x1c8] sm:$0xff]
        %v3360 = vld [vmem:[%s3301 + $0x1d0] sm:$0xff]
        %v3361 = vld [vmem:[%s3301 + $0x1d8] sm:$0xff]
        %v3362 = vld [vmem:[%s3301 + $0x1e0] sm:$0xff]
        %v3363 = vld [vmem:[%s3301 + $0x1e8] sm:$0xff]
        %v3364 = vld [vmem:[%s3301 + $0x1f0] sm:$0xff]
        %v3365 = vld [vmem:[%s3301 + $0x1f8] sm:$0xff]
        %vm3370 = vcmask 1046528
        %v3371 = vrot.slane %v3297, 1
        %v3372 = vrot.slane %v3299, 1
        %v3373 = vsel %vm3370, %v3371, %v3372
        %v3374 = vrot.slane %v3298, 1
        %v3375 = vrot.slane %v3300, 1
        %v3376 = vsel %vm3370, %v3374, %v3375
        %v3443 = vunpack.c.l.b16 %v3302
        %v3444 = vunpack.c.h.b16 %v3302
        %v3445 = vunpack.c.l.b16 %v3303
        %v3446 = vunpack.c.h.b16 %v3303
        %v3447 = vunpack.c.l.b16 %v3304
        %v3448 = vunpack.c.h.b16 %v3304
        %v3449 = vunpack.c.l.b16 %v3305
        %v3450 = vunpack.c.h.b16 %v3305
        %v3451 = vunpack.c.l.b16 %v3306
        %v3452 = vunpack.c.h.b16 %v3306
        %v3453 = vunpack.c.l.b16 %v3307
        %v3454 = vunpack.c.h.b16 %v3307
        %v3455 = vunpack.c.l.b16 %v3308
        %v3456 = vunpack.c.h.b16 %v3308
        %v3457 = vunpack.c.l.b16 %v3309
        %v3458 = vunpack.c.h.b16 %v3309
        %v3459 = vunpack.c.l.b16 %v3310
        %v3460 = vunpack.c.h.b16 %v3310
        %v3461 = vunpack.c.l.b16 %v3311
        %v3462 = vunpack.c.h.b16 %v3311
        %v3463 = vunpack.c.l.b16 %v3312
        %v3464 = vunpack.c.h.b16 %v3312
        %v3465 = vunpack.c.l.b16 %v3313
        %v3466 = vunpack.c.h.b16 %v3313
        %v3467 = vunpack.c.l.b16 %v3314
        %v3468 = vunpack.c.h.b16 %v3314
        %v3469 = vunpack.c.l.b16 %v3315
        %v3470 = vunpack.c.h.b16 %v3315
        %v3471 = vunpack.c.l.b16 %v3316
        %v3472 = vunpack.c.h.b16 %v3316
        %v3473 = vunpack.c.l.b16 %v3317
        %v3474 = vunpack.c.h.b16 %v3317
        %v3475 = vunpack.c.l.b16 %v3318
        %v3476 = vunpack.c.h.b16 %v3318
        %v3477 = vunpack.c.l.b16 %v3319
        %v3478 = vunpack.c.h.b16 %v3319
        %v3479 = vunpack.c.l.b16 %v3320
        %v3480 = vunpack.c.h.b16 %v3320
        %v3481 = vunpack.c.l.b16 %v3321
        %v3482 = vunpack.c.h.b16 %v3321
        %v3483 = vunpack.c.l.b16 %v3322
        %v3484 = vunpack.c.h.b16 %v3322
        %v3485 = vunpack.c.l.b16 %v3323
        %v3486 = vunpack.c.h.b16 %v3323
        %v3487 = vunpack.c.l.b16 %v3324
        %v3488 = vunpack.c.h.b16 %v3324
        %v3489 = vunpack.c.l.b16 %v3325
        %v3490 = vunpack.c.h.b16 %v3325
        %v3491 = vunpack.c.l.b16 %v3326
        %v3492 = vunpack.c.h.b16 %v3326
        %v3493 = vunpack.c.l.b16 %v3327
        %v3494 = vunpack.c.h.b16 %v3327
        %v3495 = vunpack.c.l.b16 %v3328
        %v3496 = vunpack.c.h.b16 %v3328
        %v3497 = vunpack.c.l.b16 %v3329
        %v3498 = vunpack.c.h.b16 %v3329
        %v3499 = vunpack.c.l.b16 %v3330
        %v3500 = vunpack.c.h.b16 %v3330
        %v3501 = vunpack.c.l.b16 %v3331
        %v3502 = vunpack.c.h.b16 %v3331
        %v3503 = vunpack.c.l.b16 %v3332
        %v3504 = vunpack.c.h.b16 %v3332
        %v3505 = vunpack.c.l.b16 %v3333
        %v3506 = vunpack.c.h.b16 %v3333
        %v3507 = vunpack.c.l.b16 %v3334
        %v3508 = vunpack.c.h.b16 %v3334
        %v3509 = vunpack.c.l.b16 %v3335
        %v3510 = vunpack.c.h.b16 %v3335
        %v3511 = vunpack.c.l.b16 %v3336
        %v3512 = vunpack.c.h.b16 %v3336
        %v3513 = vunpack.c.l.b16 %v3337
        %v3514 = vunpack.c.h.b16 %v3337
        %v3515 = vunpack.c.l.b16 %v3338
        %v3516 = vunpack.c.h.b16 %v3338
        %v3517 = vunpack.c.l.b16 %v3339
        %v3518 = vunpack.c.h.b16 %v3339
        %v3519 = vunpack.c.l.b16 %v3340
        %v3520 = vunpack.c.h.b16 %v3340
        %v3521 = vunpack.c.l.b16 %v3341
        %v3522 = vunpack.c.h.b16 %v3341
        %v3523 = vunpack.c.l.b16 %v3342
        %v3524 = vunpack.c.h.b16 %v3342
        %v3525 = vunpack.c.l.b16 %v3343
        %v3526 = vunpack.c.h.b16 %v3343
        %v3527 = vunpack.c.l.b16 %v3344
        %v3528 = vunpack.c.h.b16 %v3344
        %v3529 = vunpack.c.l.b16 %v3345
        %v3530 = vunpack.c.h.b16 %v3345
        %v3531 = vunpack.c.l.b16 %v3346
        %v3532 = vunpack.c.h.b16 %v3346
        %v3533 = vunpack.c.l.b16 %v3347
        %v3534 = vunpack.c.h.b16 %v3347
        %v3535 = vunpack.c.l.b16 %v3348
        %v3536 = vunpack.c.h.b16 %v3348
        %v3537 = vunpack.c.l.b16 %v3349
        %v3538 = vunpack.c.h.b16 %v3349
        %v3539 = vunpack.c.l.b16 %v3350
        %v3540 = vunpack.c.h.b16 %v3350
        %v3541 = vunpack.c.l.b16 %v3351
        %v3542 = vunpack.c.h.b16 %v3351
        %v3543 = vunpack.c.l.b16 %v3352
        %v3544 = vunpack.c.h.b16 %v3352
        %v3545 = vunpack.c.l.b16 %v3353
        %v3546 = vunpack.c.h.b16 %v3353
        %v3547 = vunpack.c.l.b16 %v3354
        %v3548 = vunpack.c.h.b16 %v3354
        %v3549 = vunpack.c.l.b16 %v3355
        %v3550 = vunpack.c.h.b16 %v3355
        %v3551 = vunpack.c.l.b16 %v3356
        %v3552 = vunpack.c.h.b16 %v3356
        %v3553 = vunpack.c.l.b16 %v3357
        %v3554 = vunpack.c.h.b16 %v3357
        %v3555 = vunpack.c.l.b16 %v3358
        %v3556 = vunpack.c.h.b16 %v3358
        %v3557 = vunpack.c.l.b16 %v3359
        %v3558 = vunpack.c.h.b16 %v3359
        %v3559 = vunpack.c.l.b16 %v3360
        %v3560 = vunpack.c.h.b16 %v3360
        %v3561 = vunpack.c.l.b16 %v3361
        %v3562 = vunpack.c.h.b16 %v3361
        %v3563 = vunpack.c.l.b16 %v3362
        %v3564 = vunpack.c.h.b16 %v3362
        %v3565 = vunpack.c.l.b16 %v3363
        %v3566 = vunpack.c.h.b16 %v3363
        %v3567 = vunpack.c.l.b16 %v3364
        %v3568 = vunpack.c.h.b16 %v3364
        %v3569 = vunpack.c.l.b16 %v3365
        %v3570 = vunpack.c.h.b16 %v3365
        %v3571 = vpack.c.b16 %v3447, %v3443
        %v3572 = vpack.c.b16 %v3448, %v3444
        %v3573 = vpack.c.b16 %v3449, %v3445
        %v3574 = vpack.c.b16 %v3450, %v3446
        %v3575 = vpack.c.b16 %v3455, %v3451
        %v3576 = vpack.c.b16 %v3456, %v3452
        %v3577 = vpack.c.b16 %v3457, %v3453
        %v3578 = vpack.c.b16 %v3458, %v3454
        %v3579 = vpack.c.b16 %v3463, %v3459
        %v3580 = vpack.c.b16 %v3464, %v3460
        %v3581 = vpack.c.b16 %v3465, %v3461
        %v3582 = vpack.c.b16 %v3466, %v3462
        %v3583 = vpack.c.b16 %v3471, %v3467
        %v3584 = vpack.c.b16 %v3472, %v3468
        %v3585 = vpack.c.b16 %v3473, %v3469
        %v3586 = vpack.c.b16 %v3474, %v3470
        %v3587 = vpack.c.b16 %v3479, %v3475
        %v3588 = vpack.c.b16 %v3480, %v3476
        %v3589 = vpack.c.b16 %v3481, %v3477
        %v3590 = vpack.c.b16 %v3482, %v3478
        %v3591 = vpack.c.b16 %v3487, %v3483
        %v3592 = vpack.c.b16 %v3488, %v3484
        %v3593 = vpack.c.b16 %v3489, %v3485
        %v3594 = vpack.c.b16 %v3490, %v3486
        %v3595 = vpack.c.b16 %v3495, %v3491
        %v3596 = vpack.c.b16 %v3496, %v3492
        %v3597 = vpack.c.b16 %v3497, %v3493
        %v3598 = vpack.c.b16 %v3498, %v3494
        %v3599 = vpack.c.b16 %v3503, %v3499
        %v3600 = vpack.c.b16 %v3504, %v3500
        %v3601 = vpack.c.b16 %v3505, %v3501
        %v3602 = vpack.c.b16 %v3506, %v3502
        %v3603 = vpack.c.b16 %v3511, %v3507
        %v3604 = vpack.c.b16 %v3512, %v3508
        %v3605 = vpack.c.b16 %v3513, %v3509
        %v3606 = vpack.c.b16 %v3514, %v3510
        %v3607 = vpack.c.b16 %v3519, %v3515
        %v3608 = vpack.c.b16 %v3520, %v3516
        %v3609 = vpack.c.b16 %v3521, %v3517
        %v3610 = vpack.c.b16 %v3522, %v3518
        %v3611 = vpack.c.b16 %v3527, %v3523
        %v3612 = vpack.c.b16 %v3528, %v3524
        %v3613 = vpack.c.b16 %v3529, %v3525
        %v3614 = vpack.c.b16 %v3530, %v3526
        %v3615 = vpack.c.b16 %v3535, %v3531
        %v3616 = vpack.c.b16 %v3536, %v3532
        %v3617 = vpack.c.b16 %v3537, %v3533
        %v3618 = vpack.c.b16 %v3538, %v3534
        %v3619 = vpack.c.b16 %v3543, %v3539
        %v3620 = vpack.c.b16 %v3544, %v3540
        %v3621 = vpack.c.b16 %v3545, %v3541
        %v3622 = vpack.c.b16 %v3546, %v3542
        %v3623 = vpack.c.b16 %v3551, %v3547
        %v3624 = vpack.c.b16 %v3552, %v3548
        %v3625 = vpack.c.b16 %v3553, %v3549
        %v3626 = vpack.c.b16 %v3554, %v3550
        %v3627 = vpack.c.b16 %v3559, %v3555
        %v3628 = vpack.c.b16 %v3560, %v3556
        %v3629 = vpack.c.b16 %v3561, %v3557
        %v3630 = vpack.c.b16 %v3562, %v3558
        %v3631 = vpack.c.b16 %v3567, %v3563
        %v3632 = vpack.c.b16 %v3568, %v3564
        %v3633 = vpack.c.b16 %v3569, %v3565
        %v3634 = vpack.c.b16 %v3570, %v3566
        %3699 = vmatprep.subr.bf16.mxu0 %v3572
        %3700 = vmatpush1.bf16.msra.mxu0 %v3571
        %3701 = vmatprep.subr.bf16.mxu0 %v3576
        %3702 = vmatpush1.bf16.msra.mxu0 %v3575
        %3703 = vmatprep.subr.bf16.mxu0 %v3580
        %3704 = vmatpush1.bf16.msra.mxu0 %v3579
        %3705 = vmatprep.subr.bf16.mxu0 %v3584
        %3706 = vmatpush1.bf16.msra.mxu0 %v3583
        %3707 = vmatprep.subr.bf16.mxu0 %v3588
        %3708 = vmatpush1.bf16.msra.mxu0 %v3587
        %3709 = vmatprep.subr.bf16.mxu0 %v3592
        %3710 = vmatpush1.bf16.msra.mxu0 %v3591
        %3711 = vmatprep.subr.bf16.mxu0 %v3596
        %3712 = vmatpush1.bf16.msra.mxu0 %v3595
        %3713 = vmatprep.subr.bf16.mxu0 %v3600
        %3714 = vmatpush1.bf16.msra.mxu0 %v3599
        %3715 = vmatprep.subr.bf16.mxu0 %v3604
        %3716 = vmatpush1.bf16.msra.mxu0 %v3603
        %3717 = vmatprep.subr.bf16.mxu0 %v3608
        %3718 = vmatpush1.bf16.msra.mxu0 %v3607
        %3719 = vmatprep.subr.bf16.mxu0 %v3612
        %3720 = vmatpush1.bf16.msra.mxu0 %v3611
        %3721 = vmatprep.subr.bf16.mxu0 %v3616
        %3722 = vmatpush1.bf16.msra.mxu0 %v3615
        %3723 = vmatprep.subr.bf16.mxu0 %v3620
        %3724 = vmatpush1.bf16.msra.mxu0 %v3619
        %3725 = vmatprep.subr.bf16.mxu0 %v3624
        %3726 = vmatpush1.bf16.msra.mxu0 %v3623
        %3727 = vmatprep.subr.bf16.mxu0 %v3628
        %3728 = vmatpush1.bf16.msra.mxu0 %v3627
        %3729 = vmatprep.subr.bf16.mxu0 %v3632
        %3730 = vmatpush1.bf16.msra.mxu0 %v3631
        %3731 = vmatprep.mubr.bf16.mxu0 %v3376
        %3732 = vmatmul.mubr.bf16.gmra.mrb[0].mxu0 %v3373
        %v3733 = vpop.f32.mrb[0].mxu0
        %v3734 = vadd.f32 0.0, %v3733
        %v3735 = vpop.f32.mrb[0].mxu0
        %v3736 = vadd.f32 0.0, %v3735
        %v3737 = vpop.f32.mrb[0].mxu0
        %v3738 = vadd.f32 0.0, %v3737
        %v3739 = vpop.f32.mrb[0].mxu0
        %v3740 = vadd.f32 0.0, %v3739
        %3741 = vdwg.mxu0
        %3742 = vmatprep.subr.bf16.mxu0 %v3574
        %3743 = vmatpush1.bf16.msra.mxu0 %v3573
        %3744 = vmatprep.subr.bf16.mxu0 %v3578
        %3745 = vmatpush1.bf16.msra.mxu0 %v3577
        %3746 = vmatprep.subr.bf16.mxu0 %v3582
        %3747 = vmatpush1.bf16.msra.mxu0 %v3581
        %3748 = vmatprep.subr.bf16.mxu0 %v3586
        %3749 = vmatpush1.bf16.msra.mxu0 %v3585
        %3750 = vmatprep.subr.bf16.mxu0 %v3590
        %3751 = vmatpush1.bf16.msra.mxu0 %v3589
        %3752 = vmatprep.subr.bf16.mxu0 %v3594
        %3753 = vmatpush1.bf16.msra.mxu0 %v3593
        %3754 = vmatprep.subr.bf16.mxu0 %v3598
        %3755 = vmatpush1.bf16.msra.mxu0 %v3597
        %3756 = vmatprep.subr.bf16.mxu0 %v3602
        %3757 = vmatpush1.bf16.msra.mxu0 %v3601
        %3758 = vmatprep.subr.bf16.mxu0 %v3606
        %3759 = vmatpush1.bf16.msra.mxu0 %v3605
        %3760 = vmatprep.subr.bf16.mxu0 %v3610
        %3761 = vmatpush1.bf16.msra.mxu0 %v3609
        %3762 = vmatprep.subr.bf16.mxu0 %v3614
        %3763 = vmatpush1.bf16.msra.mxu0 %v3613
        %3764 = vmatprep.subr.bf16.mxu0 %v3618
        %3765 = vmatpush1.bf16.msra.mxu0 %v3617
        %3766 = vmatprep.subr.bf16.mxu0 %v3622
        %3767 = vmatpush1.bf16.msra.mxu0 %v3621
        %3768 = vmatprep.subr.bf16.mxu0 %v3626
        %3769 = vmatpush1.bf16.msra.mxu0 %v3625
        %3770 = vmatprep.subr.bf16.mxu0 %v3630
        %3771 = vmatpush1.bf16.msra.mxu0 %v3629
        %3772 = vmatprep.subr.bf16.mxu0 %v3634
        %3773 = vmatpush1.bf16.msra.mxu0 %v3633
        %3774 = vmatprep.mubr.bf16.mxu0 %v3376
        %3775 = vmatmul.mubr.bf16.gmra.mrb[0].mxu0 %v3373
        %v3776 = vpop.f32.mrb[0].mxu0
        %v3777 = vadd.f32 0.0, %v3776
        %v3778 = vpop.f32.mrb[0].mxu0
        %v3779 = vadd.f32 0.0, %v3778
        %v3780 = vpop.f32.mrb[0].mxu0
        %v3781 = vadd.f32 0.0, %v3780
        %v3782 = vpop.f32.mrb[0].mxu0
        %v3783 = vadd.f32 0.0, %v3782
        %3784 = vdwg.mxu0
        %v3785 = vadd.f32 %v3285, %v3734
        %v3786 = vadd.f32 %v3286, %v3736
        %v3787 = vadd.f32 %v3287, %v3777
        %v3788 = vadd.f32 %v3288, %v3779
        %v3789 = vadd.f32 %v3289, %v3738
        %v3790 = vadd.f32 %v3290, %v3740
        %v3791 = vadd.f32 %v3291, %v3781
        %v3792 = vadd.f32 %v3292, %v3783
        %v3793 = vmax.f32 %v3785, 0.0
        %v3794 = vmax.f32 %v3786, 0.0
        %v3795 = vmax.f32 %v3787, 0.0
        %v3796 = vmax.f32 %v3788, 0.0
        %v3797 = vmax.f32 %v3789, 0.0
        %v3798 = vmax.f32 %v3790, 0.0
        %v3799 = vmax.f32 %v3791, 0.0
        %v3800 = vmax.f32 %v3792, 0.0
        %v3801 = vpack.c.bf16 %v3797, %v3793
        %v3802 = vpack.c.bf16 %v3798, %v3794
        %v3803 = vpack.c.bf16 %v3799, %v3795
        %v3804 = vpack.c.bf16 %v3800, %v3796
        %v3805 = vld [vmem:[%s7] sm:$0xf]
        %vm3806 = vcmask 130048
        %v3808 = vsel %vm3806, %v3805, 0
        %3810 = vmatprep.subr.bf16.mxu0 %v3802
        %3811 = vmatpush1.bf16.msra.mxu0 %v3801
        %3812 = vmatprep.subr.bf16.mxu0 0
        %3813 = vmatpush1.bf16.msra.mxu0 0
        %3814 = vmatprep.subr.bf16.mxu0 0
        %3815 = vmatpush1.bf16.msra.mxu0 0
        %3816 = vmatprep.subr.bf16.mxu0 0
        %3817 = vmatpush1.bf16.msra.mxu0 0
        %3818 = vmatprep.subr.bf16.mxu0 0
        %3819 = vmatpush1.bf16.msra.mxu0 0
        %3820 = vmatprep.subr.bf16.mxu0 0
        %3821 = vmatpush1.bf16.msra.mxu0 0
        %3822 = vmatprep.subr.bf16.mxu0 0
        %3823 = vmatpush1.bf16.msra.mxu0 0
        %3824 = vmatprep.subr.bf16.mxu0 0
        %3825 = vmatpush1.bf16.msra.mxu0 0
        %3826 = vmatprep.subr.bf16.mxu0 0
        %3827 = vmatpush1.bf16.msra.mxu0 0
        %3828 = vmatprep.subr.bf16.mxu0 0
        %3829 = vmatpush1.bf16.msra.mxu0 0
        %3830 = vmatprep.subr.bf16.mxu0 0
        %3831 = vmatpush1.bf16.msra.mxu0 0
        %3832 = vmatprep.subr.bf16.mxu0 0
        %3833 = vmatpush1.bf16.msra.mxu0 0
        %3834 = vmatprep.subr.bf16.mxu0 0
        %3835 = vmatpush1.bf16.msra.mxu0 0
        %3836 = vmatprep.subr.bf16.mxu0 0
        %3837 = vmatpush1.bf16.msra.mxu0 0
        %3838 = vmatprep.subr.bf16.mxu0 0
        %3839 = vmatpush1.bf16.msra.mxu0 0
        %3840 = vmatprep.subr.bf16.mxu0 0
        %3841 = vmatpush1.bf16.msra.mxu0 0
        %3842 = vmatprep.mubr.bf16.mxu0 0
        %3843 = vmatmul.mubr.bf16.gmra.mrb[0].mxu0 %v3808
        %v3844 = vpop.f32.mrb[0].mxu0
        %v3845 = vadd.f32 0.0, %v3844
        %v3846 = vpop.f32.mrb[0].mxu0
        %v3847 = vadd.f32 0.0, %v3846
        %v3848 = vpop.f32.mrb[0].mxu0
        %v3849 = vpop.f32.mrb[0].mxu0
        %3850 = vdwg.mxu0
        %3851 = vmatprep.subr.bf16.mxu0 %v3804
        %3852 = vmatpush1.bf16.msra.mxu0 %v3803
        %3853 = vmatprep.subr.bf16.mxu0 0
        %3854 = vmatpush1.bf16.msra.mxu0 0
        %3855 = vmatprep.subr.bf16.mxu0 0
        %3856 = vmatpush1.bf16.msra.mxu0 0
        %3857 = vmatprep.subr.bf16.mxu0 0
        %3858 = vmatpush1.bf16.msra.mxu0 0
        %3859 = vmatprep.subr.bf16.mxu0 0
        %3860 = vmatpush1.bf16.msra.mxu0 0
        %3861 = vmatprep.subr.bf16.mxu0 0
        %3862 = vmatpush1.bf16.msra.mxu0 0
        %3863 = vmatprep.subr.bf16.mxu0 0
        %3864 = vmatpush1.bf16.msra.mxu0 0
        %3865 = vmatprep.subr.bf16.mxu0 0
        %3866 = vmatpush1.bf16.msra.mxu0 0
        %3867 = vmatprep.subr.bf16.mxu0 0
        %3868 = vmatpush1.bf16.msra.mxu0 0
        %3869 = vmatprep.subr.bf16.mxu0 0
        %3870 = vmatpush1.bf16.msra.mxu0 0
        %3871 = vmatprep.subr.bf16.mxu0 0
        %3872 = vmatpush1.bf16.msra.mxu0 0
        %3873 = vmatprep.subr.bf16.mxu0 0
        %3874 = vmatpush1.bf16.msra.mxu0 0
        %3875 = vmatprep.subr.bf16.mxu0 0
        %3876 = vmatpush1.bf16.msra.mxu0 0
        %3877 = vmatprep.subr.bf16.mxu0 0
        %3878 = vmatpush1.bf16.msra.mxu0 0
        %3879 = vmatprep.subr.bf16.mxu0 0
        %3880 = vmatpush1.bf16.msra.mxu0 0
        %3881 = vmatprep.subr.bf16.mxu0 0
        %3882 = vmatpush1.bf16.msra.mxu0 0
        %3883 = vmatprep.mubr.bf16.mxu0 0
        %3884 = vmatmul.mubr.bf16.gmra.mrb[0].mxu0 %v3808
        %v3885 = vpop.f32.mrb[0].mxu0
        %v3886 = vadd.f32 0.0, %v3885
        %v3887 = vpop.f32.mrb[0].mxu0
        %v3888 = vadd.f32 0.0, %v3887
        %v3889 = vpop.f32.mrb[0].mxu0
        %v3890 = vpop.f32.mrb[0].mxu0
        %3891 = vdwg.mxu0
        %s3892 = scalar_lea.vmem %s7, 4
        %v3893 = vld [vmem:[%s3892] sm:$0xf]
        %v3895 = vsel %vm3806, %v3893, 0
        %3897 = vmatprep.subr.bf16.mxu0 %v3802
        %3898 = vmatpush1.bf16.msra.mxu0 %v3801
        %3899 = vmatprep.subr.bf16.mxu0 0
        %3900 = vmatpush1.bf16.msra.mxu0 0
        %3901 = vmatprep.subr.bf16.mxu0 0
        %3902 = vmatpush1.bf16.msra.mxu0 0
        %3903 = vmatprep.subr.bf16.mxu0 0
        %3904 = vmatpush1.bf16.msra.mxu0 0
        %3905 = vmatprep.subr.bf16.mxu0 0
        %3906 = vmatpush1.bf16.msra.mxu0 0
        %3907 = vmatprep.subr.bf16.mxu0 0
        %3908 = vmatpush1.bf16.msra.mxu0 0
        %3909 = vmatprep.subr.bf16.mxu0 0
        %3910 = vmatpush1.bf16.msra.mxu0 0
        %3911 = vmatprep.subr.bf16.mxu0 0
        %3912 = vmatpush1.bf16.msra.mxu0 0
        %3913 = vmatprep.subr.bf16.mxu0 0
        %3914 = vmatpush1.bf16.msra.mxu0 0
        %3915 = vmatprep.subr.bf16.mxu0 0
        %3916 = vmatpush1.bf16.msra.mxu0 0
        %3917 = vmatprep.subr.bf16.mxu0 0
        %3918 = vmatpush1.bf16.msra.mxu0 0
        %3919 = vmatprep.subr.bf16.mxu0 0
        %3920 = vmatpush1.bf16.msra.mxu0 0
        %3921 = vmatprep.subr.bf16.mxu0 0
        %3922 = vmatpush1.bf16.msra.mxu0 0
        %3923 = vmatprep.subr.bf16.mxu0 0
        %3924 = vmatpush1.bf16.msra.mxu0 0
        %3925 = vmatprep.subr.bf16.mxu0 0
        %3926 = vmatpush1.bf16.msra.mxu0 0
        %3927 = vmatprep.subr.bf16.mxu0 0
        %3928 = vmatpush1.bf16.msra.mxu0 0
        %3929 = vmatprep.mubr.bf16.mxu0 0
        %3930 = vmatmul.mubr.bf16.gmra.mrb[0].mxu0 %v3895
        %v3931 = vpop.f32.mrb[0].mxu0
        %v3932 = vadd.f32 0.0, %v3931
        %v3933 = vpop.f32.mrb[0].mxu0
        %v3934 = vadd.f32 0.0, %v3933
        %v3935 = vpop.f32.mrb[0].mxu0
        %v3936 = vpop.f32.mrb[0].mxu0
        %3937 = vdwg.mxu0
        %3938 = vmatprep.subr.bf16.mxu0 %v3804
        %3939 = vmatpush1.bf16.msra.mxu0 %v3803
        %3940 = vmatprep.subr.bf16.mxu0 0
        %3941 = vmatpush1.bf16.msra.mxu0 0
        %3942 = vmatprep.subr.bf16.mxu0 0
        %3943 = vmatpush1.bf16.msra.mxu0 0
        %3944 = vmatprep.subr.bf16.mxu0 0
        %3945 = vmatpush1.bf16.msra.mxu0 0
        %3946 = vmatprep.subr.bf16.mxu0 0
        %3947 = vmatpush1.bf16.msra.mxu0 0
        %3948 = vmatprep.subr.bf16.mxu0 0
        %3949 = vmatpush1.bf16.msra.mxu0 0
        %3950 = vmatprep.subr.bf16.mxu0 0
        %3951 = vmatpush1.bf16.msra.mxu0 0
        %3952 = vmatprep.subr.bf16.mxu0 0
        %3953 = vmatpush1.bf16.msra.mxu0 0
        %3954 = vmatprep.subr.bf16.mxu0 0
        %3955 = vmatpush1.bf16.msra.mxu0 0
        %3956 = vmatprep.subr.bf16.mxu0 0
        %3957 = vmatpush1.bf16.msra.mxu0 0
        %3958 = vmatprep.subr.bf16.mxu0 0
        %3959 = vmatpush1.bf16.msra.mxu0 0
        %3960 = vmatprep.subr.bf16.mxu0 0
        %3961 = vmatpush1.bf16.msra.mxu0 0
        %3962 = vmatprep.subr.bf16.mxu0 0
        %3963 = vmatpush1.bf16.msra.mxu0 0
        %3964 = vmatprep.subr.bf16.mxu0 0
        %3965 = vmatpush1.bf16.msra.mxu0 0
        %3966 = vmatprep.subr.bf16.mxu0 0
        %3967 = vmatpush1.bf16.msra.mxu0 0
        %3968 = vmatprep.subr.bf16.mxu0 0
        %3969 = vmatpush1.bf16.msra.mxu0 0
        %3970 = vmatprep.mubr.bf16.mxu0 0
        %3971 = vmatmul.mubr.bf16.gmra.mrb[0].mxu0 %v3895
        %v3972 = vpop.f32.mrb[0].mxu0
        %v3973 = vadd.f32 0.0, %v3972
        %v3974 = vpop.f32.mrb[0].mxu0
        %v3975 = vadd.f32 0.0, %v3974
        %v3976 = vpop.f32.mrb[0].mxu0
        %v3977 = vpop.f32.mrb[0].mxu0
        %3978 = vdwg.mxu0
        %v3979 = vmax.f32 %v3845, %v3932
        %v3980 = vmax.f32 %v3847, %v3934
        %v3981 = vmax.f32 %v3886, %v3973
        %v3982 = vmax.f32 %v3888, %v3975
        %v3983 = vpack.c.bf16 %v3979, %v3979
        %v3984 = vpack.c.bf16 %v3980, %v3980
        %v3985 = vpack.c.bf16 %v3981, %v3981
        %v3986 = vpack.c.bf16 %v3982, %v3982
        %v3987 = vld [vmem:[#allocation8] sm:$0xff]
        %v3988 = vld [vmem:[#allocation8 + $0x8] sm:$0xff]
        %v3989 = vld [vmem:[#allocation8 + $0x10] sm:$0xff]
        %v3990 = vld [vmem:[#allocation8 + $0x18] sm:$0xff]
        %v3991 = vld [vmem:[#allocation8 + $0x20] sm:$0xff]
        %v3992 = vld [vmem:[#allocation8 + $0x28] sm:$0xff]
        %v3993 = vld [vmem:[#allocation8 + $0x30] sm:$0xff]
        %v3994 = vld [vmem:[#allocation8 + $0x38] sm:$0xff]
        %v3995 = vld [vmem:[#allocation8 + $0x40] sm:$0xff]
        %v3996 = vld [vmem:[#allocation8 + $0x48] sm:$0xff]
        %v3997 = vld [vmem:[#allocation8 + $0x50] sm:$0xff]
        %v3998 = vld [vmem:[#allocation8 + $0x58] sm:$0xff]
        %v3999 = vld [vmem:[#allocation8 + $0x60] sm:$0xff]
        %v4000 = vld [vmem:[#allocation8 + $0x68] sm:$0xff]
        %v4001 = vld [vmem:[#allocation8 + $0x70] sm:$0xff]
        %v4002 = vld [vmem:[#allocation8 + $0x78] sm:$0xff]
        %v4003 = vld [vmem:[#allocation8 + $0x80] sm:$0xff]
        %v4004 = vld [vmem:[#allocation8 + $0x88] sm:$0xff]
        %v4005 = vld [vmem:[#allocation8 + $0x90] sm:$0xff]
        %v4006 = vld [vmem:[#allocation8 + $0x98] sm:$0xff]
        %v4007 = vld [vmem:[#allocation8 + $0xa0] sm:$0xff]
        %v4008 = vld [vmem:[#allocation8 + $0xa8] sm:$0xff]
        %v4009 = vld [vmem:[#allocation8 + $0xb0] sm:$0xff]
        %v4010 = vld [vmem:[#allocation8 + $0xb8] sm:$0xff]
        %v4011 = vld [vmem:[#allocation8 + $0xc0] sm:$0xff]
        %v4012 = vld [vmem:[#allocation8 + $0xc8] sm:$0xff]
        %v4013 = vld [vmem:[#allocation8 + $0xd0] sm:$0xff]
        %v4014 = vld [vmem:[#allocation8 + $0xd8] sm:$0xff]
        %v4015 = vld [vmem:[#allocation8 + $0xe0] sm:$0xff]
        %v4016 = vld [vmem:[#allocation8 + $0xe8] sm:$0xff]
        %v4017 = vld [vmem:[#allocation8 + $0xf0] sm:$0xff]
        %v4018 = vld [vmem:[#allocation8 + $0xf8] sm:$0xff]
        %v4019 = vld [vmem:[#allocation8 + $0x100] sm:$0xff]
        %v4020 = vld [vmem:[#allocation8 + $0x108] sm:$0xff]
        %v4021 = vld [vmem:[#allocation8 + $0x110] sm:$0xff]
        %v4022 = vld [vmem:[#allocation8 + $0x118] sm:$0xff]
        %v4023 = vld [vmem:[#allocation8 + $0x120] sm:$0xff]
        %v4024 = vld [vmem:[#allocation8 + $0x128] sm:$0xff]
        %v4025 = vld [vmem:[#allocation8 + $0x130] sm:$0xff]
        %v4026 = vld [vmem:[#allocation8 + $0x138] sm:$0xff]
        %v4027 = vld [vmem:[#allocation8 + $0x140] sm:$0xff]
        %v4028 = vld [vmem:[#allocation8 + $0x148] sm:$0xff]
        %v4029 = vld [vmem:[#allocation8 + $0x150] sm:$0xff]
        %v4030 = vld [vmem:[#allocation8 + $0x158] sm:$0xff]
        %v4031 = vld [vmem:[#allocation8 + $0x160] sm:$0xff]
        %v4032 = vld [vmem:[#allocation8 + $0x168] sm:$0xff]
        %v4033 = vld [vmem:[#allocation8 + $0x170] sm:$0xff]
        %v4034 = vld [vmem:[#allocation8 + $0x178] sm:$0xff]
        %v4035 = vld [vmem:[#allocation8 + $0x180] sm:$0xff]
        %v4036 = vld [vmem:[#allocation8 + $0x188] sm:$0xff]
        %v4037 = vld [vmem:[#allocation8 + $0x190] sm:$0xff]
        %v4038 = vld [vmem:[#allocation8 + $0x198] sm:$0xff]
        %v4039 = vld [vmem:[#allocation8 + $0x1a0] sm:$0xff]
        %v4040 = vld [vmem:[#allocation8 + $0x1a8] sm:$0xff]
        %v4041 = vld [vmem:[#allocation8 + $0x1b0] sm:$0xff]
        %v4042 = vld [vmem:[#allocation8 + $0x1b8] sm:$0xff]
        %v4043 = vld [vmem:[#allocation8 + $0x1c0] sm:$0xff]
        %v4044 = vld [vmem:[#allocation8 + $0x1c8] sm:$0xff]
        %v4045 = vld [vmem:[#allocation8 + $0x1d0] sm:$0xff]
        %v4046 = vld [vmem:[#allocation8 + $0x1d8] sm:$0xff]
        %v4047 = vld [vmem:[#allocation8 + $0x1e0] sm:$0xff]
        %v4048 = vld [vmem:[#allocation8 + $0x1e8] sm:$0xff]
        %v4049 = vld [vmem:[#allocation8 + $0x1f0] sm:$0xff]
        %v4050 = vld [vmem:[#allocation8 + $0x1f8] sm:$0xff]
        %v4115 = vunpack.c.l.b16 %v3987
        %v4116 = vunpack.c.h.b16 %v3987
        %v4117 = vunpack.c.l.b16 %v3988
        %v4118 = vunpack.c.h.b16 %v3988
        %v4119 = vunpack.c.l.b16 %v3989
        %v4120 = vunpack.c.h.b16 %v3989
        %v4121 = vunpack.c.l.b16 %v3990
        %v4122 = vunpack.c.h.b16 %v3990
        %v4123 = vunpack.c.l.b16 %v3991
        %v4124 = vunpack.c.h.b16 %v3991
        %v4125 = vunpack.c.l.b16 %v3992
        %v4126 = vunpack.c.h.b16 %v3992
        %v4127 = vunpack.c.l.b16 %v3993
        %v4128 = vunpack.c.h.b16 %v3993
        %v4129 = vunpack.c.l.b16 %v3994
        %v4130 = vunpack.c.h.b16 %v3994
        %v4131 = vunpack.c.l.b16 %v3995
        %v4132 = vunpack.c.h.b16 %v3995
        %v4133 = vunpack.c.l.b16 %v3996
        %v4134 = vunpack.c.h.b16 %v3996
        %v4135 = vunpack.c.l.b16 %v3997
        %v4136 = vunpack.c.h.b16 %v3997
        %v4137 = vunpack.c.l.b16 %v3998
        %v4138 = vunpack.c.h.b16 %v3998
        %v4139 = vunpack.c.l.b16 %v3999
        %v4140 = vunpack.c.h.b16 %v3999
        %v4141 = vunpack.c.l.b16 %v4000
        %v4142 = vunpack.c.h.b16 %v4000
        %v4143 = vunpack.c.l.b16 %v4001
        %v4144 = vunpack.c.h.b16 %v4001
        %v4145 = vunpack.c.l.b16 %v4002
        %v4146 = vunpack.c.h.b16 %v4002
        %v4147 = vunpack.c.l.b16 %v4003
        %v4148 = vunpack.c.h.b16 %v4003
        %v4149 = vunpack.c.l.b16 %v4004
        %v4150 = vunpack.c.h.b16 %v4004
        %v4151 = vunpack.c.l.b16 %v4005
        %v4152 = vunpack.c.h.b16 %v4005
        %v4153 = vunpack.c.l.b16 %v4006
        %v4154 = vunpack.c.h.b16 %v4006
        %v4155 = vunpack.c.l.b16 %v4007
        %v4156 = vunpack.c.h.b16 %v4007
        %v4157 = vunpack.c.l.b16 %v4008
        %v4158 = vunpack.c.h.b16 %v4008
        %v4159 = vunpack.c.l.b16 %v4009
        %v4160 = vunpack.c.h.b16 %v4009
        %v4161 = vunpack.c.l.b16 %v4010
        %v4162 = vunpack.c.h.b16 %v4010
        %v4163 = vunpack.c.l.b16 %v4011
        %v4164 = vunpack.c.h.b16 %v4011
        %v4165 = vunpack.c.l.b16 %v4012
        %v4166 = vunpack.c.h.b16 %v4012
        %v4167 = vunpack.c.l.b16 %v4013
        %v4168 = vunpack.c.h.b16 %v4013
        %v4169 = vunpack.c.l.b16 %v4014
        %v4170 = vunpack.c.h.b16 %v4014
        %v4171 = vunpack.c.l.b16 %v4015
        %v4172 = vunpack.c.h.b16 %v4015
        %v4173 = vunpack.c.l.b16 %v4016
        %v4174 = vunpack.c.h.b16 %v4016
        %v4175 = vunpack.c.l.b16 %v4017
        %v4176 = vunpack.c.h.b16 %v4017
        %v4177 = vunpack.c.l.b16 %v4018
        %v4178 = vunpack.c.h.b16 %v4018
        %v4179 = vunpack.c.l.b16 %v4019
        %v4180 = vunpack.c.h.b16 %v4019
        %v4181 = vunpack.c.l.b16 %v4020
        %v4182 = vunpack.c.h.b16 %v4020
        %v4183 = vunpack.c.l.b16 %v4021
        %v4184 = vunpack.c.h.b16 %v4021
        %v4185 = vunpack.c.l.b16 %v4022
        %v4186 = vunpack.c.h.b16 %v4022
        %v4187 = vunpack.c.l.b16 %v4023
        %v4188 = vunpack.c.h.b16 %v4023
        %v4189 = vunpack.c.l.b16 %v4024
        %v4190 = vunpack.c.h.b16 %v4024
        %v4191 = vunpack.c.l.b16 %v4025
        %v4192 = vunpack.c.h.b16 %v4025
        %v4193 = vunpack.c.l.b16 %v4026
        %v4194 = vunpack.c.h.b16 %v4026
        %v4195 = vunpack.c.l.b16 %v4027
        %v4196 = vunpack.c.h.b16 %v4027
        %v4197 = vunpack.c.l.b16 %v4028
        %v4198 = vunpack.c.h.b16 %v4028
        %v4199 = vunpack.c.l.b16 %v4029
        %v4200 = vunpack.c.h.b16 %v4029
        %v4201 = vunpack.c.l.b16 %v4030
        %v4202 = vunpack.c.h.b16 %v4030
        %v4203 = vunpack.c.l.b16 %v4031
        %v4204 = vunpack.c.h.b16 %v4031
        %v4205 = vunpack.c.l.b16 %v4032
        %v4206 = vunpack.c.h.b16 %v4032
        %v4207 = vunpack.c.l.b16 %v4033
        %v4208 = vunpack.c.h.b16 %v4033
        %v4209 = vunpack.c.l.b16 %v4034
        %v4210 = vunpack.c.h.b16 %v4034
        %v4211 = vunpack.c.l.b16 %v4035
        %v4212 = vunpack.c.h.b16 %v4035
        %v4213 = vunpack.c.l.b16 %v4036
        %v4214 = vunpack.c.h.b16 %v4036
        %v4215 = vunpack.c.l.b16 %v4037
        %v4216 = vunpack.c.h.b16 %v4037
        %v4217 = vunpack.c.l.b16 %v4038
        %v4218 = vunpack.c.h.b16 %v4038
        %v4219 = vunpack.c.l.b16 %v4039
        %v4220 = vunpack.c.h.b16 %v4039
        %v4221 = vunpack.c.l.b16 %v4040
        %v4222 = vunpack.c.h.b16 %v4040
        %v4223 = vunpack.c.l.b16 %v4041
        %v4224 = vunpack.c.h.b16 %v4041
        %v4225 = vunpack.c.l.b16 %v4042
        %v4226 = vunpack.c.h.b16 %v4042
        %v4227 = vunpack.c.l.b16 %v4043
        %v4228 = vunpack.c.h.b16 %v4043
        %v4229 = vunpack.c.l.b16 %v4044
        %v4230 = vunpack.c.h.b16 %v4044
        %v4231 = vunpack.c.l.b16 %v4045
        %v4232 = vunpack.c.h.b16 %v4045
        %v4233 = vunpack.c.l.b16 %v4046
        %v4234 = vunpack.c.h.b16 %v4046
        %v4235 = vunpack.c.l.b16 %v4047
        %v4236 = vunpack.c.h.b16 %v4047
        %v4237 = vunpack.c.l.b16 %v4048
        %v4238 = vunpack.c.h.b16 %v4048
        %v4239 = vunpack.c.l.b16 %v4049
        %v4240 = vunpack.c.h.b16 %v4049
        %v4241 = vunpack.c.l.b16 %v4050
        %v4242 = vunpack.c.h.b16 %v4050
        %v4243 = vpack.c.b16 %v4117, %v4115
        %v4244 = vpack.c.b16 %v4118, %v4116
        %v4245 = vpack.c.b16 %v4121, %v4119
        %v4246 = vpack.c.b16 %v4122, %v4120
        %v4247 = vpack.c.b16 %v4125, %v4123
        %v4248 = vpack.c.b16 %v4126, %v4124
        %v4249 = vpack.c.b16 %v4129, %v4127
        %v4250 = vpack.c.b16 %v4130, %v4128
        %v4251 = vpack.c.b16 %v4133, %v4131
        %v4252 = vpack.c.b16 %v4134, %v4132
        %v4253 = vpack.c.b16 %v4137, %v4135
        %v4254 = vpack.c.b16 %v4138, %v4136
        %v4255 = vpack.c.b16 %v4141, %v4139
        %v4256 = vpack.c.b16 %v4142, %v4140
        %v4257 = vpack.c.b16 %v4145, %v4143
        %v4258 = vpack.c.b16 %v4146, %v4144
        %v4259 = vpack.c.b16 %v4149, %v4147
        %v4260 = vpack.c.b16 %v4150, %v4148
        %v4261 = vpack.c.b16 %v4153, %v4151
        %v4262 = vpack.c.b16 %v4154, %v4152
        %v4263 = vpack.c.b16 %v4157, %v4155
        %v4264 = vpack.c.b16 %v4158, %v4156
        %v4265 = vpack.c.b16 %v4161, %v4159
        %v4266 = vpack.c.b16 %v4162, %v4160
        %v4267 = vpack.c.b16 %v4165, %v4163
        %v4268 = vpack.c.b16 %v4166, %v4164
        %v4269 = vpack.c.b16 %v4169, %v4167
        %v4270 = vpack.c.b16 %v4170, %v4168
        %v4271 = vpack.c.b16 %v4173, %v4171
        %v4272 = vpack.c.b16 %v4174, %v4172
        %v4273 = vpack.c.b16 %v4177, %v4175
        %v4274 = vpack.c.b16 %v4178, %v4176
        %v4275 = vpack.c.b16 %v4181, %v4179
        %v4276 = vpack.c.b16 %v4182, %v4180
        %v4277 = vpack.c.b16 %v4185, %v4183
        %v4278 = vpack.c.b16 %v4186, %v4184
        %v4279 = vpack.c.b16 %v4189, %v4187
        %v4280 = vpack.c.b16 %v4190, %v4188
        %v4281 = vpack.c.b16 %v4193, %v4191
        %v4282 = vpack.c.b16 %v4194, %v4192
        %v4283 = vpack.c.b16 %v4197, %v4195
        %v4284 = vpack.c.b16 %v4198, %v4196
        %v4285 = vpack.c.b16 %v4201, %v4199
        %v4286 = vpack.c.b16 %v4202, %v4200
        %v4287 = vpack.c.b16 %v4205, %v4203
        %v4288 = vpack.c.b16 %v4206, %v4204
        %v4289 = vpack.c.b16 %v4209, %v4207
        %v4290 = vpack.c.b16 %v4210, %v4208
        %v4291 = vpack.c.b16 %v4213, %v4211
        %v4292 = vpack.c.b16 %v4214, %v4212
        %v4293 = vpack.c.b16 %v4217, %v4215
        %v4294 = vpack.c.b16 %v4218, %v4216
        %v4295 = vpack.c.b16 %v4221, %v4219
        %v4296 = vpack.c.b16 %v4222, %v4220
        %v4297 = vpack.c.b16 %v4225, %v4223
        %v4298 = vpack.c.b16 %v4226, %v4224
        %v4299 = vpack.c.b16 %v4229, %v4227
        %v4300 = vpack.c.b16 %v4230, %v4228
        %v4301 = vpack.c.b16 %v4233, %v4231
        %v4302 = vpack.c.b16 %v4234, %v4232
        %v4303 = vpack.c.b16 %v4237, %v4235
        %v4304 = vpack.c.b16 %v4238, %v4236
        %v4305 = vpack.c.b16 %v4241, %v4239
        %v4306 = vpack.c.b16 %v4242, %v4240
        %4371 = vmatprep.subr.bf16.mxu0 %v4244
        %4372 = vmatpush1.bf16.msra.mxu0 %v4243
        %4373 = vmatprep.subr.bf16.mxu0 %v4246
        %4374 = vmatpush1.bf16.msra.mxu0 %v4245
        %4375 = vmatprep.subr.bf16.mxu0 %v4248
        %4376 = vmatpush1.bf16.msra.mxu0 %v4247
        %4377 = vmatprep.subr.bf16.mxu0 %v4250
        %4378 = vmatpush1.bf16.msra.mxu0 %v4249
        %4379 = vmatprep.subr.bf16.mxu0 %v4252
        %4380 = vmatpush1.bf16.msra.mxu0 %v4251
        %4381 = vmatprep.subr.bf16.mxu0 %v4254
        %4382 = vmatpush1.bf16.msra.mxu0 %v4253
        %4383 = vmatprep.subr.bf16.mxu0 %v4256
        %4384 = vmatpush1.bf16.msra.mxu0 %v4255
        %4385 = vmatprep.subr.bf16.mxu0 %v4258
        %4386 = vmatpush1.bf16.msra.mxu0 %v4257
        %4387 = vmatprep.subr.bf16.mxu0 %v4260
        %4388 = vmatpush1.bf16.msra.mxu0 %v4259
        %4389 = vmatprep.subr.bf16.mxu0 %v4262
        %4390 = vmatpush1.bf16.msra.mxu0 %v4261
        %4391 = vmatprep.subr.bf16.mxu0 %v4264
        %4392 = vmatpush1.bf16.msra.mxu0 %v4263
        %4393 = vmatprep.subr.bf16.mxu0 %v4266
        %4394 = vmatpush1.bf16.msra.mxu0 %v4265
        %4395 = vmatprep.subr.bf16.mxu0 %v4268
        %4396 = vmatpush1.bf16.msra.mxu0 %v4267
        %4397 = vmatprep.subr.bf16.mxu0 %v4270
        %4398 = vmatpush1.bf16.msra.mxu0 %v4269
        %4399 = vmatprep.subr.bf16.mxu0 %v4272
        %4400 = vmatpush1.bf16.msra.mxu0 %v4271
        %4401 = vmatprep.subr.bf16.mxu0 %v4274
        %4402 = vmatpush1.bf16.msra.mxu0 %v4273
        %4403 = vmatprep.mubr.bf16.mxu0 %v3984
        %4404 = vmatmul.mubr.bf16.gmra.mrb[0].mxu0 %v3983
        %v4405 = vpop.f32.mrb[0].mxu0
        %v4406 = vadd.f32 0.0, %v4405
        %v4407 = vpop.f32.mrb[0].mxu0
        %v4408 = vadd.f32 0.0, %v4407
        %v4409 = vpop.f32.mrb[0].mxu0
        %v4410 = vpop.f32.mrb[0].mxu0
        %4411 = vdwg.mxu0
        %4412 = vmatprep.subr.bf16.mxu0 %v4276
        %4413 = vmatpush1.bf16.msra.mxu0 %v4275
        %4414 = vmatprep.subr.bf16.mxu0 %v4278
        %4415 = vmatpush1.bf16.msra.mxu0 %v4277
        %4416 = vmatprep.subr.bf16.mxu0 %v4280
        %4417 = vmatpush1.bf16.msra.mxu0 %v4279
        %4418 = vmatprep.subr.bf16.mxu0 %v4282
        %4419 = vmatpush1.bf16.msra.mxu0 %v4281
        %4420 = vmatprep.subr.bf16.mxu0 %v4284
        %4421 = vmatpush1.bf16.msra.mxu0 %v4283
        %4422 = vmatprep.subr.bf16.mxu0 %v4286
        %4423 = vmatpush1.bf16.msra.mxu0 %v4285
        %4424 = vmatprep.subr.bf16.mxu0 %v4288
        %4425 = vmatpush1.bf16.msra.mxu0 %v4287
        %4426 = vmatprep.subr.bf16.mxu0 %v4290
        %4427 = vmatpush1.bf16.msra.mxu0 %v4289
        %4428 = vmatprep.subr.bf16.mxu0 %v4292
        %4429 = vmatpush1.bf16.msra.mxu0 %v4291
        %4430 = vmatprep.subr.bf16.mxu0 %v4294
        %4431 = vmatpush1.bf16.msra.mxu0 %v4293
        %4432 = vmatprep.subr.bf16.mxu0 %v4296
        %4433 = vmatpush1.bf16.msra.mxu0 %v4295
        %4434 = vmatprep.subr.bf16.mxu0 %v4298
        %4435 = vmatpush1.bf16.msra.mxu0 %v4297
        %4436 = vmatprep.subr.bf16.mxu0 %v4300
        %4437 = vmatpush1.bf16.msra.mxu0 %v4299
        %4438 = vmatprep.subr.bf16.mxu0 %v4302
        %4439 = vmatpush1.bf16.msra.mxu0 %v4301
        %4440 = vmatprep.subr.bf16.mxu0 %v4304
        %4441 = vmatpush1.bf16.msra.mxu0 %v4303
        %4442 = vmatprep.subr.bf16.mxu0 %v4306
        %4443 = vmatpush1.bf16.msra.mxu0 %v4305
        %4444 = vmatprep.mubr.bf16.mxu0 %v3986
        %4445 = vmatmul.mubr.bf16.gmra.mrb[0].mxu0 %v3985
        %v4446 = vpop.f32.mrb[0].mxu0
        %v4447 = vadd.f32 %v4406, %v4446
        %v4448 = vpop.f32.mrb[0].mxu0
        %v4449 = vadd.f32 %v4408, %v4448
        %v4450 = vpop.f32.mrb[0].mxu0
        %v4451 = vpop.f32.mrb[0].mxu0
        %4452 = vdwg.mxu0
        %s4453 = scalar_lea.vmem [#allocation8], 512
        %v4454 = vld [vmem:[%s4453] sm:$0xff]
        %v4455 = vld [vmem:[%s4453 + $0x8] sm:$0xff]
        %v4456 = vld [vmem:[%s4453 + $0x10] sm:$0xff]
        %v4457 = vld [vmem:[%s4453 + $0x18] sm:$0xff]
        %v4458 = vld [vmem:[%s4453 + $0x20] sm:$0xff]
        %v4459 = vld [vmem:[%s4453 + $0x28] sm:$0xff]
        %v4460 = vld [vmem:[%s4453 + $0x30] sm:$0xff]
        %v4461 = vld [vmem:[%s4453 + $0x38] sm:$0xff]
        %v4462 = vld [vmem:[%s4453 + $0x40] sm:$0xff]
        %v4463 = vld [vmem:[%s4453 + $0x48] sm:$0xff]
        %v4464 = vld [vmem:[%s4453 + $0x50] sm:$0xff]
        %v4465 = vld [vmem:[%s4453 + $0x58] sm:$0xff]
        %v4466 = vld [vmem:[%s4453 + $0x60] sm:$0xff]
        %v4467 = vld [vmem:[%s4453 + $0x68] sm:$0xff]
        %v4468 = vld [vmem:[%s4453 + $0x70] sm:$0xff]
        %v4469 = vld [vmem:[%s4453 + $0x78] sm:$0xff]
        %v4470 = vld [vmem:[%s4453 + $0x80] sm:$0xff]
        %v4471 = vld [vmem:[%s4453 + $0x88] sm:$0xff]
        %v4472 = vld [vmem:[%s4453 + $0x90] sm:$0xff]
        %v4473 = vld [vmem:[%s4453 + $0x98] sm:$0xff]
        %v4474 = vld [vmem:[%s4453 + $0xa0] sm:$0xff]
        %v4475 = vld [vmem:[%s4453 + $0xa8] sm:$0xff]
        %v4476 = vld [vmem:[%s4453 + $0xb0] sm:$0xff]
        %v4477 = vld [vmem:[%s4453 + $0xb8] sm:$0xff]
        %v4478 = vld [vmem:[%s4453 + $0xc0] sm:$0xff]
        %v4479 = vld [vmem:[%s4453 + $0xc8] sm:$0xff]
        %v4480 = vld [vmem:[%s4453 + $0xd0] sm:$0xff]
        %v4481 = vld [vmem:[%s4453 + $0xd8] sm:$0xff]
        %v4482 = vld [vmem:[%s4453 + $0xe0] sm:$0xff]
        %v4483 = vld [vmem:[%s4453 + $0xe8] sm:$0xff]
        %v4484 = vld [vmem:[%s4453 + $0xf0] sm:$0xff]
        %v4485 = vld [vmem:[%s4453 + $0xf8] sm:$0xff]
        %v4486 = vld [vmem:[%s4453 + $0x100] sm:$0xff]
        %v4487 = vld [vmem:[%s4453 + $0x108] sm:$0xff]
        %v4488 = vld [vmem:[%s4453 + $0x110] sm:$0xff]
        %v4489 = vld [vmem:[%s4453 + $0x118] sm:$0xff]
        %v4490 = vld [vmem:[%s4453 + $0x120] sm:$0xff]
        %v4491 = vld [vmem:[%s4453 + $0x128] sm:$0xff]
        %v4492 = vld [vmem:[%s4453 + $0x130] sm:$0xff]
        %v4493 = vld [vmem:[%s4453 + $0x138] sm:$0xff]
        %v4494 = vld [vmem:[%s4453 + $0x140] sm:$0xff]
        %v4495 = vld [vmem:[%s4453 + $0x148] sm:$0xff]
        %v4496 = vld [vmem:[%s4453 + $0x150] sm:$0xff]
        %v4497 = vld [vmem:[%s4453 + $0x158] sm:$0xff]
        %v4498 = vld [vmem:[%s4453 + $0x160] sm:$0xff]
        %v4499 = vld [vmem:[%s4453 + $0x168] sm:$0xff]
        %v4500 = vld [vmem:[%s4453 + $0x170] sm:$0xff]
        %v4501 = vld [vmem:[%s4453 + $0x178] sm:$0xff]
        %v4502 = vld [vmem:[%s4453 + $0x180] sm:$0xff]
        %v4503 = vld [vmem:[%s4453 + $0x188] sm:$0xff]
        %v4504 = vld [vmem:[%s4453 + $0x190] sm:$0xff]
        %v4505 = vld [vmem:[%s4453 + $0x198] sm:$0xff]
        %v4506 = vld [vmem:[%s4453 + $0x1a0] sm:$0xff]
        %v4507 = vld [vmem:[%s4453 + $0x1a8] sm:$0xff]
        %v4508 = vld [vmem:[%s4453 + $0x1b0] sm:$0xff]
        %v4509 = vld [vmem:[%s4453 + $0x1b8] sm:$0xff]
        %v4510 = vld [vmem:[%s4453 + $0x1c0] sm:$0xff]
        %v4511 = vld [vmem:[%s4453 + $0x1c8] sm:$0xff]
        %v4512 = vld [vmem:[%s4453 + $0x1d0] sm:$0xff]
        %v4513 = vld [vmem:[%s4453 + $0x1d8] sm:$0xff]
        %v4514 = vld [vmem:[%s4453 + $0x1e0] sm:$0xff]
        %v4515 = vld [vmem:[%s4453 + $0x1e8] sm:$0xff]
        %v4516 = vld [vmem:[%s4453 + $0x1f0] sm:$0xff]
        %v4517 = vld [vmem:[%s4453 + $0x1f8] sm:$0xff]
        %v4582 = vunpack.c.l.b16 %v4454
        %v4583 = vunpack.c.h.b16 %v4454
        %v4584 = vunpack.c.l.b16 %v4455
        %v4585 = vunpack.c.h.b16 %v4455
        %v4586 = vunpack.c.l.b16 %v4456
        %v4587 = vunpack.c.h.b16 %v4456
        %v4588 = vunpack.c.l.b16 %v4457
        %v4589 = vunpack.c.h.b16 %v4457
        %v4590 = vunpack.c.l.b16 %v4458
        %v4591 = vunpack.c.h.b16 %v4458
        %v4592 = vunpack.c.l.b16 %v4459
        %v4593 = vunpack.c.h.b16 %v4459
        %v4594 = vunpack.c.l.b16 %v4460
        %v4595 = vunpack.c.h.b16 %v4460
        %v4596 = vunpack.c.l.b16 %v4461
        %v4597 = vunpack.c.h.b16 %v4461
        %v4598 = vunpack.c.l.b16 %v4462
        %v4599 = vunpack.c.h.b16 %v4462
        %v4600 = vunpack.c.l.b16 %v4463
        %v4601 = vunpack.c.h.b16 %v4463
        %v4602 = vunpack.c.l.b16 %v4464
        %v4603 = vunpack.c.h.b16 %v4464
        %v4604 = vunpack.c.l.b16 %v4465
        %v4605 = vunpack.c.h.b16 %v4465
        %v4606 = vunpack.c.l.b16 %v4466
        %v4607 = vunpack.c.h.b16 %v4466
        %v4608 = vunpack.c.l.b16 %v4467
        %v4609 = vunpack.c.h.b16 %v4467
        %v4610 = vunpack.c.l.b16 %v4468
        %v4611 = vunpack.c.h.b16 %v4468
        %v4612 = vunpack.c.l.b16 %v4469
        %v4613 = vunpack.c.h.b16 %v4469
        %v4614 = vunpack.c.l.b16 %v4470
        %v4615 = vunpack.c.h.b16 %v4470
        %v4616 = vunpack.c.l.b16 %v4471
        %v4617 = vunpack.c.h.b16 %v4471
        %v4618 = vunpack.c.l.b16 %v4472
        %v4619 = vunpack.c.h.b16 %v4472
        %v4620 = vunpack.c.l.b16 %v4473
        %v4621 = vunpack.c.h.b16 %v4473
        %v4622 = vunpack.c.l.b16 %v4474
        %v4623 = vunpack.c.h.b16 %v4474
        %v4624 = vunpack.c.l.b16 %v4475
        %v4625 = vunpack.c.h.b16 %v4475
        %v4626 = vunpack.c.l.b16 %v4476
        %v4627 = vunpack.c.h.b16 %v4476
        %v4628 = vunpack.c.l.b16 %v4477
        %v4629 = vunpack.c.h.b16 %v4477
        %v4630 = vunpack.c.l.b16 %v4478
        %v4631 = vunpack.c.h.b16 %v4478
        %v4632 = vunpack.c.l.b16 %v4479
        %v4633 = vunpack.c.h.b16 %v4479
        %v4634 = vunpack.c.l.b16 %v4480
        %v4635 = vunpack.c.h.b16 %v4480
        %v4636 = vunpack.c.l.b16 %v4481
        %v4637 = vunpack.c.h.b16 %v4481
        %v4638 = vunpack.c.l.b16 %v4482
        %v4639 = vunpack.c.h.b16 %v4482
        %v4640 = vunpack.c.l.b16 %v4483
        %v4641 = vunpack.c.h.b16 %v4483
        %v4642 = vunpack.c.l.b16 %v4484
        %v4643 = vunpack.c.h.b16 %v4484
        %v4644 = vunpack.c.l.b16 %v4485
        %v4645 = vunpack.c.h.b16 %v4485
        %v4646 = vunpack.c.l.b16 %v4486
        %v4647 = vunpack.c.h.b16 %v4486
        %v4648 = vunpack.c.l.b16 %v4487
        %v4649 = vunpack.c.h.b16 %v4487
        %v4650 = vunpack.c.l.b16 %v4488
        %v4651 = vunpack.c.h.b16 %v4488
        %v4652 = vunpack.c.l.b16 %v4489
        %v4653 = vunpack.c.h.b16 %v4489
        %v4654 = vunpack.c.l.b16 %v4490
        %v4655 = vunpack.c.h.b16 %v4490
        %v4656 = vunpack.c.l.b16 %v4491
        %v4657 = vunpack.c.h.b16 %v4491
        %v4658 = vunpack.c.l.b16 %v4492
        %v4659 = vunpack.c.h.b16 %v4492
        %v4660 = vunpack.c.l.b16 %v4493
        %v4661 = vunpack.c.h.b16 %v4493
        %v4662 = vunpack.c.l.b16 %v4494
        %v4663 = vunpack.c.h.b16 %v4494
        %v4664 = vunpack.c.l.b16 %v4495
        %v4665 = vunpack.c.h.b16 %v4495
        %v4666 = vunpack.c.l.b16 %v4496
        %v4667 = vunpack.c.h.b16 %v4496
        %v4668 = vunpack.c.l.b16 %v4497
        %v4669 = vunpack.c.h.b16 %v4497
        %v4670 = vunpack.c.l.b16 %v4498
        %v4671 = vunpack.c.h.b16 %v4498
        %v4672 = vunpack.c.l.b16 %v4499
        %v4673 = vunpack.c.h.b16 %v4499
        %v4674 = vunpack.c.l.b16 %v4500
        %v4675 = vunpack.c.h.b16 %v4500
        %v4676 = vunpack.c.l.b16 %v4501
        %v4677 = vunpack.c.h.b16 %v4501
        %v4678 = vunpack.c.l.b16 %v4502
        %v4679 = vunpack.c.h.b16 %v4502
        %v4680 = vunpack.c.l.b16 %v4503
        %v4681 = vunpack.c.h.b16 %v4503
        %v4682 = vunpack.c.l.b16 %v4504
        %v4683 = vunpack.c.h.b16 %v4504
        %v4684 = vunpack.c.l.b16 %v4505
        %v4685 = vunpack.c.h.b16 %v4505
        %v4686 = vunpack.c.l.b16 %v4506
        %v4687 = vunpack.c.h.b16 %v4506
        %v4688 = vunpack.c.l.b16 %v4507
        %v4689 = vunpack.c.h.b16 %v4507
        %v4690 = vunpack.c.l.b16 %v4508
        %v4691 = vunpack.c.h.b16 %v4508
        %v4692 = vunpack.c.l.b16 %v4509
        %v4693 = vunpack.c.h.b16 %v4509
        %v4694 = vunpack.c.l.b16 %v4510
        %v4695 = vunpack.c.h.b16 %v4510
        %v4696 = vunpack.c.l.b16 %v4511
        %v4697 = vunpack.c.h.b16 %v4511
        %v4698 = vunpack.c.l.b16 %v4512
        %v4699 = vunpack.c.h.b16 %v4512
        %v4700 = vunpack.c.l.b16 %v4513
        %v4701 = vunpack.c.h.b16 %v4513
        %v4702 = vunpack.c.l.b16 %v4514
        %v4703 = vunpack.c.h.b16 %v4514
        %v4704 = vunpack.c.l.b16 %v4515
        %v4705 = vunpack.c.h.b16 %v4515
        %v4706 = vunpack.c.l.b16 %v4516
        %v4707 = vunpack.c.h.b16 %v4516
        %v4708 = vunpack.c.l.b16 %v4517
        %v4709 = vunpack.c.h.b16 %v4517
        %v4710 = vpack.c.b16 %v4584, %v4582
        %v4711 = vpack.c.b16 %v4585, %v4583
        %v4712 = vpack.c.b16 %v4588, %v4586
        %v4713 = vpack.c.b16 %v4589, %v4587
        %v4714 = vpack.c.b16 %v4592, %v4590
        %v4715 = vpack.c.b16 %v4593, %v4591
        %v4716 = vpack.c.b16 %v4596, %v4594
        %v4717 = vpack.c.b16 %v4597, %v4595
        %v4718 = vpack.c.b16 %v4600, %v4598
        %v4719 = vpack.c.b16 %v4601, %v4599
        %v4720 = vpack.c.b16 %v4604, %v4602
        %v4721 = vpack.c.b16 %v4605, %v4603
        %v4722 = vpack.c.b16 %v4608, %v4606
        %v4723 = vpack.c.b16 %v4609, %v4607
        %v4724 = vpack.c.b16 %v4612, %v4610
        %v4725 = vpack.c.b16 %v4613, %v4611
        %v4726 = vpack.c.b16 %v4616, %v4614
        %v4727 = vpack.c.b16 %v4617, %v4615
        %v4728 = vpack.c.b16 %v4620, %v4618
        %v4729 = vpack.c.b16 %v4621, %v4619
        %v4730 = vpack.c.b16 %v4624, %v4622
        %v4731 = vpack.c.b16 %v4625, %v4623
        %v4732 = vpack.c.b16 %v4628, %v4626
        %v4733 = vpack.c.b16 %v4629, %v4627
        %v4734 = vpack.c.b16 %v4632, %v4630
        %v4735 = vpack.c.b16 %v4633, %v4631
        %v4736 = vpack.c.b16 %v4636, %v4634
        %v4737 = vpack.c.b16 %v4637, %v4635
        %v4738 = vpack.c.b16 %v4640, %v4638
        %v4739 = vpack.c.b16 %v4641, %v4639
        %v4740 = vpack.c.b16 %v4644, %v4642
        %v4741 = vpack.c.b16 %v4645, %v4643
        %v4742 = vpack.c.b16 %v4648, %v4646
        %v4743 = vpack.c.b16 %v4649, %v4647
        %v4744 = vpack.c.b16 %v4652, %v4650
        %v4745 = vpack.c.b16 %v4653, %v4651
        %v4746 = vpack.c.b16 %v4656, %v4654
        %v4747 = vpack.c.b16 %v4657, %v4655
        %v4748 = vpack.c.b16 %v4660, %v4658
        %v4749 = vpack.c.b16 %v4661, %v4659
        %v4750 = vpack.c.b16 %v4664, %v4662
        %v4751 = vpack.c.b16 %v4665, %v4663
        %v4752 = vpack.c.b16 %v4668, %v4666
        %v4753 = vpack.c.b16 %v4669, %v4667
        %v4754 = vpack.c.b16 %v4672, %v4670
        %v4755 = vpack.c.b16 %v4673, %v4671
        %v4756 = vpack.c.b16 %v4676, %v4674
        %v4757 = vpack.c.b16 %v4677, %v4675
        %v4758 = vpack.c.b16 %v4680, %v4678
        %v4759 = vpack.c.b16 %v4681, %v4679
        %v4760 = vpack.c.b16 %v4684, %v4682
        %v4761 = vpack.c.b16 %v4685, %v4683
        %v4762 = vpack.c.b16 %v4688, %v4686
        %v4763 = vpack.c.b16 %v4689, %v4687
        %v4764 = vpack.c.b16 %v4692, %v4690
        %v4765 = vpack.c.b16 %v4693, %v4691
        %v4766 = vpack.c.b16 %v4696, %v4694
        %v4767 = vpack.c.b16 %v4697, %v4695
        %v4768 = vpack.c.b16 %v4700, %v4698
        %v4769 = vpack.c.b16 %v4701, %v4699
        %v4770 = vpack.c.b16 %v4704, %v4702
        %v4771 = vpack.c.b16 %v4705, %v4703
        %v4772 = vpack.c.b16 %v4708, %v4706
        %v4773 = vpack.c.b16 %v4709, %v4707
        %4838 = vmatprep.subr.bf16.mxu0 %v4711
        %4839 = vmatpush1.bf16.msra.mxu0 %v4710
        %4840 = vmatprep.subr.bf16.mxu0 %v4713
        %4841 = vmatpush1.bf16.msra.mxu0 %v4712
        %4842 = vmatprep.subr.bf16.mxu0 %v4715
        %4843 = vmatpush1.bf16.msra.mxu0 %v4714
        %4844 = vmatprep.subr.bf16.mxu0 %v4717
        %4845 = vmatpush1.bf16.msra.mxu0 %v4716
        %4846 = vmatprep.subr.bf16.mxu0 %v4719
        %4847 = vmatpush1.bf16.msra.mxu0 %v4718
        %4848 = vmatprep.subr.bf16.mxu0 %v4721
        %4849 = vmatpush1.bf16.msra.mxu0 %v4720
        %4850 = vmatprep.subr.bf16.mxu0 %v4723
        %4851 = vmatpush1.bf16.msra.mxu0 %v4722
        %4852 = vmatprep.subr.bf16.mxu0 %v4725
        %4853 = vmatpush1.bf16.msra.mxu0 %v4724
        %4854 = vmatprep.subr.bf16.mxu0 %v4727
        %4855 = vmatpush1.bf16.msra.mxu0 %v4726
        %4856 = vmatprep.subr.bf16.mxu0 %v4729
        %4857 = vmatpush1.bf16.msra.mxu0 %v4728
        %4858 = vmatprep.subr.bf16.mxu0 %v4731
        %4859 = vmatpush1.bf16.msra.mxu0 %v4730
        %4860 = vmatprep.subr.bf16.mxu0 %v4733
        %4861 = vmatpush1.bf16.msra.mxu0 %v4732
        %4862 = vmatprep.subr.bf16.mxu0 %v4735
        %4863 = vmatpush1.bf16.msra.mxu0 %v4734
        %4864 = vmatprep.subr.bf16.mxu0 %v4737
        %4865 = vmatpush1.bf16.msra.mxu0 %v4736
        %4866 = vmatprep.subr.bf16.mxu0 %v4739
        %4867 = vmatpush1.bf16.msra.mxu0 %v4738
        %4868 = vmatprep.subr.bf16.mxu0 %v4741
        %4869 = vmatpush1.bf16.msra.mxu0 %v4740
        %4870 = vmatprep.mubr.bf16.mxu0 %v3984
        %4871 = vmatmul.mubr.bf16.gmra.mrb[0].mxu0 %v3983
        %v4872 = vpop.f32.mrb[0].mxu0
        %v4873 = vadd.f32 0.0, %v4872
        %v4874 = vpop.f32.mrb[0].mxu0
        %v4875 = vadd.f32 0.0, %v4874
        %v4876 = vpop.f32.mrb[0].mxu0
        %v4877 = vpop.f32.mrb[0].mxu0
        %4878 = vdwg.mxu0
        %4879 = vmatprep.subr.bf16.mxu0 %v4743
        %4880 = vmatpush1.bf16.msra.mxu0 %v4742
        %4881 = vmatprep.subr.bf16.mxu0 %v4745
        %4882 = vmatpush1.bf16.msra.mxu0 %v4744
        %4883 = vmatprep.subr.bf16.mxu0 %v4747
        %4884 = vmatpush1.bf16.msra.mxu0 %v4746
        %4885 = vmatprep.subr.bf16.mxu0 %v4749
        %4886 = vmatpush1.bf16.msra.mxu0 %v4748
        %4887 = vmatprep.subr.bf16.mxu0 %v4751
        %4888 = vmatpush1.bf16.msra.mxu0 %v4750
        %4889 = vmatprep.subr.bf16.mxu0 %v4753
        %4890 = vmatpush1.bf16.msra.mxu0 %v4752
        %4891 = vmatprep.subr.bf16.mxu0 %v4755
        %4892 = vmatpush1.bf16.msra.mxu0 %v4754
        %4893 = vmatprep.subr.bf16.mxu0 %v4757
        %4894 = vmatpush1.bf16.msra.mxu0 %v4756
        %4895 = vmatprep.subr.bf16.mxu0 %v4759
        %4896 = vmatpush1.bf16.msra.mxu0 %v4758
        %4897 = vmatprep.subr.bf16.mxu0 %v4761
        %4898 = vmatpush1.bf16.msra.mxu0 %v4760
        %4899 = vmatprep.subr.bf16.mxu0 %v4763
        %4900 = vmatpush1.bf16.msra.mxu0 %v4762
        %4901 = vmatprep.subr.bf16.mxu0 %v4765
        %4902 = vmatpush1.bf16.msra.mxu0 %v4764
        %4903 = vmatprep.subr.bf16.mxu0 %v4767
        %4904 = vmatpush1.bf16.msra.mxu0 %v4766
        %4905 = vmatprep.subr.bf16.mxu0 %v4769
        %4906 = vmatpush1.bf16.msra.mxu0 %v4768
        %4907 = vmatprep.subr.bf16.mxu0 %v4771
        %4908 = vmatpush1.bf16.msra.mxu0 %v4770
        %4909 = vmatprep.subr.bf16.mxu0 %v4773
        %4910 = vmatpush1.bf16.msra.mxu0 %v4772
        %4911 = vmatprep.mubr.bf16.mxu0 %v3986
        %4912 = vmatmul.mubr.bf16.gmra.mrb[0].mxu0 %v3985
        %v4913 = vpop.f32.mrb[0].mxu0
        %v4914 = vadd.f32 %v4873, %v4913
        %v4915 = vpop.f32.mrb[0].mxu0
        %v4916 = vadd.f32 %v4875, %v4915
        %v4917 = vpop.f32.mrb[0].mxu0
        %v4918 = vpop.f32.mrb[0].mxu0
        %4919 = vdwg.mxu0
        %v4920 = vmax.f32 %v4447, %v4914
        %v4921 = vmax.f32 %v4449, %v4916
        %4922 = vst [vmem:[#allocation4] sm:$0xff] 0.0
        %4923 = vst [vmem:[#allocation4 + $0x8] sm:$0xff] 0.0
        %4924 = vst [vmem:[#allocation4 + $0x10] sm:$0x3] 0.0
        %4925 = vst [vmem:[#allocation4 + $0x18] sm:$0x3] 0.0
        %v4928 = vrot.slane %v4920, 7
        %v4929 = vrot.slane %v4921, 7
        %4932 = vst [vmem:[#allocation4] sm:$0xfe] %v4928
        %4933 = vst [vmem:[#allocation4 + $0x8] sm:$0xfe] %v4929
        %4934 = vst [vmem:[#allocation4 + $0x10] sm:$0x1] %v4928
        %4935 = vst [vmem:[#allocation4 + $0x18] sm:$0x1] %v4929
        %v4936 = vld [vmem:[%s10] sm:$0xf]
        %v4937 = vld [vmem:[#allocation4] sm:$0xff]
        %v4938 = vld [vmem:[#allocation4 + $0x8] sm:$0xff]
        %v4939 = vpack.c.bf16 %v4937, %v4937
        %v4940 = vpack.c.bf16 %v4938, %v4938
        %v4941 = vld [vmem:[#allocation10] sm:$0xff]
        %v4942 = vld [vmem:[#allocation10 + $0x8] sm:$0xff]
        %v4943 = vld [vmem:[#allocation10 + $0x10] sm:$0xff]
        %v4944 = vld [vmem:[#allocation10 + $0x18] sm:$0xff]
        %v4945 = vld [vmem:[#allocation10 + $0x20] sm:$0xff]
        %v4946 = vld [vmem:[#allocation10 + $0x28] sm:$0xff]
        %v4947 = vld [vmem:[#allocation10 + $0x30] sm:$0xff]
        %v4948 = vld [vmem:[#allocation10 + $0x38] sm:$0xff]
        %v4949 = vld [vmem:[#allocation10 + $0x40] sm:$0xff]
        %v4950 = vld [vmem:[#allocation10 + $0x48] sm:$0xff]
        %v4951 = vld [vmem:[#allocation10 + $0x50] sm:$0xff]
        %v4952 = vld [vmem:[#allocation10 + $0x58] sm:$0xff]
        %v4953 = vld [vmem:[#allocation10 + $0x60] sm:$0xff]
        %v4954 = vld [vmem:[#allocation10 + $0x68] sm:$0xff]
        %v4955 = vld [vmem:[#allocation10 + $0x70] sm:$0xff]
        %v4956 = vld [vmem:[#allocation10 + $0x78] sm:$0xff]
        %v4957 = vld [vmem:[#allocation10 + $0x80] sm:$0xff]
        %v4958 = vld [vmem:[#allocation10 + $0x88] sm:$0xff]
        %v4959 = vld [vmem:[#allocation10 + $0x90] sm:$0xff]
        %v4960 = vld [vmem:[#allocation10 + $0x98] sm:$0xff]
        %v4961 = vld [vmem:[#allocation10 + $0xa0] sm:$0xff]
        %v4962 = vld [vmem:[#allocation10 + $0xa8] sm:$0xff]
        %v4963 = vld [vmem:[#allocation10 + $0xb0] sm:$0xff]
        %v4964 = vld [vmem:[#allocation10 + $0xb8] sm:$0xff]
        %v4965 = vld [vmem:[#allocation10 + $0xc0] sm:$0xff]
        %v4966 = vld [vmem:[#allocation10 + $0xc8] sm:$0xff]
        %v4967 = vld [vmem:[#allocation10 + $0xd0] sm:$0xff]
        %v4968 = vld [vmem:[#allocation10 + $0xd8] sm:$0xff]
        %v4969 = vld [vmem:[#allocation10 + $0xe0] sm:$0xff]
        %v4970 = vld [vmem:[#allocation10 + $0xe8] sm:$0xff]
        %v4971 = vld [vmem:[#allocation10 + $0xf0] sm:$0xff]
        %v4972 = vld [vmem:[#allocation10 + $0xf8] sm:$0xff]
        %v4973 = vld [vmem:[#allocation10 + $0x100] sm:$0xff]
        %v4974 = vld [vmem:[#allocation10 + $0x108] sm:$0xff]
        %v4975 = vld [vmem:[#allocation10 + $0x110] sm:$0xff]
        %v4976 = vld [vmem:[#allocation10 + $0x118] sm:$0xff]
        %v4977 = vld [vmem:[#allocation10 + $0x120] sm:$0xff]
        %v4978 = vld [vmem:[#allocation10 + $0x128] sm:$0xff]
        %v4979 = vld [vmem:[#allocation10 + $0x130] sm:$0xff]
        %v4980 = vld [vmem:[#allocation10 + $0x138] sm:$0xff]
        %v4981 = vld [vmem:[#allocation10 + $0x140] sm:$0xff]
        %v4982 = vld [vmem:[#allocation10 + $0x148] sm:$0xff]
        %v4983 = vld [vmem:[#allocation10 + $0x150] sm:$0xff]
        %v4984 = vld [vmem:[#allocation10 + $0x158] sm:$0xff]
        %v4985 = vld [vmem:[#allocation10 + $0x160] sm:$0xff]
        %v4986 = vld [vmem:[#allocation10 + $0x168] sm:$0xff]
        %v4987 = vld [vmem:[#allocation10 + $0x170] sm:$0xff]
        %v4988 = vld [vmem:[#allocation10 + $0x178] sm:$0xff]
        %v4989 = vld [vmem:[#allocation10 + $0x180] sm:$0xff]
        %v4990 = vld [vmem:[#allocation10 + $0x188] sm:$0xff]
        %v4991 = vld [vmem:[#allocation10 + $0x190] sm:$0xff]
        %v4992 = vld [vmem:[#allocation10 + $0x198] sm:$0xff]
        %v4993 = vld [vmem:[#allocation10 + $0x1a0] sm:$0xff]
        %v4994 = vld [vmem:[#allocation10 + $0x1a8] sm:$0xff]
        %v4995 = vld [vmem:[#allocation10 + $0x1b0] sm:$0xff]
        %v4996 = vld [vmem:[#allocation10 + $0x1b8] sm:$0xff]
        %v4997 = vld [vmem:[#allocation10 + $0x1c0] sm:$0xff]
        %v4998 = vld [vmem:[#allocation10 + $0x1c8] sm:$0xff]
        %v4999 = vld [vmem:[#allocation10 + $0x1d0] sm:$0xff]
        %v5000 = vld [vmem:[#allocation10 + $0x1d8] sm:$0xff]
        %v5001 = vld [vmem:[#allocation10 + $0x1e0] sm:$0xff]
        %v5002 = vld [vmem:[#allocation10 + $0x1e8] sm:$0xff]
        %v5003 = vld [vmem:[#allocation10 + $0x1f0] sm:$0xff]
        %v5004 = vld [vmem:[#allocation10 + $0x1f8] sm:$0xff]
        %v5069 = vunpack.c.l.b16 %v4941
        %v5070 = vunpack.c.h.b16 %v4941
        %v5071 = vunpack.c.l.b16 %v4942
        %v5072 = vunpack.c.h.b16 %v4942
        %v5073 = vunpack.c.l.b16 %v4943
        %v5074 = vunpack.c.h.b16 %v4943
        %v5075 = vunpack.c.l.b16 %v4944
        %v5076 = vunpack.c.h.b16 %v4944
        %v5077 = vunpack.c.l.b16 %v4945
        %v5078 = vunpack.c.h.b16 %v4945
        %v5079 = vunpack.c.l.b16 %v4946
        %v5080 = vunpack.c.h.b16 %v4946
        %v5081 = vunpack.c.l.b16 %v4947
        %v5082 = vunpack.c.h.b16 %v4947
        %v5083 = vunpack.c.l.b16 %v4948
        %v5084 = vunpack.c.h.b16 %v4948
        %v5085 = vunpack.c.l.b16 %v4949
        %v5086 = vunpack.c.h.b16 %v4949
        %v5087 = vunpack.c.l.b16 %v4950
        %v5088 = vunpack.c.h.b16 %v4950
        %v5089 = vunpack.c.l.b16 %v4951
        %v5090 = vunpack.c.h.b16 %v4951
        %v5091 = vunpack.c.l.b16 %v4952
        %v5092 = vunpack.c.h.b16 %v4952
        %v5093 = vunpack.c.l.b16 %v4953
        %v5094 = vunpack.c.h.b16 %v4953
        %v5095 = vunpack.c.l.b16 %v4954
        %v5096 = vunpack.c.h.b16 %v4954
        %v5097 = vunpack.c.l.b16 %v4955
        %v5098 = vunpack.c.h.b16 %v4955
        %v5099 = vunpack.c.l.b16 %v4956
        %v5100 = vunpack.c.h.b16 %v4956
        %v5101 = vunpack.c.l.b16 %v4957
        %v5102 = vunpack.c.h.b16 %v4957
        %v5103 = vunpack.c.l.b16 %v4958
        %v5104 = vunpack.c.h.b16 %v4958
        %v5105 = vunpack.c.l.b16 %v4959
        %v5106 = vunpack.c.h.b16 %v4959
        %v5107 = vunpack.c.l.b16 %v4960
        %v5108 = vunpack.c.h.b16 %v4960
        %v5109 = vunpack.c.l.b16 %v4961
        %v5110 = vunpack.c.h.b16 %v4961
        %v5111 = vunpack.c.l.b16 %v4962
        %v5112 = vunpack.c.h.b16 %v4962
        %v5113 = vunpack.c.l.b16 %v4963
        %v5114 = vunpack.c.h.b16 %v4963
        %v5115 = vunpack.c.l.b16 %v4964
        %v5116 = vunpack.c.h.b16 %v4964
        %v5117 = vunpack.c.l.b16 %v4965
        %v5118 = vunpack.c.h.b16 %v4965
        %v5119 = vunpack.c.l.b16 %v4966
        %v5120 = vunpack.c.h.b16 %v4966
        %v5121 = vunpack.c.l.b16 %v4967
        %v5122 = vunpack.c.h.b16 %v4967
        %v5123 = vunpack.c.l.b16 %v4968
        %v5124 = vunpack.c.h.b16 %v4968
        %v5125 = vunpack.c.l.b16 %v4969
        %v5126 = vunpack.c.h.b16 %v4969
        %v5127 = vunpack.c.l.b16 %v4970
        %v5128 = vunpack.c.h.b16 %v4970
        %v5129 = vunpack.c.l.b16 %v4971
        %v5130 = vunpack.c.h.b16 %v4971
        %v5131 = vunpack.c.l.b16 %v4972
        %v5132 = vunpack.c.h.b16 %v4972
        %v5133 = vunpack.c.l.b16 %v4973
        %v5134 = vunpack.c.h.b16 %v4973
        %v5135 = vunpack.c.l.b16 %v4974
        %v5136 = vunpack.c.h.b16 %v4974
        %v5137 = vunpack.c.l.b16 %v4975
        %v5138 = vunpack.c.h.b16 %v4975
        %v5139 = vunpack.c.l.b16 %v4976
        %v5140 = vunpack.c.h.b16 %v4976
        %v5141 = vunpack.c.l.b16 %v4977
        %v5142 = vunpack.c.h.b16 %v4977
        %v5143 = vunpack.c.l.b16 %v4978
        %v5144 = vunpack.c.h.b16 %v4978
        %v5145 = vunpack.c.l.b16 %v4979
        %v5146 = vunpack.c.h.b16 %v4979
        %v5147 = vunpack.c.l.b16 %v4980
        %v5148 = vunpack.c.h.b16 %v4980
        %v5149 = vunpack.c.l.b16 %v4981
        %v5150 = vunpack.c.h.b16 %v4981
        %v5151 = vunpack.c.l.b16 %v4982
        %v5152 = vunpack.c.h.b16 %v4982
        %v5153 = vunpack.c.l.b16 %v4983
        %v5154 = vunpack.c.h.b16 %v4983
        %v5155 = vunpack.c.l.b16 %v4984
        %v5156 = vunpack.c.h.b16 %v4984
        %v5157 = vunpack.c.l.b16 %v4985
        %v5158 = vunpack.c.h.b16 %v4985
        %v5159 = vunpack.c.l.b16 %v4986
        %v5160 = vunpack.c.h.b16 %v4986
        %v5161 = vunpack.c.l.b16 %v4987
        %v5162 = vunpack.c.h.b16 %v4987
        %v5163 = vunpack.c.l.b16 %v4988
        %v5164 = vunpack.c.h.b16 %v4988
        %v5165 = vunpack.c.l.b16 %v4989
        %v5166 = vunpack.c.h.b16 %v4989
        %v5167 = vunpack.c.l.b16 %v4990
        %v5168 = vunpack.c.h.b16 %v4990
        %v5169 = vunpack.c.l.b16 %v4991
        %v5170 = vunpack.c.h.b16 %v4991
        %v5171 = vunpack.c.l.b16 %v4992
        %v5172 = vunpack.c.h.b16 %v4992
        %v5173 = vunpack.c.l.b16 %v4993
        %v5174 = vunpack.c.h.b16 %v4993
        %v5175 = vunpack.c.l.b16 %v4994
        %v5176 = vunpack.c.h.b16 %v4994
        %v5177 = vunpack.c.l.b16 %v4995
        %v5178 = vunpack.c.h.b16 %v4995
        %v5179 = vunpack.c.l.b16 %v4996
        %v5180 = vunpack.c.h.b16 %v4996
        %v5181 = vunpack.c.l.b16 %v4997
        %v5182 = vunpack.c.h.b16 %v4997
        %v5183 = vunpack.c.l.b16 %v4998
        %v5184 = vunpack.c.h.b16 %v4998
        %v5185 = vunpack.c.l.b16 %v4999
        %v5186 = vunpack.c.h.b16 %v4999
        %v5187 = vunpack.c.l.b16 %v5000
        %v5188 = vunpack.c.h.b16 %v5000
        %v5189 = vunpack.c.l.b16 %v5001
        %v5190 = vunpack.c.h.b16 %v5001
        %v5191 = vunpack.c.l.b16 %v5002
        %v5192 = vunpack.c.h.b16 %v5002
        %v5193 = vunpack.c.l.b16 %v5003
        %v5194 = vunpack.c.h.b16 %v5003
        %v5195 = vunpack.c.l.b16 %v5004
        %v5196 = vunpack.c.h.b16 %v5004
        %v5197 = vpack.c.b16 %v5073, %v5069
        %v5198 = vpack.c.b16 %v5074, %v5070
        %v5199 = vpack.c.b16 %v5075, %v5071
        %v5200 = vpack.c.b16 %v5076, %v5072
        %v5201 = vpack.c.b16 %v5081, %v5077
        %v5202 = vpack.c.b16 %v5082, %v5078
        %v5203 = vpack.c.b16 %v5083, %v5079
        %v5204 = vpack.c.b16 %v5084, %v5080
        %v5205 = vpack.c.b16 %v5089, %v5085
        %v5206 = vpack.c.b16 %v5090, %v5086
        %v5207 = vpack.c.b16 %v5091, %v5087
        %v5208 = vpack.c.b16 %v5092, %v5088
        %v5209 = vpack.c.b16 %v5097, %v5093
        %v5210 = vpack.c.b16 %v5098, %v5094
        %v5211 = vpack.c.b16 %v5099, %v5095
        %v5212 = vpack.c.b16 %v5100, %v5096
        %v5213 = vpack.c.b16 %v5105, %v5101
        %v5214 = vpack.c.b16 %v5106, %v5102
        %v5215 = vpack.c.b16 %v5107, %v5103
        %v5216 = vpack.c.b16 %v5108, %v5104
        %v5217 = vpack.c.b16 %v5113, %v5109
        %v5218 = vpack.c.b16 %v5114, %v5110
        %v5219 = vpack.c.b16 %v5115, %v5111
        %v5220 = vpack.c.b16 %v5116, %v5112
        %v5221 = vpack.c.b16 %v5121, %v5117
        %v5222 = vpack.c.b16 %v5122, %v5118
        %v5223 = vpack.c.b16 %v5123, %v5119
        %v5224 = vpack.c.b16 %v5124, %v5120
        %v5225 = vpack.c.b16 %v5129, %v5125
        %v5226 = vpack.c.b16 %v5130, %v5126
        %v5227 = vpack.c.b16 %v5131, %v5127
        %v5228 = vpack.c.b16 %v5132, %v5128
        %v5229 = vpack.c.b16 %v5137, %v5133
        %v5230 = vpack.c.b16 %v5138, %v5134
        %v5231 = vpack.c.b16 %v5139, %v5135
        %v5232 = vpack.c.b16 %v5140, %v5136
        %v5233 = vpack.c.b16 %v5145, %v5141
        %v5234 = vpack.c.b16 %v5146, %v5142
        %v5235 = vpack.c.b16 %v5147, %v5143
        %v5236 = vpack.c.b16 %v5148, %v5144
        %v5237 = vpack.c.b16 %v5153, %v5149
        %v5238 = vpack.c.b16 %v5154, %v5150
        %v5239 = vpack.c.b16 %v5155, %v5151
        %v5240 = vpack.c.b16 %v5156, %v5152
        %v5241 = vpack.c.b16 %v5161, %v5157
        %v5242 = vpack.c.b16 %v5162, %v5158
        %v5243 = vpack.c.b16 %v5163, %v5159
        %v5244 = vpack.c.b16 %v5164, %v5160
        %v5245 = vpack.c.b16 %v5169, %v5165
        %v5246 = vpack.c.b16 %v5170, %v5166
        %v5247 = vpack.c.b16 %v5171, %v5167
        %v5248 = vpack.c.b16 %v5172, %v5168
        %v5249 = vpack.c.b16 %v5177, %v5173
        %v5250 = vpack.c.b16 %v5178, %v5174
        %v5251 = vpack.c.b16 %v5179, %v5175
        %v5252 = vpack.c.b16 %v5180, %v5176
        %v5253 = vpack.c.b16 %v5185, %v5181
        %v5254 = vpack.c.b16 %v5186, %v5182
        %v5255 = vpack.c.b16 %v5187, %v5183
        %v5256 = vpack.c.b16 %v5188, %v5184
        %v5257 = vpack.c.b16 %v5193, %v5189
        %v5258 = vpack.c.b16 %v5194, %v5190
        %v5259 = vpack.c.b16 %v5195, %v5191
        %v5260 = vpack.c.b16 %v5196, %v5192
        %5325 = vmatprep.subr.bf16.mxu0 %v5198
        %5326 = vmatpush1.bf16.msra.mxu0 %v5197
        %5327 = vmatprep.subr.bf16.mxu0 %v5202
        %5328 = vmatpush1.bf16.msra.mxu0 %v5201
        %5329 = vmatprep.subr.bf16.mxu0 %v5206
        %5330 = vmatpush1.bf16.msra.mxu0 %v5205
        %5331 = vmatprep.subr.bf16.mxu0 %v5210
        %5332 = vmatpush1.bf16.msra.mxu0 %v5209
        %5333 = vmatprep.subr.bf16.mxu0 %v5214
        %5334 = vmatpush1.bf16.msra.mxu0 %v5213
        %5335 = vmatprep.subr.bf16.mxu0 %v5218
        %5336 = vmatpush1.bf16.msra.mxu0 %v5217
        %5337 = vmatprep.subr.bf16.mxu0 %v5222
        %5338 = vmatpush1.bf16.msra.mxu0 %v5221
        %5339 = vmatprep.subr.bf16.mxu0 %v5226
        %5340 = vmatpush1.bf16.msra.mxu0 %v5225
        %5341 = vmatprep.subr.bf16.mxu0 %v5230
        %5342 = vmatpush1.bf16.msra.mxu0 %v5229
        %5343 = vmatprep.subr.bf16.mxu0 %v5234
        %5344 = vmatpush1.bf16.msra.mxu0 %v5233
        %5345 = vmatprep.subr.bf16.mxu0 %v5238
        %5346 = vmatpush1.bf16.msra.mxu0 %v5237
        %5347 = vmatprep.subr.bf16.mxu0 %v5242
        %5348 = vmatpush1.bf16.msra.mxu0 %v5241
        %5349 = vmatprep.subr.bf16.mxu0 %v5246
        %5350 = vmatpush1.bf16.msra.mxu0 %v5245
        %5351 = vmatprep.subr.bf16.mxu0 %v5250
        %5352 = vmatpush1.bf16.msra.mxu0 %v5249
        %5353 = vmatprep.subr.bf16.mxu0 %v5254
        %5354 = vmatpush1.bf16.msra.mxu0 %v5253
        %5355 = vmatprep.subr.bf16.mxu0 %v5258
        %5356 = vmatpush1.bf16.msra.mxu0 %v5257
        %5357 = vmatprep.mubr.bf16.mxu0 %v4940
        %5358 = vmatmul.mubr.bf16.gmra.mrb[0].mxu0 %v4939
        %v5359 = vpop.f32.mrb[0].mxu0
        %v5360 = vadd.f32 0.0, %v5359
        %v5361 = vpop.f32.mrb[0].mxu0
        %v5362 = vadd.f32 0.0, %v5361
        %v5363 = vpop.f32.mrb[0].mxu0
        %v5364 = vpop.f32.mrb[0].mxu0
        %5365 = vdwg.mxu0
        %5366 = vmatprep.subr.bf16.mxu0 %v5200
        %5367 = vmatpush1.bf16.msra.mxu0 %v5199
        %5368 = vmatprep.subr.bf16.mxu0 %v5204
        %5369 = vmatpush1.bf16.msra.mxu0 %v5203
        %5370 = vmatprep.subr.bf16.mxu0 %v5208
        %5371 = vmatpush1.bf16.msra.mxu0 %v5207
        %5372 = vmatprep.subr.bf16.mxu0 %v5212
        %5373 = vmatpush1.bf16.msra.mxu0 %v5211
        %5374 = vmatprep.subr.bf16.mxu0 %v5216
        %5375 = vmatpush1.bf16.msra.mxu0 %v5215
        %5376 = vmatprep.subr.bf16.mxu0 %v5220
        %5377 = vmatpush1.bf16.msra.mxu0 %v5219
        %5378 = vmatprep.subr.bf16.mxu0 %v5224
        %5379 = vmatpush1.bf16.msra.mxu0 %v5223
        %5380 = vmatprep.subr.bf16.mxu0 %v5228
        %5381 = vmatpush1.bf16.msra.mxu0 %v5227
        %5382 = vmatprep.subr.bf16.mxu0 %v5232
        %5383 = vmatpush1.bf16.msra.mxu0 %v5231
        %5384 = vmatprep.subr.bf16.mxu0 %v5236
        %5385 = vmatpush1.bf16.msra.mxu0 %v5235
        %5386 = vmatprep.subr.bf16.mxu0 %v5240
        %5387 = vmatpush1.bf16.msra.mxu0 %v5239
        %5388 = vmatprep.subr.bf16.mxu0 %v5244
        %5389 = vmatpush1.bf16.msra.mxu0 %v5243
        %5390 = vmatprep.subr.bf16.mxu0 %v5248
        %5391 = vmatpush1.bf16.msra.mxu0 %v5247
        %5392 = vmatprep.subr.bf16.mxu0 %v5252
        %5393 = vmatpush1.bf16.msra.mxu0 %v5251
        %5394 = vmatprep.subr.bf16.mxu0 %v5256
        %5395 = vmatpush1.bf16.msra.mxu0 %v5255
        %5396 = vmatprep.subr.bf16.mxu0 %v5260
        %5397 = vmatpush1.bf16.msra.mxu0 %v5259
        %5398 = vmatprep.mubr.bf16.mxu0 %v4940
        %5399 = vmatmul.mubr.bf16.gmra.mrb[0].mxu0 %v4939
        %v5400 = vpop.f32.mrb[0].mxu0
        %v5401 = vadd.f32 0.0, %v5400
        %v5402 = vpop.f32.mrb[0].mxu0
        %v5403 = vadd.f32 0.0, %v5402
        %v5404 = vpop.f32.mrb[0].mxu0
        %v5405 = vpop.f32.mrb[0].mxu0
        %5406 = vdwg.mxu0
        %v5408 = vlaneseq
        %v5409 = vshrl.u32 %v5408, 7
        %v5410 = vsub.s32 0, %v5409
        %v5411 = vrot.slane %v4936, %v5410
        %v5412 = vlaneseq
        %v5413 = vshrl.u32 %v5412, 7
        %v5414 = vsub.s32 1, %v5413
        %v5415 = vrot.slane %v4936, %v5414
        %v5416 = vlaneseq
        %v5417 = vshrl.u32 %v5416, 7
        %v5418 = vsub.s32 2, %v5417
        %v5419 = vrot.slane %v4936, %v5418
        %v5420 = vlaneseq
        %v5421 = vshrl.u32 %v5420, 7
        %v5422 = vsub.s32 3, %v5421
        %v5423 = vrot.slane %v4936, %v5422
        %v5428 = vadd.f32 %v5411, %v5360
        %v5429 = vadd.f32 %v5415, %v5362
        %v5430 = vadd.f32 %v5419, %v5401
        %v5431 = vadd.f32 %v5423, %v5403
        %v5432 = vld [vmem:[#allocation4] sm:$0xfe]
        %v5433 = vld [vmem:[#allocation4 + $0x8] sm:$0xfe]
        %v5434 = vld [vmem:[#allocation4 + $0x10] sm:$0x1]
        %v5435 = vld [vmem:[#allocation4 + $0x18] sm:$0x1]
        %v5436 = vpack.c.bf16 %v5434, %v5432
        %v5437 = vpack.c.bf16 %v5435, %v5433
        %s5438 = scalar_lea.vmem [#allocation10], 512
        %v5439 = vld [vmem:[%s5438] sm:$0xff]
        %v5440 = vld [vmem:[%s5438 + $0x8] sm:$0xff]
        %v5441 = vld [vmem:[%s5438 + $0x10] sm:$0xff]
        %v5442 = vld [vmem:[%s5438 + $0x18] sm:$0xff]
        %v5443 = vld [vmem:[%s5438 + $0x20] sm:$0xff]
        %v5444 = vld [vmem:[%s5438 + $0x28] sm:$0xff]
        %v5445 = vld [vmem:[%s5438 + $0x30] sm:$0xff]
        %v5446 = vld [vmem:[%s5438 + $0x38] sm:$0xff]
        %v5447 = vld [vmem:[%s5438 + $0x40] sm:$0xff]
        %v5448 = vld [vmem:[%s5438 + $0x48] sm:$0xff]
        %v5449 = vld [vmem:[%s5438 + $0x50] sm:$0xff]
        %v5450 = vld [vmem:[%s5438 + $0x58] sm:$0xff]
        %v5451 = vld [vmem:[%s5438 + $0x60] sm:$0xff]
        %v5452 = vld [vmem:[%s5438 + $0x68] sm:$0xff]
        %v5453 = vld [vmem:[%s5438 + $0x70] sm:$0xff]
        %v5454 = vld [vmem:[%s5438 + $0x78] sm:$0xff]
        %v5455 = vld [vmem:[%s5438 + $0x80] sm:$0xff]
        %v5456 = vld [vmem:[%s5438 + $0x88] sm:$0xff]
        %v5457 = vld [vmem:[%s5438 + $0x90] sm:$0xff]
        %v5458 = vld [vmem:[%s5438 + $0x98] sm:$0xff]
        %v5459 = vld [vmem:[%s5438 + $0xa0] sm:$0xff]
        %v5460 = vld [vmem:[%s5438 + $0xa8] sm:$0xff]
        %v5461 = vld [vmem:[%s5438 + $0xb0] sm:$0xff]
        %v5462 = vld [vmem:[%s5438 + $0xb8] sm:$0xff]
        %v5463 = vld [vmem:[%s5438 + $0xc0] sm:$0xff]
        %v5464 = vld [vmem:[%s5438 + $0xc8] sm:$0xff]
        %v5465 = vld [vmem:[%s5438 + $0xd0] sm:$0xff]
        %v5466 = vld [vmem:[%s5438 + $0xd8] sm:$0xff]
        %v5467 = vld [vmem:[%s5438 + $0xe0] sm:$0xff]
        %v5468 = vld [vmem:[%s5438 + $0xe8] sm:$0xff]
        %v5469 = vld [vmem:[%s5438 + $0xf0] sm:$0xff]
        %v5470 = vld [vmem:[%s5438 + $0xf8] sm:$0xff]
        %v5471 = vld [vmem:[%s5438 + $0x100] sm:$0xff]
        %v5472 = vld [vmem:[%s5438 + $0x108] sm:$0xff]
        %v5473 = vld [vmem:[%s5438 + $0x110] sm:$0xff]
        %v5474 = vld [vmem:[%s5438 + $0x118] sm:$0xff]
        %v5475 = vld [vmem:[%s5438 + $0x120] sm:$0xff]
        %v5476 = vld [vmem:[%s5438 + $0x128] sm:$0xff]
        %v5477 = vld [vmem:[%s5438 + $0x130] sm:$0xff]
        %v5478 = vld [vmem:[%s5438 + $0x138] sm:$0xff]
        %v5479 = vld [vmem:[%s5438 + $0x140] sm:$0xff]
        %v5480 = vld [vmem:[%s5438 + $0x148] sm:$0xff]
        %v5481 = vld [vmem:[%s5438 + $0x150] sm:$0xff]
        %v5482 = vld [vmem:[%s5438 + $0x158] sm:$0xff]
        %v5483 = vld [vmem:[%s5438 + $0x160] sm:$0xff]
        %v5484 = vld [vmem:[%s5438 + $0x168] sm:$0xff]
        %v5485 = vld [vmem:[%s5438 + $0x170] sm:$0xff]
        %v5486 = vld [vmem:[%s5438 + $0x178] sm:$0xff]
        %v5487 = vld [vmem:[%s5438 + $0x180] sm:$0xff]
        %v5488 = vld [vmem:[%s5438 + $0x188] sm:$0xff]
        %v5489 = vld [vmem:[%s5438 + $0x190] sm:$0xff]
        %v5490 = vld [vmem:[%s5438 + $0x198] sm:$0xff]
        %v5491 = vld [vmem:[%s5438 + $0x1a0] sm:$0xff]
        %v5492 = vld [vmem:[%s5438 + $0x1a8] sm:$0xff]
        %v5493 = vld [vmem:[%s5438 + $0x1b0] sm:$0xff]
        %v5494 = vld [vmem:[%s5438 + $0x1b8] sm:$0xff]
        %v5495 = vld [vmem:[%s5438 + $0x1c0] sm:$0xff]
        %v5496 = vld [vmem:[%s5438 + $0x1c8] sm:$0xff]
        %v5497 = vld [vmem:[%s5438 + $0x1d0] sm:$0xff]
        %v5498 = vld [vmem:[%s5438 + $0x1d8] sm:$0xff]
        %v5499 = vld [vmem:[%s5438 + $0x1e0] sm:$0xff]
        %v5500 = vld [vmem:[%s5438 + $0x1e8] sm:$0xff]
        %v5501 = vld [vmem:[%s5438 + $0x1f0] sm:$0xff]
        %v5502 = vld [vmem:[%s5438 + $0x1f8] sm:$0xff]
        %v5504 = vshrl.u32 %v5436, 16
        %v5506 = vshll.u32 %v5436, 16
        %v5508 = vrot.slane %v5506, 1
        %v5509 = vor.u32 %v5504, %v5508
        %v5511 = vshrl.u32 %v5437, 16
        %v5513 = vshll.u32 %v5437, 16
        %v5515 = vrot.slane %v5513, 1
        %v5516 = vor.u32 %v5511, %v5515
        %v5583 = vunpack.c.l.b16 %v5439
        %v5584 = vunpack.c.h.b16 %v5439
        %v5585 = vunpack.c.l.b16 %v5440
        %v5586 = vunpack.c.h.b16 %v5440
        %v5587 = vunpack.c.l.b16 %v5441
        %v5588 = vunpack.c.h.b16 %v5441
        %v5589 = vunpack.c.l.b16 %v5442
        %v5590 = vunpack.c.h.b16 %v5442
        %v5591 = vunpack.c.l.b16 %v5443
        %v5592 = vunpack.c.h.b16 %v5443
        %v5593 = vunpack.c.l.b16 %v5444
        %v5594 = vunpack.c.h.b16 %v5444
        %v5595 = vunpack.c.l.b16 %v5445
        %v5596 = vunpack.c.h.b16 %v5445
        %v5597 = vunpack.c.l.b16 %v5446
        %v5598 = vunpack.c.h.b16 %v5446
        %v5599 = vunpack.c.l.b16 %v5447
        %v5600 = vunpack.c.h.b16 %v5447
        %v5601 = vunpack.c.l.b16 %v5448
        %v5602 = vunpack.c.h.b16 %v5448
        %v5603 = vunpack.c.l.b16 %v5449
        %v5604 = vunpack.c.h.b16 %v5449
        %v5605 = vunpack.c.l.b16 %v5450
        %v5606 = vunpack.c.h.b16 %v5450
        %v5607 = vunpack.c.l.b16 %v5451
        %v5608 = vunpack.c.h.b16 %v5451
        %v5609 = vunpack.c.l.b16 %v5452
        %v5610 = vunpack.c.h.b16 %v5452
        %v5611 = vunpack.c.l.b16 %v5453
        %v5612 = vunpack.c.h.b16 %v5453
        %v5613 = vunpack.c.l.b16 %v5454
        %v5614 = vunpack.c.h.b16 %v5454
        %v5615 = vunpack.c.l.b16 %v5455
        %v5616 = vunpack.c.h.b16 %v5455
        %v5617 = vunpack.c.l.b16 %v5456
        %v5618 = vunpack.c.h.b16 %v5456
        %v5619 = vunpack.c.l.b16 %v5457
        %v5620 = vunpack.c.h.b16 %v5457
        %v5621 = vunpack.c.l.b16 %v5458
        %v5622 = vunpack.c.h.b16 %v5458
        %v5623 = vunpack.c.l.b16 %v5459
        %v5624 = vunpack.c.h.b16 %v5459
        %v5625 = vunpack.c.l.b16 %v5460
        %v5626 = vunpack.c.h.b16 %v5460
        %v5627 = vunpack.c.l.b16 %v5461
        %v5628 = vunpack.c.h.b16 %v5461
        %v5629 = vunpack.c.l.b16 %v5462
        %v5630 = vunpack.c.h.b16 %v5462
        %v5631 = vunpack.c.l.b16 %v5463
        %v5632 = vunpack.c.h.b16 %v5463
        %v5633 = vunpack.c.l.b16 %v5464
        %v5634 = vunpack.c.h.b16 %v5464
        %v5635 = vunpack.c.l.b16 %v5465
        %v5636 = vunpack.c.h.b16 %v5465
        %v5637 = vunpack.c.l.b16 %v5466
        %v5638 = vunpack.c.h.b16 %v5466
        %v5639 = vunpack.c.l.b16 %v5467
        %v5640 = vunpack.c.h.b16 %v5467
        %v5641 = vunpack.c.l.b16 %v5468
        %v5642 = vunpack.c.h.b16 %v5468
        %v5643 = vunpack.c.l.b16 %v5469
        %v5644 = vunpack.c.h.b16 %v5469
        %v5645 = vunpack.c.l.b16 %v5470
        %v5646 = vunpack.c.h.b16 %v5470
        %v5647 = vunpack.c.l.b16 %v5471
        %v5648 = vunpack.c.h.b16 %v5471
        %v5649 = vunpack.c.l.b16 %v5472
        %v5650 = vunpack.c.h.b16 %v5472
        %v5651 = vunpack.c.l.b16 %v5473
        %v5652 = vunpack.c.h.b16 %v5473
        %v5653 = vunpack.c.l.b16 %v5474
        %v5654 = vunpack.c.h.b16 %v5474
        %v5655 = vunpack.c.l.b16 %v5475
        %v5656 = vunpack.c.h.b16 %v5475
        %v5657 = vunpack.c.l.b16 %v5476
        %v5658 = vunpack.c.h.b16 %v5476
        %v5659 = vunpack.c.l.b16 %v5477
        %v5660 = vunpack.c.h.b16 %v5477
        %v5661 = vunpack.c.l.b16 %v5478
        %v5662 = vunpack.c.h.b16 %v5478
        %v5663 = vunpack.c.l.b16 %v5479
        %v5664 = vunpack.c.h.b16 %v5479
        %v5665 = vunpack.c.l.b16 %v5480
        %v5666 = vunpack.c.h.b16 %v5480
        %v5667 = vunpack.c.l.b16 %v5481
        %v5668 = vunpack.c.h.b16 %v5481
        %v5669 = vunpack.c.l.b16 %v5482
        %v5670 = vunpack.c.h.b16 %v5482
        %v5671 = vunpack.c.l.b16 %v5483
        %v5672 = vunpack.c.h.b16 %v5483
        %v5673 = vunpack.c.l.b16 %v5484
        %v5674 = vunpack.c.h.b16 %v5484
        %v5675 = vunpack.c.l.b16 %v5485
        %v5676 = vunpack.c.h.b16 %v5485
        %v5677 = vunpack.c.l.b16 %v5486
        %v5678 = vunpack.c.h.b16 %v5486
        %v5679 = vunpack.c.l.b16 %v5487
        %v5680 = vunpack.c.h.b16 %v5487
        %v5681 = vunpack.c.l.b16 %v5488
        %v5682 = vunpack.c.h.b16 %v5488
        %v5683 = vunpack.c.l.b16 %v5489
        %v5684 = vunpack.c.h.b16 %v5489
        %v5685 = vunpack.c.l.b16 %v5490
        %v5686 = vunpack.c.h.b16 %v5490
        %v5687 = vunpack.c.l.b16 %v5491
        %v5688 = vunpack.c.h.b16 %v5491
        %v5689 = vunpack.c.l.b16 %v5492
        %v5690 = vunpack.c.h.b16 %v5492
        %v5691 = vunpack.c.l.b16 %v5493
        %v5692 = vunpack.c.h.b16 %v5493
        %v5693 = vunpack.c.l.b16 %v5494
        %v5694 = vunpack.c.h.b16 %v5494
        %v5695 = vunpack.c.l.b16 %v5495
        %v5696 = vunpack.c.h.b16 %v5495
        %v5697 = vunpack.c.l.b16 %v5496
        %v5698 = vunpack.c.h.b16 %v5496
        %v5699 = vunpack.c.l.b16 %v5497
        %v5700 = vunpack.c.h.b16 %v5497
        %v5701 = vunpack.c.l.b16 %v5498
        %v5702 = vunpack.c.h.b16 %v5498
        %v5703 = vunpack.c.l.b16 %v5499
        %v5704 = vunpack.c.h.b16 %v5499
        %v5705 = vunpack.c.l.b16 %v5500
        %v5706 = vunpack.c.h.b16 %v5500
        %v5707 = vunpack.c.l.b16 %v5501
        %v5708 = vunpack.c.h.b16 %v5501
        %v5709 = vunpack.c.l.b16 %v5502
        %v5710 = vunpack.c.h.b16 %v5502
        %v5711 = vpack.c.b16 %v5587, %v5583
        %v5712 = vpack.c.b16 %v5588, %v5584
        %v5713 = vpack.c.b16 %v5589, %v5585
        %v5714 = vpack.c.b16 %v5590, %v5586
        %v5715 = vpack.c.b16 %v5595, %v5591
        %v5716 = vpack.c.b16 %v5596, %v5592
        %v5717 = vpack.c.b16 %v5597, %v5593
        %v5718 = vpack.c.b16 %v5598, %v5594
        %v5719 = vpack.c.b16 %v5603, %v5599
        %v5720 = vpack.c.b16 %v5604, %v5600
        %v5721 = vpack.c.b16 %v5605, %v5601
        %v5722 = vpack.c.b16 %v5606, %v5602
        %v5723 = vpack.c.b16 %v5611, %v5607
        %v5724 = vpack.c.b16 %v5612, %v5608
        %v5725 = vpack.c.b16 %v5613, %v5609
        %v5726 = vpack.c.b16 %v5614, %v5610
        %v5727 = vpack.c.b16 %v5619, %v5615
        %v5728 = vpack.c.b16 %v5620, %v5616
        %v5729 = vpack.c.b16 %v5621, %v5617
        %v5730 = vpack.c.b16 %v5622, %v5618
        %v5731 = vpack.c.b16 %v5627, %v5623
        %v5732 = vpack.c.b16 %v5628, %v5624
        %v5733 = vpack.c.b16 %v5629, %v5625
        %v5734 = vpack.c.b16 %v5630, %v5626
        %v5735 = vpack.c.b16 %v5635, %v5631
        %v5736 = vpack.c.b16 %v5636, %v5632
        %v5737 = vpack.c.b16 %v5637, %v5633
        %v5738 = vpack.c.b16 %v5638, %v5634
        %v5739 = vpack.c.b16 %v5643, %v5639
        %v5740 = vpack.c.b16 %v5644, %v5640
        %v5741 = vpack.c.b16 %v5645, %v5641
        %v5742 = vpack.c.b16 %v5646, %v5642
        %v5743 = vpack.c.b16 %v5651, %v5647
        %v5744 = vpack.c.b16 %v5652, %v5648
        %v5745 = vpack.c.b16 %v5653, %v5649
        %v5746 = vpack.c.b16 %v5654, %v5650
        %v5747 = vpack.c.b16 %v5659, %v5655
        %v5748 = vpack.c.b16 %v5660, %v5656
        %v5749 = vpack.c.b16 %v5661, %v5657
        %v5750 = vpack.c.b16 %v5662, %v5658
        %v5751 = vpack.c.b16 %v5667, %v5663
        %v5752 = vpack.c.b16 %v5668, %v5664
        %v5753 = vpack.c.b16 %v5669, %v5665
        %v5754 = vpack.c.b16 %v5670, %v5666
        %v5755 = vpack.c.b16 %v5675, %v5671
        %v5756 = vpack.c.b16 %v5676, %v5672
        %v5757 = vpack.c.b16 %v5677, %v5673
        %v5758 = vpack.c.b16 %v5678, %v5674
        %v5759 = vpack.c.b16 %v5683, %v5679
        %v5760 = vpack.c.b16 %v5684, %v5680
        %v5761 = vpack.c.b16 %v5685, %v5681
        %v5762 = vpack.c.b16 %v5686, %v5682
        %v5763 = vpack.c.b16 %v5691, %v5687
        %v5764 = vpack.c.b16 %v5692, %v5688
        %v5765 = vpack.c.b16 %v5693, %v5689
        %v5766 = vpack.c.b16 %v5694, %v5690
        %v5767 = vpack.c.b16 %v5699, %v5695
        %v5768 = vpack.c.b16 %v5700, %v5696
        %v5769 = vpack.c.b16 %v5701, %v5697
        %v5770 = vpack.c.b16 %v5702, %v5698
        %v5771 = vpack.c.b16 %v5707, %v5703
        %v5772 = vpack.c.b16 %v5708, %v5704
        %v5773 = vpack.c.b16 %v5709, %v5705
        %v5774 = vpack.c.b16 %v5710, %v5706
        %5839 = vmatprep.subr.bf16.mxu0 %v5712
        %5840 = vmatpush1.bf16.msra.mxu0 %v5711
        %5841 = vmatprep.subr.bf16.mxu0 %v5716
        %5842 = vmatpush1.bf16.msra.mxu0 %v5715
        %5843 = vmatprep.subr.bf16.mxu0 %v5720
        %5844 = vmatpush1.bf16.msra.mxu0 %v5719
        %5845 = vmatprep.subr.bf16.mxu0 %v5724
        %5846 = vmatpush1.bf16.msra.mxu0 %v5723
        %5847 = vmatprep.subr.bf16.mxu0 %v5728
        %5848 = vmatpush1.bf16.msra.mxu0 %v5727
        %5849 = vmatprep.subr.bf16.mxu0 %v5732
        %5850 = vmatpush1.bf16.msra.mxu0 %v5731
        %5851 = vmatprep.subr.bf16.mxu0 %v5736
        %5852 = vmatpush1.bf16.msra.mxu0 %v5735
        %5853 = vmatprep.subr.bf16.mxu0 %v5740
        %5854 = vmatpush1.bf16.msra.mxu0 %v5739
        %5855 = vmatprep.subr.bf16.mxu0 %v5744
        %5856 = vmatpush1.bf16.msra.mxu0 %v5743
        %5857 = vmatprep.subr.bf16.mxu0 %v5748
        %5858 = vmatpush1.bf16.msra.mxu0 %v5747
        %5859 = vmatprep.subr.bf16.mxu0 %v5752
        %5860 = vmatpush1.bf16.msra.mxu0 %v5751
        %5861 = vmatprep.subr.bf16.mxu0 %v5756
        %5862 = vmatpush1.bf16.msra.mxu0 %v5755
        %5863 = vmatprep.subr.bf16.mxu0 %v5760
        %5864 = vmatpush1.bf16.msra.mxu0 %v5759
        %5865 = vmatprep.subr.bf16.mxu0 %v5764
        %5866 = vmatpush1.bf16.msra.mxu0 %v5763
        %5867 = vmatprep.subr.bf16.mxu0 %v5768
        %5868 = vmatpush1.bf16.msra.mxu0 %v5767
        %5869 = vmatprep.subr.bf16.mxu0 %v5772
        %5870 = vmatpush1.bf16.msra.mxu0 %v5771
        %5871 = vmatprep.mubr.bf16.mxu0 %v5516
        %5872 = vmatmul.mubr.bf16.gmra.mrb[0].mxu0 %v5509
        %v5873 = vpop.f32.mrb[0].mxu0
        %v5874 = vadd.f32 0.0, %v5873
        %v5875 = vpop.f32.mrb[0].mxu0
        %v5876 = vadd.f32 0.0, %v5875
        %v5877 = vpop.f32.mrb[0].mxu0
        %v5878 = vpop.f32.mrb[0].mxu0
        %5879 = vdwg.mxu0
        %5880 = vmatprep.subr.bf16.mxu0 %v5714
        %5881 = vmatpush1.bf16.msra.mxu0 %v5713
        %5882 = vmatprep.subr.bf16.mxu0 %v5718
        %5883 = vmatpush1.bf16.msra.mxu0 %v5717
        %5884 = vmatprep.subr.bf16.mxu0 %v5722
        %5885 = vmatpush1.bf16.msra.mxu0 %v5721
        %5886 = vmatprep.subr.bf16.mxu0 %v5726
        %5887 = vmatpush1.bf16.msra.mxu0 %v5725
        %5888 = vmatprep.subr.bf16.mxu0 %v5730
        %5889 = vmatpush1.bf16.msra.mxu0 %v5729
        %5890 = vmatprep.subr.bf16.mxu0 %v5734
        %5891 = vmatpush1.bf16.msra.mxu0 %v5733
        %5892 = vmatprep.subr.bf16.mxu0 %v5738
        %5893 = vmatpush1.bf16.msra.mxu0 %v5737
        %5894 = vmatprep.subr.bf16.mxu0 %v5742
        %5895 = vmatpush1.bf16.msra.mxu0 %v5741
        %5896 = vmatprep.subr.bf16.mxu0 %v5746
        %5897 = vmatpush1.bf16.msra.mxu0 %v5745
        %5898 = vmatprep.subr.bf16.mxu0 %v5750
        %5899 = vmatpush1.bf16.msra.mxu0 %v5749
        %5900 = vmatprep.subr.bf16.mxu0 %v5754
        %5901 = vmatpush1.bf16.msra.mxu0 %v5753
        %5902 = vmatprep.subr.bf16.mxu0 %v5758
        %5903 = vmatpush1.bf16.msra.mxu0 %v5757
        %5904 = vmatprep.subr.bf16.mxu0 %v5762
        %5905 = vmatpush1.bf16.msra.mxu0 %v5761
        %5906 = vmatprep.subr.bf16.mxu0 %v5766
        %5907 = vmatpush1.bf16.msra.mxu0 %v5765
        %5908 = vmatprep.subr.bf16.mxu0 %v5770
        %5909 = vmatpush1.bf16.msra.mxu0 %v5769
        %5910 = vmatprep.subr.bf16.mxu0 %v5774
        %5911 = vmatpush1.bf16.msra.mxu0 %v5773
        %5912 = vmatprep.mubr.bf16.mxu0 %v5516
        %5913 = vmatmul.mubr.bf16.gmra.mrb[0].mxu0 %v5509
        %v5914 = vpop.f32.mrb[0].mxu0
        %v5915 = vadd.f32 0.0, %v5914
        %v5916 = vpop.f32.mrb[0].mxu0
        %v5917 = vadd.f32 0.0, %v5916
        %v5918 = vpop.f32.mrb[0].mxu0
        %v5919 = vpop.f32.mrb[0].mxu0
        %5920 = vdwg.mxu0
        %v5921 = vadd.f32 %v5428, %v5874
        %v5922 = vadd.f32 %v5429, %v5876
        %v5923 = vadd.f32 %v5430, %v5915
        %v5924 = vadd.f32 %v5431, %v5917
        %v5925 = vld [vmem:[#allocation4] sm:$0xfc]
        %v5926 = vld [vmem:[#allocation4 + $0x8] sm:$0xfc]
        %v5927 = vld [vmem:[#allocation4 + $0x10] sm:$0x3]
        %v5928 = vld [vmem:[#allocation4 + $0x18] sm:$0x3]
        %v5929 = vpack.c.bf16 %v5927, %v5925
        %v5930 = vpack.c.bf16 %v5928, %v5926
        %s5931 = scalar_lea.vmem [#allocation10], 1024
        %v5932 = vld [vmem:[%s5931] sm:$0xff]
        %v5933 = vld [vmem:[%s5931 + $0x8] sm:$0xff]
        %v5934 = vld [vmem:[%s5931 + $0x10] sm:$0xff]
        %v5935 = vld [vmem:[%s5931 + $0x18] sm:$0xff]
        %v5936 = vld [vmem:[%s5931 + $0x20] sm:$0xff]
        %v5937 = vld [vmem:[%s5931 + $0x28] sm:$0xff]
        %v5938 = vld [vmem:[%s5931 + $0x30] sm:$0xff]
        %v5939 = vld [vmem:[%s5931 + $0x38] sm:$0xff]
        %v5940 = vld [vmem:[%s5931 + $0x40] sm:$0xff]
        %v5941 = vld [vmem:[%s5931 + $0x48] sm:$0xff]
        %v5942 = vld [vmem:[%s5931 + $0x50] sm:$0xff]
        %v5943 = vld [vmem:[%s5931 + $0x58] sm:$0xff]
        %v5944 = vld [vmem:[%s5931 + $0x60] sm:$0xff]
        %v5945 = vld [vmem:[%s5931 + $0x68] sm:$0xff]
        %v5946 = vld [vmem:[%s5931 + $0x70] sm:$0xff]
        %v5947 = vld [vmem:[%s5931 + $0x78] sm:$0xff]
        %v5948 = vld [vmem:[%s5931 + $0x80] sm:$0xff]
        %v5949 = vld [vmem:[%s5931 + $0x88] sm:$0xff]
        %v5950 = vld [vmem:[%s5931 + $0x90] sm:$0xff]
        %v5951 = vld [vmem:[%s5931 + $0x98] sm:$0xff]
        %v5952 = vld [vmem:[%s5931 + $0xa0] sm:$0xff]
        %v5953 = vld [vmem:[%s5931 + $0xa8] sm:$0xff]
        %v5954 = vld [vmem:[%s5931 + $0xb0] sm:$0xff]
        %v5955 = vld [vmem:[%s5931 + $0xb8] sm:$0xff]
        %v5956 = vld [vmem:[%s5931 + $0xc0] sm:$0xff]
        %v5957 = vld [vmem:[%s5931 + $0xc8] sm:$0xff]
        %v5958 = vld [vmem:[%s5931 + $0xd0] sm:$0xff]
        %v5959 = vld [vmem:[%s5931 + $0xd8] sm:$0xff]
        %v5960 = vld [vmem:[%s5931 + $0xe0] sm:$0xff]
        %v5961 = vld [vmem:[%s5931 + $0xe8] sm:$0xff]
        %v5962 = vld [vmem:[%s5931 + $0xf0] sm:$0xff]
        %v5963 = vld [vmem:[%s5931 + $0xf8] sm:$0xff]
        %v5964 = vld [vmem:[%s5931 + $0x100] sm:$0xff]
        %v5965 = vld [vmem:[%s5931 + $0x108] sm:$0xff]
        %v5966 = vld [vmem:[%s5931 + $0x110] sm:$0xff]
        %v5967 = vld [vmem:[%s5931 + $0x118] sm:$0xff]
        %v5968 = vld [vmem:[%s5931 + $0x120] sm:$0xff]
        %v5969 = vld [vmem:[%s5931 + $0x128] sm:$0xff]
        %v5970 = vld [vmem:[%s5931 + $0x130] sm:$0xff]
        %v5971 = vld [vmem:[%s5931 + $0x138] sm:$0xff]
        %v5972 = vld [vmem:[%s5931 + $0x140] sm:$0xff]
        %v5973 = vld [vmem:[%s5931 + $0x148] sm:$0xff]
        %v5974 = vld [vmem:[%s5931 + $0x150] sm:$0xff]
        %v5975 = vld [vmem:[%s5931 + $0x158] sm:$0xff]
        %v5976 = vld [vmem:[%s5931 + $0x160] sm:$0xff]
        %v5977 = vld [vmem:[%s5931 + $0x168] sm:$0xff]
        %v5978 = vld [vmem:[%s5931 + $0x170] sm:$0xff]
        %v5979 = vld [vmem:[%s5931 + $0x178] sm:$0xff]
        %v5980 = vld [vmem:[%s5931 + $0x180] sm:$0xff]
        %v5981 = vld [vmem:[%s5931 + $0x188] sm:$0xff]
        %v5982 = vld [vmem:[%s5931 + $0x190] sm:$0xff]
        %v5983 = vld [vmem:[%s5931 + $0x198] sm:$0xff]
        %v5984 = vld [vmem:[%s5931 + $0x1a0] sm:$0xff]
        %v5985 = vld [vmem:[%s5931 + $0x1a8] sm:$0xff]
        %v5986 = vld [vmem:[%s5931 + $0x1b0] sm:$0xff]
        %v5987 = vld [vmem:[%s5931 + $0x1b8] sm:$0xff]
        %v5988 = vld [vmem:[%s5931 + $0x1c0] sm:$0xff]
        %v5989 = vld [vmem:[%s5931 + $0x1c8] sm:$0xff]
        %v5990 = vld [vmem:[%s5931 + $0x1d0] sm:$0xff]
        %v5991 = vld [vmem:[%s5931 + $0x1d8] sm:$0xff]
        %v5992 = vld [vmem:[%s5931 + $0x1e0] sm:$0xff]
        %v5993 = vld [vmem:[%s5931 + $0x1e8] sm:$0xff]
        %v5994 = vld [vmem:[%s5931 + $0x1f0] sm:$0xff]
        %v5995 = vld [vmem:[%s5931 + $0x1f8] sm:$0xff]
        %v5998 = vrot.slane %v5929, 1
        %v5999 = vrot.slane %v5930, 1
        %v6066 = vunpack.c.l.b16 %v5932
        %v6067 = vunpack.c.h.b16 %v5932
        %v6068 = vunpack.c.l.b16 %v5933
        %v6069 = vunpack.c.h.b16 %v5933
        %v6070 = vunpack.c.l.b16 %v5934
        %v6071 = vunpack.c.h.b16 %v5934
        %v6072 = vunpack.c.l.b16 %v5935
        %v6073 = vunpack.c.h.b16 %v5935
        %v6074 = vunpack.c.l.b16 %v5936
        %v6075 = vunpack.c.h.b16 %v5936
        %v6076 = vunpack.c.l.b16 %v5937
        %v6077 = vunpack.c.h.b16 %v5937
        %v6078 = vunpack.c.l.b16 %v5938
        %v6079 = vunpack.c.h.b16 %v5938
        %v6080 = vunpack.c.l.b16 %v5939
        %v6081 = vunpack.c.h.b16 %v5939
        %v6082 = vunpack.c.l.b16 %v5940
        %v6083 = vunpack.c.h.b16 %v5940
        %v6084 = vunpack.c.l.b16 %v5941
        %v6085 = vunpack.c.h.b16 %v5941
        %v6086 = vunpack.c.l.b16 %v5942
        %v6087 = vunpack.c.h.b16 %v5942
        %v6088 = vunpack.c.l.b16 %v5943
        %v6089 = vunpack.c.h.b16 %v5943
        %v6090 = vunpack.c.l.b16 %v5944
        %v6091 = vunpack.c.h.b16 %v5944
        %v6092 = vunpack.c.l.b16 %v5945
        %v6093 = vunpack.c.h.b16 %v5945
        %v6094 = vunpack.c.l.b16 %v5946
        %v6095 = vunpack.c.h.b16 %v5946
        %v6096 = vunpack.c.l.b16 %v5947
        %v6097 = vunpack.c.h.b16 %v5947
        %v6098 = vunpack.c.l.b16 %v5948
        %v6099 = vunpack.c.h.b16 %v5948
        %v6100 = vunpack.c.l.b16 %v5949
        %v6101 = vunpack.c.h.b16 %v5949
        %v6102 = vunpack.c.l.b16 %v5950
        %v6103 = vunpack.c.h.b16 %v5950
        %v6104 = vunpack.c.l.b16 %v5951
        %v6105 = vunpack.c.h.b16 %v5951
        %v6106 = vunpack.c.l.b16 %v5952
        %v6107 = vunpack.c.h.b16 %v5952
        %v6108 = vunpack.c.l.b16 %v5953
        %v6109 = vunpack.c.h.b16 %v5953
        %v6110 = vunpack.c.l.b16 %v5954
        %v6111 = vunpack.c.h.b16 %v5954
        %v6112 = vunpack.c.l.b16 %v5955
        %v6113 = vunpack.c.h.b16 %v5955
        %v6114 = vunpack.c.l.b16 %v5956
        %v6115 = vunpack.c.h.b16 %v5956
        %v6116 = vunpack.c.l.b16 %v5957
        %v6117 = vunpack.c.h.b16 %v5957
        %v6118 = vunpack.c.l.b16 %v5958
        %v6119 = vunpack.c.h.b16 %v5958
        %v6120 = vunpack.c.l.b16 %v5959
        %v6121 = vunpack.c.h.b16 %v5959
        %v6122 = vunpack.c.l.b16 %v5960
        %v6123 = vunpack.c.h.b16 %v5960
        %v6124 = vunpack.c.l.b16 %v5961
        %v6125 = vunpack.c.h.b16 %v5961
        %v6126 = vunpack.c.l.b16 %v5962
        %v6127 = vunpack.c.h.b16 %v5962
        %v6128 = vunpack.c.l.b16 %v5963
        %v6129 = vunpack.c.h.b16 %v5963
        %v6130 = vunpack.c.l.b16 %v5964
        %v6131 = vunpack.c.h.b16 %v5964
        %v6132 = vunpack.c.l.b16 %v5965
        %v6133 = vunpack.c.h.b16 %v5965
        %v6134 = vunpack.c.l.b16 %v5966
        %v6135 = vunpack.c.h.b16 %v5966
        %v6136 = vunpack.c.l.b16 %v5967
        %v6137 = vunpack.c.h.b16 %v5967
        %v6138 = vunpack.c.l.b16 %v5968
        %v6139 = vunpack.c.h.b16 %v5968
        %v6140 = vunpack.c.l.b16 %v5969
        %v6141 = vunpack.c.h.b16 %v5969
        %v6142 = vunpack.c.l.b16 %v5970
        %v6143 = vunpack.c.h.b16 %v5970
        %v6144 = vunpack.c.l.b16 %v5971
        %v6145 = vunpack.c.h.b16 %v5971
        %v6146 = vunpack.c.l.b16 %v5972
        %v6147 = vunpack.c.h.b16 %v5972
        %v6148 = vunpack.c.l.b16 %v5973
        %v6149 = vunpack.c.h.b16 %v5973
        %v6150 = vunpack.c.l.b16 %v5974
        %v6151 = vunpack.c.h.b16 %v5974
        %v6152 = vunpack.c.l.b16 %v5975
        %v6153 = vunpack.c.h.b16 %v5975
        %v6154 = vunpack.c.l.b16 %v5976
        %v6155 = vunpack.c.h.b16 %v5976
        %v6156 = vunpack.c.l.b16 %v5977
        %v6157 = vunpack.c.h.b16 %v5977
        %v6158 = vunpack.c.l.b16 %v5978
        %v6159 = vunpack.c.h.b16 %v5978
        %v6160 = vunpack.c.l.b16 %v5979
        %v6161 = vunpack.c.h.b16 %v5979
        %v6162 = vunpack.c.l.b16 %v5980
        %v6163 = vunpack.c.h.b16 %v5980
        %v6164 = vunpack.c.l.b16 %v5981
        %v6165 = vunpack.c.h.b16 %v5981
        %v6166 = vunpack.c.l.b16 %v5982
        %v6167 = vunpack.c.h.b16 %v5982
        %v6168 = vunpack.c.l.b16 %v5983
        %v6169 = vunpack.c.h.b16 %v5983
        %v6170 = vunpack.c.l.b16 %v5984
        %v6171 = vunpack.c.h.b16 %v5984
        %v6172 = vunpack.c.l.b16 %v5985
        %v6173 = vunpack.c.h.b16 %v5985
        %v6174 = vunpack.c.l.b16 %v5986
        %v6175 = vunpack.c.h.b16 %v5986
        %v6176 = vunpack.c.l.b16 %v5987
        %v6177 = vunpack.c.h.b16 %v5987
        %v6178 = vunpack.c.l.b16 %v5988
        %v6179 = vunpack.c.h.b16 %v5988
        %v6180 = vunpack.c.l.b16 %v5989
        %v6181 = vunpack.c.h.b16 %v5989
        %v6182 = vunpack.c.l.b16 %v5990
        %v6183 = vunpack.c.h.b16 %v5990
        %v6184 = vunpack.c.l.b16 %v5991
        %v6185 = vunpack.c.h.b16 %v5991
        %v6186 = vunpack.c.l.b16 %v5992
        %v6187 = vunpack.c.h.b16 %v5992
        %v6188 = vunpack.c.l.b16 %v5993
        %v6189 = vunpack.c.h.b16 %v5993
        %v6190 = vunpack.c.l.b16 %v5994
        %v6191 = vunpack.c.h.b16 %v5994
        %v6192 = vunpack.c.l.b16 %v5995
        %v6193 = vunpack.c.h.b16 %v5995
        %v6194 = vpack.c.b16 %v6070, %v6066
        %v6195 = vpack.c.b16 %v6071, %v6067
        %v6196 = vpack.c.b16 %v6072, %v6068
        %v6197 = vpack.c.b16 %v6073, %v6069
        %v6198 = vpack.c.b16 %v6078, %v6074
        %v6199 = vpack.c.b16 %v6079, %v6075
        %v6200 = vpack.c.b16 %v6080, %v6076
        %v6201 = vpack.c.b16 %v6081, %v6077
        %v6202 = vpack.c.b16 %v6086, %v6082
        %v6203 = vpack.c.b16 %v6087, %v6083
        %v6204 = vpack.c.b16 %v6088, %v6084
        %v6205 = vpack.c.b16 %v6089, %v6085
        %v6206 = vpack.c.b16 %v6094, %v6090
        %v6207 = vpack.c.b16 %v6095, %v6091
        %v6208 = vpack.c.b16 %v6096, %v6092
        %v6209 = vpack.c.b16 %v6097, %v6093
        %v6210 = vpack.c.b16 %v6102, %v6098
        %v6211 = vpack.c.b16 %v6103, %v6099
        %v6212 = vpack.c.b16 %v6104, %v6100
        %v6213 = vpack.c.b16 %v6105, %v6101
        %v6214 = vpack.c.b16 %v6110, %v6106
        %v6215 = vpack.c.b16 %v6111, %v6107
        %v6216 = vpack.c.b16 %v6112, %v6108
        %v6217 = vpack.c.b16 %v6113, %v6109
        %v6218 = vpack.c.b16 %v6118, %v6114
        %v6219 = vpack.c.b16 %v6119, %v6115
        %v6220 = vpack.c.b16 %v6120, %v6116
        %v6221 = vpack.c.b16 %v6121, %v6117
        %v6222 = vpack.c.b16 %v6126, %v6122
        %v6223 = vpack.c.b16 %v6127, %v6123
        %v6224 = vpack.c.b16 %v6128, %v6124
        %v6225 = vpack.c.b16 %v6129, %v6125
        %v6226 = vpack.c.b16 %v6134, %v6130
        %v6227 = vpack.c.b16 %v6135, %v6131
        %v6228 = vpack.c.b16 %v6136, %v6132
        %v6229 = vpack.c.b16 %v6137, %v6133
        %v6230 = vpack.c.b16 %v6142, %v6138
        %v6231 = vpack.c.b16 %v6143, %v6139
        %v6232 = vpack.c.b16 %v6144, %v6140
        %v6233 = vpack.c.b16 %v6145, %v6141
        %v6234 = vpack.c.b16 %v6150, %v6146
        %v6235 = vpack.c.b16 %v6151, %v6147
        %v6236 = vpack.c.b16 %v6152, %v6148
        %v6237 = vpack.c.b16 %v6153, %v6149
        %v6238 = vpack.c.b16 %v6158, %v6154
        %v6239 = vpack.c.b16 %v6159, %v6155
        %v6240 = vpack.c.b16 %v6160, %v6156
        %v6241 = vpack.c.b16 %v6161, %v6157
        %v6242 = vpack.c.b16 %v6166, %v6162
        %v6243 = vpack.c.b16 %v6167, %v6163
        %v6244 = vpack.c.b16 %v6168, %v6164
        %v6245 = vpack.c.b16 %v6169, %v6165
        %v6246 = vpack.c.b16 %v6174, %v6170
        %v6247 = vpack.c.b16 %v6175, %v6171
        %v6248 = vpack.c.b16 %v6176, %v6172
        %v6249 = vpack.c.b16 %v6177, %v6173
        %v6250 = vpack.c.b16 %v6182, %v6178
        %v6251 = vpack.c.b16 %v6183, %v6179
        %v6252 = vpack.c.b16 %v6184, %v6180
        %v6253 = vpack.c.b16 %v6185, %v6181
        %v6254 = vpack.c.b16 %v6190, %v6186
        %v6255 = vpack.c.b16 %v6191, %v6187
        %v6256 = vpack.c.b16 %v6192, %v6188
        %v6257 = vpack.c.b16 %v6193, %v6189
        %6322 = vmatprep.subr.bf16.mxu0 %v6195
        %6323 = vmatpush1.bf16.msra.mxu0 %v6194
        %6324 = vmatprep.subr.bf16.mxu0 %v6199
        %6325 = vmatpush1.bf16.msra.mxu0 %v6198
        %6326 = vmatprep.subr.bf16.mxu0 %v6203
        %6327 = vmatpush1.bf16.msra.mxu0 %v6202
        %6328 = vmatprep.subr.bf16.mxu0 %v6207
        %6329 = vmatpush1.bf16.msra.mxu0 %v6206
        %6330 = vmatprep.subr.bf16.mxu0 %v6211
        %6331 = vmatpush1.bf16.msra.mxu0 %v6210
        %6332 = vmatprep.subr.bf16.mxu0 %v6215
        %6333 = vmatpush1.bf16.msra.mxu0 %v6214
        %6334 = vmatprep.subr.bf16.mxu0 %v6219
        %6335 = vmatpush1.bf16.msra.mxu0 %v6218
        %6336 = vmatprep.subr.bf16.mxu0 %v6223
        %6337 = vmatpush1.bf16.msra.mxu0 %v6222
        %6338 = vmatprep.subr.bf16.mxu0 %v6227
        %6339 = vmatpush1.bf16.msra.mxu0 %v6226
        %6340 = vmatprep.subr.bf16.mxu0 %v6231
        %6341 = vmatpush1.bf16.msra.mxu0 %v6230
        %6342 = vmatprep.subr.bf16.mxu0 %v6235
        %6343 = vmatpush1.bf16.msra.mxu0 %v6234
        %6344 = vmatprep.subr.bf16.mxu0 %v6239
        %6345 = vmatpush1.bf16.msra.mxu0 %v6238
        %6346 = vmatprep.subr.bf16.mxu0 %v6243
        %6347 = vmatpush1.bf16.msra.mxu0 %v6242
        %6348 = vmatprep.subr.bf16.mxu0 %v6247
        %6349 = vmatpush1.bf16.msra.mxu0 %v6246
        %6350 = vmatprep.subr.bf16.mxu0 %v6251
        %6351 = vmatpush1.bf16.msra.mxu0 %v6250
        %6352 = vmatprep.subr.bf16.mxu0 %v6255
        %6353 = vmatpush1.bf16.msra.mxu0 %v6254
        %6354 = vmatprep.mubr.bf16.mxu0 %v5999
        %6355 = vmatmul.mubr.bf16.gmra.mrb[0].mxu0 %v5998
        %v6356 = vpop.f32.mrb[0].mxu0
        %v6357 = vadd.f32 0.0, %v6356
        %v6358 = vpop.f32.mrb[0].mxu0
        %v6359 = vadd.f32 0.0, %v6358
        %v6360 = vpop.f32.mrb[0].mxu0
        %v6361 = vpop.f32.mrb[0].mxu0
        %6362 = vdwg.mxu0
        %6363 = vmatprep.subr.bf16.mxu0 %v6197
        %6364 = vmatpush1.bf16.msra.mxu0 %v6196
        %6365 = vmatprep.subr.bf16.mxu0 %v6201
        %6366 = vmatpush1.bf16.msra.mxu0 %v6200
        %6367 = vmatprep.subr.bf16.mxu0 %v6205
        %6368 = vmatpush1.bf16.msra.mxu0 %v6204
        %6369 = vmatprep.subr.bf16.mxu0 %v6209
        %6370 = vmatpush1.bf16.msra.mxu0 %v6208
        %6371 = vmatprep.subr.bf16.mxu0 %v6213
        %6372 = vmatpush1.bf16.msra.mxu0 %v6212
        %6373 = vmatprep.subr.bf16.mxu0 %v6217
        %6374 = vmatpush1.bf16.msra.mxu0 %v6216
        %6375 = vmatprep.subr.bf16.mxu0 %v6221
        %6376 = vmatpush1.bf16.msra.mxu0 %v6220
        %6377 = vmatprep.subr.bf16.mxu0 %v6225
        %6378 = vmatpush1.bf16.msra.mxu0 %v6224
        %6379 = vmatprep.subr.bf16.mxu0 %v6229
        %6380 = vmatpush1.bf16.msra.mxu0 %v6228
        %6381 = vmatprep.subr.bf16.mxu0 %v6233
        %6382 = vmatpush1.bf16.msra.mxu0 %v6232
        %6383 = vmatprep.subr.bf16.mxu0 %v6237
        %6384 = vmatpush1.bf16.msra.mxu0 %v6236
        %6385 = vmatprep.subr.bf16.mxu0 %v6241
        %6386 = vmatpush1.bf16.msra.mxu0 %v6240
        %6387 = vmatprep.subr.bf16.mxu0 %v6245
        %6388 = vmatpush1.bf16.msra.mxu0 %v6244
        %6389 = vmatprep.subr.bf16.mxu0 %v6249
        %6390 = vmatpush1.bf16.msra.mxu0 %v6248
        %6391 = vmatprep.subr.bf16.mxu0 %v6253
        %6392 = vmatpush1.bf16.msra.mxu0 %v6252
        %6393 = vmatprep.subr.bf16.mxu0 %v6257
        %6394 = vmatpush1.bf16.msra.mxu0 %v6256
        %6395 = vmatprep.mubr.bf16.mxu0 %v5999
        %6396 = vmatmul.mubr.bf16.gmra.mrb[0].mxu0 %v5998
        %v6397 = vpop.f32.mrb[0].mxu0
        %v6398 = vadd.f32 0.0, %v6397
        %v6399 = vpop.f32.mrb[0].mxu0
        %v6400 = vadd.f32 0.0, %v6399
        %v6401 = vpop.f32.mrb[0].mxu0
        %v6402 = vpop.f32.mrb[0].mxu0
        %6403 = vdwg.mxu0
        %v6404 = vadd.f32 %v5921, %v6357
        %v6405 = vadd.f32 %v5922, %v6359
        %v6406 = vadd.f32 %v5923, %v6398
        %v6407 = vadd.f32 %v5924, %v6400
        %v6408 = vmax.f32 %v6404, 0.0
        %v6409 = vmax.f32 %v6405, 0.0
        %v6410 = vmax.f32 %v6406, 0.0
        %v6411 = vmax.f32 %v6407, 0.0
        %v6412 = vld [vmem:[%s12] sm:$0x1]
        %v6413 = vpack.c.bf16 %v6408, %v6408
        %v6414 = vpack.c.bf16 %v6409, %v6409
        %v6415 = vpack.c.bf16 %v6410, %v6410
        %v6416 = vpack.c.bf16 %v6411, %v6411
        %v6417 = vld [vmem:[%s11] sm:$0xf]
        %v6418 = vld [vmem:[%s11 + $0x4] sm:$0xf]
        %v6419 = vld [vmem:[%s11 + $0x8] sm:$0xf]
        %v6420 = vld [vmem:[%s11 + $0xc] sm:$0xf]
        %v6421 = vld [vmem:[%s11 + $0x10] sm:$0xf]
        %v6422 = vld [vmem:[%s11 + $0x14] sm:$0xf]
        %v6423 = vld [vmem:[%s11 + $0x18] sm:$0xf]
        %v6424 = vld [vmem:[%s11 + $0x1c] sm:$0xf]
        %v6425 = vld [vmem:[%s11 + $0x20] sm:$0xf]
        %v6426 = vld [vmem:[%s11 + $0x24] sm:$0xf]
        %v6427 = vld [vmem:[%s11 + $0x28] sm:$0xf]
        %v6428 = vld [vmem:[%s11 + $0x2c] sm:$0xf]
        %v6429 = vld [vmem:[%s11 + $0x30] sm:$0xf]
        %v6430 = vld [vmem:[%s11 + $0x34] sm:$0xf]
        %v6431 = vld [vmem:[%s11 + $0x38] sm:$0xf]
        %v6432 = vld [vmem:[%s11 + $0x3c] sm:$0xf]
        %v6433 = vld [vmem:[%s11 + $0x40] sm:$0xf]
        %v6434 = vld [vmem:[%s11 + $0x44] sm:$0xf]
        %v6435 = vld [vmem:[%s11 + $0x48] sm:$0xf]
        %v6436 = vld [vmem:[%s11 + $0x4c] sm:$0xf]
        %v6437 = vld [vmem:[%s11 + $0x50] sm:$0xf]
        %v6438 = vld [vmem:[%s11 + $0x54] sm:$0xf]
        %v6439 = vld [vmem:[%s11 + $0x58] sm:$0xf]
        %v6440 = vld [vmem:[%s11 + $0x5c] sm:$0xf]
        %v6441 = vld [vmem:[%s11 + $0x60] sm:$0xf]
        %v6442 = vld [vmem:[%s11 + $0x64] sm:$0xf]
        %v6443 = vld [vmem:[%s11 + $0x68] sm:$0xf]
        %v6444 = vld [vmem:[%s11 + $0x6c] sm:$0xf]
        %v6445 = vld [vmem:[%s11 + $0x70] sm:$0xf]
        %v6446 = vld [vmem:[%s11 + $0x74] sm:$0xf]
        %v6447 = vld [vmem:[%s11 + $0x78] sm:$0xf]
        %v6448 = vld [vmem:[%s11 + $0x7c] sm:$0xf]
        %v6449 = vld [vmem:[%s11 + $0x80] sm:$0xf]
        %v6450 = vld [vmem:[%s11 + $0x84] sm:$0xf]
        %v6451 = vld [vmem:[%s11 + $0x88] sm:$0xf]
        %v6452 = vld [vmem:[%s11 + $0x8c] sm:$0xf]
        %v6453 = vld [vmem:[%s11 + $0x90] sm:$0xf]
        %v6454 = vld [vmem:[%s11 + $0x94] sm:$0xf]
        %v6455 = vld [vmem:[%s11 + $0x98] sm:$0xf]
        %v6456 = vld [vmem:[%s11 + $0x9c] sm:$0xf]
        %v6457 = vld [vmem:[%s11 + $0xa0] sm:$0xf]
        %v6458 = vld [vmem:[%s11 + $0xa4] sm:$0xf]
        %v6459 = vld [vmem:[%s11 + $0xa8] sm:$0xf]
        %v6460 = vld [vmem:[%s11 + $0xac] sm:$0xf]
        %v6461 = vld [vmem:[%s11 + $0xb0] sm:$0xf]
        %v6462 = vld [vmem:[%s11 + $0xb4] sm:$0xf]
        %v6463 = vld [vmem:[%s11 + $0xb8] sm:$0xf]
        %v6464 = vld [vmem:[%s11 + $0xbc] sm:$0xf]
        %v6465 = vld [vmem:[%s11 + $0xc0] sm:$0xf]
        %v6466 = vld [vmem:[%s11 + $0xc4] sm:$0xf]
        %v6467 = vld [vmem:[%s11 + $0xc8] sm:$0xf]
        %v6468 = vld [vmem:[%s11 + $0xcc] sm:$0xf]
        %v6469 = vld [vmem:[%s11 + $0xd0] sm:$0xf]
        %v6470 = vld [vmem:[%s11 + $0xd4] sm:$0xf]
        %v6471 = vld [vmem:[%s11 + $0xd8] sm:$0xf]
        %v6472 = vld [vmem:[%s11 + $0xdc] sm:$0xf]
        %v6473 = vld [vmem:[%s11 + $0xe0] sm:$0xf]
        %v6474 = vld [vmem:[%s11 + $0xe4] sm:$0xf]
        %v6475 = vld [vmem:[%s11 + $0xe8] sm:$0xf]
        %v6476 = vld [vmem:[%s11 + $0xec] sm:$0xf]
        %v6477 = vld [vmem:[%s11 + $0xf0] sm:$0xf]
        %v6478 = vld [vmem:[%s11 + $0xf4] sm:$0xf]
        %v6479 = vld [vmem:[%s11 + $0xf8] sm:$0xf]
        %v6480 = vld [vmem:[%s11 + $0xfc] sm:$0xf]
        %v6545 = vunpack.c.l.b16 %v6417
        %v6546 = vunpack.c.l.b16 %v6418
        %v6547 = vunpack.c.l.b16 %v6419
        %v6548 = vunpack.c.l.b16 %v6420
        %v6549 = vunpack.c.l.b16 %v6421
        %v6550 = vunpack.c.l.b16 %v6422
        %v6551 = vunpack.c.l.b16 %v6423
        %v6552 = vunpack.c.l.b16 %v6424
        %v6553 = vunpack.c.l.b16 %v6425
        %v6554 = vunpack.c.l.b16 %v6426
        %v6555 = vunpack.c.l.b16 %v6427
        %v6556 = vunpack.c.l.b16 %v6428
        %v6557 = vunpack.c.l.b16 %v6429
        %v6558 = vunpack.c.l.b16 %v6430
        %v6559 = vunpack.c.l.b16 %v6431
        %v6560 = vunpack.c.l.b16 %v6432
        %v6561 = vunpack.c.l.b16 %v6433
        %v6562 = vunpack.c.l.b16 %v6434
        %v6563 = vunpack.c.l.b16 %v6435
        %v6564 = vunpack.c.l.b16 %v6436
        %v6565 = vunpack.c.l.b16 %v6437
        %v6566 = vunpack.c.l.b16 %v6438
        %v6567 = vunpack.c.l.b16 %v6439
        %v6568 = vunpack.c.l.b16 %v6440
        %v6569 = vunpack.c.l.b16 %v6441
        %v6570 = vunpack.c.l.b16 %v6442
        %v6571 = vunpack.c.l.b16 %v6443
        %v6572 = vunpack.c.l.b16 %v6444
        %v6573 = vunpack.c.l.b16 %v6445
        %v6574 = vunpack.c.l.b16 %v6446
        %v6575 = vunpack.c.l.b16 %v6447
        %v6576 = vunpack.c.l.b16 %v6448
        %v6577 = vunpack.c.l.b16 %v6449
        %v6578 = vunpack.c.l.b16 %v6450
        %v6579 = vunpack.c.l.b16 %v6451
        %v6580 = vunpack.c.l.b16 %v6452
        %v6581 = vunpack.c.l.b16 %v6453
        %v6582 = vunpack.c.l.b16 %v6454
        %v6583 = vunpack.c.l.b16 %v6455
        %v6584 = vunpack.c.l.b16 %v6456
        %v6585 = vunpack.c.l.b16 %v6457
        %v6586 = vunpack.c.l.b16 %v6458
        %v6587 = vunpack.c.l.b16 %v6459
        %v6588 = vunpack.c.l.b16 %v6460
        %v6589 = vunpack.c.l.b16 %v6461
        %v6590 = vunpack.c.l.b16 %v6462
        %v6591 = vunpack.c.l.b16 %v6463
        %v6592 = vunpack.c.l.b16 %v6464
        %v6593 = vunpack.c.l.b16 %v6465
        %v6594 = vunpack.c.l.b16 %v6466
        %v6595 = vunpack.c.l.b16 %v6467
        %v6596 = vunpack.c.l.b16 %v6468
        %v6597 = vunpack.c.l.b16 %v6469
        %v6598 = vunpack.c.l.b16 %v6470
        %v6599 = vunpack.c.l.b16 %v6471
        %v6600 = vunpack.c.l.b16 %v6472
        %v6601 = vunpack.c.l.b16 %v6473
        %v6602 = vunpack.c.l.b16 %v6474
        %v6603 = vunpack.c.l.b16 %v6475
        %v6604 = vunpack.c.l.b16 %v6476
        %v6605 = vunpack.c.l.b16 %v6477
        %v6606 = vunpack.c.l.b16 %v6478
        %v6607 = vunpack.c.l.b16 %v6479
        %v6608 = vunpack.c.l.b16 %v6480
        %v6609 = vpack.c.b16 %v6546, %v6545
        %v6610 = vpack.c.b16 %v6548, %v6547
        %v6611 = vpack.c.b16 %v6550, %v6549
        %v6612 = vpack.c.b16 %v6552, %v6551
        %v6613 = vpack.c.b16 %v6554, %v6553
        %v6614 = vpack.c.b16 %v6556, %v6555
        %v6615 = vpack.c.b16 %v6558, %v6557
        %v6616 = vpack.c.b16 %v6560, %v6559
        %v6617 = vpack.c.b16 %v6562, %v6561
        %v6618 = vpack.c.b16 %v6564, %v6563
        %v6619 = vpack.c.b16 %v6566, %v6565
        %v6620 = vpack.c.b16 %v6568, %v6567
        %v6621 = vpack.c.b16 %v6570, %v6569
        %v6622 = vpack.c.b16 %v6572, %v6571
        %v6623 = vpack.c.b16 %v6574, %v6573
        %v6624 = vpack.c.b16 %v6576, %v6575
        %v6625 = vpack.c.b16 %v6578, %v6577
        %v6626 = vpack.c.b16 %v6580, %v6579
        %v6627 = vpack.c.b16 %v6582, %v6581
        %v6628 = vpack.c.b16 %v6584, %v6583
        %v6629 = vpack.c.b16 %v6586, %v6585
        %v6630 = vpack.c.b16 %v6588, %v6587
        %v6631 = vpack.c.b16 %v6590, %v6589
        %v6632 = vpack.c.b16 %v6592, %v6591
        %v6633 = vpack.c.b16 %v6594, %v6593
        %v6634 = vpack.c.b16 %v6596, %v6595
        %v6635 = vpack.c.b16 %v6598, %v6597
        %v6636 = vpack.c.b16 %v6600, %v6599
        %v6637 = vpack.c.b16 %v6602, %v6601
        %v6638 = vpack.c.b16 %v6604, %v6603
        %v6639 = vpack.c.b16 %v6606, %v6605
        %v6640 = vpack.c.b16 %v6608, %v6607
        %6673 = vmatprep.subr.bf16.mxu0 0
        %6674 = vmatpush1.bf16.msra.mxu0 %v6609
        %6675 = vmatprep.subr.bf16.mxu0 0
        %6676 = vmatpush1.bf16.msra.mxu0 %v6610
        %6677 = vmatprep.subr.bf16.mxu0 0
        %6678 = vmatpush1.bf16.msra.mxu0 %v6611
        %6679 = vmatprep.subr.bf16.mxu0 0
        %6680 = vmatpush1.bf16.msra.mxu0 %v6612
        %6681 = vmatprep.subr.bf16.mxu0 0
        %6682 = vmatpush1.bf16.msra.mxu0 %v6613
        %6683 = vmatprep.subr.bf16.mxu0 0
        %6684 = vmatpush1.bf16.msra.mxu0 %v6614
        %6685 = vmatprep.subr.bf16.mxu0 0
        %6686 = vmatpush1.bf16.msra.mxu0 %v6615
        %6687 = vmatprep.subr.bf16.mxu0 0
        %6688 = vmatpush1.bf16.msra.mxu0 %v6616
        %6689 = vmatprep.subr.bf16.mxu0 0
        %6690 = vmatpush1.bf16.msra.mxu0 %v6617
        %6691 = vmatprep.subr.bf16.mxu0 0
        %6692 = vmatpush1.bf16.msra.mxu0 %v6618
        %6693 = vmatprep.subr.bf16.mxu0 0
        %6694 = vmatpush1.bf16.msra.mxu0 %v6619
        %6695 = vmatprep.subr.bf16.mxu0 0
        %6696 = vmatpush1.bf16.msra.mxu0 %v6620
        %6697 = vmatprep.subr.bf16.mxu0 0
        %6698 = vmatpush1.bf16.msra.mxu0 %v6621
        %6699 = vmatprep.subr.bf16.mxu0 0
        %6700 = vmatpush1.bf16.msra.mxu0 %v6622
        %6701 = vmatprep.subr.bf16.mxu0 0
        %6702 = vmatpush1.bf16.msra.mxu0 %v6623
        %6703 = vmatprep.subr.bf16.mxu0 0
        %6704 = vmatpush1.bf16.msra.mxu0 %v6624
        %6705 = vmatprep.mubr.bf16.mxu0 %v6414
        %6706 = vmatmul.mubr.bf16.gmra.mrb[0].mxu0 %v6413
        %v6707 = vpop.f32.mrb[0].mxu0
        %v6708 = vadd.f32 0.0, %v6707
        %v6709 = vpop.f32.mrb[0].mxu0
        %v6710 = vpop.f32.mrb[0].mxu0
        %v6711 = vpop.f32.mrb[0].mxu0
        %6712 = vdwg.mxu0
        %6713 = vmatprep.subr.bf16.mxu0 0
        %6714 = vmatpush1.bf16.msra.mxu0 %v6625
        %6715 = vmatprep.subr.bf16.mxu0 0
        %6716 = vmatpush1.bf16.msra.mxu0 %v6626
        %6717 = vmatprep.subr.bf16.mxu0 0
        %6718 = vmatpush1.bf16.msra.mxu0 %v6627
        %6719 = vmatprep.subr.bf16.mxu0 0
        %6720 = vmatpush1.bf16.msra.mxu0 %v6628
        %6721 = vmatprep.subr.bf16.mxu0 0
        %6722 = vmatpush1.bf16.msra.mxu0 %v6629
        %6723 = vmatprep.subr.bf16.mxu0 0
        %6724 = vmatpush1.bf16.msra.mxu0 %v6630
        %6725 = vmatprep.subr.bf16.mxu0 0
        %6726 = vmatpush1.bf16.msra.mxu0 %v6631
        %6727 = vmatprep.subr.bf16.mxu0 0
        %6728 = vmatpush1.bf16.msra.mxu0 %v6632
        %6729 = vmatprep.subr.bf16.mxu0 0
        %6730 = vmatpush1.bf16.msra.mxu0 %v6633
        %6731 = vmatprep.subr.bf16.mxu0 0
        %6732 = vmatpush1.bf16.msra.mxu0 %v6634
        %6733 = vmatprep.subr.bf16.mxu0 0
        %6734 = vmatpush1.bf16.msra.mxu0 %v6635
        %6735 = vmatprep.subr.bf16.mxu0 0
        %6736 = vmatpush1.bf16.msra.mxu0 %v6636
        %6737 = vmatprep.subr.bf16.mxu0 0
        %6738 = vmatpush1.bf16.msra.mxu0 %v6637
        %6739 = vmatprep.subr.bf16.mxu0 0
        %6740 = vmatpush1.bf16.msra.mxu0 %v6638
        %6741 = vmatprep.subr.bf16.mxu0 0
        %6742 = vmatpush1.bf16.msra.mxu0 %v6639
        %6743 = vmatprep.subr.bf16.mxu0 0
        %6744 = vmatpush1.bf16.msra.mxu0 %v6640
        %6745 = vmatprep.mubr.bf16.mxu0 %v6416
        %6746 = vmatmul.mubr.bf16.gmra.mrb[0].mxu0 %v6415
        %v6747 = vpop.f32.mrb[0].mxu0
        %v6748 = vadd.f32 %v6708, %v6747
        %v6749 = vpop.f32.mrb[0].mxu0
        %v6750 = vpop.f32.mrb[0].mxu0
        %v6751 = vpop.f32.mrb[0].mxu0
        %6752 = vdwg.mxu0
        %v6753 = vadd.f32 %v6412, %v6748
        %s6754 = scalar_lea.vmem %s11, 256
        %v6755 = vld [vmem:[%s6754] sm:$0xf]
        %v6756 = vld [vmem:[%s6754 + $0x4] sm:$0xf]
        %v6757 = vld [vmem:[%s6754 + $0x8] sm:$0xf]
        %v6758 = vld [vmem:[%s6754 + $0xc] sm:$0xf]
        %v6759 = vld [vmem:[%s6754 + $0x10] sm:$0xf]
        %v6760 = vld [vmem:[%s6754 + $0x14] sm:$0xf]
        %v6761 = vld [vmem:[%s6754 + $0x18] sm:$0xf]
        %v6762 = vld [vmem:[%s6754 + $0x1c] sm:$0xf]
        %v6763 = vld [vmem:[%s6754 + $0x20] sm:$0xf]
        %v6764 = vld [vmem:[%s6754 + $0x24] sm:$0xf]
        %v6765 = vld [vmem:[%s6754 + $0x28] sm:$0xf]
        %v6766 = vld [vmem:[%s6754 + $0x2c] sm:$0xf]
        %v6767 = vld [vmem:[%s6754 + $0x30] sm:$0xf]
        %v6768 = vld [vmem:[%s6754 + $0x34] sm:$0xf]
        %v6769 = vld [vmem:[%s6754 + $0x38] sm:$0xf]
        %v6770 = vld [vmem:[%s6754 + $0x3c] sm:$0xf]
        %v6771 = vld [vmem:[%s6754 + $0x40] sm:$0xf]
        %v6772 = vld [vmem:[%s6754 + $0x44] sm:$0xf]
        %v6773 = vld [vmem:[%s6754 + $0x48] sm:$0xf]
        %v6774 = vld [vmem:[%s6754 + $0x4c] sm:$0xf]
        %v6775 = vld [vmem:[%s6754 + $0x50] sm:$0xf]
        %v6776 = vld [vmem:[%s6754 + $0x54] sm:$0xf]
        %v6777 = vld [vmem:[%s6754 + $0x58] sm:$0xf]
        %v6778 = vld [vmem:[%s6754 + $0x5c] sm:$0xf]
        %v6779 = vld [vmem:[%s6754 + $0x60] sm:$0xf]
        %v6780 = vld [vmem:[%s6754 + $0x64] sm:$0xf]
        %v6781 = vld [vmem:[%s6754 + $0x68] sm:$0xf]
        %v6782 = vld [vmem:[%s6754 + $0x6c] sm:$0xf]
        %v6783 = vld [vmem:[%s6754 + $0x70] sm:$0xf]
        %v6784 = vld [vmem:[%s6754 + $0x74] sm:$0xf]
        %v6785 = vld [vmem:[%s6754 + $0x78] sm:$0xf]
        %v6786 = vld [vmem:[%s6754 + $0x7c] sm:$0xf]
        %v6787 = vld [vmem:[%s6754 + $0x80] sm:$0xf]
        %v6788 = vld [vmem:[%s6754 + $0x84] sm:$0xf]
        %v6789 = vld [vmem:[%s6754 + $0x88] sm:$0xf]
        %v6790 = vld [vmem:[%s6754 + $0x8c] sm:$0xf]
        %v6791 = vld [vmem:[%s6754 + $0x90] sm:$0xf]
        %v6792 = vld [vmem:[%s6754 + $0x94] sm:$0xf]
        %v6793 = vld [vmem:[%s6754 + $0x98] sm:$0xf]
        %v6794 = vld [vmem:[%s6754 + $0x9c] sm:$0xf]
        %v6795 = vld [vmem:[%s6754 + $0xa0] sm:$0xf]
        %v6796 = vld [vmem:[%s6754 + $0xa4] sm:$0xf]
        %v6797 = vld [vmem:[%s6754 + $0xa8] sm:$0xf]
        %v6798 = vld [vmem:[%s6754 + $0xac] sm:$0xf]
        %v6799 = vld [vmem:[%s6754 + $0xb0] sm:$0xf]
        %v6800 = vld [vmem:[%s6754 + $0xb4] sm:$0xf]
        %v6801 = vld [vmem:[%s6754 + $0xb8] sm:$0xf]
        %v6802 = vld [vmem:[%s6754 + $0xbc] sm:$0xf]
        %v6803 = vld [vmem:[%s6754 + $0xc0] sm:$0xf]
        %v6804 = vld [vmem:[%s6754 + $0xc4] sm:$0xf]
        %v6805 = vld [vmem:[%s6754 + $0xc8] sm:$0xf]
        %v6806 = vld [vmem:[%s6754 + $0xcc] sm:$0xf]
        %v6807 = vld [vmem:[%s6754 + $0xd0] sm:$0xf]
        %v6808 = vld [vmem:[%s6754 + $0xd4] sm:$0xf]
        %v6809 = vld [vmem:[%s6754 + $0xd8] sm:$0xf]
        %v6810 = vld [vmem:[%s6754 + $0xdc] sm:$0xf]
        %v6811 = vld [vmem:[%s6754 + $0xe0] sm:$0xf]
        %v6812 = vld [vmem:[%s6754 + $0xe4] sm:$0xf]
        %v6813 = vld [vmem:[%s6754 + $0xe8] sm:$0xf]
        %v6814 = vld [vmem:[%s6754 + $0xec] sm:$0xf]
        %v6815 = vld [vmem:[%s6754 + $0xf0] sm:$0xf]
        %v6816 = vld [vmem:[%s6754 + $0xf4] sm:$0xf]
        %v6817 = vld [vmem:[%s6754 + $0xf8] sm:$0xf]
        %v6818 = vld [vmem:[%s6754 + $0xfc] sm:$0xf]
        %v6820 = vshrl.u32 %v6413, 16
        %v6823 = vshrl.u32 %v6414, 16
        %v6826 = vshrl.u32 %v6415, 16
        %v6829 = vshrl.u32 %v6416, 16
        %v6899 = vunpack.c.l.b16 %v6755
        %v6900 = vunpack.c.l.b16 %v6756
        %v6901 = vunpack.c.l.b16 %v6757
        %v6902 = vunpack.c.l.b16 %v6758
        %v6903 = vunpack.c.l.b16 %v6759
        %v6904 = vunpack.c.l.b16 %v6760
        %v6905 = vunpack.c.l.b16 %v6761
        %v6906 = vunpack.c.l.b16 %v6762
        %v6907 = vunpack.c.l.b16 %v6763
        %v6908 = vunpack.c.l.b16 %v6764
        %v6909 = vunpack.c.l.b16 %v6765
        %v6910 = vunpack.c.l.b16 %v6766
        %v6911 = vunpack.c.l.b16 %v6767
        %v6912 = vunpack.c.l.b16 %v6768
        %v6913 = vunpack.c.l.b16 %v6769
        %v6914 = vunpack.c.l.b16 %v6770
        %v6915 = vunpack.c.l.b16 %v6771
        %v6916 = vunpack.c.l.b16 %v6772
        %v6917 = vunpack.c.l.b16 %v6773
        %v6918 = vunpack.c.l.b16 %v6774
        %v6919 = vunpack.c.l.b16 %v6775
        %v6920 = vunpack.c.l.b16 %v6776
        %v6921 = vunpack.c.l.b16 %v6777
        %v6922 = vunpack.c.l.b16 %v6778
        %v6923 = vunpack.c.l.b16 %v6779
        %v6924 = vunpack.c.l.b16 %v6780
        %v6925 = vunpack.c.l.b16 %v6781
        %v6926 = vunpack.c.l.b16 %v6782
        %v6927 = vunpack.c.l.b16 %v6783
        %v6928 = vunpack.c.l.b16 %v6784
        %v6929 = vunpack.c.l.b16 %v6785
        %v6930 = vunpack.c.l.b16 %v6786
        %v6931 = vunpack.c.l.b16 %v6787
        %v6932 = vunpack.c.l.b16 %v6788
        %v6933 = vunpack.c.l.b16 %v6789
        %v6934 = vunpack.c.l.b16 %v6790
        %v6935 = vunpack.c.l.b16 %v6791
        %v6936 = vunpack.c.l.b16 %v6792
        %v6937 = vunpack.c.l.b16 %v6793
        %v6938 = vunpack.c.l.b16 %v6794
        %v6939 = vunpack.c.l.b16 %v6795
        %v6940 = vunpack.c.l.b16 %v6796
        %v6941 = vunpack.c.l.b16 %v6797
        %v6942 = vunpack.c.l.b16 %v6798
        %v6943 = vunpack.c.l.b16 %v6799
        %v6944 = vunpack.c.l.b16 %v6800
        %v6945 = vunpack.c.l.b16 %v6801
        %v6946 = vunpack.c.l.b16 %v6802
        %v6947 = vunpack.c.l.b16 %v6803
        %v6948 = vunpack.c.l.b16 %v6804
        %v6949 = vunpack.c.l.b16 %v6805
        %v6950 = vunpack.c.l.b16 %v6806
        %v6951 = vunpack.c.l.b16 %v6807
        %v6952 = vunpack.c.l.b16 %v6808
        %v6953 = vunpack.c.l.b16 %v6809
        %v6954 = vunpack.c.l.b16 %v6810
        %v6955 = vunpack.c.l.b16 %v6811
        %v6956 = vunpack.c.l.b16 %v6812
        %v6957 = vunpack.c.l.b16 %v6813
        %v6958 = vunpack.c.l.b16 %v6814
        %v6959 = vunpack.c.l.b16 %v6815
        %v6960 = vunpack.c.l.b16 %v6816
        %v6961 = vunpack.c.l.b16 %v6817
        %v6962 = vunpack.c.l.b16 %v6818
        %v6963 = vpack.c.b16 %v6900, %v6899
        %v6964 = vpack.c.b16 %v6902, %v6901
        %v6965 = vpack.c.b16 %v6904, %v6903
        %v6966 = vpack.c.b16 %v6906, %v6905
        %v6967 = vpack.c.b16 %v6908, %v6907
        %v6968 = vpack.c.b16 %v6910, %v6909
        %v6969 = vpack.c.b16 %v6912, %v6911
        %v6970 = vpack.c.b16 %v6914, %v6913
        %v6971 = vpack.c.b16 %v6916, %v6915
        %v6972 = vpack.c.b16 %v6918, %v6917
        %v6973 = vpack.c.b16 %v6920, %v6919
        %v6974 = vpack.c.b16 %v6922, %v6921
        %v6975 = vpack.c.b16 %v6924, %v6923
        %v6976 = vpack.c.b16 %v6926, %v6925
        %v6977 = vpack.c.b16 %v6928, %v6927
        %v6978 = vpack.c.b16 %v6930, %v6929
        %v6979 = vpack.c.b16 %v6932, %v6931
        %v6980 = vpack.c.b16 %v6934, %v6933
        %v6981 = vpack.c.b16 %v6936, %v6935
        %v6982 = vpack.c.b16 %v6938, %v6937
        %v6983 = vpack.c.b16 %v6940, %v6939
        %v6984 = vpack.c.b16 %v6942, %v6941
        %v6985 = vpack.c.b16 %v6944, %v6943
        %v6986 = vpack.c.b16 %v6946, %v6945
        %v6987 = vpack.c.b16 %v6948, %v6947
        %v6988 = vpack.c.b16 %v6950, %v6949
        %v6989 = vpack.c.b16 %v6952, %v6951
        %v6990 = vpack.c.b16 %v6954, %v6953
        %v6991 = vpack.c.b16 %v6956, %v6955
        %v6992 = vpack.c.b16 %v6958, %v6957
        %v6993 = vpack.c.b16 %v6960, %v6959
        %v6994 = vpack.c.b16 %v6962, %v6961
        %7027 = vmatprep.subr.bf16.mxu0 0
        %7028 = vmatpush1.bf16.msra.mxu0 %v6963
        %7029 = vmatprep.subr.bf16.mxu0 0
        %7030 = vmatpush1.bf16.msra.mxu0 %v6964
        %7031 = vmatprep.subr.bf16.mxu0 0
        %7032 = vmatpush1.bf16.msra.mxu0 %v6965
        %7033 = vmatprep.subr.bf16.mxu0 0
        %7034 = vmatpush1.bf16.msra.mxu0 %v6966
        %7035 = vmatprep.subr.bf16.mxu0 0
        %7036 = vmatpush1.bf16.msra.mxu0 %v6967
        %7037 = vmatprep.subr.bf16.mxu0 0
        %7038 = vmatpush1.bf16.msra.mxu0 %v6968
        %7039 = vmatprep.subr.bf16.mxu0 0
        %7040 = vmatpush1.bf16.msra.mxu0 %v6969
        %7041 = vmatprep.subr.bf16.mxu0 0
        %7042 = vmatpush1.bf16.msra.mxu0 %v6970
        %7043 = vmatprep.subr.bf16.mxu0 0
        %7044 = vmatpush1.bf16.msra.mxu0 %v6971
        %7045 = vmatprep.subr.bf16.mxu0 0
        %7046 = vmatpush1.bf16.msra.mxu0 %v6972
        %7047 = vmatprep.subr.bf16.mxu0 0
        %7048 = vmatpush1.bf16.msra.mxu0 %v6973
        %7049 = vmatprep.subr.bf16.mxu0 0
        %7050 = vmatpush1.bf16.msra.mxu0 %v6974
        %7051 = vmatprep.subr.bf16.mxu0 0
        %7052 = vmatpush1.bf16.msra.mxu0 %v6975
        %7053 = vmatprep.subr.bf16.mxu0 0
        %7054 = vmatpush1.bf16.msra.mxu0 %v6976
        %7055 = vmatprep.subr.bf16.mxu0 0
        %7056 = vmatpush1.bf16.msra.mxu0 %v6977
        %7057 = vmatprep.subr.bf16.mxu0 0
        %7058 = vmatpush1.bf16.msra.mxu0 %v6978
        %7059 = vmatprep.mubr.bf16.mxu0 %v6823
        %7060 = vmatmul.mubr.bf16.gmra.mrb[0].mxu0 %v6820
        %v7061 = vpop.f32.mrb[0].mxu0
        %v7062 = vadd.f32 0.0, %v7061
        %v7063 = vpop.f32.mrb[0].mxu0
        %v7064 = vpop.f32.mrb[0].mxu0
        %v7065 = vpop.f32.mrb[0].mxu0
        %7066 = vdwg.mxu0
        %7067 = vmatprep.subr.bf16.mxu0 0
        %7068 = vmatpush1.bf16.msra.mxu0 %v6979
        %7069 = vmatprep.subr.bf16.mxu0 0
        %7070 = vmatpush1.bf16.msra.mxu0 %v6980
        %7071 = vmatprep.subr.bf16.mxu0 0
        %7072 = vmatpush1.bf16.msra.mxu0 %v6981
        %7073 = vmatprep.subr.bf16.mxu0 0
        %7074 = vmatpush1.bf16.msra.mxu0 %v6982
        %7075 = vmatprep.subr.bf16.mxu0 0
        %7076 = vmatpush1.bf16.msra.mxu0 %v6983
        %7077 = vmatprep.subr.bf16.mxu0 0
        %7078 = vmatpush1.bf16.msra.mxu0 %v6984
        %7079 = vmatprep.subr.bf16.mxu0 0
        %7080 = vmatpush1.bf16.msra.mxu0 %v6985
        %7081 = vmatprep.subr.bf16.mxu0 0
        %7082 = vmatpush1.bf16.msra.mxu0 %v6986
        %7083 = vmatprep.subr.bf16.mxu0 0
        %7084 = vmatpush1.bf16.msra.mxu0 %v6987
        %7085 = vmatprep.subr.bf16.mxu0 0
        %7086 = vmatpush1.bf16.msra.mxu0 %v6988
        %7087 = vmatprep.subr.bf16.mxu0 0
        %7088 = vmatpush1.bf16.msra.mxu0 %v6989
        %7089 = vmatprep.subr.bf16.mxu0 0
        %7090 = vmatpush1.bf16.msra.mxu0 %v6990
        %7091 = vmatprep.subr.bf16.mxu0 0
        %7092 = vmatpush1.bf16.msra.mxu0 %v6991
        %7093 = vmatprep.subr.bf16.mxu0 0
        %7094 = vmatpush1.bf16.msra.mxu0 %v6992
        %7095 = vmatprep.subr.bf16.mxu0 0
        %7096 = vmatpush1.bf16.msra.mxu0 %v6993
        %7097 = vmatprep.subr.bf16.mxu0 0
        %7098 = vmatpush1.bf16.msra.mxu0 %v6994
        %7099 = vmatprep.mubr.bf16.mxu0 %v6829
        %7100 = vmatmul.mubr.bf16.gmra.mrb[0].mxu0 %v6826
        %v7101 = vpop.f32.mrb[0].mxu0
        %v7102 = vadd.f32 %v7062, %v7101
        %v7103 = vpop.f32.mrb[0].mxu0
        %v7104 = vpop.f32.mrb[0].mxu0
        %v7105 = vpop.f32.mrb[0].mxu0
        %7106 = vdwg.mxu0
        %v7107 = vadd.f32 %v6753, %v7102
        %s7108 = scalar_lea.vmem %s11, 512
        %v7109 = vld [vmem:[%s7108] sm:$0xf]
        %v7110 = vld [vmem:[%s7108 + $0x4] sm:$0xf]
        %v7111 = vld [vmem:[%s7108 + $0x8] sm:$0xf]
        %v7112 = vld [vmem:[%s7108 + $0xc] sm:$0xf]
        %v7113 = vld [vmem:[%s7108 + $0x10] sm:$0xf]
        %v7114 = vld [vmem:[%s7108 + $0x14] sm:$0xf]
        %v7115 = vld [vmem:[%s7108 + $0x18] sm:$0xf]
        %v7116 = vld [vmem:[%s7108 + $0x1c] sm:$0xf]
        %v7117 = vld [vmem:[%s7108 + $0x20] sm:$0xf]
        %v7118 = vld [vmem:[%s7108 + $0x24] sm:$0xf]
        %v7119 = vld [vmem:[%s7108 + $0x28] sm:$0xf]
        %v7120 = vld [vmem:[%s7108 + $0x2c] sm:$0xf]
        %v7121 = vld [vmem:[%s7108 + $0x30] sm:$0xf]
        %v7122 = vld [vmem:[%s7108 + $0x34] sm:$0xf]
        %v7123 = vld [vmem:[%s7108 + $0x38] sm:$0xf]
        %v7124 = vld [vmem:[%s7108 + $0x3c] sm:$0xf]
        %v7125 = vld [vmem:[%s7108 + $0x40] sm:$0xf]
        %v7126 = vld [vmem:[%s7108 + $0x44] sm:$0xf]
        %v7127 = vld [vmem:[%s7108 + $0x48] sm:$0xf]
        %v7128 = vld [vmem:[%s7108 + $0x4c] sm:$0xf]
        %v7129 = vld [vmem:[%s7108 + $0x50] sm:$0xf]
        %v7130 = vld [vmem:[%s7108 + $0x54] sm:$0xf]
        %v7131 = vld [vmem:[%s7108 + $0x58] sm:$0xf]
        %v7132 = vld [vmem:[%s7108 + $0x5c] sm:$0xf]
        %v7133 = vld [vmem:[%s7108 + $0x60] sm:$0xf]
        %v7134 = vld [vmem:[%s7108 + $0x64] sm:$0xf]
        %v7135 = vld [vmem:[%s7108 + $0x68] sm:$0xf]
        %v7136 = vld [vmem:[%s7108 + $0x6c] sm:$0xf]
        %v7137 = vld [vmem:[%s7108 + $0x70] sm:$0xf]
        %v7138 = vld [vmem:[%s7108 + $0x74] sm:$0xf]
        %v7139 = vld [vmem:[%s7108 + $0x78] sm:$0xf]
        %v7140 = vld [vmem:[%s7108 + $0x7c] sm:$0xf]
        %v7141 = vld [vmem:[%s7108 + $0x80] sm:$0xf]
        %v7142 = vld [vmem:[%s7108 + $0x84] sm:$0xf]
        %v7143 = vld [vmem:[%s7108 + $0x88] sm:$0xf]
        %v7144 = vld [vmem:[%s7108 + $0x8c] sm:$0xf]
        %v7145 = vld [vmem:[%s7108 + $0x90] sm:$0xf]
        %v7146 = vld [vmem:[%s7108 + $0x94] sm:$0xf]
        %v7147 = vld [vmem:[%s7108 + $0x98] sm:$0xf]
        %v7148 = vld [vmem:[%s7108 + $0x9c] sm:$0xf]
        %v7149 = vld [vmem:[%s7108 + $0xa0] sm:$0xf]
        %v7150 = vld [vmem:[%s7108 + $0xa4] sm:$0xf]
        %v7151 = vld [vmem:[%s7108 + $0xa8] sm:$0xf]
        %v7152 = vld [vmem:[%s7108 + $0xac] sm:$0xf]
        %v7153 = vld [vmem:[%s7108 + $0xb0] sm:$0xf]
        %v7154 = vld [vmem:[%s7108 + $0xb4] sm:$0xf]
        %v7155 = vld [vmem:[%s7108 + $0xb8] sm:$0xf]
        %v7156 = vld [vmem:[%s7108 + $0xbc] sm:$0xf]
        %v7157 = vld [vmem:[%s7108 + $0xc0] sm:$0xf]
        %v7158 = vld [vmem:[%s7108 + $0xc4] sm:$0xf]
        %v7159 = vld [vmem:[%s7108 + $0xc8] sm:$0xf]
        %v7160 = vld [vmem:[%s7108 + $0xcc] sm:$0xf]
        %v7161 = vld [vmem:[%s7108 + $0xd0] sm:$0xf]
        %v7162 = vld [vmem:[%s7108 + $0xd4] sm:$0xf]
        %v7163 = vld [vmem:[%s7108 + $0xd8] sm:$0xf]
        %v7164 = vld [vmem:[%s7108 + $0xdc] sm:$0xf]
        %v7165 = vld [vmem:[%s7108 + $0xe0] sm:$0xf]
        %v7166 = vld [vmem:[%s7108 + $0xe4] sm:$0xf]
        %v7167 = vld [vmem:[%s7108 + $0xe8] sm:$0xf]
        %v7168 = vld [vmem:[%s7108 + $0xec] sm:$0xf]
        %v7169 = vld [vmem:[%s7108 + $0xf0] sm:$0xf]
        %v7170 = vld [vmem:[%s7108 + $0xf4] sm:$0xf]
        %v7171 = vld [vmem:[%s7108 + $0xf8] sm:$0xf]
        %v7172 = vld [vmem:[%s7108 + $0xfc] sm:$0xf]
        %v7177 = vrot.slane %v6413, 1
        %v7178 = vrot.slane %v6414, 1
        %v7179 = vrot.slane %v6415, 1
        %v7180 = vrot.slane %v6416, 1
        %v7249 = vunpack.c.l.b16 %v7109
        %v7250 = vunpack.c.l.b16 %v7110
        %v7251 = vunpack.c.l.b16 %v7111
        %v7252 = vunpack.c.l.b16 %v7112
        %v7253 = vunpack.c.l.b16 %v7113
        %v7254 = vunpack.c.l.b16 %v7114
        %v7255 = vunpack.c.l.b16 %v7115
        %v7256 = vunpack.c.l.b16 %v7116
        %v7257 = vunpack.c.l.b16 %v7117
        %v7258 = vunpack.c.l.b16 %v7118
        %v7259 = vunpack.c.l.b16 %v7119
        %v7260 = vunpack.c.l.b16 %v7120
        %v7261 = vunpack.c.l.b16 %v7121
        %v7262 = vunpack.c.l.b16 %v7122
        %v7263 = vunpack.c.l.b16 %v7123
        %v7264 = vunpack.c.l.b16 %v7124
        %v7265 = vunpack.c.l.b16 %v7125
        %v7266 = vunpack.c.l.b16 %v7126
        %v7267 = vunpack.c.l.b16 %v7127
        %v7268 = vunpack.c.l.b16 %v7128
        %v7269 = vunpack.c.l.b16 %v7129
        %v7270 = vunpack.c.l.b16 %v7130
        %v7271 = vunpack.c.l.b16 %v7131
        %v7272 = vunpack.c.l.b16 %v7132
        %v7273 = vunpack.c.l.b16 %v7133
        %v7274 = vunpack.c.l.b16 %v7134
        %v7275 = vunpack.c.l.b16 %v7135
        %v7276 = vunpack.c.l.b16 %v7136
        %v7277 = vunpack.c.l.b16 %v7137
        %v7278 = vunpack.c.l.b16 %v7138
        %v7279 = vunpack.c.l.b16 %v7139
        %v7280 = vunpack.c.l.b16 %v7140
        %v7281 = vunpack.c.l.b16 %v7141
        %v7282 = vunpack.c.l.b16 %v7142
        %v7283 = vunpack.c.l.b16 %v7143
        %v7284 = vunpack.c.l.b16 %v7144
        %v7285 = vunpack.c.l.b16 %v7145
        %v7286 = vunpack.c.l.b16 %v7146
        %v7287 = vunpack.c.l.b16 %v7147
        %v7288 = vunpack.c.l.b16 %v7148
        %v7289 = vunpack.c.l.b16 %v7149
        %v7290 = vunpack.c.l.b16 %v7150
        %v7291 = vunpack.c.l.b16 %v7151
        %v7292 = vunpack.c.l.b16 %v7152
        %v7293 = vunpack.c.l.b16 %v7153
        %v7294 = vunpack.c.l.b16 %v7154
        %v7295 = vunpack.c.l.b16 %v7155
        %v7296 = vunpack.c.l.b16 %v7156
        %v7297 = vunpack.c.l.b16 %v7157
        %v7298 = vunpack.c.l.b16 %v7158
        %v7299 = vunpack.c.l.b16 %v7159
        %v7300 = vunpack.c.l.b16 %v7160
        %v7301 = vunpack.c.l.b16 %v7161
        %v7302 = vunpack.c.l.b16 %v7162
        %v7303 = vunpack.c.l.b16 %v7163
        %v7304 = vunpack.c.l.b16 %v7164
        %v7305 = vunpack.c.l.b16 %v7165
        %v7306 = vunpack.c.l.b16 %v7166
        %v7307 = vunpack.c.l.b16 %v7167
        %v7308 = vunpack.c.l.b16 %v7168
        %v7309 = vunpack.c.l.b16 %v7169
        %v7310 = vunpack.c.l.b16 %v7170
        %v7311 = vunpack.c.l.b16 %v7171
        %v7312 = vunpack.c.l.b16 %v7172
        %v7313 = vpack.c.b16 %v7250, %v7249
        %v7314 = vpack.c.b16 %v7252, %v7251
        %v7315 = vpack.c.b16 %v7254, %v7253
        %v7316 = vpack.c.b16 %v7256, %v7255
        %v7317 = vpack.c.b16 %v7258, %v7257
        %v7318 = vpack.c.b16 %v7260, %v7259
        %v7319 = vpack.c.b16 %v7262, %v7261
        %v7320 = vpack.c.b16 %v7264, %v7263
        %v7321 = vpack.c.b16 %v7266, %v7265
        %v7322 = vpack.c.b16 %v7268, %v7267
        %v7323 = vpack.c.b16 %v7270, %v7269
        %v7324 = vpack.c.b16 %v7272, %v7271
        %v7325 = vpack.c.b16 %v7274, %v7273
        %v7326 = vpack.c.b16 %v7276, %v7275
        %v7327 = vpack.c.b16 %v7278, %v7277
        %v7328 = vpack.c.b16 %v7280, %v7279
        %v7329 = vpack.c.b16 %v7282, %v7281
        %v7330 = vpack.c.b16 %v7284, %v7283
        %v7331 = vpack.c.b16 %v7286, %v7285
        %v7332 = vpack.c.b16 %v7288, %v7287
        %v7333 = vpack.c.b16 %v7290, %v7289
        %v7334 = vpack.c.b16 %v7292, %v7291
        %v7335 = vpack.c.b16 %v7294, %v7293
        %v7336 = vpack.c.b16 %v7296, %v7295
        %v7337 = vpack.c.b16 %v7298, %v7297
        %v7338 = vpack.c.b16 %v7300, %v7299
        %v7339 = vpack.c.b16 %v7302, %v7301
        %v7340 = vpack.c.b16 %v7304, %v7303
        %v7341 = vpack.c.b16 %v7306, %v7305
        %v7342 = vpack.c.b16 %v7308, %v7307
        %v7343 = vpack.c.b16 %v7310, %v7309
        %v7344 = vpack.c.b16 %v7312, %v7311
        %7377 = vmatprep.subr.bf16.mxu0 0
        %7378 = vmatpush1.bf16.msra.mxu0 %v7313
        %7379 = vmatprep.subr.bf16.mxu0 0
        %7380 = vmatpush1.bf16.msra.mxu0 %v7314
        %7381 = vmatprep.subr.bf16.mxu0 0
        %7382 = vmatpush1.bf16.msra.mxu0 %v7315
        %7383 = vmatprep.subr.bf16.mxu0 0
        %7384 = vmatpush1.bf16.msra.mxu0 %v7316
        %7385 = vmatprep.subr.bf16.mxu0 0
        %7386 = vmatpush1.bf16.msra.mxu0 %v7317
        %7387 = vmatprep.subr.bf16.mxu0 0
        %7388 = vmatpush1.bf16.msra.mxu0 %v7318
        %7389 = vmatprep.subr.bf16.mxu0 0
        %7390 = vmatpush1.bf16.msra.mxu0 %v7319
        %7391 = vmatprep.subr.bf16.mxu0 0
        %7392 = vmatpush1.bf16.msra.mxu0 %v7320
        %7393 = vmatprep.subr.bf16.mxu0 0
        %7394 = vmatpush1.bf16.msra.mxu0 %v7321
        %7395 = vmatprep.subr.bf16.mxu0 0
        %7396 = vmatpush1.bf16.msra.mxu0 %v7322
        %7397 = vmatprep.subr.bf16.mxu0 0
        %7398 = vmatpush1.bf16.msra.mxu0 %v7323
        %7399 = vmatprep.subr.bf16.mxu0 0
        %7400 = vmatpush1.bf16.msra.mxu0 %v7324
        %7401 = vmatprep.subr.bf16.mxu0 0
        %7402 = vmatpush1.bf16.msra.mxu0 %v7325
        %7403 = vmatprep.subr.bf16.mxu0 0
        %7404 = vmatpush1.bf16.msra.mxu0 %v7326
        %7405 = vmatprep.subr.bf16.mxu0 0
        %7406 = vmatpush1.bf16.msra.mxu0 %v7327
        %7407 = vmatprep.subr.bf16.mxu0 0
        %7408 = vmatpush1.bf16.msra.mxu0 %v7328
        %7409 = vmatprep.mubr.bf16.mxu0 %v7178
        %7410 = vmatmul.mubr.bf16.gmra.mrb[0].mxu0 %v7177
        %v7411 = vpop.f32.mrb[0].mxu0
        %v7412 = vadd.f32 0.0, %v7411
        %v7413 = vpop.f32.mrb[0].mxu0
        %v7414 = vpop.f32.mrb[0].mxu0
        %v7415 = vpop.f32.mrb[0].mxu0
        %7416 = vdwg.mxu0
        %7417 = vmatprep.subr.bf16.mxu0 0
        %7418 = vmatpush1.bf16.msra.mxu0 %v7329
        %7419 = vmatprep.subr.bf16.mxu0 0
        %7420 = vmatpush1.bf16.msra.mxu0 %v7330
        %7421 = vmatprep.subr.bf16.mxu0 0
        %7422 = vmatpush1.bf16.msra.mxu0 %v7331
        %7423 = vmatprep.subr.bf16.mxu0 0
        %7424 = vmatpush1.bf16.msra.mxu0 %v7332
        %7425 = vmatprep.subr.bf16.mxu0 0
        %7426 = vmatpush1.bf16.msra.mxu0 %v7333
        %7427 = vmatprep.subr.bf16.mxu0 0
        %7428 = vmatpush1.bf16.msra.mxu0 %v7334
        %7429 = vmatprep.subr.bf16.mxu0 0
        %7430 = vmatpush1.bf16.msra.mxu0 %v7335
        %7431 = vmatprep.subr.bf16.mxu0 0
        %7432 = vmatpush1.bf16.msra.mxu0 %v7336
        %7433 = vmatprep.subr.bf16.mxu0 0
        %7434 = vmatpush1.bf16.msra.mxu0 %v7337
        %7435 = vmatprep.subr.bf16.mxu0 0
        %7436 = vmatpush1.bf16.msra.mxu0 %v7338
        %7437 = vmatprep.subr.bf16.mxu0 0
        %7438 = vmatpush1.bf16.msra.mxu0 %v7339
        %7439 = vmatprep.subr.bf16.mxu0 0
        %7440 = vmatpush1.bf16.msra.mxu0 %v7340
        %7441 = vmatprep.subr.bf16.mxu0 0
        %7442 = vmatpush1.bf16.msra.mxu0 %v7341
        %7443 = vmatprep.subr.bf16.mxu0 0
        %7444 = vmatpush1.bf16.msra.mxu0 %v7342
        %7445 = vmatprep.subr.bf16.mxu0 0
        %7446 = vmatpush1.bf16.msra.mxu0 %v7343
        %7447 = vmatprep.subr.bf16.mxu0 0
        %7448 = vmatpush1.bf16.msra.mxu0 %v7344
        %7449 = vmatprep.mubr.bf16.mxu0 %v7180
        %7450 = vmatmul.mubr.bf16.gmra.mrb[0].mxu0 %v7179
        %v7451 = vpop.f32.mrb[0].mxu0
        %v7452 = vadd.f32 %v7412, %v7451
        %v7453 = vpop.f32.mrb[0].mxu0
        %v7454 = vpop.f32.mrb[0].mxu0
        %v7455 = vpop.f32.mrb[0].mxu0
        %7456 = vdwg.mxu0
        %v7457 = vadd.f32 %v7107, %v7452
        %s7458 = scalar_lea.vmem %s11, 768
        %v7459 = vld [vmem:[%s7458] sm:$0xf]
        %v7460 = vld [vmem:[%s7458 + $0x4] sm:$0xf]
        %v7461 = vld [vmem:[%s7458 + $0x8] sm:$0xf]
        %v7462 = vld [vmem:[%s7458 + $0xc] sm:$0xf]
        %v7463 = vld [vmem:[%s7458 + $0x10] sm:$0xf]
        %v7464 = vld [vmem:[%s7458 + $0x14] sm:$0xf]
        %v7465 = vld [vmem:[%s7458 + $0x18] sm:$0xf]
        %v7466 = vld [vmem:[%s7458 + $0x1c] sm:$0xf]
        %v7467 = vld [vmem:[%s7458 + $0x20] sm:$0xf]
        %v7468 = vld [vmem:[%s7458 + $0x24] sm:$0xf]
        %v7469 = vld [vmem:[%s7458 + $0x28] sm:$0xf]
        %v7470 = vld [vmem:[%s7458 + $0x2c] sm:$0xf]
        %v7471 = vld [vmem:[%s7458 + $0x30] sm:$0xf]
        %v7472 = vld [vmem:[%s7458 + $0x34] sm:$0xf]
        %v7473 = vld [vmem:[%s7458 + $0x38] sm:$0xf]
        %v7474 = vld [vmem:[%s7458 + $0x3c] sm:$0xf]
        %v7475 = vld [vmem:[%s7458 + $0x40] sm:$0xf]
        %v7476 = vld [vmem:[%s7458 + $0x44] sm:$0xf]
        %v7477 = vld [vmem:[%s7458 + $0x48] sm:$0xf]
        %v7478 = vld [vmem:[%s7458 + $0x4c] sm:$0xf]
        %v7479 = vld [vmem:[%s7458 + $0x50] sm:$0xf]
        %v7480 = vld [vmem:[%s7458 + $0x54] sm:$0xf]
        %v7481 = vld [vmem:[%s7458 + $0x58] sm:$0xf]
        %v7482 = vld [vmem:[%s7458 + $0x5c] sm:$0xf]
        %v7483 = vld [vmem:[%s7458 + $0x60] sm:$0xf]
        %v7484 = vld [vmem:[%s7458 + $0x64] sm:$0xf]
        %v7485 = vld [vmem:[%s7458 + $0x68] sm:$0xf]
        %v7486 = vld [vmem:[%s7458 + $0x6c] sm:$0xf]
        %v7487 = vld [vmem:[%s7458 + $0x70] sm:$0xf]
        %v7488 = vld [vmem:[%s7458 + $0x74] sm:$0xf]
        %v7489 = vld [vmem:[%s7458 + $0x78] sm:$0xf]
        %v7490 = vld [vmem:[%s7458 + $0x7c] sm:$0xf]
        %v7491 = vld [vmem:[%s7458 + $0x80] sm:$0xf]
        %v7492 = vld [vmem:[%s7458 + $0x84] sm:$0xf]
        %v7493 = vld [vmem:[%s7458 + $0x88] sm:$0xf]
        %v7494 = vld [vmem:[%s7458 + $0x8c] sm:$0xf]
        %v7495 = vld [vmem:[%s7458 + $0x90] sm:$0xf]
        %v7496 = vld [vmem:[%s7458 + $0x94] sm:$0xf]
        %v7497 = vld [vmem:[%s7458 + $0x98] sm:$0xf]
        %v7498 = vld [vmem:[%s7458 + $0x9c] sm:$0xf]
        %v7499 = vld [vmem:[%s7458 + $0xa0] sm:$0xf]
        %v7500 = vld [vmem:[%s7458 + $0xa4] sm:$0xf]
        %v7501 = vld [vmem:[%s7458 + $0xa8] sm:$0xf]
        %v7502 = vld [vmem:[%s7458 + $0xac] sm:$0xf]
        %v7503 = vld [vmem:[%s7458 + $0xb0] sm:$0xf]
        %v7504 = vld [vmem:[%s7458 + $0xb4] sm:$0xf]
        %v7505 = vld [vmem:[%s7458 + $0xb8] sm:$0xf]
        %v7506 = vld [vmem:[%s7458 + $0xbc] sm:$0xf]
        %v7507 = vld [vmem:[%s7458 + $0xc0] sm:$0xf]
        %v7508 = vld [vmem:[%s7458 + $0xc4] sm:$0xf]
        %v7509 = vld [vmem:[%s7458 + $0xc8] sm:$0xf]
        %v7510 = vld [vmem:[%s7458 + $0xcc] sm:$0xf]
        %v7511 = vld [vmem:[%s7458 + $0xd0] sm:$0xf]
        %v7512 = vld [vmem:[%s7458 + $0xd4] sm:$0xf]
        %v7513 = vld [vmem:[%s7458 + $0xd8] sm:$0xf]
        %v7514 = vld [vmem:[%s7458 + $0xdc] sm:$0xf]
        %v7515 = vld [vmem:[%s7458 + $0xe0] sm:$0xf]
        %v7516 = vld [vmem:[%s7458 + $0xe4] sm:$0xf]
        %v7517 = vld [vmem:[%s7458 + $0xe8] sm:$0xf]
        %v7518 = vld [vmem:[%s7458 + $0xec] sm:$0xf]
        %v7519 = vld [vmem:[%s7458 + $0xf0] sm:$0xf]
        %v7520 = vld [vmem:[%s7458 + $0xf4] sm:$0xf]
        %v7521 = vld [vmem:[%s7458 + $0xf8] sm:$0xf]
        %v7522 = vld [vmem:[%s7458 + $0xfc] sm:$0xf]
        %v7523 = vrot.slane %v6820, 1
        %v7524 = vrot.slane %v6823, 1
        %v7525 = vrot.slane %v6826, 1
        %v7526 = vrot.slane %v6829, 1
        %v7595 = vunpack.c.l.b16 %v7459
        %v7596 = vunpack.c.l.b16 %v7460
        %v7597 = vunpack.c.l.b16 %v7461
        %v7598 = vunpack.c.l.b16 %v7462
        %v7599 = vunpack.c.l.b16 %v7463
        %v7600 = vunpack.c.l.b16 %v7464
        %v7601 = vunpack.c.l.b16 %v7465
        %v7602 = vunpack.c.l.b16 %v7466
        %v7603 = vunpack.c.l.b16 %v7467
        %v7604 = vunpack.c.l.b16 %v7468
        %v7605 = vunpack.c.l.b16 %v7469
        %v7606 = vunpack.c.l.b16 %v7470
        %v7607 = vunpack.c.l.b16 %v7471
        %v7608 = vunpack.c.l.b16 %v7472
        %v7609 = vunpack.c.l.b16 %v7473
        %v7610 = vunpack.c.l.b16 %v7474
        %v7611 = vunpack.c.l.b16 %v7475
        %v7612 = vunpack.c.l.b16 %v7476
        %v7613 = vunpack.c.l.b16 %v7477
        %v7614 = vunpack.c.l.b16 %v7478
        %v7615 = vunpack.c.l.b16 %v7479
        %v7616 = vunpack.c.l.b16 %v7480
        %v7617 = vunpack.c.l.b16 %v7481
        %v7618 = vunpack.c.l.b16 %v7482
        %v7619 = vunpack.c.l.b16 %v7483
        %v7620 = vunpack.c.l.b16 %v7484
        %v7621 = vunpack.c.l.b16 %v7485
        %v7622 = vunpack.c.l.b16 %v7486
        %v7623 = vunpack.c.l.b16 %v7487
        %v7624 = vunpack.c.l.b16 %v7488
        %v7625 = vunpack.c.l.b16 %v7489
        %v7626 = vunpack.c.l.b16 %v7490
        %v7627 = vunpack.c.l.b16 %v7491
        %v7628 = vunpack.c.l.b16 %v7492
        %v7629 = vunpack.c.l.b16 %v7493
        %v7630 = vunpack.c.l.b16 %v7494
        %v7631 = vunpack.c.l.b16 %v7495
        %v7632 = vunpack.c.l.b16 %v7496
        %v7633 = vunpack.c.l.b16 %v7497
        %v7634 = vunpack.c.l.b16 %v7498
        %v7635 = vunpack.c.l.b16 %v7499
        %v7636 = vunpack.c.l.b16 %v7500
        %v7637 = vunpack.c.l.b16 %v7501
        %v7638 = vunpack.c.l.b16 %v7502
        %v7639 = vunpack.c.l.b16 %v7503
        %v7640 = vunpack.c.l.b16 %v7504
        %v7641 = vunpack.c.l.b16 %v7505
        %v7642 = vunpack.c.l.b16 %v7506
        %v7643 = vunpack.c.l.b16 %v7507
        %v7644 = vunpack.c.l.b16 %v7508
        %v7645 = vunpack.c.l.b16 %v7509
        %v7646 = vunpack.c.l.b16 %v7510
        %v7647 = vunpack.c.l.b16 %v7511
        %v7648 = vunpack.c.l.b16 %v7512
        %v7649 = vunpack.c.l.b16 %v7513
        %v7650 = vunpack.c.l.b16 %v7514
        %v7651 = vunpack.c.l.b16 %v7515
        %v7652 = vunpack.c.l.b16 %v7516
        %v7653 = vunpack.c.l.b16 %v7517
        %v7654 = vunpack.c.l.b16 %v7518
        %v7655 = vunpack.c.l.b16 %v7519
        %v7656 = vunpack.c.l.b16 %v7520
        %v7657 = vunpack.c.l.b16 %v7521
        %v7658 = vunpack.c.l.b16 %v7522
        %v7659 = vpack.c.b16 %v7596, %v7595
        %v7660 = vpack.c.b16 %v7598, %v7597
        %v7661 = vpack.c.b16 %v7600, %v7599
        %v7662 = vpack.c.b16 %v7602, %v7601
        %v7663 = vpack.c.b16 %v7604, %v7603
        %v7664 = vpack.c.b16 %v7606, %v7605
        %v7665 = vpack.c.b16 %v7608, %v7607
        %v7666 = vpack.c.b16 %v7610, %v7609
        %v7667 = vpack.c.b16 %v7612, %v7611
        %v7668 = vpack.c.b16 %v7614, %v7613
        %v7669 = vpack.c.b16 %v7616, %v7615
        %v7670 = vpack.c.b16 %v7618, %v7617
        %v7671 = vpack.c.b16 %v7620, %v7619
        %v7672 = vpack.c.b16 %v7622, %v7621
        %v7673 = vpack.c.b16 %v7624, %v7623
        %v7674 = vpack.c.b16 %v7626, %v7625
        %v7675 = vpack.c.b16 %v7628, %v7627
        %v7676 = vpack.c.b16 %v7630, %v7629
        %v7677 = vpack.c.b16 %v7632, %v7631
        %v7678 = vpack.c.b16 %v7634, %v7633
        %v7679 = vpack.c.b16 %v7636, %v7635
        %v7680 = vpack.c.b16 %v7638, %v7637
        %v7681 = vpack.c.b16 %v7640, %v7639
        %v7682 = vpack.c.b16 %v7642, %v7641
        %v7683 = vpack.c.b16 %v7644, %v7643
        %v7684 = vpack.c.b16 %v7646, %v7645
        %v7685 = vpack.c.b16 %v7648, %v7647
        %v7686 = vpack.c.b16 %v7650, %v7649
        %v7687 = vpack.c.b16 %v7652, %v7651
        %v7688 = vpack.c.b16 %v7654, %v7653
        %v7689 = vpack.c.b16 %v7656, %v7655
        %v7690 = vpack.c.b16 %v7658, %v7657
        %7723 = vmatprep.subr.bf16.mxu0 0
        %7724 = vmatpush1.bf16.msra.mxu0 %v7659
        %7725 = vmatprep.subr.bf16.mxu0 0
        %7726 = vmatpush1.bf16.msra.mxu0 %v7660
        %7727 = vmatprep.subr.bf16.mxu0 0
        %7728 = vmatpush1.bf16.msra.mxu0 %v7661
        %7729 = vmatprep.subr.bf16.mxu0 0
        %7730 = vmatpush1.bf16.msra.mxu0 %v7662
        %7731 = vmatprep.subr.bf16.mxu0 0
        %7732 = vmatpush1.bf16.msra.mxu0 %v7663
        %7733 = vmatprep.subr.bf16.mxu0 0
        %7734 = vmatpush1.bf16.msra.mxu0 %v7664
        %7735 = vmatprep.subr.bf16.mxu0 0
        %7736 = vmatpush1.bf16.msra.mxu0 %v7665
        %7737 = vmatprep.subr.bf16.mxu0 0
        %7738 = vmatpush1.bf16.msra.mxu0 %v7666
        %7739 = vmatprep.subr.bf16.mxu0 0
        %7740 = vmatpush1.bf16.msra.mxu0 %v7667
        %7741 = vmatprep.subr.bf16.mxu0 0
        %7742 = vmatpush1.bf16.msra.mxu0 %v7668
        %7743 = vmatprep.subr.bf16.mxu0 0
        %7744 = vmatpush1.bf16.msra.mxu0 %v7669
        %7745 = vmatprep.subr.bf16.mxu0 0
        %7746 = vmatpush1.bf16.msra.mxu0 %v7670
        %7747 = vmatprep.subr.bf16.mxu0 0
        %7748 = vmatpush1.bf16.msra.mxu0 %v7671
        %7749 = vmatprep.subr.bf16.mxu0 0
        %7750 = vmatpush1.bf16.msra.mxu0 %v7672
        %7751 = vmatprep.subr.bf16.mxu0 0
        %7752 = vmatpush1.bf16.msra.mxu0 %v7673
        %7753 = vmatprep.subr.bf16.mxu0 0
        %7754 = vmatpush1.bf16.msra.mxu0 %v7674
        %7755 = vmatprep.mubr.bf16.mxu0 %v7524
        %7756 = vmatmul.mubr.bf16.gmra.mrb[0].mxu0 %v7523
        %v7757 = vpop.f32.mrb[0].mxu0
        %v7758 = vadd.f32 0.0, %v7757
        %v7759 = vpop.f32.mrb[0].mxu0
        %v7760 = vpop.f32.mrb[0].mxu0
        %v7761 = vpop.f32.mrb[0].mxu0
        %7762 = vdwg.mxu0
        %7763 = vmatprep.subr.bf16.mxu0 0
        %7764 = vmatpush1.bf16.msra.mxu0 %v7675
        %7765 = vmatprep.subr.bf16.mxu0 0
        %7766 = vmatpush1.bf16.msra.mxu0 %v7676
        %7767 = vmatprep.subr.bf16.mxu0 0
        %7768 = vmatpush1.bf16.msra.mxu0 %v7677
        %7769 = vmatprep.subr.bf16.mxu0 0
        %7770 = vmatpush1.bf16.msra.mxu0 %v7678
        %7771 = vmatprep.subr.bf16.mxu0 0
        %7772 = vmatpush1.bf16.msra.mxu0 %v7679
        %7773 = vmatprep.subr.bf16.mxu0 0
        %7774 = vmatpush1.bf16.msra.mxu0 %v7680
        %7775 = vmatprep.subr.bf16.mxu0 0
        %7776 = vmatpush1.bf16.msra.mxu0 %v7681
        %7777 = vmatprep.subr.bf16.mxu0 0
        %7778 = vmatpush1.bf16.msra.mxu0 %v7682
        %7779 = vmatprep.subr.bf16.mxu0 0
        %7780 = vmatpush1.bf16.msra.mxu0 %v7683
        %7781 = vmatprep.subr.bf16.mxu0 0
        %7782 = vmatpush1.bf16.msra.mxu0 %v7684
        %7783 = vmatprep.subr.bf16.mxu0 0
        %7784 = vmatpush1.bf16.msra.mxu0 %v7685
        %7785 = vmatprep.subr.bf16.mxu0 0
        %7786 = vmatpush1.bf16.msra.mxu0 %v7686
        %7787 = vmatprep.subr.bf16.mxu0 0
        %7788 = vmatpush1.bf16.msra.mxu0 %v7687
        %7789 = vmatprep.subr.bf16.mxu0 0
        %7790 = vmatpush1.bf16.msra.mxu0 %v7688
        %7791 = vmatprep.subr.bf16.mxu0 0
        %7792 = vmatpush1.bf16.msra.mxu0 %v7689
        %7793 = vmatprep.subr.bf16.mxu0 0
        %7794 = vmatpush1.bf16.msra.mxu0 %v7690
        %7795 = vmatprep.mubr.bf16.mxu0 %v7526
        %7796 = vmatmul.mubr.bf16.gmra.mrb[0].mxu0 %v7525
        %v7797 = vpop.f32.mrb[0].mxu0
        %v7798 = vadd.f32 %v7758, %v7797
        %v7799 = vpop.f32.mrb[0].mxu0
        %v7800 = vpop.f32.mrb[0].mxu0
        %v7801 = vpop.f32.mrb[0].mxu0
        %7802 = vdwg.mxu0
        %v7803 = vadd.f32 %v7457, %v7798
        %s7804 = scalar_lea.vmem %s11, 1024
        %v7805 = vld [vmem:[%s7804] sm:$0xf]
        %v7806 = vld [vmem:[%s7804 + $0x4] sm:$0xf]
        %v7807 = vld [vmem:[%s7804 + $0x8] sm:$0xf]
        %v7808 = vld [vmem:[%s7804 + $0xc] sm:$0xf]
        %v7809 = vld [vmem:[%s7804 + $0x10] sm:$0xf]
        %v7810 = vld [vmem:[%s7804 + $0x14] sm:$0xf]
        %v7811 = vld [vmem:[%s7804 + $0x18] sm:$0xf]
        %v7812 = vld [vmem:[%s7804 + $0x1c] sm:$0xf]
        %v7813 = vld [vmem:[%s7804 + $0x20] sm:$0xf]
        %v7814 = vld [vmem:[%s7804 + $0x24] sm:$0xf]
        %v7815 = vld [vmem:[%s7804 + $0x28] sm:$0xf]
        %v7816 = vld [vmem:[%s7804 + $0x2c] sm:$0xf]
        %v7817 = vld [vmem:[%s7804 + $0x30] sm:$0xf]
        %v7818 = vld [vmem:[%s7804 + $0x34] sm:$0xf]
        %v7819 = vld [vmem:[%s7804 + $0x38] sm:$0xf]
        %v7820 = vld [vmem:[%s7804 + $0x3c] sm:$0xf]
        %v7821 = vld [vmem:[%s7804 + $0x40] sm:$0xf]
        %v7822 = vld [vmem:[%s7804 + $0x44] sm:$0xf]
        %v7823 = vld [vmem:[%s7804 + $0x48] sm:$0xf]
        %v7824 = vld [vmem:[%s7804 + $0x4c] sm:$0xf]
        %v7825 = vld [vmem:[%s7804 + $0x50] sm:$0xf]
        %v7826 = vld [vmem:[%s7804 + $0x54] sm:$0xf]
        %v7827 = vld [vmem:[%s7804 + $0x58] sm:$0xf]
        %v7828 = vld [vmem:[%s7804 + $0x5c] sm:$0xf]
        %v7829 = vld [vmem:[%s7804 + $0x60] sm:$0xf]
        %v7830 = vld [vmem:[%s7804 + $0x64] sm:$0xf]
        %v7831 = vld [vmem:[%s7804 + $0x68] sm:$0xf]
        %v7832 = vld [vmem:[%s7804 + $0x6c] sm:$0xf]
        %v7833 = vld [vmem:[%s7804 + $0x70] sm:$0xf]
        %v7834 = vld [vmem:[%s7804 + $0x74] sm:$0xf]
        %v7835 = vld [vmem:[%s7804 + $0x78] sm:$0xf]
        %v7836 = vld [vmem:[%s7804 + $0x7c] sm:$0xf]
        %v7837 = vld [vmem:[%s7804 + $0x80] sm:$0xf]
        %v7838 = vld [vmem:[%s7804 + $0x84] sm:$0xf]
        %v7839 = vld [vmem:[%s7804 + $0x88] sm:$0xf]
        %v7840 = vld [vmem:[%s7804 + $0x8c] sm:$0xf]
        %v7841 = vld [vmem:[%s7804 + $0x90] sm:$0xf]
        %v7842 = vld [vmem:[%s7804 + $0x94] sm:$0xf]
        %v7843 = vld [vmem:[%s7804 + $0x98] sm:$0xf]
        %v7844 = vld [vmem:[%s7804 + $0x9c] sm:$0xf]
        %v7845 = vld [vmem:[%s7804 + $0xa0] sm:$0xf]
        %v7846 = vld [vmem:[%s7804 + $0xa4] sm:$0xf]
        %v7847 = vld [vmem:[%s7804 + $0xa8] sm:$0xf]
        %v7848 = vld [vmem:[%s7804 + $0xac] sm:$0xf]
        %v7849 = vld [vmem:[%s7804 + $0xb0] sm:$0xf]
        %v7850 = vld [vmem:[%s7804 + $0xb4] sm:$0xf]
        %v7851 = vld [vmem:[%s7804 + $0xb8] sm:$0xf]
        %v7852 = vld [vmem:[%s7804 + $0xbc] sm:$0xf]
        %v7853 = vld [vmem:[%s7804 + $0xc0] sm:$0xf]
        %v7854 = vld [vmem:[%s7804 + $0xc4] sm:$0xf]
        %v7855 = vld [vmem:[%s7804 + $0xc8] sm:$0xf]
        %v7856 = vld [vmem:[%s7804 + $0xcc] sm:$0xf]
        %v7857 = vld [vmem:[%s7804 + $0xd0] sm:$0xf]
        %v7858 = vld [vmem:[%s7804 + $0xd4] sm:$0xf]
        %v7859 = vld [vmem:[%s7804 + $0xd8] sm:$0xf]
        %v7860 = vld [vmem:[%s7804 + $0xdc] sm:$0xf]
        %v7861 = vld [vmem:[%s7804 + $0xe0] sm:$0xf]
        %v7862 = vld [vmem:[%s7804 + $0xe4] sm:$0xf]
        %v7863 = vld [vmem:[%s7804 + $0xe8] sm:$0xf]
        %v7864 = vld [vmem:[%s7804 + $0xec] sm:$0xf]
        %v7865 = vld [vmem:[%s7804 + $0xf0] sm:$0xf]
        %v7866 = vld [vmem:[%s7804 + $0xf4] sm:$0xf]
        %v7867 = vld [vmem:[%s7804 + $0xf8] sm:$0xf]
        %v7868 = vld [vmem:[%s7804 + $0xfc] sm:$0xf]
        %v7869 = vrot.slane %v6413, 2
        %v7870 = vrot.slane %v6414, 2
        %v7871 = vrot.slane %v6415, 2
        %v7872 = vrot.slane %v6416, 2
        %v7941 = vunpack.c.l.b16 %v7805
        %v7942 = vunpack.c.l.b16 %v7806
        %v7943 = vunpack.c.l.b16 %v7807
        %v7944 = vunpack.c.l.b16 %v7808
        %v7945 = vunpack.c.l.b16 %v7809
        %v7946 = vunpack.c.l.b16 %v7810
        %v7947 = vunpack.c.l.b16 %v7811
        %v7948 = vunpack.c.l.b16 %v7812
        %v7949 = vunpack.c.l.b16 %v7813
        %v7950 = vunpack.c.l.b16 %v7814
        %v7951 = vunpack.c.l.b16 %v7815
        %v7952 = vunpack.c.l.b16 %v7816
        %v7953 = vunpack.c.l.b16 %v7817
        %v7954 = vunpack.c.l.b16 %v7818
        %v7955 = vunpack.c.l.b16 %v7819
        %v7956 = vunpack.c.l.b16 %v7820
        %v7957 = vunpack.c.l.b16 %v7821
        %v7958 = vunpack.c.l.b16 %v7822
        %v7959 = vunpack.c.l.b16 %v7823
        %v7960 = vunpack.c.l.b16 %v7824
        %v7961 = vunpack.c.l.b16 %v7825
        %v7962 = vunpack.c.l.b16 %v7826
        %v7963 = vunpack.c.l.b16 %v7827
        %v7964 = vunpack.c.l.b16 %v7828
        %v7965 = vunpack.c.l.b16 %v7829
        %v7966 = vunpack.c.l.b16 %v7830
        %v7967 = vunpack.c.l.b16 %v7831
        %v7968 = vunpack.c.l.b16 %v7832
        %v7969 = vunpack.c.l.b16 %v7833
        %v7970 = vunpack.c.l.b16 %v7834
        %v7971 = vunpack.c.l.b16 %v7835
        %v7972 = vunpack.c.l.b16 %v7836
        %v7973 = vunpack.c.l.b16 %v7837
        %v7974 = vunpack.c.l.b16 %v7838
        %v7975 = vunpack.c.l.b16 %v7839
        %v7976 = vunpack.c.l.b16 %v7840
        %v7977 = vunpack.c.l.b16 %v7841
        %v7978 = vunpack.c.l.b16 %v7842
        %v7979 = vunpack.c.l.b16 %v7843
        %v7980 = vunpack.c.l.b16 %v7844
        %v7981 = vunpack.c.l.b16 %v7845
        %v7982 = vunpack.c.l.b16 %v7846
        %v7983 = vunpack.c.l.b16 %v7847
        %v7984 = vunpack.c.l.b16 %v7848
        %v7985 = vunpack.c.l.b16 %v7849
        %v7986 = vunpack.c.l.b16 %v7850
        %v7987 = vunpack.c.l.b16 %v7851
        %v7988 = vunpack.c.l.b16 %v7852
        %v7989 = vunpack.c.l.b16 %v7853
        %v7990 = vunpack.c.l.b16 %v7854
        %v7991 = vunpack.c.l.b16 %v7855
        %v7992 = vunpack.c.l.b16 %v7856
        %v7993 = vunpack.c.l.b16 %v7857
        %v7994 = vunpack.c.l.b16 %v7858
        %v7995 = vunpack.c.l.b16 %v7859
        %v7996 = vunpack.c.l.b16 %v7860
        %v7997 = vunpack.c.l.b16 %v7861
        %v7998 = vunpack.c.l.b16 %v7862
        %v7999 = vunpack.c.l.b16 %v7863
        %v8000 = vunpack.c.l.b16 %v7864
        %v8001 = vunpack.c.l.b16 %v7865
        %v8002 = vunpack.c.l.b16 %v7866
        %v8003 = vunpack.c.l.b16 %v7867
        %v8004 = vunpack.c.l.b16 %v7868
        %v8005 = vpack.c.b16 %v7942, %v7941
        %v8006 = vpack.c.b16 %v7944, %v7943
        %v8007 = vpack.c.b16 %v7946, %v7945
        %v8008 = vpack.c.b16 %v7948, %v7947
        %v8009 = vpack.c.b16 %v7950, %v7949
        %v8010 = vpack.c.b16 %v7952, %v7951
        %v8011 = vpack.c.b16 %v7954, %v7953
        %v8012 = vpack.c.b16 %v7956, %v7955
        %v8013 = vpack.c.b16 %v7958, %v7957
        %v8014 = vpack.c.b16 %v7960, %v7959
        %v8015 = vpack.c.b16 %v7962, %v7961
        %v8016 = vpack.c.b16 %v7964, %v7963
        %v8017 = vpack.c.b16 %v7966, %v7965
        %v8018 = vpack.c.b16 %v7968, %v7967
        %v8019 = vpack.c.b16 %v7970, %v7969
        %v8020 = vpack.c.b16 %v7972, %v7971
        %v8021 = vpack.c.b16 %v7974, %v7973
        %v8022 = vpack.c.b16 %v7976, %v7975
        %v8023 = vpack.c.b16 %v7978, %v7977
        %v8024 = vpack.c.b16 %v7980, %v7979
        %v8025 = vpack.c.b16 %v7982, %v7981
        %v8026 = vpack.c.b16 %v7984, %v7983
        %v8027 = vpack.c.b16 %v7986, %v7985
        %v8028 = vpack.c.b16 %v7988, %v7987
        %v8029 = vpack.c.b16 %v7990, %v7989
        %v8030 = vpack.c.b16 %v7992, %v7991
        %v8031 = vpack.c.b16 %v7994, %v7993
        %v8032 = vpack.c.b16 %v7996, %v7995
        %v8033 = vpack.c.b16 %v7998, %v7997
        %v8034 = vpack.c.b16 %v8000, %v7999
        %v8035 = vpack.c.b16 %v8002, %v8001
        %v8036 = vpack.c.b16 %v8004, %v8003
        %8069 = vmatprep.subr.bf16.mxu0 0
        %8070 = vmatpush1.bf16.msra.mxu0 %v8005
        %8071 = vmatprep.subr.bf16.mxu0 0
        %8072 = vmatpush1.bf16.msra.mxu0 %v8006
        %8073 = vmatprep.subr.bf16.mxu0 0
        %8074 = vmatpush1.bf16.msra.mxu0 %v8007
        %8075 = vmatprep.subr.bf16.mxu0 0
        %8076 = vmatpush1.bf16.msra.mxu0 %v8008
        %8077 = vmatprep.subr.bf16.mxu0 0
        %8078 = vmatpush1.bf16.msra.mxu0 %v8009
        %8079 = vmatprep.subr.bf16.mxu0 0
        %8080 = vmatpush1.bf16.msra.mxu0 %v8010
        %8081 = vmatprep.subr.bf16.mxu0 0
        %8082 = vmatpush1.bf16.msra.mxu0 %v8011
        %8083 = vmatprep.subr.bf16.mxu0 0
        %8084 = vmatpush1.bf16.msra.mxu0 %v8012
        %8085 = vmatprep.subr.bf16.mxu0 0
        %8086 = vmatpush1.bf16.msra.mxu0 %v8013
        %8087 = vmatprep.subr.bf16.mxu0 0
        %8088 = vmatpush1.bf16.msra.mxu0 %v8014
        %8089 = vmatprep.subr.bf16.mxu0 0
        %8090 = vmatpush1.bf16.msra.mxu0 %v8015
        %8091 = vmatprep.subr.bf16.mxu0 0
        %8092 = vmatpush1.bf16.msra.mxu0 %v8016
        %8093 = vmatprep.subr.bf16.mxu0 0
        %8094 = vmatpush1.bf16.msra.mxu0 %v8017
        %8095 = vmatprep.subr.bf16.mxu0 0
        %8096 = vmatpush1.bf16.msra.mxu0 %v8018
        %8097 = vmatprep.subr.bf16.mxu0 0
        %8098 = vmatpush1.bf16.msra.mxu0 %v8019
        %8099 = vmatprep.subr.bf16.mxu0 0
        %8100 = vmatpush1.bf16.msra.mxu0 %v8020
        %8101 = vmatprep.mubr.bf16.mxu0 %v7870
        %8102 = vmatmul.mubr.bf16.gmra.mrb[0].mxu0 %v7869
        %v8103 = vpop.f32.mrb[0].mxu0
        %v8104 = vadd.f32 0.0, %v8103
        %v8105 = vpop.f32.mrb[0].mxu0
        %v8106 = vpop.f32.mrb[0].mxu0
        %v8107 = vpop.f32.mrb[0].mxu0
        %8108 = vdwg.mxu0
        %8109 = vmatprep.subr.bf16.mxu0 0
        %8110 = vmatpush1.bf16.msra.mxu0 %v8021
        %8111 = vmatprep.subr.bf16.mxu0 0
        %8112 = vmatpush1.bf16.msra.mxu0 %v8022
        %8113 = vmatprep.subr.bf16.mxu0 0
        %8114 = vmatpush1.bf16.msra.mxu0 %v8023
        %8115 = vmatprep.subr.bf16.mxu0 0
        %8116 = vmatpush1.bf16.msra.mxu0 %v8024
        %8117 = vmatprep.subr.bf16.mxu0 0
        %8118 = vmatpush1.bf16.msra.mxu0 %v8025
        %8119 = vmatprep.subr.bf16.mxu0 0
        %8120 = vmatpush1.bf16.msra.mxu0 %v8026
        %8121 = vmatprep.subr.bf16.mxu0 0
        %8122 = vmatpush1.bf16.msra.mxu0 %v8027
        %8123 = vmatprep.subr.bf16.mxu0 0
        %8124 = vmatpush1.bf16.msra.mxu0 %v8028
        %8125 = vmatprep.subr.bf16.mxu0 0
        %8126 = vmatpush1.bf16.msra.mxu0 %v8029
        %8127 = vmatprep.subr.bf16.mxu0 0
        %8128 = vmatpush1.bf16.msra.mxu0 %v8030
        %8129 = vmatprep.subr.bf16.mxu0 0
        %8130 = vmatpush1.bf16.msra.mxu0 %v8031
        %8131 = vmatprep.subr.bf16.mxu0 0
        %8132 = vmatpush1.bf16.msra.mxu0 %v8032
        %8133 = vmatprep.subr.bf16.mxu0 0
        %8134 = vmatpush1.bf16.msra.mxu0 %v8033
        %8135 = vmatprep.subr.bf16.mxu0 0
        %8136 = vmatpush1.bf16.msra.mxu0 %v8034
        %8137 = vmatprep.subr.bf16.mxu0 0
        %8138 = vmatpush1.bf16.msra.mxu0 %v8035
        %8139 = vmatprep.subr.bf16.mxu0 0
        %8140 = vmatpush1.bf16.msra.mxu0 %v8036
        %8141 = vmatprep.mubr.bf16.mxu0 %v7872
        %8142 = vmatmul.mubr.bf16.gmra.mrb[0].mxu0 %v7871
        %v8143 = vpop.f32.mrb[0].mxu0
        %v8144 = vadd.f32 %v8104, %v8143
        %v8145 = vpop.f32.mrb[0].mxu0
        %v8146 = vpop.f32.mrb[0].mxu0
        %v8147 = vpop.f32.mrb[0].mxu0
        %8148 = vdwg.mxu0
        %v8149 = vadd.f32 %v7803, %v8144
        %s8150 = scalar_lea.vmem %s11, 1280
        %v8151 = vld [vmem:[%s8150] sm:$0xf]
        %v8152 = vld [vmem:[%s8150 + $0x4] sm:$0xf]
        %v8153 = vld [vmem:[%s8150 + $0x8] sm:$0xf]
        %v8154 = vld [vmem:[%s8150 + $0xc] sm:$0xf]
        %v8155 = vld [vmem:[%s8150 + $0x10] sm:$0xf]
        %v8156 = vld [vmem:[%s8150 + $0x14] sm:$0xf]
        %v8157 = vld [vmem:[%s8150 + $0x18] sm:$0xf]
        %v8158 = vld [vmem:[%s8150 + $0x1c] sm:$0xf]
        %v8159 = vld [vmem:[%s8150 + $0x20] sm:$0xf]
        %v8160 = vld [vmem:[%s8150 + $0x24] sm:$0xf]
        %v8161 = vld [vmem:[%s8150 + $0x28] sm:$0xf]
        %v8162 = vld [vmem:[%s8150 + $0x2c] sm:$0xf]
        %v8163 = vld [vmem:[%s8150 + $0x30] sm:$0xf]
        %v8164 = vld [vmem:[%s8150 + $0x34] sm:$0xf]
        %v8165 = vld [vmem:[%s8150 + $0x38] sm:$0xf]
        %v8166 = vld [vmem:[%s8150 + $0x3c] sm:$0xf]
        %v8167 = vld [vmem:[%s8150 + $0x40] sm:$0xf]
        %v8168 = vld [vmem:[%s8150 + $0x44] sm:$0xf]
        %v8169 = vld [vmem:[%s8150 + $0x48] sm:$0xf]
        %v8170 = vld [vmem:[%s8150 + $0x4c] sm:$0xf]
        %v8171 = vld [vmem:[%s8150 + $0x50] sm:$0xf]
        %v8172 = vld [vmem:[%s8150 + $0x54] sm:$0xf]
        %v8173 = vld [vmem:[%s8150 + $0x58] sm:$0xf]
        %v8174 = vld [vmem:[%s8150 + $0x5c] sm:$0xf]
        %v8175 = vld [vmem:[%s8150 + $0x60] sm:$0xf]
        %v8176 = vld [vmem:[%s8150 + $0x64] sm:$0xf]
        %v8177 = vld [vmem:[%s8150 + $0x68] sm:$0xf]
        %v8178 = vld [vmem:[%s8150 + $0x6c] sm:$0xf]
        %v8179 = vld [vmem:[%s8150 + $0x70] sm:$0xf]
        %v8180 = vld [vmem:[%s8150 + $0x74] sm:$0xf]
        %v8181 = vld [vmem:[%s8150 + $0x78] sm:$0xf]
        %v8182 = vld [vmem:[%s8150 + $0x7c] sm:$0xf]
        %v8183 = vld [vmem:[%s8150 + $0x80] sm:$0xf]
        %v8184 = vld [vmem:[%s8150 + $0x84] sm:$0xf]
        %v8185 = vld [vmem:[%s8150 + $0x88] sm:$0xf]
        %v8186 = vld [vmem:[%s8150 + $0x8c] sm:$0xf]
        %v8187 = vld [vmem:[%s8150 + $0x90] sm:$0xf]
        %v8188 = vld [vmem:[%s8150 + $0x94] sm:$0xf]
        %v8189 = vld [vmem:[%s8150 + $0x98] sm:$0xf]
        %v8190 = vld [vmem:[%s8150 + $0x9c] sm:$0xf]
        %v8191 = vld [vmem:[%s8150 + $0xa0] sm:$0xf]
        %v8192 = vld [vmem:[%s8150 + $0xa4] sm:$0xf]
        %v8193 = vld [vmem:[%s8150 + $0xa8] sm:$0xf]
        %v8194 = vld [vmem:[%s8150 + $0xac] sm:$0xf]
        %v8195 = vld [vmem:[%s8150 + $0xb0] sm:$0xf]
        %v8196 = vld [vmem:[%s8150 + $0xb4] sm:$0xf]
        %v8197 = vld [vmem:[%s8150 + $0xb8] sm:$0xf]
        %v8198 = vld [vmem:[%s8150 + $0xbc] sm:$0xf]
        %v8199 = vld [vmem:[%s8150 + $0xc0] sm:$0xf]
        %v8200 = vld [vmem:[%s8150 + $0xc4] sm:$0xf]
        %v8201 = vld [vmem:[%s8150 + $0xc8] sm:$0xf]
        %v8202 = vld [vmem:[%s8150 + $0xcc] sm:$0xf]
        %v8203 = vld [vmem:[%s8150 + $0xd0] sm:$0xf]
        %v8204 = vld [vmem:[%s8150 + $0xd4] sm:$0xf]
        %v8205 = vld [vmem:[%s8150 + $0xd8] sm:$0xf]
        %v8206 = vld [vmem:[%s8150 + $0xdc] sm:$0xf]
        %v8207 = vld [vmem:[%s8150 + $0xe0] sm:$0xf]
        %v8208 = vld [vmem:[%s8150 + $0xe4] sm:$0xf]
        %v8209 = vld [vmem:[%s8150 + $0xe8] sm:$0xf]
        %v8210 = vld [vmem:[%s8150 + $0xec] sm:$0xf]
        %v8211 = vld [vmem:[%s8150 + $0xf0] sm:$0xf]
        %v8212 = vld [vmem:[%s8150 + $0xf4] sm:$0xf]
        %v8213 = vld [vmem:[%s8150 + $0xf8] sm:$0xf]
        %v8214 = vld [vmem:[%s8150 + $0xfc] sm:$0xf]
        %v8215 = vrot.slane %v6820, 2
        %v8216 = vrot.slane %v6823, 2
        %v8217 = vrot.slane %v6826, 2
        %v8218 = vrot.slane %v6829, 2
        %v8287 = vunpack.c.l.b16 %v8151
        %v8288 = vunpack.c.l.b16 %v8152
        %v8289 = vunpack.c.l.b16 %v8153
        %v8290 = vunpack.c.l.b16 %v8154
        %v8291 = vunpack.c.l.b16 %v8155
        %v8292 = vunpack.c.l.b16 %v8156
        %v8293 = vunpack.c.l.b16 %v8157
        %v8294 = vunpack.c.l.b16 %v8158
        %v8295 = vunpack.c.l.b16 %v8159
        %v8296 = vunpack.c.l.b16 %v8160
        %v8297 = vunpack.c.l.b16 %v8161
        %v8298 = vunpack.c.l.b16 %v8162
        %v8299 = vunpack.c.l.b16 %v8163
        %v8300 = vunpack.c.l.b16 %v8164
        %v8301 = vunpack.c.l.b16 %v8165
        %v8302 = vunpack.c.l.b16 %v8166
        %v8303 = vunpack.c.l.b16 %v8167
        %v8304 = vunpack.c.l.b16 %v8168
        %v8305 = vunpack.c.l.b16 %v8169
        %v8306 = vunpack.c.l.b16 %v8170
        %v8307 = vunpack.c.l.b16 %v8171
        %v8308 = vunpack.c.l.b16 %v8172
        %v8309 = vunpack.c.l.b16 %v8173
        %v8310 = vunpack.c.l.b16 %v8174
        %v8311 = vunpack.c.l.b16 %v8175
        %v8312 = vunpack.c.l.b16 %v8176
        %v8313 = vunpack.c.l.b16 %v8177
        %v8314 = vunpack.c.l.b16 %v8178
        %v8315 = vunpack.c.l.b16 %v8179
        %v8316 = vunpack.c.l.b16 %v8180
        %v8317 = vunpack.c.l.b16 %v8181
        %v8318 = vunpack.c.l.b16 %v8182
        %v8319 = vunpack.c.l.b16 %v8183
        %v8320 = vunpack.c.l.b16 %v8184
        %v8321 = vunpack.c.l.b16 %v8185
        %v8322 = vunpack.c.l.b16 %v8186
        %v8323 = vunpack.c.l.b16 %v8187
        %v8324 = vunpack.c.l.b16 %v8188
        %v8325 = vunpack.c.l.b16 %v8189
        %v8326 = vunpack.c.l.b16 %v8190
        %v8327 = vunpack.c.l.b16 %v8191
        %v8328 = vunpack.c.l.b16 %v8192
        %v8329 = vunpack.c.l.b16 %v8193
        %v8330 = vunpack.c.l.b16 %v8194
        %v8331 = vunpack.c.l.b16 %v8195
        %v8332 = vunpack.c.l.b16 %v8196
        %v8333 = vunpack.c.l.b16 %v8197
        %v8334 = vunpack.c.l.b16 %v8198
        %v8335 = vunpack.c.l.b16 %v8199
        %v8336 = vunpack.c.l.b16 %v8200
        %v8337 = vunpack.c.l.b16 %v8201
        %v8338 = vunpack.c.l.b16 %v8202
        %v8339 = vunpack.c.l.b16 %v8203
        %v8340 = vunpack.c.l.b16 %v8204
        %v8341 = vunpack.c.l.b16 %v8205
        %v8342 = vunpack.c.l.b16 %v8206
        %v8343 = vunpack.c.l.b16 %v8207
        %v8344 = vunpack.c.l.b16 %v8208
        %v8345 = vunpack.c.l.b16 %v8209
        %v8346 = vunpack.c.l.b16 %v8210
        %v8347 = vunpack.c.l.b16 %v8211
        %v8348 = vunpack.c.l.b16 %v8212
        %v8349 = vunpack.c.l.b16 %v8213
        %v8350 = vunpack.c.l.b16 %v8214
        %v8351 = vpack.c.b16 %v8288, %v8287
        %v8352 = vpack.c.b16 %v8290, %v8289
        %v8353 = vpack.c.b16 %v8292, %v8291
        %v8354 = vpack.c.b16 %v8294, %v8293
        %v8355 = vpack.c.b16 %v8296, %v8295
        %v8356 = vpack.c.b16 %v8298, %v8297
        %v8357 = vpack.c.b16 %v8300, %v8299
        %v8358 = vpack.c.b16 %v8302, %v8301
        %v8359 = vpack.c.b16 %v8304, %v8303
        %v8360 = vpack.c.b16 %v8306, %v8305
        %v8361 = vpack.c.b16 %v8308, %v8307
        %v8362 = vpack.c.b16 %v8310, %v8309
        %v8363 = vpack.c.b16 %v8312, %v8311
        %v8364 = vpack.c.b16 %v8314, %v8313
        %v8365 = vpack.c.b16 %v8316, %v8315
        %v8366 = vpack.c.b16 %v8318, %v8317
        %v8367 = vpack.c.b16 %v8320, %v8319
        %v8368 = vpack.c.b16 %v8322, %v8321
        %v8369 = vpack.c.b16 %v8324, %v8323
        %v8370 = vpack.c.b16 %v8326, %v8325
        %v8371 = vpack.c.b16 %v8328, %v8327
        %v8372 = vpack.c.b16 %v8330, %v8329
        %v8373 = vpack.c.b16 %v8332, %v8331
        %v8374 = vpack.c.b16 %v8334, %v8333
        %v8375 = vpack.c.b16 %v8336, %v8335
        %v8376 = vpack.c.b16 %v8338, %v8337
        %v8377 = vpack.c.b16 %v8340, %v8339
        %v8378 = vpack.c.b16 %v8342, %v8341
        %v8379 = vpack.c.b16 %v8344, %v8343
        %v8380 = vpack.c.b16 %v8346, %v8345
        %v8381 = vpack.c.b16 %v8348, %v8347
        %v8382 = vpack.c.b16 %v8350, %v8349
        %8415 = vmatprep.subr.bf16.mxu0 0
        %8416 = vmatpush1.bf16.msra.mxu0 %v8351
        %8417 = vmatprep.subr.bf16.mxu0 0
        %8418 = vmatpush1.bf16.msra.mxu0 %v8352
        %8419 = vmatprep.subr.bf16.mxu0 0
        %8420 = vmatpush1.bf16.msra.mxu0 %v8353
        %8421 = vmatprep.subr.bf16.mxu0 0
        %8422 = vmatpush1.bf16.msra.mxu0 %v8354
        %8423 = vmatprep.subr.bf16.mxu0 0
        %8424 = vmatpush1.bf16.msra.mxu0 %v8355
        %8425 = vmatprep.subr.bf16.mxu0 0
        %8426 = vmatpush1.bf16.msra.mxu0 %v8356
        %8427 = vmatprep.subr.bf16.mxu0 0
        %8428 = vmatpush1.bf16.msra.mxu0 %v8357
        %8429 = vmatprep.subr.bf16.mxu0 0
        %8430 = vmatpush1.bf16.msra.mxu0 %v8358
        %8431 = vmatprep.subr.bf16.mxu0 0
        %8432 = vmatpush1.bf16.msra.mxu0 %v8359
        %8433 = vmatprep.subr.bf16.mxu0 0
        %8434 = vmatpush1.bf16.msra.mxu0 %v8360
        %8435 = vmatprep.subr.bf16.mxu0 0
        %8436 = vmatpush1.bf16.msra.mxu0 %v8361
        %8437 = vmatprep.subr.bf16.mxu0 0
        %8438 = vmatpush1.bf16.msra.mxu0 %v8362
        %8439 = vmatprep.subr.bf16.mxu0 0
        %8440 = vmatpush1.bf16.msra.mxu0 %v8363
        %8441 = vmatprep.subr.bf16.mxu0 0
        %8442 = vmatpush1.bf16.msra.mxu0 %v8364
        %8443 = vmatprep.subr.bf16.mxu0 0
        %8444 = vmatpush1.bf16.msra.mxu0 %v8365
        %8445 = vmatprep.subr.bf16.mxu0 0
        %8446 = vmatpush1.bf16.msra.mxu0 %v8366
        %8447 = vmatprep.mubr.bf16.mxu0 %v8216
        %8448 = vmatmul.mubr.bf16.gmra.mrb[0].mxu0 %v8215
        %v8449 = vpop.f32.mrb[0].mxu0
        %v8450 = vadd.f32 0.0, %v8449
        %v8451 = vpop.f32.mrb[0].mxu0
        %v8452 = vpop.f32.mrb[0].mxu0
        %v8453 = vpop.f32.mrb[0].mxu0
        %8454 = vdwg.mxu0
        %8455 = vmatprep.subr.bf16.mxu0 0
        %8456 = vmatpush1.bf16.msra.mxu0 %v8367
        %8457 = vmatprep.subr.bf16.mxu0 0
        %8458 = vmatpush1.bf16.msra.mxu0 %v8368
        %8459 = vmatprep.subr.bf16.mxu0 0
        %8460 = vmatpush1.bf16.msra.mxu0 %v8369
        %8461 = vmatprep.subr.bf16.mxu0 0
        %8462 = vmatpush1.bf16.msra.mxu0 %v8370
        %8463 = vmatprep.subr.bf16.mxu0 0
        %8464 = vmatpush1.bf16.msra.mxu0 %v8371
        %8465 = vmatprep.subr.bf16.mxu0 0
        %8466 = vmatpush1.bf16.msra.mxu0 %v8372
        %8467 = vmatprep.subr.bf16.mxu0 0
        %8468 = vmatpush1.bf16.msra.mxu0 %v8373
        %8469 = vmatprep.subr.bf16.mxu0 0
        %8470 = vmatpush1.bf16.msra.mxu0 %v8374
        %8471 = vmatprep.subr.bf16.mxu0 0
        %8472 = vmatpush1.bf16.msra.mxu0 %v8375
        %8473 = vmatprep.subr.bf16.mxu0 0
        %8474 = vmatpush1.bf16.msra.mxu0 %v8376
        %8475 = vmatprep.subr.bf16.mxu0 0
        %8476 = vmatpush1.bf16.msra.mxu0 %v8377
        %8477 = vmatprep.subr.bf16.mxu0 0
        %8478 = vmatpush1.bf16.msra.mxu0 %v8378
        %8479 = vmatprep.subr.bf16.mxu0 0
        %8480 = vmatpush1.bf16.msra.mxu0 %v8379
        %8481 = vmatprep.subr.bf16.mxu0 0
        %8482 = vmatpush1.bf16.msra.mxu0 %v8380
        %8483 = vmatprep.subr.bf16.mxu0 0
        %8484 = vmatpush1.bf16.msra.mxu0 %v8381
        %8485 = vmatprep.subr.bf16.mxu0 0
        %8486 = vmatpush1.bf16.msra.mxu0 %v8382
        %8487 = vmatprep.mubr.bf16.mxu0 %v8218
        %8488 = vmatmul.mubr.bf16.gmra.mrb[0].mxu0 %v8217
        %v8489 = vpop.f32.mrb[0].mxu0
        %v8490 = vadd.f32 %v8450, %v8489
        %v8491 = vpop.f32.mrb[0].mxu0
        %v8492 = vpop.f32.mrb[0].mxu0
        %v8493 = vpop.f32.mrb[0].mxu0
        %8494 = vdwg.mxu0
        %v8495 = vadd.f32 %v8149, %v8490
        %s8496 = scalar_lea.vmem %s11, 1536
        %v8497 = vld [vmem:[%s8496] sm:$0xf]
        %v8498 = vld [vmem:[%s8496 + $0x4] sm:$0xf]
        %v8499 = vld [vmem:[%s8496 + $0x8] sm:$0xf]
        %v8500 = vld [vmem:[%s8496 + $0xc] sm:$0xf]
        %v8501 = vld [vmem:[%s8496 + $0x10] sm:$0xf]
        %v8502 = vld [vmem:[%s8496 + $0x14] sm:$0xf]
        %v8503 = vld [vmem:[%s8496 + $0x18] sm:$0xf]
        %v8504 = vld [vmem:[%s8496 + $0x1c] sm:$0xf]
        %v8505 = vld [vmem:[%s8496 + $0x20] sm:$0xf]
        %v8506 = vld [vmem:[%s8496 + $0x24] sm:$0xf]
        %v8507 = vld [vmem:[%s8496 + $0x28] sm:$0xf]
        %v8508 = vld [vmem:[%s8496 + $0x2c] sm:$0xf]
        %v8509 = vld [vmem:[%s8496 + $0x30] sm:$0xf]
        %v8510 = vld [vmem:[%s8496 + $0x34] sm:$0xf]
        %v8511 = vld [vmem:[%s8496 + $0x38] sm:$0xf]
        %v8512 = vld [vmem:[%s8496 + $0x3c] sm:$0xf]
        %v8513 = vld [vmem:[%s8496 + $0x40] sm:$0xf]
        %v8514 = vld [vmem:[%s8496 + $0x44] sm:$0xf]
        %v8515 = vld [vmem:[%s8496 + $0x48] sm:$0xf]
        %v8516 = vld [vmem:[%s8496 + $0x4c] sm:$0xf]
        %v8517 = vld [vmem:[%s8496 + $0x50] sm:$0xf]
        %v8518 = vld [vmem:[%s8496 + $0x54] sm:$0xf]
        %v8519 = vld [vmem:[%s8496 + $0x58] sm:$0xf]
        %v8520 = vld [vmem:[%s8496 + $0x5c] sm:$0xf]
        %v8521 = vld [vmem:[%s8496 + $0x60] sm:$0xf]
        %v8522 = vld [vmem:[%s8496 + $0x64] sm:$0xf]
        %v8523 = vld [vmem:[%s8496 + $0x68] sm:$0xf]
        %v8524 = vld [vmem:[%s8496 + $0x6c] sm:$0xf]
        %v8525 = vld [vmem:[%s8496 + $0x70] sm:$0xf]
        %v8526 = vld [vmem:[%s8496 + $0x74] sm:$0xf]
        %v8527 = vld [vmem:[%s8496 + $0x78] sm:$0xf]
        %v8528 = vld [vmem:[%s8496 + $0x7c] sm:$0xf]
        %v8529 = vld [vmem:[%s8496 + $0x80] sm:$0xf]
        %v8530 = vld [vmem:[%s8496 + $0x84] sm:$0xf]
        %v8531 = vld [vmem:[%s8496 + $0x88] sm:$0xf]
        %v8532 = vld [vmem:[%s8496 + $0x8c] sm:$0xf]
        %v8533 = vld [vmem:[%s8496 + $0x90] sm:$0xf]
        %v8534 = vld [vmem:[%s8496 + $0x94] sm:$0xf]
        %v8535 = vld [vmem:[%s8496 + $0x98] sm:$0xf]
        %v8536 = vld [vmem:[%s8496 + $0x9c] sm:$0xf]
        %v8537 = vld [vmem:[%s8496 + $0xa0] sm:$0xf]
        %v8538 = vld [vmem:[%s8496 + $0xa4] sm:$0xf]
        %v8539 = vld [vmem:[%s8496 + $0xa8] sm:$0xf]
        %v8540 = vld [vmem:[%s8496 + $0xac] sm:$0xf]
        %v8541 = vld [vmem:[%s8496 + $0xb0] sm:$0xf]
        %v8542 = vld [vmem:[%s8496 + $0xb4] sm:$0xf]
        %v8543 = vld [vmem:[%s8496 + $0xb8] sm:$0xf]
        %v8544 = vld [vmem:[%s8496 + $0xbc] sm:$0xf]
        %v8545 = vld [vmem:[%s8496 + $0xc0] sm:$0xf]
        %v8546 = vld [vmem:[%s8496 + $0xc4] sm:$0xf]
        %v8547 = vld [vmem:[%s8496 + $0xc8] sm:$0xf]
        %v8548 = vld [vmem:[%s8496 + $0xcc] sm:$0xf]
        %v8549 = vld [vmem:[%s8496 + $0xd0] sm:$0xf]
        %v8550 = vld [vmem:[%s8496 + $0xd4] sm:$0xf]
        %v8551 = vld [vmem:[%s8496 + $0xd8] sm:$0xf]
        %v8552 = vld [vmem:[%s8496 + $0xdc] sm:$0xf]
        %v8553 = vld [vmem:[%s8496 + $0xe0] sm:$0xf]
        %v8554 = vld [vmem:[%s8496 + $0xe4] sm:$0xf]
        %v8555 = vld [vmem:[%s8496 + $0xe8] sm:$0xf]
        %v8556 = vld [vmem:[%s8496 + $0xec] sm:$0xf]
        %v8557 = vld [vmem:[%s8496 + $0xf0] sm:$0xf]
        %v8558 = vld [vmem:[%s8496 + $0xf4] sm:$0xf]
        %v8559 = vld [vmem:[%s8496 + $0xf8] sm:$0xf]
        %v8560 = vld [vmem:[%s8496 + $0xfc] sm:$0xf]
        %v8561 = vrot.slane %v6413, 3
        %v8562 = vrot.slane %v6414, 3
        %v8563 = vrot.slane %v6415, 3
        %v8564 = vrot.slane %v6416, 3
        %v8633 = vunpack.c.l.b16 %v8497
        %v8634 = vunpack.c.l.b16 %v8498
        %v8635 = vunpack.c.l.b16 %v8499
        %v8636 = vunpack.c.l.b16 %v8500
        %v8637 = vunpack.c.l.b16 %v8501
        %v8638 = vunpack.c.l.b16 %v8502
        %v8639 = vunpack.c.l.b16 %v8503
        %v8640 = vunpack.c.l.b16 %v8504
        %v8641 = vunpack.c.l.b16 %v8505
        %v8642 = vunpack.c.l.b16 %v8506
        %v8643 = vunpack.c.l.b16 %v8507
        %v8644 = vunpack.c.l.b16 %v8508
        %v8645 = vunpack.c.l.b16 %v8509
        %v8646 = vunpack.c.l.b16 %v8510
        %v8647 = vunpack.c.l.b16 %v8511
        %v8648 = vunpack.c.l.b16 %v8512
        %v8649 = vunpack.c.l.b16 %v8513
        %v8650 = vunpack.c.l.b16 %v8514
        %v8651 = vunpack.c.l.b16 %v8515
        %v8652 = vunpack.c.l.b16 %v8516
        %v8653 = vunpack.c.l.b16 %v8517
        %v8654 = vunpack.c.l.b16 %v8518
        %v8655 = vunpack.c.l.b16 %v8519
        %v8656 = vunpack.c.l.b16 %v8520
        %v8657 = vunpack.c.l.b16 %v8521
        %v8658 = vunpack.c.l.b16 %v8522
        %v8659 = vunpack.c.l.b16 %v8523
        %v8660 = vunpack.c.l.b16 %v8524
        %v8661 = vunpack.c.l.b16 %v8525
        %v8662 = vunpack.c.l.b16 %v8526
        %v8663 = vunpack.c.l.b16 %v8527
        %v8664 = vunpack.c.l.b16 %v8528
        %v8665 = vunpack.c.l.b16 %v8529
        %v8666 = vunpack.c.l.b16 %v8530
        %v8667 = vunpack.c.l.b16 %v8531
        %v8668 = vunpack.c.l.b16 %v8532
        %v8669 = vunpack.c.l.b16 %v8533
        %v8670 = vunpack.c.l.b16 %v8534
        %v8671 = vunpack.c.l.b16 %v8535
        %v8672 = vunpack.c.l.b16 %v8536
        %v8673 = vunpack.c.l.b16 %v8537
        %v8674 = vunpack.c.l.b16 %v8538
        %v8675 = vunpack.c.l.b16 %v8539
        %v8676 = vunpack.c.l.b16 %v8540
        %v8677 = vunpack.c.l.b16 %v8541
        %v8678 = vunpack.c.l.b16 %v8542
        %v8679 = vunpack.c.l.b16 %v8543
        %v8680 = vunpack.c.l.b16 %v8544
        %v8681 = vunpack.c.l.b16 %v8545
        %v8682 = vunpack.c.l.b16 %v8546
        %v8683 = vunpack.c.l.b16 %v8547
        %v8684 = vunpack.c.l.b16 %v8548
        %v8685 = vunpack.c.l.b16 %v8549
        %v8686 = vunpack.c.l.b16 %v8550
        %v8687 = vunpack.c.l.b16 %v8551
        %v8688 = vunpack.c.l.b16 %v8552
        %v8689 = vunpack.c.l.b16 %v8553
        %v8690 = vunpack.c.l.b16 %v8554
        %v8691 = vunpack.c.l.b16 %v8555
        %v8692 = vunpack.c.l.b16 %v8556
        %v8693 = vunpack.c.l.b16 %v8557
        %v8694 = vunpack.c.l.b16 %v8558
        %v8695 = vunpack.c.l.b16 %v8559
        %v8696 = vunpack.c.l.b16 %v8560
        %v8697 = vpack.c.b16 %v8634, %v8633
        %v8698 = vpack.c.b16 %v8636, %v8635
        %v8699 = vpack.c.b16 %v8638, %v8637
        %v8700 = vpack.c.b16 %v8640, %v8639
        %v8701 = vpack.c.b16 %v8642, %v8641
        %v8702 = vpack.c.b16 %v8644, %v8643
        %v8703 = vpack.c.b16 %v8646, %v8645
        %v8704 = vpack.c.b16 %v8648, %v8647
        %v8705 = vpack.c.b16 %v8650, %v8649
        %v8706 = vpack.c.b16 %v8652, %v8651
        %v8707 = vpack.c.b16 %v8654, %v8653
        %v8708 = vpack.c.b16 %v8656, %v8655
        %v8709 = vpack.c.b16 %v8658, %v8657
        %v8710 = vpack.c.b16 %v8660, %v8659
        %v8711 = vpack.c.b16 %v8662, %v8661
        %v8712 = vpack.c.b16 %v8664, %v8663
        %v8713 = vpack.c.b16 %v8666, %v8665
        %v8714 = vpack.c.b16 %v8668, %v8667
        %v8715 = vpack.c.b16 %v8670, %v8669
        %v8716 = vpack.c.b16 %v8672, %v8671
        %v8717 = vpack.c.b16 %v8674, %v8673
        %v8718 = vpack.c.b16 %v8676, %v8675
        %v8719 = vpack.c.b16 %v8678, %v8677
        %v8720 = vpack.c.b16 %v8680, %v8679
        %v8721 = vpack.c.b16 %v8682, %v8681
        %v8722 = vpack.c.b16 %v8684, %v8683
        %v8723 = vpack.c.b16 %v8686, %v8685
        %v8724 = vpack.c.b16 %v8688, %v8687
        %v8725 = vpack.c.b16 %v8690, %v8689
        %v8726 = vpack.c.b16 %v8692, %v8691
        %v8727 = vpack.c.b16 %v8694, %v8693
        %v8728 = vpack.c.b16 %v8696, %v8695
        %8761 = vmatprep.subr.bf16.mxu0 0
        %8762 = vmatpush1.bf16.msra.mxu0 %v8697
        %8763 = vmatprep.subr.bf16.mxu0 0
        %8764 = vmatpush1.bf16.msra.mxu0 %v8698
        %8765 = vmatprep.subr.bf16.mxu0 0
        %8766 = vmatpush1.bf16.msra.mxu0 %v8699
        %8767 = vmatprep.subr.bf16.mxu0 0
        %8768 = vmatpush1.bf16.msra.mxu0 %v8700
        %8769 = vmatprep.subr.bf16.mxu0 0
        %8770 = vmatpush1.bf16.msra.mxu0 %v8701
        %8771 = vmatprep.subr.bf16.mxu0 0
        %8772 = vmatpush1.bf16.msra.mxu0 %v8702
        %8773 = vmatprep.subr.bf16.mxu0 0
        %8774 = vmatpush1.bf16.msra.mxu0 %v8703
        %8775 = vmatprep.subr.bf16.mxu0 0
        %8776 = vmatpush1.bf16.msra.mxu0 %v8704
        %8777 = vmatprep.subr.bf16.mxu0 0
        %8778 = vmatpush1.bf16.msra.mxu0 %v8705
        %8779 = vmatprep.subr.bf16.mxu0 0
        %8780 = vmatpush1.bf16.msra.mxu0 %v8706
        %8781 = vmatprep.subr.bf16.mxu0 0
        %8782 = vmatpush1.bf16.msra.mxu0 %v8707
        %8783 = vmatprep.subr.bf16.mxu0 0
        %8784 = vmatpush1.bf16.msra.mxu0 %v8708
        %8785 = vmatprep.subr.bf16.mxu0 0
        %8786 = vmatpush1.bf16.msra.mxu0 %v8709
        %8787 = vmatprep.subr.bf16.mxu0 0
        %8788 = vmatpush1.bf16.msra.mxu0 %v8710
        %8789 = vmatprep.subr.bf16.mxu0 0
        %8790 = vmatpush1.bf16.msra.mxu0 %v8711
        %8791 = vmatprep.subr.bf16.mxu0 0
        %8792 = vmatpush1.bf16.msra.mxu0 %v8712
        %8793 = vmatprep.mubr.bf16.mxu0 %v8562
        %8794 = vmatmul.mubr.bf16.gmra.mrb[0].mxu0 %v8561
        %v8795 = vpop.f32.mrb[0].mxu0
        %v8796 = vadd.f32 0.0, %v8795
        %v8797 = vpop.f32.mrb[0].mxu0
        %v8798 = vpop.f32.mrb[0].mxu0
        %v8799 = vpop.f32.mrb[0].mxu0
        %8800 = vdwg.mxu0
        %8801 = vmatprep.subr.bf16.mxu0 0
        %8802 = vmatpush1.bf16.msra.mxu0 %v8713
        %8803 = vmatprep.subr.bf16.mxu0 0
        %8804 = vmatpush1.bf16.msra.mxu0 %v8714
        %8805 = vmatprep.subr.bf16.mxu0 0
        %8806 = vmatpush1.bf16.msra.mxu0 %v8715
        %8807 = vmatprep.subr.bf16.mxu0 0
        %8808 = vmatpush1.bf16.msra.mxu0 %v8716
        %8809 = vmatprep.subr.bf16.mxu0 0
        %8810 = vmatpush1.bf16.msra.mxu0 %v8717
        %8811 = vmatprep.subr.bf16.mxu0 0
        %8812 = vmatpush1.bf16.msra.mxu0 %v8718
        %8813 = vmatprep.subr.bf16.mxu0 0
        %8814 = vmatpush1.bf16.msra.mxu0 %v8719
        %8815 = vmatprep.subr.bf16.mxu0 0
        %8816 = vmatpush1.bf16.msra.mxu0 %v8720
        %8817 = vmatprep.subr.bf16.mxu0 0
        %8818 = vmatpush1.bf16.msra.mxu0 %v8721
        %8819 = vmatprep.subr.bf16.mxu0 0
        %8820 = vmatpush1.bf16.msra.mxu0 %v8722
        %8821 = vmatprep.subr.bf16.mxu0 0
        %8822 = vmatpush1.bf16.msra.mxu0 %v8723
        %8823 = vmatprep.subr.bf16.mxu0 0
        %8824 = vmatpush1.bf16.msra.mxu0 %v8724
        %8825 = vmatprep.subr.bf16.mxu0 0
        %8826 = vmatpush1.bf16.msra.mxu0 %v8725
        %8827 = vmatprep.subr.bf16.mxu0 0
        %8828 = vmatpush1.bf16.msra.mxu0 %v8726
        %8829 = vmatprep.subr.bf16.mxu0 0
        %8830 = vmatpush1.bf16.msra.mxu0 %v8727
        %8831 = vmatprep.subr.bf16.mxu0 0
        %8832 = vmatpush1.bf16.msra.mxu0 %v8728
        %8833 = vmatprep.mubr.bf16.mxu0 %v8564
        %8834 = vmatmul.mubr.bf16.gmra.mrb[0].mxu0 %v8563
        %v8835 = vpop.f32.mrb[0].mxu0
        %v8836 = vadd.f32 %v8796, %v8835
        %v8837 = vpop.f32.mrb[0].mxu0
        %v8838 = vpop.f32.mrb[0].mxu0
        %v8839 = vpop.f32.mrb[0].mxu0
        %8840 = vdwg.mxu0
        %v8841 = vadd.f32 %v8495, %v8836
        %s8842 = scalar_lea.vmem %s11, 1792
        %v8843 = vld [vmem:[%s8842] sm:$0xf]
        %v8844 = vld [vmem:[%s8842 + $0x4] sm:$0xf]
        %v8845 = vld [vmem:[%s8842 + $0x8] sm:$0xf]
        %v8846 = vld [vmem:[%s8842 + $0xc] sm:$0xf]
        %v8847 = vld [vmem:[%s8842 + $0x10] sm:$0xf]
        %v8848 = vld [vmem:[%s8842 + $0x14] sm:$0xf]
        %v8849 = vld [vmem:[%s8842 + $0x18] sm:$0xf]
        %v8850 = vld [vmem:[%s8842 + $0x1c] sm:$0xf]
        %v8851 = vld [vmem:[%s8842 + $0x20] sm:$0xf]
        %v8852 = vld [vmem:[%s8842 + $0x24] sm:$0xf]
        %v8853 = vld [vmem:[%s8842 + $0x28] sm:$0xf]
        %v8854 = vld [vmem:[%s8842 + $0x2c] sm:$0xf]
        %v8855 = vld [vmem:[%s8842 + $0x30] sm:$0xf]
        %v8856 = vld [vmem:[%s8842 + $0x34] sm:$0xf]
        %v8857 = vld [vmem:[%s8842 + $0x38] sm:$0xf]
        %v8858 = vld [vmem:[%s8842 + $0x3c] sm:$0xf]
        %v8859 = vld [vmem:[%s8842 + $0x40] sm:$0xf]
        %v8860 = vld [vmem:[%s8842 + $0x44] sm:$0xf]
        %v8861 = vld [vmem:[%s8842 + $0x48] sm:$0xf]
        %v8862 = vld [vmem:[%s8842 + $0x4c] sm:$0xf]
        %v8863 = vld [vmem:[%s8842 + $0x50] sm:$0xf]
        %v8864 = vld [vmem:[%s8842 + $0x54] sm:$0xf]
        %v8865 = vld [vmem:[%s8842 + $0x58] sm:$0xf]
        %v8866 = vld [vmem:[%s8842 + $0x5c] sm:$0xf]
        %v8867 = vld [vmem:[%s8842 + $0x60] sm:$0xf]
        %v8868 = vld [vmem:[%s8842 + $0x64] sm:$0xf]
        %v8869 = vld [vmem:[%s8842 + $0x68] sm:$0xf]
        %v8870 = vld [vmem:[%s8842 + $0x6c] sm:$0xf]
        %v8871 = vld [vmem:[%s8842 + $0x70] sm:$0xf]
        %v8872 = vld [vmem:[%s8842 + $0x74] sm:$0xf]
        %v8873 = vld [vmem:[%s8842 + $0x78] sm:$0xf]
        %v8874 = vld [vmem:[%s8842 + $0x7c] sm:$0xf]
        %v8875 = vld [vmem:[%s8842 + $0x80] sm:$0xf]
        %v8876 = vld [vmem:[%s8842 + $0x84] sm:$0xf]
        %v8877 = vld [vmem:[%s8842 + $0x88] sm:$0xf]
        %v8878 = vld [vmem:[%s8842 + $0x8c] sm:$0xf]
        %v8879 = vld [vmem:[%s8842 + $0x90] sm:$0xf]
        %v8880 = vld [vmem:[%s8842 + $0x94] sm:$0xf]
        %v8881 = vld [vmem:[%s8842 + $0x98] sm:$0xf]
        %v8882 = vld [vmem:[%s8842 + $0x9c] sm:$0xf]
        %v8883 = vld [vmem:[%s8842 + $0xa0] sm:$0xf]
        %v8884 = vld [vmem:[%s8842 + $0xa4] sm:$0xf]
        %v8885 = vld [vmem:[%s8842 + $0xa8] sm:$0xf]
        %v8886 = vld [vmem:[%s8842 + $0xac] sm:$0xf]
        %v8887 = vld [vmem:[%s8842 + $0xb0] sm:$0xf]
        %v8888 = vld [vmem:[%s8842 + $0xb4] sm:$0xf]
        %v8889 = vld [vmem:[%s8842 + $0xb8] sm:$0xf]
        %v8890 = vld [vmem:[%s8842 + $0xbc] sm:$0xf]
        %v8891 = vld [vmem:[%s8842 + $0xc0] sm:$0xf]
        %v8892 = vld [vmem:[%s8842 + $0xc4] sm:$0xf]
        %v8893 = vld [vmem:[%s8842 + $0xc8] sm:$0xf]
        %v8894 = vld [vmem:[%s8842 + $0xcc] sm:$0xf]
        %v8895 = vld [vmem:[%s8842 + $0xd0] sm:$0xf]
        %v8896 = vld [vmem:[%s8842 + $0xd4] sm:$0xf]
        %v8897 = vld [vmem:[%s8842 + $0xd8] sm:$0xf]
        %v8898 = vld [vmem:[%s8842 + $0xdc] sm:$0xf]
        %v8899 = vld [vmem:[%s8842 + $0xe0] sm:$0xf]
        %v8900 = vld [vmem:[%s8842 + $0xe4] sm:$0xf]
        %v8901 = vld [vmem:[%s8842 + $0xe8] sm:$0xf]
        %v8902 = vld [vmem:[%s8842 + $0xec] sm:$0xf]
        %v8903 = vld [vmem:[%s8842 + $0xf0] sm:$0xf]
        %v8904 = vld [vmem:[%s8842 + $0xf4] sm:$0xf]
        %v8905 = vld [vmem:[%s8842 + $0xf8] sm:$0xf]
        %v8906 = vld [vmem:[%s8842 + $0xfc] sm:$0xf]
        %v8907 = vrot.slane %v6820, 3
        %v8908 = vrot.slane %v6823, 3
        %v8909 = vrot.slane %v6826, 3
        %v8910 = vrot.slane %v6829, 3
        %v8979 = vunpack.c.l.b16 %v8843
        %v8980 = vunpack.c.l.b16 %v8844
        %v8981 = vunpack.c.l.b16 %v8845
        %v8982 = vunpack.c.l.b16 %v8846
        %v8983 = vunpack.c.l.b16 %v8847
        %v8984 = vunpack.c.l.b16 %v8848
        %v8985 = vunpack.c.l.b16 %v8849
        %v8986 = vunpack.c.l.b16 %v8850
        %v8987 = vunpack.c.l.b16 %v8851
        %v8988 = vunpack.c.l.b16 %v8852
        %v8989 = vunpack.c.l.b16 %v8853
        %v8990 = vunpack.c.l.b16 %v8854
        %v8991 = vunpack.c.l.b16 %v8855
        %v8992 = vunpack.c.l.b16 %v8856
        %v8993 = vunpack.c.l.b16 %v8857
        %v8994 = vunpack.c.l.b16 %v8858
        %v8995 = vunpack.c.l.b16 %v8859
        %v8996 = vunpack.c.l.b16 %v8860
        %v8997 = vunpack.c.l.b16 %v8861
        %v8998 = vunpack.c.l.b16 %v8862
        %v8999 = vunpack.c.l.b16 %v8863
        %v9000 = vunpack.c.l.b16 %v8864
        %v9001 = vunpack.c.l.b16 %v8865
        %v9002 = vunpack.c.l.b16 %v8866
        %v9003 = vunpack.c.l.b16 %v8867
        %v9004 = vunpack.c.l.b16 %v8868
        %v9005 = vunpack.c.l.b16 %v8869
        %v9006 = vunpack.c.l.b16 %v8870
        %v9007 = vunpack.c.l.b16 %v8871
        %v9008 = vunpack.c.l.b16 %v8872
        %v9009 = vunpack.c.l.b16 %v8873
        %v9010 = vunpack.c.l.b16 %v8874
        %v9011 = vunpack.c.l.b16 %v8875
        %v9012 = vunpack.c.l.b16 %v8876
        %v9013 = vunpack.c.l.b16 %v8877
        %v9014 = vunpack.c.l.b16 %v8878
        %v9015 = vunpack.c.l.b16 %v8879
        %v9016 = vunpack.c.l.b16 %v8880
        %v9017 = vunpack.c.l.b16 %v8881
        %v9018 = vunpack.c.l.b16 %v8882
        %v9019 = vunpack.c.l.b16 %v8883
        %v9020 = vunpack.c.l.b16 %v8884
        %v9021 = vunpack.c.l.b16 %v8885
        %v9022 = vunpack.c.l.b16 %v8886
        %v9023 = vunpack.c.l.b16 %v8887
        %v9024 = vunpack.c.l.b16 %v8888
        %v9025 = vunpack.c.l.b16 %v8889
        %v9026 = vunpack.c.l.b16 %v8890
        %v9027 = vunpack.c.l.b16 %v8891
        %v9028 = vunpack.c.l.b16 %v8892
        %v9029 = vunpack.c.l.b16 %v8893
        %v9030 = vunpack.c.l.b16 %v8894
        %v9031 = vunpack.c.l.b16 %v8895
        %v9032 = vunpack.c.l.b16 %v8896
        %v9033 = vunpack.c.l.b16 %v8897
        %v9034 = vunpack.c.l.b16 %v8898
        %v9035 = vunpack.c.l.b16 %v8899
        %v9036 = vunpack.c.l.b16 %v8900
        %v9037 = vunpack.c.l.b16 %v8901
        %v9038 = vunpack.c.l.b16 %v8902
        %v9039 = vunpack.c.l.b16 %v8903
        %v9040 = vunpack.c.l.b16 %v8904
        %v9041 = vunpack.c.l.b16 %v8905
        %v9042 = vunpack.c.l.b16 %v8906
        %v9043 = vpack.c.b16 %v8980, %v8979
        %v9044 = vpack.c.b16 %v8982, %v8981
        %v9045 = vpack.c.b16 %v8984, %v8983
        %v9046 = vpack.c.b16 %v8986, %v8985
        %v9047 = vpack.c.b16 %v8988, %v8987
        %v9048 = vpack.c.b16 %v8990, %v8989
        %v9049 = vpack.c.b16 %v8992, %v8991
        %v9050 = vpack.c.b16 %v8994, %v8993
        %v9051 = vpack.c.b16 %v8996, %v8995
        %v9052 = vpack.c.b16 %v8998, %v8997
        %v9053 = vpack.c.b16 %v9000, %v8999
        %v9054 = vpack.c.b16 %v9002, %v9001
        %v9055 = vpack.c.b16 %v9004, %v9003
        %v9056 = vpack.c.b16 %v9006, %v9005
        %v9057 = vpack.c.b16 %v9008, %v9007
        %v9058 = vpack.c.b16 %v9010, %v9009
        %v9059 = vpack.c.b16 %v9012, %v9011
        %v9060 = vpack.c.b16 %v9014, %v9013
        %v9061 = vpack.c.b16 %v9016, %v9015
        %v9062 = vpack.c.b16 %v9018, %v9017
        %v9063 = vpack.c.b16 %v9020, %v9019
        %v9064 = vpack.c.b16 %v9022, %v9021
        %v9065 = vpack.c.b16 %v9024, %v9023
        %v9066 = vpack.c.b16 %v9026, %v9025
        %v9067 = vpack.c.b16 %v9028, %v9027
        %v9068 = vpack.c.b16 %v9030, %v9029
        %v9069 = vpack.c.b16 %v9032, %v9031
        %v9070 = vpack.c.b16 %v9034, %v9033
        %v9071 = vpack.c.b16 %v9036, %v9035
        %v9072 = vpack.c.b16 %v9038, %v9037
        %v9073 = vpack.c.b16 %v9040, %v9039
        %v9074 = vpack.c.b16 %v9042, %v9041
        %9107 = vmatprep.subr.bf16.mxu0 0
        %9108 = vmatpush1.bf16.msra.mxu0 %v9043
        %9109 = vmatprep.subr.bf16.mxu0 0
        %9110 = vmatpush1.bf16.msra.mxu0 %v9044
        %9111 = vmatprep.subr.bf16.mxu0 0
        %9112 = vmatpush1.bf16.msra.mxu0 %v9045
        %9113 = vmatprep.subr.bf16.mxu0 0
        %9114 = vmatpush1.bf16.msra.mxu0 %v9046
        %9115 = vmatprep.subr.bf16.mxu0 0
        %9116 = vmatpush1.bf16.msra.mxu0 %v9047
        %9117 = vmatprep.subr.bf16.mxu0 0
        %9118 = vmatpush1.bf16.msra.mxu0 %v9048
        %9119 = vmatprep.subr.bf16.mxu0 0
        %9120 = vmatpush1.bf16.msra.mxu0 %v9049
        %9121 = vmatprep.subr.bf16.mxu0 0
        %9122 = vmatpush1.bf16.msra.mxu0 %v9050
        %9123 = vmatprep.subr.bf16.mxu0 0
        %9124 = vmatpush1.bf16.msra.mxu0 %v9051
        %9125 = vmatprep.subr.bf16.mxu0 0
        %9126 = vmatpush1.bf16.msra.mxu0 %v9052
        %9127 = vmatprep.subr.bf16.mxu0 0
        %9128 = vmatpush1.bf16.msra.mxu0 %v9053
        %9129 = vmatprep.subr.bf16.mxu0 0
        %9130 = vmatpush1.bf16.msra.mxu0 %v9054
        %9131 = vmatprep.subr.bf16.mxu0 0
        %9132 = vmatpush1.bf16.msra.mxu0 %v9055
        %9133 = vmatprep.subr.bf16.mxu0 0
        %9134 = vmatpush1.bf16.msra.mxu0 %v9056
        %9135 = vmatprep.subr.bf16.mxu0 0
        %9136 = vmatpush1.bf16.msra.mxu0 %v9057
        %9137 = vmatprep.subr.bf16.mxu0 0
        %9138 = vmatpush1.bf16.msra.mxu0 %v9058
        %9139 = vmatprep.mubr.bf16.mxu0 %v8908
        %9140 = vmatmul.mubr.bf16.gmra.mrb[0].mxu0 %v8907
        %v9141 = vpop.f32.mrb[0].mxu0
        %v9142 = vadd.f32 0.0, %v9141
        %v9143 = vpop.f32.mrb[0].mxu0
        %v9144 = vpop.f32.mrb[0].mxu0
        %v9145 = vpop.f32.mrb[0].mxu0
        %9146 = vdwg.mxu0
        %9147 = vmatprep.subr.bf16.mxu0 0
        %9148 = vmatpush1.bf16.msra.mxu0 %v9059
        %9149 = vmatprep.subr.bf16.mxu0 0
        %9150 = vmatpush1.bf16.msra.mxu0 %v9060
        %9151 = vmatprep.subr.bf16.mxu0 0
        %9152 = vmatpush1.bf16.msra.mxu0 %v9061
        %9153 = vmatprep.subr.bf16.mxu0 0
        %9154 = vmatpush1.bf16.msra.mxu0 %v9062
        %9155 = vmatprep.subr.bf16.mxu0 0
        %9156 = vmatpush1.bf16.msra.mxu0 %v9063
        %9157 = vmatprep.subr.bf16.mxu0 0
        %9158 = vmatpush1.bf16.msra.mxu0 %v9064
        %9159 = vmatprep.subr.bf16.mxu0 0
        %9160 = vmatpush1.bf16.msra.mxu0 %v9065
        %9161 = vmatprep.subr.bf16.mxu0 0
        %9162 = vmatpush1.bf16.msra.mxu0 %v9066
        %9163 = vmatprep.subr.bf16.mxu0 0
        %9164 = vmatpush1.bf16.msra.mxu0 %v9067
        %9165 = vmatprep.subr.bf16.mxu0 0
        %9166 = vmatpush1.bf16.msra.mxu0 %v9068
        %9167 = vmatprep.subr.bf16.mxu0 0
        %9168 = vmatpush1.bf16.msra.mxu0 %v9069
        %9169 = vmatprep.subr.bf16.mxu0 0
        %9170 = vmatpush1.bf16.msra.mxu0 %v9070
        %9171 = vmatprep.subr.bf16.mxu0 0
        %9172 = vmatpush1.bf16.msra.mxu0 %v9071
        %9173 = vmatprep.subr.bf16.mxu0 0
        %9174 = vmatpush1.bf16.msra.mxu0 %v9072
        %9175 = vmatprep.subr.bf16.mxu0 0
        %9176 = vmatpush1.bf16.msra.mxu0 %v9073
        %9177 = vmatprep.subr.bf16.mxu0 0
        %9178 = vmatpush1.bf16.msra.mxu0 %v9074
        %9179 = vmatprep.mubr.bf16.mxu0 %v8910
        %9180 = vmatmul.mubr.bf16.gmra.mrb[0].mxu0 %v8909
        %v9181 = vpop.f32.mrb[0].mxu0
        %v9182 = vadd.f32 %v9142, %v9181
        %v9183 = vpop.f32.mrb[0].mxu0
        %v9184 = vpop.f32.mrb[0].mxu0
        %v9185 = vpop.f32.mrb[0].mxu0
        %9186 = vdwg.mxu0
        %v9187 = vadd.f32 %v8841, %v9182
        %vm9188 = vcmask 114688
        %9189 = vst.msk [vmem:[%s476] sm:$0x1] %vm9188, %v9187
        %s9190 = sand.u32 %s315, 1
        %s9191 = scalar_lea.sflag [#allocation7], %s9190
        %s9192 = sand.u32 %s315, 1
        %s9193 = scalar_lea.vmem [#allocation11], %s9192
        // Predicated region
        $region85: #{loc_cnn1_forward.1} parent=71 // pred_check
          %p9194 = pneg %p325
        $region86: #{loc_cnn1_forward.1} parent=71 // pred_check_branch
          %9196 = sbr.rel (%p9194) target = $region88
        $region87: #{loc_cnn1_forward.1} parent=71 // pred_region
          %s9198 = ssub.s32 16, 16
          %9199 = vsyncadd %s9191, %s9198
          %s9200 = smul.addr %s29, 16
          %s9201 = scalar_lea.hbm %s13, %s9200
          %s9203 = sshll.u32 %s9193, 4
          %s9204 = int_to_ptr.vmem [resolvable:$true] %s9203
          %9206 = dma.vmem_to_hbm [thread:$0]  %s9204, 16, %s9201, %s9191
        $region88: #{loc_cnn1_forward.1} parent=71 // pred_fallthru
          _
      $region72: #{loc_cnn1_forward.1} parent=5 // pred_fallthru
        _
      %p9207 = scmp.le.s32.totalorder 2, %s24
      // Predicated region
      $region89: #{loc_cnn1_forward.1} parent=5 // pred_check
        %p9208 = pneg %p9207
      $region90: #{loc_cnn1_forward.1} parent=5 // pred_check_branch
        %9210 = sbr.rel (%p9208) target = $region92
      $region91: #{loc_cnn1_forward.1} parent=5 // pred_region
        %s9211 = ssub.s32 %s24, 2
        // Predicated region
        $region93: #{loc_cnn1_forward.1} parent=91 // pred_check
          %p9212 = pneg %p331
        $region94: #{loc_cnn1_forward.1} parent=91 // pred_check_branch
          %9214 = sbr.rel (%p9212) target = $region96
        $region95: #{loc_cnn1_forward.1} parent=91 // pred_region
          %s9215 = sand.u32 %s316, 1
          %s9216 = scalar_lea.sflag [#allocation7], %s9215
          %s9217 = sand.u32 %s316, 1
          %s9218 = scalar_lea.vmem [#allocation11], %s9217
          %9219 = dma.done %s9216, 16
        $region96: #{loc_cnn1_forward.1} parent=91 // pred_fallthru
          _
      $region92: #{loc_cnn1_forward.1} parent=5 // pred_fallthru
        _
    $region6: #{loc_cnn1_forward.1} parent=1 // loop_footer
      %s28 = sadd.s32 1, %s24
    $region7: #{loc_cnn1_forward.1} parent=1 // loop_footer_branch
      %23 = sbr.rel target = $region3
    $region8: #{loc_cnn1_forward.1} parent=1 // loop_exit
      _
    %9220 = vsyncpa [#allocation6], 1
    %s9221 = scalar_lea.sflag [#allocation6], 1
    %9222 = vsyncpa %s9221, 1
    %9223 = vsyncpa [#allocation9], 1
    %9224 = vsyncpa [#allocation7], 1
    %s9225 = scalar_lea.sflag [#allocation7], 1
    %9226 = vsyncpa %s9225, 1

</llo_original>
